<compile_context>
chip_gen: v6e
topology: v6e:2x2x1
jax: 0.10.0
libtpu: 0.0.40
codegen_flags: <defaults>
</compile_context>

<pallas_src>
import math

import jax
import jax.numpy as jnp
from jax.experimental import pallas as pl
from jax.experimental.pallas import tpu as pltpu

PI = math.acos(0.0) * 2.0  # matches torch.acos(torch.zeros(1)).item() * 2
_VMEM = pltpu.MemorySpace.VMEM

H_LSTM = 64      # PolNetBADGR LSTM hidden size
HP = 128         # lane-aligned padded hidden size (gate blocks at 128-lane offsets)
HEAD_OUT = 128   # packed lane-dense head output width (col 0 = e, cols 1:4 = position)


# ----------------------------------------------------------------------------
# Kernel 1: encoder matmul (im2col patches @ conv weight) + bias + ReLU
# ----------------------------------------------------------------------------
def _conv_mm_relu_kernel(p_ref, w_ref, b_ref, o_ref):
    acc = jnp.dot(p_ref[...], w_ref[...], preferred_element_type=jnp.float32)
    o_ref[...] = jnp.maximum(acc + b_ref[...], 0.0).astype(o_ref.dtype)


# ----------------------------------------------------------------------------
# Kernel 2: fused context (image MLP, action MLP, hoisted W_ih projection)
#           + LSTM recurrence + collision/position heads.
# ----------------------------------------------------------------------------
def _context_recurrence_kernel(feat_ref, w1, b1, w2, b2, w3, b3, w4, b4,
                               act_ref, w5, b5, w6, b6, wih, bih,
                               whh, w79, b79, w810, b810,
                               out_ref, gx_sc):
    f32, bf16 = jnp.float32, jnp.bfloat16
    b_pad = feat_ref.shape[0]
    hp = whh.shape[0]                       # 128 (padded hidden)
    n_steps = gx_sc.shape[0] // b_pad       # T

    def mm(x, w_ref):                       # bf16 MXU matmul, f32 accumulate
        return jnp.dot(x.astype(bf16), w_ref[...], preferred_element_type=f32)

    # ---- image MLP: linear1..linear4 (ReLU on 1..3) ----
    x = jnp.maximum(mm(feat_ref[...], w1) + b1[...], 0.0)
    x = jnp.maximum(mm(x, w2) + b2[...], 0.0)
    x = jnp.maximum(mm(x, w3) + b3[...], 0.0)
    x = mm(x, w4) + b4[...]                             # (B_pad, 2*H) = (B_pad, HP)
    # (h0, c0) = chunk(x, 2, dim=1), zero-padded H -> HP lanes (requires 2*H == HP).
    h_dim = x.shape[1] // 2
    keep = jax.lax.broadcasted_iota(jnp.int32, x.shape, 1) < h_dim
    h = jnp.where(keep, x, 0.0)
    c = jnp.where(keep, pltpu.roll(x, h_dim, axis=1), 0.0)

    # ---- action MLP (linear5,6) + hoisted LSTM input projection (all timesteps) ----
    y = jnp.maximum(mm(act_ref[...], w5) + b5[...], 0.0)
    y = jnp.maximum(mm(y, w6) + b6[...], 0.0)
    gx_sc[...] = mm(y, wih) + bih[...]                  # (T*B_pad, 4*HP) f32

    # ---- recurrence + fused heads; yaw lane mask hoisted out of the loop ----
    yaw_mask = jax.lax.broadcasted_iota(
        jnp.int32, (b_pad, out_ref.shape[1]), 1) == 3

    def step(t, carry):
        h, c = carry
        row = pl.multiple_of(t * b_pad, 8)
        # LSTM step: input projection precomputed; only h @ W_hh is serial.
        gates = gx_sc[pl.ds(row, b_pad), :] + mm(h, whh)
        i = jax.nn.sigmoid(gates[:, 0 * hp:1 * hp])
        f = jax.nn.sigmoid(gates[:, 1 * hp:2 * hp])
        g = jnp.tanh(gates[:, 2 * hp:3 * hp])
        o = jax.nn.sigmoid(gates[:, 3 * hp:4 * hp])
        c = f * c + i * g
        h = o * jnp.tanh(c)
        # Fused heads: [linear7|linear9] then block-diagonal [linear8|linear10],
        # packed lane-dense (col 0 = e, cols 1:4 = position, col 3 = yaw).
        h79 = jnp.maximum(mm(h, w79) + b79[...], 0.0)
        out = mm(h79, w810) + b810[...]
        out = jnp.where(yaw_mask, jnp.tanh(out) * PI, out)     # yaw post-proc
        out_ref[pl.ds(row, b_pad), :] = out
        return h, c

    jax.lax.fori_loop(0, n_steps, step, (h, c), unroll=True)


# ----------------------------------------------------------------------------
# Glue helpers
# ----------------------------------------------------------------------------
def _round_up(x, m):
    return ((x + m - 1) // m) * m


def _im2col_nhwc(x_nhwc, kh, kw, stride, pad):
    x = jnp.pad(x_nhwc, ((0, 0), (pad, pad), (pad, pad), (0, 0)))
    B, H, W, C = x.shape
    oh = (H - kh) // stride + 1
    ow = (W - kw) // stride + 1
    patches = []
    for i in range(kh):
        for j in range(kw):
            patches.append(
                x[:, i:i + stride * oh:stride, j:j + stride * ow:stride, :])
    p = jnp.stack(patches, axis=3)                     # (B, oh, ow, kh*kw, C)
    return p.reshape(B, oh, ow, kh * kw * C), oh, ow


def _pad_gate_cols(w, h, hp):
    """(in, 4*h) -> (in, 4*hp): each PyTorch gate block (i,f,g,o) placed at a
    hp-lane-aligned offset; padded lanes are zero."""
    fin = w.shape[0]
    wg = w.reshape(fin, 4, h)
    wg = jnp.pad(wg, ((0, 0), (0, 0), (0, hp - h)))
    return wg.reshape(fin, 4 * hp)


def _conv_encoder(image_bpad_nchw, conv_w, conv_b):
    """Stand-in encoder: Conv2d(3x3, s=2, p=1) + ReLU via im2col + Pallas matmul.
    K and OC are padded to 128 for unmasked loads / lane-dense stores."""
    # TODO(synk): for production image sizes the im2col gather should live
    # inside the kernel (pl.ANY HBM ref + strided reads) to avoid ~9x traffic.
    bf16 = jnp.bfloat16
    b_pad = image_bpad_nchw.shape[0]
    oc = conv_b.shape[1]
    oc_pad = _round_up(oc, 128)
    x_nhwc = jnp.transpose(image_bpad_nchw, (0, 2, 3, 1)).astype(bf16)
    patches, oh, ow = _im2col_nhwc(x_nhwc, 3, 3, stride=2, pad=1)
    K = patches.shape[-1]
    k_pad = _round_up(K, 128)
    M = b_pad * oh * ow
    p = jnp.pad(patches.reshape(M, K), ((0, 0), (0, k_pad - K)))
    w = jnp.pad(conv_w, ((0, k_pad - K), (0, oc_pad - oc))).astype(bf16)
    b = jnp.pad(conv_b, ((0, 0), (0, oc_pad - oc)))

    tile_m = 128                      # M = B_pad*64 >= 512 -> grid >= 4 steps
    while M % tile_m:
        tile_m //= 2

    enc = pl.pallas_call(
        _conv_mm_relu_kernel,
        out_shape=jax.ShapeDtypeStruct((M, oc_pad), bf16),
        grid=(M // tile_m,),
        in_specs=[
            pl.BlockSpec((tile_m, k_pad), lambda m: (m, 0)),
            pl.BlockSpec((k_pad, oc_pad), lambda m: (0, 0)),
            pl.BlockSpec((1, oc_pad), lambda m: (0, 0)),
        ],
        out_specs=pl.BlockSpec((tile_m, oc_pad), lambda m: (m, 0)),
        compiler_params=pltpu.CompilerParams(
            dimension_semantics=("parallel",)),
    )(p, w, b)
    # Flatten order (OH, OW, OC) -- consistent with synthetic linear1 weights.
    return enc.reshape(b_pad, oh * ow, oc_pad)[:, :, :oc].reshape(
        b_pad, oh * ow * oc)


# ----------------------------------------------------------------------------
# Parameter init (deterministic, PyTorch-Linear-style uniform(+-1/sqrt(fan_in)))
# ----------------------------------------------------------------------------
def _linear(key, fan_in, fan_out):
    kw, kb = jax.random.split(key)
    bound = 1.0 / math.sqrt(fan_in)
    w = jax.random.uniform(kw, (fan_in, fan_out), jnp.float32, -bound, bound)
    b = jax.random.uniform(kb, (1, fan_out), jnp.float32, -bound, bound)
    return w, b


def init_params(key, in_channels, enc_out_channels, enc_feat_dim):
    keys = iter(jax.random.split(key, 16))
    p = {}
    p["conv_w"], p["conv_b"] = _linear(next(keys), 3 * 3 * in_channels, enc_out_channels)
    p["w1"], p["b1"] = _linear(next(keys), enc_feat_dim, 256)
    p["w2"], p["b2"] = _linear(next(keys), 256, 256)
    p["w3"], p["b3"] = _linear(next(keys), 256, 128)
    p["w4"], p["b4"] = _linear(next(keys), 128, 128)
    p["w5"], p["b5"] = _linear(next(keys), 2, 16)
    p["w6"], p["b6"] = _linear(next(keys), 16, 16)
    p["w7"], p["b7"] = _linear(next(keys), 64, 32)
    p["w8"], p["b8"] = _linear(next(keys), 32, 1)
    p["w9"], p["b9"] = _linear(next(keys), 64, 32)
    p["w10"], p["b10"] = _linear(next(keys), 32, 3)
    # LSTM: input 16, hidden 64 -> gates 256 (PyTorch gate order i,f,g,o);
    # b_ih and b_hh summed.
    wih, bih = _linear(next(keys), 16, 256)
    whh, bhh = _linear(next(keys), 64, 256)
    p["lstm_wih"], p["lstm_whh"] = wih, whh
    p["lstm_b"] = bih + bhh
    return p


# ----------------------------------------------------------------------------
# Forward pass (mirrors PolNetBADGR.forward)
# ----------------------------------------------------------------------------
def polnet_badgr_forward(params, image_nchw, action):
    assert 2 * H_LSTM == HP, "gate packing / (h0,c0) split require 2*H_LSTM == HP"
    f32, bf16 = jnp.float32, jnp.bfloat16
    B, T, _ = action.shape
    B_pad = _round_up(B, 8)
    H = H_LSTM

    # --- encoder (Pallas kernel 1) on batch-padded images ---
    img = jnp.zeros((B_pad,) + image_nchw.shape[1:], f32).at[:B].set(
        image_nchw.astype(f32))
    feat = _conv_encoder(img, params["conv_w"], params["conv_b"])   # (B_pad, F) bf16

    # --- action, time-major rows (row = t*B_pad + b), lane-padded to 128 ---
    ACT_PAD = 128
    act_tm = jnp.zeros((T, B_pad, ACT_PAD), bf16)
    act_tm = act_tm.at[:, :B, :2].set(jnp.transpose(action, (1, 0, 2)).astype(bf16))
    act_tm = act_tm.reshape(T * B_pad, ACT_PAD)
    w5p = jnp.pad(params["w5"], ((0, ACT_PAD - params["w5"].shape[0]), (0, 0)))

    # --- lane-aligned padded LSTM weights & packed head weights (tiny glue) ---
    wih_pad = _pad_gate_cols(params["lstm_wih"], H, HP).astype(bf16)     # (16, 4*HP)
    whh_pad = jnp.pad(_pad_gate_cols(params["lstm_whh"], H, HP),
                      ((0, HP - H), (0, 0))).astype(bf16)                # (HP, 4*HP)
    bih_pad = _pad_gate_cols(params["lstm_b"], H, HP)                    # (1, 4*HP)

    w79 = jnp.zeros((HP, 64), f32)
    w79 = w79.at[:H, :32].set(params["w7"]).at[:H, 32:].set(params["w9"]).astype(bf16)
    b79 = jnp.concatenate([params["b7"], params["b9"]], axis=1)          # (1, 64)
    w810 = jnp.zeros((64, HEAD_OUT), f32)
    w810 = w810.at[:32, 0:1].set(params["w8"]).at[32:, 1:4].set(
        params["w10"]).astype(bf16)
    b810 = jnp.zeros((1, HEAD_OUT), f32)
    b810 = b810.at[:, 0:1].set(params["b8"]).at[:, 1:4].set(params["b10"])

    # --- fused context + LSTM recurrence + heads (Pallas kernel 2, one call) ---
    out_tm = pl.pallas_call(
        _context_recurrence_kernel,
        out_shape=jax.ShapeDtypeStruct((T * B_pad, HEAD_OUT), f32),
        in_specs=[pl.BlockSpec(memory_space=_VMEM)] * 21,
        out_specs=pl.BlockSpec(memory_space=_VMEM),
        scratch_shapes=[pltpu.VMEM((T * B_pad, 4 * HP), f32)],
    )(feat,
      params["w1"].astype(bf16), params["b1"],
      params["w2"].astype(bf16), params["b2"],
      params["w3"].astype(bf16), params["b3"],
      params["w4"].astype(bf16), params["b4"],
      act_tm,
      w5p.astype(bf16), params["b5"],
      params["w6"].astype(bf16), params["b6"],
      wih_pad, bih_pad,
      whh_pad, w79, b79, w810, b810)

    out = jnp.transpose(out_tm.reshape(T, B_pad, HEAD_OUT)[:, :B, :], (1, 0, 2))
    e = out[:, :, 0:1]
    position = out[:, :, 1:4]
    # e_col and e_bumpy share linear7/linear8 in the reference -> same values.
    return e, position, e


# ----------------------------------------------------------------------------
if __name__ == "__main__":
    key = jax.random.PRNGKey(0)
    k_img, k_act, k_par = jax.random.split(key, 3)

    B, C, Him, Wim = 2, 4, 16, 16         # image NCHW (small synthetic shapes)
    T = 8                                 # action timesteps
    OC = 8                                # stand-in encoder output channels
    OH = OW = (Him + 2 * 1 - 3) // 2 + 1  # conv 3x3, stride 2, pad 1  -> 8
    enc_feat_dim = OH * OW * OC           # 512

    image = jax.random.normal(k_img, (B, C, Him, Wim), jnp.float32)
    action = jax.random.normal(k_act, (B, T, 2), jnp.float32)
    params = init_params(k_par, C, OC, enc_feat_dim)

    fwd = jax.jit(polnet_badgr_forward)
    e_col, position, e_bumpy = fwd(params, image, action)
    jax.block_until_ready((e_col, position, e_bumpy))

    assert e_col.shape == (B, T, 1)
    assert position.shape == (B, T, 3)
    assert e_bumpy.shape == (B, T, 1)
    assert bool(jnp.all(jnp.isfinite(e_col)))
    assert bool(jnp.all(jnp.isfinite(position)))
    print("KERNEL_OK")
</pallas_src>

<mosaic_0001>
module attributes {stable_mosaic.version = 11 : i64} {
  func.func @_conv_mm_relu_kernel(%arg0: i32, %arg1: memref<128x128xbf16, #tpu.memory_space<vmem>>, %arg2: memref<128x128xbf16, #tpu.memory_space<vmem>>, %arg3: memref<1x128xf32, #tpu.memory_space<vmem>>, %arg4: memref<128x128xbf16, #tpu.memory_space<vmem>>) attributes {dimension_semantics = [#tpu.dimension_semantics<parallel>], iteration_bounds = array<i64: 4>, scalar_prefetch = 0 : i64, scratch_operands = 0 : i64, tpu.core_type = #tpu.core_type<tc>, window_params = [{transform_indices = @transform_0, window_bounds = array<i64: 128, 128>}, {pipeline_mode = #tpu.pipeline_mode<synchronous>, transform_indices = @transform_1, window_bounds = array<i64: 128, 128>}, {pipeline_mode = #tpu.pipeline_mode<synchronous>, transform_indices = @transform_2, window_bounds = array<i64: 1, 128>}, {transform_indices = @transform_3, window_bounds = array<i64: 128, 128>}]} {
    %c0 = arith.constant 0 : index
    %c0_0 = arith.constant 0 : index
    %0 = vector.load %arg1[%c0, %c0_0] : memref<128x128xbf16, #tpu.memory_space<vmem>>, vector<128x128xbf16>
    %c0_1 = arith.constant 0 : index
    %c0_2 = arith.constant 0 : index
    %1 = vector.load %arg2[%c0_1, %c0_2] : memref<128x128xbf16, #tpu.memory_space<vmem>>, vector<128x128xbf16>
    %cst = arith.constant dense<0.000000e+00> : vector<128x128xf32>
    %2 = tpu.matmul %0, %1, %cst {dimension_numbers = #tpu.dot_dimension_numbers<[1], [0], [0], [1], [0, 0, 1, 1], [], []>} : vector<128x128xbf16>, vector<128x128xbf16>, vector<128x128xf32> -> vector<128x128xf32>
    %c0_3 = arith.constant 0 : index
    %c0_4 = arith.constant 0 : index
    %3 = vector.load %arg3[%c0_3, %c0_4] : memref<1x128xf32, #tpu.memory_space<vmem>>, vector<1x128xf32>
    %4 = vector.broadcast %3 : vector<1x128xf32> to vector<128x128xf32>
    %5 = arith.addf %2, %4 : vector<128x128xf32>
    %cst_5 = arith.constant 0.000000e+00 : f32
    %6 = vector.broadcast %cst_5 : f32 to vector<128x128xf32>
    %7 = arith.maximumf %5, %6 : vector<128x128xf32>
    %8 = arith.truncf %7 : vector<128x128xf32> to vector<128x128xbf16>
    %c0_6 = arith.constant 0 : index
    %c0_7 = arith.constant 0 : index
    %9 = vector.load %arg4[%c0_6, %c0_7] : memref<128x128xbf16, #tpu.memory_space<vmem>>, vector<128x128xbf16>
    tpu.vector_store %arg4[%c0_6, %c0_7], %8 {strides = array<i32>} : memref<128x128xbf16, #tpu.memory_space<vmem>>, vector<128x128xbf16>,
    return
  }
  func.func @transform_0(%arg0: i32) -> (i32, i32) {
    %c0_i32 = arith.constant 0 : i32
    %c0_i32_0 = arith.constant 0 : i32
    return %arg0, %c0_i32 : i32, i32
  }
  func.func @transform_1(%arg0: i32) -> (i32, i32) {
    %c0_i32 = arith.constant 0 : i32
    %c0_i32_0 = arith.constant 0 : i32
    %c0_i32_1 = arith.constant 0 : i32
    return %c0_i32, %c0_i32_0 : i32, i32
  }
  func.func @transform_2(%arg0: i32) -> (i32, i32) {
    %c0_i32 = arith.constant 0 : i32
    %c0_i32_0 = arith.constant 0 : i32
    %c0_i32_1 = arith.constant 0 : i32
    return %c0_i32, %c0_i32_0 : i32, i32
  }
  func.func @transform_3(%arg0: i32) -> (i32, i32) {
    %c0_i32 = arith.constant 0 : i32
    %c0_i32_0 = arith.constant 0 : i32
    return %arg0, %c0_i32 : i32, i32
  }
}

module attributes {stable_mosaic.version = 11 : i64} {
  func.func @_context_recurrence_kernel(%arg0: memref<8x512xbf16, #tpu.memory_space<vmem>>, %arg1: memref<512x256xbf16, #tpu.memory_space<vmem>>, %arg2: memref<1x256xf32, #tpu.memory_space<vmem>>, %arg3: memref<256x256xbf16, #tpu.memory_space<vmem>>, %arg4: memref<1x256xf32, #tpu.memory_space<vmem>>, %arg5: memref<256x128xbf16, #tpu.memory_space<vmem>>, %arg6: memref<1x128xf32, #tpu.memory_space<vmem>>, %arg7: memref<128x128xbf16, #tpu.memory_space<vmem>>, %arg8: memref<1x128xf32, #tpu.memory_space<vmem>>, %arg9: memref<64x128xbf16, #tpu.memory_space<vmem>>, %arg10: memref<128x16xbf16, #tpu.memory_space<vmem>>, %arg11: memref<1x16xf32, #tpu.memory_space<vmem>>, %arg12: memref<16x16xbf16, #tpu.memory_space<vmem>>, %arg13: memref<1x16xf32, #tpu.memory_space<vmem>>, %arg14: memref<16x512xbf16, #tpu.memory_space<vmem>>, %arg15: memref<1x512xf32, #tpu.memory_space<vmem>>, %arg16: memref<128x512xbf16, #tpu.memory_space<vmem>>, %arg17: memref<128x64xbf16, #tpu.memory_space<vmem>>, %arg18: memref<1x64xf32, #tpu.memory_space<vmem>>, %arg19: memref<64x128xbf16, #tpu.memory_space<vmem>>, %arg20: memref<1x128xf32, #tpu.memory_space<vmem>>, %arg21: memref<64x128xf32, #tpu.memory_space<vmem>>, %arg22: memref<64x512xf32, #tpu.memory_space<vmem>>) attributes {dimension_semantics = [], scalar_prefetch = 0 : i64, scratch_operands = 1 : i64, tpu.core_type = #tpu.core_type<tc>} {
    %c0 = arith.constant 0 : index
    %c0_0 = arith.constant 0 : index
    %0 = vector.load %arg0[%c0, %c0_0] : memref<8x512xbf16, #tpu.memory_space<vmem>>, vector<8x512xbf16>
    %c0_1 = arith.constant 0 : index
    %c0_2 = arith.constant 0 : index
    %1 = vector.load %arg1[%c0_1, %c0_2] : memref<512x256xbf16, #tpu.memory_space<vmem>>, vector<512x256xbf16>
    %cst = arith.constant dense<0.000000e+00> : vector<8x256xf32>
    %2 = tpu.matmul %0, %1, %cst {dimension_numbers = #tpu.dot_dimension_numbers<[1], [0], [0], [1], [0, 0, 1, 1], [], []>} : vector<8x512xbf16>, vector<512x256xbf16>, vector<8x256xf32> -> vector<8x256xf32>
    %c0_3 = arith.constant 0 : index
    %c0_4 = arith.constant 0 : index
    %3 = vector.load %arg2[%c0_3, %c0_4] : memref<1x256xf32, #tpu.memory_space<vmem>>, vector<1x256xf32>
    %4 = vector.broadcast %3 : vector<1x256xf32> to vector<8x256xf32>
    %5 = arith.addf %2, %4 : vector<8x256xf32>
    %cst_5 = arith.constant 0.000000e+00 : f32
    %6 = vector.broadcast %cst_5 : f32 to vector<8x256xf32>
    %7 = arith.maximumf %5, %6 : vector<8x256xf32>
    %8 = arith.truncf %7 : vector<8x256xf32> to vector<8x256xbf16>
    %c0_6 = arith.constant 0 : index
    %c0_7 = arith.constant 0 : index
    %9 = vector.load %arg3[%c0_6, %c0_7] : memref<256x256xbf16, #tpu.memory_space<vmem>>, vector<256x256xbf16>
    %cst_8 = arith.constant dense<0.000000e+00> : vector<8x256xf32>
    %10 = tpu.matmul %8, %9, %cst_8 {dimension_numbers = #tpu.dot_dimension_numbers<[1], [0], [0], [1], [0, 0, 1, 1], [], []>} : vector<8x256xbf16>, vector<256x256xbf16>, vector<8x256xf32> -> vector<8x256xf32>
    %c0_9 = arith.constant 0 : index
    %c0_10 = arith.constant 0 : index
    %11 = vector.load %arg4[%c0_9, %c0_10] : memref<1x256xf32, #tpu.memory_space<vmem>>, vector<1x256xf32>
    %12 = vector.broadcast %11 : vector<1x256xf32> to vector<8x256xf32>
    %13 = arith.addf %10, %12 : vector<8x256xf32>
    %cst_11 = arith.constant 0.000000e+00 : f32
    %14 = vector.broadcast %cst_11 : f32 to vector<8x256xf32>
    %15 = arith.maximumf %13, %14 : vector<8x256xf32>
    %16 = arith.truncf %15 : vector<8x256xf32> to vector<8x256xbf16>
    %c0_12 = arith.constant 0 : index
    %c0_13 = arith.constant 0 : index
    %17 = vector.load %arg5[%c0_12, %c0_13] : memref<256x128xbf16, #tpu.memory_space<vmem>>, vector<256x128xbf16>
    %cst_14 = arith.constant dense<0.000000e+00> : vector<8x128xf32>
    %18 = tpu.matmul %16, %17, %cst_14 {dimension_numbers = #tpu.dot_dimension_numbers<[1], [0], [0], [1], [0, 0, 1, 1], [], []>} : vector<8x256xbf16>, vector<256x128xbf16>, vector<8x128xf32> -> vector<8x128xf32>
    %c0_15 = arith.constant 0 : index
    %c0_16 = arith.constant 0 : index
    %19 = vector.load %arg6[%c0_15, %c0_16] : memref<1x128xf32, #tpu.memory_space<vmem>>, vector<1x128xf32>
    %20 = vector.broadcast %19 : vector<1x128xf32> to vector<8x128xf32>
    %21 = arith.addf %18, %20 : vector<8x128xf32>
    %cst_17 = arith.constant 0.000000e+00 : f32
    %22 = vector.broadcast %cst_17 : f32 to vector<8x128xf32>
    %23 = arith.maximumf %21, %22 : vector<8x128xf32>
    %24 = arith.truncf %23 : vector<8x128xf32> to vector<8x128xbf16>
    %c0_18 = arith.constant 0 : index
    %c0_19 = arith.constant 0 : index
    %25 = vector.load %arg7[%c0_18, %c0_19] : memref<128x128xbf16, #tpu.memory_space<vmem>>, vector<128x128xbf16>
    %cst_20 = arith.constant dense<0.000000e+00> : vector<8x128xf32>
    %26 = tpu.matmul %24, %25, %cst_20 {dimension_numbers = #tpu.dot_dimension_numbers<[1], [0], [0], [1], [0, 0, 1, 1], [], []>} : vector<8x128xbf16>, vector<128x128xbf16>, vector<8x128xf32> -> vector<8x128xf32>
    %c0_21 = arith.constant 0 : index
    %c0_22 = arith.constant 0 : index
    %27 = vector.load %arg8[%c0_21, %c0_22] : memref<1x128xf32, #tpu.memory_space<vmem>>, vector<1x128xf32>
    %28 = vector.broadcast %27 : vector<1x128xf32> to vector<8x128xf32>
    %29 = arith.addf %26, %28 : vector<8x128xf32>
    %30 = tpu.iota {dimensions = array<i32: 1>} : vector<8x128xi32>
    %c64_i32 = arith.constant 64 : i32
    %31 = vector.broadcast %c64_i32 : i32 to vector<8x128xi32>
    %32 = arith.cmpi slt, %30, %31 : vector<8x128xi32>
    %cst_23 = arith.constant 0.000000e+00 : f32
    %33 = vector.broadcast %cst_23 : f32 to vector<8x128xf32>
    %34 = arith.select %32, %29, %33 : vector<8x128xi1>, vector<8x128xf32>
    %c64_i32_24 = arith.constant 64 : i32
    %35 = tpu.dynamic_rotate %29 by %c64_i32_24 dim 1 : vector<8x128xf32>, i32 -> vector<8x128xf32>
    %cst_25 = arith.constant 0.000000e+00 : f32
    %36 = vector.broadcast %cst_25 : f32 to vector<8x128xf32>
    %37 = arith.select %32, %35, %36 : vector<8x128xi1>, vector<8x128xf32>
    %c0_26 = arith.constant 0 : index
    %c0_27 = arith.constant 0 : index
    %38 = vector.load %arg9[%c0_26, %c0_27] : memref<64x128xbf16, #tpu.memory_space<vmem>>, vector<64x128xbf16>
    %c0_28 = arith.constant 0 : index
    %c0_29 = arith.constant 0 : index
    %39 = vector.load %arg10[%c0_28, %c0_29] : memref<128x16xbf16, #tpu.memory_space<vmem>>, vector<128x16xbf16>
    %cst_30 = arith.constant dense<0.000000e+00> : vector<64x16xf32>
    %40 = tpu.matmul %38, %39, %cst_30 {dimension_numbers = #tpu.dot_dimension_numbers<[1], [0], [0], [1], [0, 0, 1, 1], [], []>} : vector<64x128xbf16>, vector<128x16xbf16>, vector<64x16xf32> -> vector<64x16xf32>
    %c0_31 = arith.constant 0 : index
    %c0_32 = arith.constant 0 : index
    %41 = vector.load %arg11[%c0_31, %c0_32] : memref<1x16xf32, #tpu.memory_space<vmem>>, vector<1x16xf32>
    %42 = vector.broadcast %41 : vector<1x16xf32> to vector<64x16xf32>
    %43 = arith.addf %40, %42 : vector<64x16xf32>
    %cst_33 = arith.constant 0.000000e+00 : f32
    %44 = vector.broadcast %cst_33 : f32 to vector<64x16xf32>
    %45 = arith.maximumf %43, %44 : vector<64x16xf32>
    %46 = arith.truncf %45 : vector<64x16xf32> to vector<64x16xbf16>
    %c0_34 = arith.constant 0 : index
    %c0_35 = arith.constant 0 : index
    %47 = vector.load %arg12[%c0_34, %c0_35] : memref<16x16xbf16, #tpu.memory_space<vmem>>, vector<16x16xbf16>
    %cst_36 = arith.constant dense<0.000000e+00> : vector<64x16xf32>
    %48 = tpu.matmul %46, %47, %cst_36 {dimension_numbers = #tpu.dot_dimension_numbers<[1], [0], [0], [1], [0, 0, 1, 1], [], []>} : vector<64x16xbf16>, vector<16x16xbf16>, vector<64x16xf32> -> vector<64x16xf32>
    %c0_37 = arith.constant 0 : index
    %c0_38 = arith.constant 0 : index
    %49 = vector.load %arg13[%c0_37, %c0_38] : memref<1x16xf32, #tpu.memory_space<vmem>>, vector<1x16xf32>
    %50 = vector.broadcast %49 : vector<1x16xf32> to vector<64x16xf32>
    %51 = arith.addf %48, %50 : vector<64x16xf32>
    %cst_39 = arith.constant 0.000000e+00 : f32
    %52 = vector.broadcast %cst_39 : f32 to vector<64x16xf32>
    %53 = arith.maximumf %51, %52 : vector<64x16xf32>
    %54 = arith.truncf %53 : vector<64x16xf32> to vector<64x16xbf16>
    %c0_40 = arith.constant 0 : index
    %c0_41 = arith.constant 0 : index
    %55 = vector.load %arg14[%c0_40, %c0_41] : memref<16x512xbf16, #tpu.memory_space<vmem>>, vector<16x512xbf16>
    %cst_42 = arith.constant dense<0.000000e+00> : vector<64x512xf32>
    %56 = tpu.matmul %54, %55, %cst_42 {dimension_numbers = #tpu.dot_dimension_numbers<[1], [0], [0], [1], [0, 0, 1, 1], [], []>} : vector<64x16xbf16>, vector<16x512xbf16>, vector<64x512xf32> -> vector<64x512xf32>
    %c0_43 = arith.constant 0 : index
    %c0_44 = arith.constant 0 : index
    %57 = vector.load %arg15[%c0_43, %c0_44] : memref<1x512xf32, #tpu.memory_space<vmem>>, vector<1x512xf32>
    %58 = vector.broadcast %57 : vector<1x512xf32> to vector<64x512xf32>
    %59 = arith.addf %56, %58 : vector<64x512xf32>
    %c0_45 = arith.constant 0 : index
    %c0_46 = arith.constant 0 : index
    %60 = vector.load %arg22[%c0_45, %c0_46] : memref<64x512xf32, #tpu.memory_space<vmem>>, vector<64x512xf32>
    tpu.vector_store %arg22[%c0_45, %c0_46], %59 {strides = array<i32>} : memref<64x512xf32, #tpu.memory_space<vmem>>, vector<64x512xf32>,
    %61 = tpu.iota {dimensions = array<i32: 1>} : vector<8x128xi32>
    %c3_i32 = arith.constant 3 : i32
    %62 = vector.broadcast %c3_i32 : i32 to vector<8x128xi32>
    %63 = arith.cmpi eq, %61, %62 : vector<8x128xi32>
    %c0_i32 = arith.constant 0 : i32
    %c8_i32 = arith.constant 8 : i32
    %64 = arith.muli %c0_i32, %c8_i32 : i32
    %65 = tpu.assume_multiple %64, 8 : i32
    %66 = arith.index_cast %65 : i32 to index
    %c0_47 = arith.constant 0 : index
    %67 = vector.load %arg22[%66, %c0_47] : memref<64x512xf32, #tpu.memory_space<vmem>>, vector<8x512xf32>
    %68 = arith.truncf %34 : vector<8x128xf32> to vector<8x128xbf16>
    %c0_48 = arith.constant 0 : index
    %c0_49 = arith.constant 0 : index
    %69 = vector.load %arg16[%c0_48, %c0_49] : memref<128x512xbf16, #tpu.memory_space<vmem>>, vector<128x512xbf16>
    %cst_50 = arith.constant dense<0.000000e+00> : vector<8x512xf32>
    %70 = tpu.matmul %68, %69, %cst_50 {dimension_numbers = #tpu.dot_dimension_numbers<[1], [0], [0], [1], [0, 0, 1, 1], [], []>} : vector<8x128xbf16>, vector<128x512xbf16>, vector<8x512xf32> -> vector<8x512xf32>
    %71 = arith.addf %67, %70 : vector<8x512xf32>
    %72 = vector.extract_strided_slice %71 {offsets = [0, 0], sizes = [8, 128], strides = [1, 1]} : vector<8x512xf32> to vector<8x128xf32>
    %73 = arith.negf %72 : vector<8x128xf32>
    %74 = math.exp %73 : vector<8x128xf32>
    %cst_51 = arith.constant 1.000000e+00 : f32
    %75 = vector.broadcast %cst_51 : f32 to vector<8x128xf32>
    %76 = arith.addf %75, %74 : vector<8x128xf32>
    %77 = arith.divf %75, %76 : vector<8x128xf32>
    %78 = vector.extract_strided_slice %71 {offsets = [0, 128], sizes = [8, 128], strides = [1, 1]} : vector<8x512xf32> to vector<8x128xf32>
    %79 = arith.negf %78 : vector<8x128xf32>
    %80 = math.exp %79 : vector<8x128xf32>
    %cst_52 = arith.constant 1.000000e+00 : f32
    %81 = vector.broadcast %cst_52 : f32 to vector<8x128xf32>
    %82 = arith.addf %81, %80 : vector<8x128xf32>
    %83 = arith.divf %81, %82 : vector<8x128xf32>
    %84 = vector.extract_strided_slice %71 {offsets = [0, 256], sizes = [8, 128], strides = [1, 1]} : vector<8x512xf32> to vector<8x128xf32>
    %85 = math.tanh %84 : vector<8x128xf32>
    %86 = vector.extract_strided_slice %71 {offsets = [0, 384], sizes = [8, 128], strides = [1, 1]} : vector<8x512xf32> to vector<8x128xf32>
    %87 = arith.negf %86 : vector<8x128xf32>
    %88 = math.exp %87 : vector<8x128xf32>
    %cst_53 = arith.constant 1.000000e+00 : f32
    %89 = vector.broadcast %cst_53 : f32 to vector<8x128xf32>
    %90 = arith.addf %89, %88 : vector<8x128xf32>
    %91 = arith.divf %89, %90 : vector<8x128xf32>
    %92 = arith.mulf %83, %37 : vector<8x128xf32>
    %93 = arith.mulf %77, %85 : vector<8x128xf32>
    %94 = arith.addf %92, %93 : vector<8x128xf32>
    %95 = math.tanh %94 : vector<8x128xf32>
    %96 = arith.mulf %91, %95 : vector<8x128xf32>
    %97 = arith.truncf %96 : vector<8x128xf32> to vector<8x128xbf16>
    %c0_54 = arith.constant 0 : index
    %c0_55 = arith.constant 0 : index
    %98 = vector.load %arg17[%c0_54, %c0_55] : memref<128x64xbf16, #tpu.memory_space<vmem>>, vector<128x64xbf16>
    %cst_56 = arith.constant dense<0.000000e+00> : vector<8x64xf32>
    %99 = tpu.matmul %97, %98, %cst_56 {dimension_numbers = #tpu.dot_dimension_numbers<[1], [0], [0], [1], [0, 0, 1, 1], [], []>} : vector<8x128xbf16>, vector<128x64xbf16>, vector<8x64xf32> -> vector<8x64xf32>
    %c0_57 = arith.constant 0 : index
    %c0_58 = arith.constant 0 : index
    %100 = vector.load %arg18[%c0_57, %c0_58] : memref<1x64xf32, #tpu.memory_space<vmem>>, vector<1x64xf32>
    %101 = vector.broadcast %100 : vector<1x64xf32> to vector<8x64xf32>
    %102 = arith.addf %99, %101 : vector<8x64xf32>
    %cst_59 = arith.constant 0.000000e+00 : f32
    %103 = vector.broadcast %cst_59 : f32 to vector<8x64xf32>
    %104 = arith.maximumf %102, %103 : vector<8x64xf32>
    %105 = arith.truncf %104 : vector<8x64xf32> to vector<8x64xbf16>
    %c0_60 = arith.constant 0 : index
    %c0_61 = arith.constant 0 : index
    %106 = vector.load %arg19[%c0_60, %c0_61] : memref<64x128xbf16, #tpu.memory_space<vmem>>, vector<64x128xbf16>
    %cst_62 = arith.constant dense<0.000000e+00> : vector<8x128xf32>
    %107 = tpu.matmul %105, %106, %cst_62 {dimension_numbers = #tpu.dot_dimension_numbers<[1], [0], [0], [1], [0, 0, 1, 1], [], []>} : vector<8x64xbf16>, vector<64x128xbf16>, vector<8x128xf32> -> vector<8x128xf32>
    %c0_63 = arith.constant 0 : index
    %c0_64 = arith.constant 0 : index
    %108 = vector.load %arg20[%c0_63, %c0_64] : memref<1x128xf32, #tpu.memory_space<vmem>>, vector<1x128xf32>
    %109 = vector.broadcast %108 : vector<1x128xf32> to vector<8x128xf32>
    %110 = arith.addf %107, %109 : vector<8x128xf32>
    %111 = math.tanh %110 : vector<8x128xf32>
    %cst_65 = arith.constant 3.14159274 : f32
    %112 = vector.broadcast %cst_65 : f32 to vector<8x128xf32>
    %113 = arith.mulf %111, %112 : vector<8x128xf32>
    %114 = arith.select %63, %113, %110 : vector<8x128xi1>, vector<8x128xf32>
    %115 = arith.index_cast %65 : i32 to index
    %c0_66 = arith.constant 0 : index
    %116 = vector.load %arg21[%115, %c0_66] : memref<64x128xf32, #tpu.memory_space<vmem>>, vector<8x128xf32>
    tpu.vector_store %arg21[%115, %c0_66], %114 {strides = array<i32>} : memref<64x128xf32, #tpu.memory_space<vmem>>, vector<8x128xf32>,
    %c1_i32 = arith.constant 1 : i32
    %c8_i32_67 = arith.constant 8 : i32
    %117 = arith.muli %c1_i32, %c8_i32_67 : i32
    %118 = tpu.assume_multiple %117, 8 : i32
    %119 = arith.index_cast %118 : i32 to index
    %c0_68 = arith.constant 0 : index
    %120 = vector.load %arg22[%119, %c0_68] : memref<64x512xf32, #tpu.memory_space<vmem>>, vector<8x512xf32>
    %121 = arith.truncf %96 : vector<8x128xf32> to vector<8x128xbf16>
    %c0_69 = arith.constant 0 : index
    %c0_70 = arith.constant 0 : index
    %122 = vector.load %arg16[%c0_69, %c0_70] : memref<128x512xbf16, #tpu.memory_space<vmem>>, vector<128x512xbf16>
    %cst_71 = arith.constant dense<0.000000e+00> : vector<8x512xf32>
    %123 = tpu.matmul %121, %122, %cst_71 {dimension_numbers = #tpu.dot_dimension_numbers<[1], [0], [0], [1], [0, 0, 1, 1], [], []>} : vector<8x128xbf16>, vector<128x512xbf16>, vector<8x512xf32> -> vector<8x512xf32>
    %124 = arith.addf %120, %123 : vector<8x512xf32>
    %125 = vector.extract_strided_slice %124 {offsets = [0, 0], sizes = [8, 128], strides = [1, 1]} : vector<8x512xf32> to vector<8x128xf32>
    %126 = arith.negf %125 : vector<8x128xf32>
    %127 = math.exp %126 : vector<8x128xf32>
    %cst_72 = arith.constant 1.000000e+00 : f32
    %128 = vector.broadcast %cst_72 : f32 to vector<8x128xf32>
    %129 = arith.addf %128, %127 : vector<8x128xf32>
    %130 = arith.divf %128, %129 : vector<8x128xf32>
    %131 = vector.extract_strided_slice %124 {offsets = [0, 128], sizes = [8, 128], strides = [1, 1]} : vector<8x512xf32> to vector<8x128xf32>
    %132 = arith.negf %131 : vector<8x128xf32>
    %133 = math.exp %132 : vector<8x128xf32>
    %cst_73 = arith.constant 1.000000e+00 : f32
    %134 = vector.broadcast %cst_73 : f32 to vector<8x128xf32>
    %135 = arith.addf %134, %133 : vector<8x128xf32>
    %136 = arith.divf %134, %135 : vector<8x128xf32>
    %137 = vector.extract_strided_slice %124 {offsets = [0, 256], sizes = [8, 128], strides = [1, 1]} : vector<8x512xf32> to vector<8x128xf32>
    %138 = math.tanh %137 : vector<8x128xf32>
    %139 = vector.extract_strided_slice %124 {offsets = [0, 384], sizes = [8, 128], strides = [1, 1]} : vector<8x512xf32> to vector<8x128xf32>
    %140 = arith.negf %139 : vector<8x128xf32>
    %141 = math.exp %140 : vector<8x128xf32>
    %cst_74 = arith.constant 1.000000e+00 : f32
    %142 = vector.broadcast %cst_74 : f32 to vector<8x128xf32>
    %143 = arith.addf %142, %141 : vector<8x128xf32>
    %144 = arith.divf %142, %143 : vector<8x128xf32>
    %145 = arith.mulf %136, %94 : vector<8x128xf32>
    %146 = arith.mulf %130, %138 : vector<8x128xf32>
    %147 = arith.addf %145, %146 : vector<8x128xf32>
    %148 = math.tanh %147 : vector<8x128xf32>
    %149 = arith.mulf %144, %148 : vector<8x128xf32>
    %150 = arith.truncf %149 : vector<8x128xf32> to vector<8x128xbf16>
    %c0_75 = arith.constant 0 : index
    %c0_76 = arith.constant 0 : index
    %151 = vector.load %arg17[%c0_75, %c0_76] : memref<128x64xbf16, #tpu.memory_space<vmem>>, vector<128x64xbf16>
    %cst_77 = arith.constant dense<0.000000e+00> : vector<8x64xf32>
    %152 = tpu.matmul %150, %151, %cst_77 {dimension_numbers = #tpu.dot_dimension_numbers<[1], [0], [0], [1], [0, 0, 1, 1], [], []>} : vector<8x128xbf16>, vector<128x64xbf16>, vector<8x64xf32> -> vector<8x64xf32>
    %c0_78 = arith.constant 0 : index
    %c0_79 = arith.constant 0 : index
    %153 = vector.load %arg18[%c0_78, %c0_79] : memref<1x64xf32, #tpu.memory_space<vmem>>, vector<1x64xf32>
    %154 = vector.broadcast %153 : vector<1x64xf32> to vector<8x64xf32>
    %155 = arith.addf %152, %154 : vector<8x64xf32>
    %cst_80 = arith.constant 0.000000e+00 : f32
    %156 = vector.broadcast %cst_80 : f32 to vector<8x64xf32>
    %157 = arith.maximumf %155, %156 : vector<8x64xf32>
    %158 = arith.truncf %157 : vector<8x64xf32> to vector<8x64xbf16>
    %c0_81 = arith.constant 0 : index
    %c0_82 = arith.constant 0 : index
    %159 = vector.load %arg19[%c0_81, %c0_82] : memref<64x128xbf16, #tpu.memory_space<vmem>>, vector<64x128xbf16>
    %cst_83 = arith.constant dense<0.000000e+00> : vector<8x128xf32>
    %160 = tpu.matmul %158, %159, %cst_83 {dimension_numbers = #tpu.dot_dimension_numbers<[1], [0], [0], [1], [0, 0, 1, 1], [], []>} : vector<8x64xbf16>, vector<64x128xbf16>, vector<8x128xf32> -> vector<8x128xf32>
    %c0_84 = arith.constant 0 : index
    %c0_85 = arith.constant 0 : index
    %161 = vector.load %arg20[%c0_84, %c0_85] : memref<1x128xf32, #tpu.memory_space<vmem>>, vector<1x128xf32>
    %162 = vector.broadcast %161 : vector<1x128xf32> to vector<8x128xf32>
    %163 = arith.addf %160, %162 : vector<8x128xf32>
    %164 = math.tanh %163 : vector<8x128xf32>
    %cst_86 = arith.constant 3.14159274 : f32
    %165 = vector.broadcast %cst_86 : f32 to vector<8x128xf32>
    %166 = arith.mulf %164, %165 : vector<8x128xf32>
    %167 = arith.select %63, %166, %163 : vector<8x128xi1>, vector<8x128xf32>
    %168 = arith.index_cast %118 : i32 to index
    %c0_87 = arith.constant 0 : index
    %169 = vector.load %arg21[%168, %c0_87] : memref<64x128xf32, #tpu.memory_space<vmem>>, vector<8x128xf32>
    tpu.vector_store %arg21[%168, %c0_87], %167 {strides = array<i32>} : memref<64x128xf32, #tpu.memory_space<vmem>>, vector<8x128xf32>,
    %c2_i32 = arith.constant 2 : i32
    %c8_i32_88 = arith.constant 8 : i32
    %170 = arith.muli %c2_i32, %c8_i32_88 : i32
    %171 = tpu.assume_multiple %170, 8 : i32
    %172 = arith.index_cast %171 : i32 to index
    %c0_89 = arith.constant 0 : index
    %173 = vector.load %arg22[%172, %c0_89] : memref<64x512xf32, #tpu.memory_space<vmem>>, vector<8x512xf32>
    %174 = arith.truncf %149 : vector<8x128xf32> to vector<8x128xbf16>
    %c0_90 = arith.constant 0 : index
    %c0_91 = arith.constant 0 : index
    %175 = vector.load %arg16[%c0_90, %c0_91] : memref<128x512xbf16, #tpu.memory_space<vmem>>, vector<128x512xbf16>
    %cst_92 = arith.constant dense<0.000000e+00> : vector<8x512xf32>
    %176 = tpu.matmul %174, %175, %cst_92 {dimension_numbers = #tpu.dot_dimension_numbers<[1], [0], [0], [1], [0, 0, 1, 1], [], []>} : vector<8x128xbf16>, vector<128x512xbf16>, vector<8x512xf32> -> vector<8x512xf32>
    %177 = arith.addf %173, %176 : vector<8x512xf32>
    %178 = vector.extract_strided_slice %177 {offsets = [0, 0], sizes = [8, 128], strides = [1, 1]} : vector<8x512xf32> to vector<8x128xf32>
    %179 = arith.negf %178 : vector<8x128xf32>
    %180 = math.exp %179 : vector<8x128xf32>
    %cst_93 = arith.constant 1.000000e+00 : f32
    %181 = vector.broadcast %cst_93 : f32 to vector<8x128xf32>
    %182 = arith.addf %181, %180 : vector<8x128xf32>
    %183 = arith.divf %181, %182 : vector<8x128xf32>
    %184 = vector.extract_strided_slice %177 {offsets = [0, 128], sizes = [8, 128], strides = [1, 1]} : vector<8x512xf32> to vector<8x128xf32>
    %185 = arith.negf %184 : vector<8x128xf32>
    %186 = math.exp %185 : vector<8x128xf32>
    %cst_94 = arith.constant 1.000000e+00 : f32
    %187 = vector.broadcast %cst_94 : f32 to vector<8x128xf32>
    %188 = arith.addf %187, %186 : vector<8x128xf32>
    %189 = arith.divf %187, %188 : vector<8x128xf32>
    %190 = vector.extract_strided_slice %177 {offsets = [0, 256], sizes = [8, 128], strides = [1, 1]} : vector<8x512xf32> to vector<8x128xf32>
    %191 = math.tanh %190 : vector<8x128xf32>
    %192 = vector.extract_strided_slice %177 {offsets = [0, 384], sizes = [8, 128], strides = [1, 1]} : vector<8x512xf32> to vector<8x128xf32>
    %193 = arith.negf %192 : vector<8x128xf32>
    %194 = math.exp %193 : vector<8x128xf32>
    %cst_95 = arith.constant 1.000000e+00 : f32
    %195 = vector.broadcast %cst_95 : f32 to vector<8x128xf32>
    %196 = arith.addf %195, %194 : vector<8x128xf32>
    %197 = arith.divf %195, %196 : vector<8x128xf32>
    %198 = arith.mulf %189, %147 : vector<8x128xf32>
    %199 = arith.mulf %183, %191 : vector<8x128xf32>
    %200 = arith.addf %198, %199 : vector<8x128xf32>
    %201 = math.tanh %200 : vector<8x128xf32>
    %202 = arith.mulf %197, %201 : vector<8x128xf32>
    %203 = arith.truncf %202 : vector<8x128xf32> to vector<8x128xbf16>
    %c0_96 = arith.constant 0 : index
    %c0_97 = arith.constant 0 : index
    %204 = vector.load %arg17[%c0_96, %c0_97] : memref<128x64xbf16, #tpu.memory_space<vmem>>, vector<128x64xbf16>
    %cst_98 = arith.constant dense<0.000000e+00> : vector<8x64xf32>
    %205 = tpu.matmul %203, %204, %cst_98 {dimension_numbers = #tpu.dot_dimension_numbers<[1], [0], [0], [1], [0, 0, 1, 1], [], []>} : vector<8x128xbf16>, vector<128x64xbf16>, vector<8x64xf32> -> vector<8x64xf32>
    %c0_99 = arith.constant 0 : index
    %c0_100 = arith.constant 0 : index
    %206 = vector.load %arg18[%c0_99, %c0_100] : memref<1x64xf32, #tpu.memory_space<vmem>>, vector<1x64xf32>
    %207 = vector.broadcast %206 : vector<1x64xf32> to vector<8x64xf32>
    %208 = arith.addf %205, %207 : vector<8x64xf32>
    %cst_101 = arith.constant 0.000000e+00 : f32
    %209 = vector.broadcast %cst_101 : f32 to vector<8x64xf32>
    %210 = arith.maximumf %208, %209 : vector<8x64xf32>
    %211 = arith.truncf %210 : vector<8x64xf32> to vector<8x64xbf16>
    %c0_102 = arith.constant 0 : index
    %c0_103 = arith.constant 0 : index
    %212 = vector.load %arg19[%c0_102, %c0_103] : memref<64x128xbf16, #tpu.memory_space<vmem>>, vector<64x128xbf16>
    %cst_104 = arith.constant dense<0.000000e+00> : vector<8x128xf32>
    %213 = tpu.matmul %211, %212, %cst_104 {dimension_numbers = #tpu.dot_dimension_numbers<[1], [0], [0], [1], [0, 0, 1, 1], [], []>} : vector<8x64xbf16>, vector<64x128xbf16>, vector<8x128xf32> -> vector<8x128xf32>
    %c0_105 = arith.constant 0 : index
    %c0_106 = arith.constant 0 : index
    %214 = vector.load %arg20[%c0_105, %c0_106] : memref<1x128xf32, #tpu.memory_space<vmem>>, vector<1x128xf32>
    %215 = vector.broadcast %214 : vector<1x128xf32> to vector<8x128xf32>
    %216 = arith.addf %213, %215 : vector<8x128xf32>
    %217 = math.tanh %216 : vector<8x128xf32>
    %cst_107 = arith.constant 3.14159274 : f32
    %218 = vector.broadcast %cst_107 : f32 to vector<8x128xf32>
    %219 = arith.mulf %217, %218 : vector<8x128xf32>
    %220 = arith.select %63, %219, %216 : vector<8x128xi1>, vector<8x128xf32>
    %221 = arith.index_cast %171 : i32 to index
    %c0_108 = arith.constant 0 : index
    %222 = vector.load %arg21[%221, %c0_108] : memref<64x128xf32, #tpu.memory_space<vmem>>, vector<8x128xf32>
    tpu.vector_store %arg21[%221, %c0_108], %220 {strides = array<i32>} : memref<64x128xf32, #tpu.memory_space<vmem>>, vector<8x128xf32>,
    %c3_i32_109 = arith.constant 3 : i32
    %c8_i32_110 = arith.constant 8 : i32
    %223 = arith.muli %c3_i32_109, %c8_i32_110 : i32
    %224 = tpu.assume_multiple %223, 8 : i32
    %225 = arith.index_cast %224 : i32 to index
    %c0_111 = arith.constant 0 : index
    %226 = vector.load %arg22[%225, %c0_111] : memref<64x512xf32, #tpu.memory_space<vmem>>, vector<8x512xf32>
    %227 = arith.truncf %202 : vector<8x128xf32> to vector<8x128xbf16>
    %c0_112 = arith.constant 0 : index
    %c0_113 = arith.constant 0 : index
    %228 = vector.load %arg16[%c0_112, %c0_113] : memref<128x512xbf16, #tpu.memory_space<vmem>>, vector<128x512xbf16>
    %cst_114 = arith.constant dense<0.000000e+00> : vector<8x512xf32>
    %229 = tpu.matmul %227, %228, %cst_114 {dimension_numbers = #tpu.dot_dimension_numbers<[1], [0], [0], [1], [0, 0, 1, 1], [], []>} : vector<8x128xbf16>, vector<128x512xbf16>, vector<8x512xf32> -> vector<8x512xf32>
    %230 = arith.addf %226, %229 : vector<8x512xf32>
    %231 = vector.extract_strided_slice %230 {offsets = [0, 0], sizes = [8, 128], strides = [1, 1]} : vector<8x512xf32> to vector<8x128xf32>
    %232 = arith.negf %231 : vector<8x128xf32>
    %233 = math.exp %232 : vector<8x128xf32>
    %cst_115 = arith.constant 1.000000e+00 : f32
    %234 = vector.broadcast %cst_115 : f32 to vector<8x128xf32>
    %235 = arith.addf %234, %233 : vector<8x128xf32>
    %236 = arith.divf %234, %235 : vector<8x128xf32>
    %237 = vector.extract_strided_slice %230 {offsets = [0, 128], sizes = [8, 128], strides = [1, 1]} : vector<8x512xf32> to vector<8x128xf32>
    %238 = arith.negf %237 : vector<8x128xf32>
    %239 = math.exp %238 : vector<8x128xf32>
    %cst_116 = arith.constant 1.000000e+00 : f32
    %240 = vector.broadcast %cst_116 : f32 to vector<8x128xf32>
    %241 = arith.addf %240, %239 : vector<8x128xf32>
    %242 = arith.divf %240, %241 : vector<8x128xf32>
    %243 = vector.extract_strided_slice %230 {offsets = [0, 256], sizes = [8, 128], strides = [1, 1]} : vector<8x512xf32> to vector<8x128xf32>
    %244 = math.tanh %243 : vector<8x128xf32>
    %245 = vector.extract_strided_slice %230 {offsets = [0, 384], sizes = [8, 128], strides = [1, 1]} : vector<8x512xf32> to vector<8x128xf32>
    %246 = arith.negf %245 : vector<8x128xf32>
    %247 = math.exp %246 : vector<8x128xf32>
    %cst_117 = arith.constant 1.000000e+00 : f32
    %248 = vector.broadcast %cst_117 : f32 to vector<8x128xf32>
    %249 = arith.addf %248, %247 : vector<8x128xf32>
    %250 = arith.divf %248, %249 : vector<8x128xf32>
    %251 = arith.mulf %242, %200 : vector<8x128xf32>
    %252 = arith.mulf %236, %244 : vector<8x128xf32>
    %253 = arith.addf %251, %252 : vector<8x128xf32>
    %254 = math.tanh %253 : vector<8x128xf32>
    %255 = arith.mulf %250, %254 : vector<8x128xf32>
    %256 = arith.truncf %255 : vector<8x128xf32> to vector<8x128xbf16>
    %c0_118 = arith.constant 0 : index
    %c0_119 = arith.constant 0 : index
    %257 = vector.load %arg17[%c0_118, %c0_119] : memref<128x64xbf16, #tpu.memory_space<vmem>>, vector<128x64xbf16>
    %cst_120 = arith.constant dense<0.000000e+00> : vector<8x64xf32>
    %258 = tpu.matmul %256, %257, %cst_120 {dimension_numbers = #tpu.dot_dimension_numbers<[1], [0], [0], [1], [0, 0, 1, 1], [], []>} : vector<8x128xbf16>, vector<128x64xbf16>, vector<8x64xf32> -> vector<8x64xf32>
    %c0_121 = arith.constant 0 : index
    %c0_122 = arith.constant 0 : index
    %259 = vector.load %arg18[%c0_121, %c0_122] : memref<1x64xf32, #tpu.memory_space<vmem>>, vector<1x64xf32>
    %260 = vector.broadcast %259 : vector<1x64xf32> to vector<8x64xf32>
    %261 = arith.addf %258, %260 : vector<8x64xf32>
    %cst_123 = arith.constant 0.000000e+00 : f32
    %262 = vector.broadcast %cst_123 : f32 to vector<8x64xf32>
    %263 = arith.maximumf %261, %262 : vector<8x64xf32>
    %264 = arith.truncf %263 : vector<8x64xf32> to vector<8x64xbf16>
    %c0_124 = arith.constant 0 : index
    %c0_125 = arith.constant 0 : index
    %265 = vector.load %arg19[%c0_124, %c0_125] : memref<64x128xbf16, #tpu.memory_space<vmem>>, vector<64x128xbf16>
    %cst_126 = arith.constant dense<0.000000e+00> : vector<8x128xf32>
    %266 = tpu.matmul %264, %265, %cst_126 {dimension_numbers = #tpu.dot_dimension_numbers<[1], [0], [0], [1], [0, 0, 1, 1], [], []>} : vector<8x64xbf16>, vector<64x128xbf16>, vector<8x128xf32> -> vector<8x128xf32>
    %c0_127 = arith.constant 0 : index
    %c0_128 = arith.constant 0 : index
    %267 = vector.load %arg20[%c0_127, %c0_128] : memref<1x128xf32, #tpu.memory_space<vmem>>, vector<1x128xf32>
    %268 = vector.broadcast %267 : vector<1x128xf32> to vector<8x128xf32>
    %269 = arith.addf %266, %268 : vector<8x128xf32>
    %270 = math.tanh %269 : vector<8x128xf32>
    %cst_129 = arith.constant 3.14159274 : f32
    %271 = vector.broadcast %cst_129 : f32 to vector<8x128xf32>
    %272 = arith.mulf %270, %271 : vector<8x128xf32>
    %273 = arith.select %63, %272, %269 : vector<8x128xi1>, vector<8x128xf32>
    %274 = arith.index_cast %224 : i32 to index
    %c0_130 = arith.constant 0 : index
    %275 = vector.load %arg21[%274, %c0_130] : memref<64x128xf32, #tpu.memory_space<vmem>>, vector<8x128xf32>
    tpu.vector_store %arg21[%274, %c0_130], %273 {strides = array<i32>} : memref<64x128xf32, #tpu.memory_space<vmem>>, vector<8x128xf32>,
    %c4_i32 = arith.constant 4 : i32
    %c8_i32_131 = arith.constant 8 : i32
    %276 = arith.muli %c4_i32, %c8_i32_131 : i32
    %277 = tpu.assume_multiple %276, 8 : i32
    %278 = arith.index_cast %277 : i32 to index
    %c0_132 = arith.constant 0 : index
    %279 = vector.load %arg22[%278, %c0_132] : memref<64x512xf32, #tpu.memory_space<vmem>>, vector<8x512xf32>
    %280 = arith.truncf %255 : vector<8x128xf32> to vector<8x128xbf16>
    %c0_133 = arith.constant 0 : index
    %c0_134 = arith.constant 0 : index
    %281 = vector.load %arg16[%c0_133, %c0_134] : memref<128x512xbf16, #tpu.memory_space<vmem>>, vector<128x512xbf16>
    %cst_135 = arith.constant dense<0.000000e+00> : vector<8x512xf32>
    %282 = tpu.matmul %280, %281, %cst_135 {dimension_numbers = #tpu.dot_dimension_numbers<[1], [0], [0], [1], [0, 0, 1, 1], [], []>} : vector<8x128xbf16>, vector<128x512xbf16>, vector<8x512xf32> -> vector<8x512xf32>
    %283 = arith.addf %279, %282 : vector<8x512xf32>
    %284 = vector.extract_strided_slice %283 {offsets = [0, 0], sizes = [8, 128], strides = [1, 1]} : vector<8x512xf32> to vector<8x128xf32>
    %285 = arith.negf %284 : vector<8x128xf32>
    %286 = math.exp %285 : vector<8x128xf32>
    %cst_136 = arith.constant 1.000000e+00 : f32
    %287 = vector.broadcast %cst_136 : f32 to vector<8x128xf32>
    %288 = arith.addf %287, %286 : vector<8x128xf32>
    %289 = arith.divf %287, %288 : vector<8x128xf32>
    %290 = vector.extract_strided_slice %283 {offsets = [0, 128], sizes = [8, 128], strides = [1, 1]} : vector<8x512xf32> to vector<8x128xf32>
    %291 = arith.negf %290 : vector<8x128xf32>
    %292 = math.exp %291 : vector<8x128xf32>
    %cst_137 = arith.constant 1.000000e+00 : f32
    %293 = vector.broadcast %cst_137 : f32 to vector<8x128xf32>
    %294 = arith.addf %293, %292 : vector<8x128xf32>
    %295 = arith.divf %293, %294 : vector<8x128xf32>
    %296 = vector.extract_strided_slice %283 {offsets = [0, 256], sizes = [8, 128], strides = [1, 1]} : vector<8x512xf32> to vector<8x128xf32>
    %297 = math.tanh %296 : vector<8x128xf32>
    %298 = vector.extract_strided_slice %283 {offsets = [0, 384], sizes = [8, 128], strides = [1, 1]} : vector<8x512xf32> to vector<8x128xf32>
    %299 = arith.negf %298 : vector<8x128xf32>
    %300 = math.exp %299 : vector<8x128xf32>
    %cst_138 = arith.constant 1.000000e+00 : f32
    %301 = vector.broadcast %cst_138 : f32 to vector<8x128xf32>
    %302 = arith.addf %301, %300 : vector<8x128xf32>
    %303 = arith.divf %301, %302 : vector<8x128xf32>
    %304 = arith.mulf %295, %253 : vector<8x128xf32>
    %305 = arith.mulf %289, %297 : vector<8x128xf32>
    %306 = arith.addf %304, %305 : vector<8x128xf32>
    %307 = math.tanh %306 : vector<8x128xf32>
    %308 = arith.mulf %303, %307 : vector<8x128xf32>
    %309 = arith.truncf %308 : vector<8x128xf32> to vector<8x128xbf16>
    %c0_139 = arith.constant 0 : index
    %c0_140 = arith.constant 0 : index
    %310 = vector.load %arg17[%c0_139, %c0_140] : memref<128x64xbf16, #tpu.memory_space<vmem>>, vector<128x64xbf16>
    %cst_141 = arith.constant dense<0.000000e+00> : vector<8x64xf32>
    %311 = tpu.matmul %309, %310, %cst_141 {dimension_numbers = #tpu.dot_dimension_numbers<[1], [0], [0], [1], [0, 0, 1, 1], [], []>} : vector<8x128xbf16>, vector<128x64xbf16>, vector<8x64xf32> -> vector<8x64xf32>
    %c0_142 = arith.constant 0 : index
    %c0_143 = arith.constant 0 : index
    %312 = vector.load %arg18[%c0_142, %c0_143] : memref<1x64xf32, #tpu.memory_space<vmem>>, vector<1x64xf32>
    %313 = vector.broadcast %312 : vector<1x64xf32> to vector<8x64xf32>
    %314 = arith.addf %311, %313 : vector<8x64xf32>
    %cst_144 = arith.constant 0.000000e+00 : f32
    %315 = vector.broadcast %cst_144 : f32 to vector<8x64xf32>
    %316 = arith.maximumf %314, %315 : vector<8x64xf32>
    %317 = arith.truncf %316 : vector<8x64xf32> to vector<8x64xbf16>
    %c0_145 = arith.constant 0 : index
    %c0_146 = arith.constant 0 : index
    %318 = vector.load %arg19[%c0_145, %c0_146] : memref<64x128xbf16, #tpu.memory_space<vmem>>, vector<64x128xbf16>
    %cst_147 = arith.constant dense<0.000000e+00> : vector<8x128xf32>
    %319 = tpu.matmul %317, %318, %cst_147 {dimension_numbers = #tpu.dot_dimension_numbers<[1], [0], [0], [1], [0, 0, 1, 1], [], []>} : vector<8x64xbf16>, vector<64x128xbf16>, vector<8x128xf32> -> vector<8x128xf32>
    %c0_148 = arith.constant 0 : index
    %c0_149 = arith.constant 0 : index
    %320 = vector.load %arg20[%c0_148, %c0_149] : memref<1x128xf32, #tpu.memory_space<vmem>>, vector<1x128xf32>
    %321 = vector.broadcast %320 : vector<1x128xf32> to vector<8x128xf32>
    %322 = arith.addf %319, %321 : vector<8x128xf32>
    %323 = math.tanh %322 : vector<8x128xf32>
    %cst_150 = arith.constant 3.14159274 : f32
    %324 = vector.broadcast %cst_150 : f32 to vector<8x128xf32>
    %325 = arith.mulf %323, %324 : vector<8x128xf32>
    %326 = arith.select %63, %325, %322 : vector<8x128xi1>, vector<8x128xf32>
    %327 = arith.index_cast %277 : i32 to index
    %c0_151 = arith.constant 0 : index
    %328 = vector.load %arg21[%327, %c0_151] : memref<64x128xf32, #tpu.memory_space<vmem>>, vector<8x128xf32>
    tpu.vector_store %arg21[%327, %c0_151], %326 {strides = array<i32>} : memref<64x128xf32, #tpu.memory_space<vmem>>, vector<8x128xf32>,
    %c5_i32 = arith.constant 5 : i32
    %c8_i32_152 = arith.constant 8 : i32
    %329 = arith.muli %c5_i32, %c8_i32_152 : i32
    %330 = tpu.assume_multiple %329, 8 : i32
    %331 = arith.index_cast %330 : i32 to index
    %c0_153 = arith.constant 0 : index
    %332 = vector.load %arg22[%331, %c0_153] : memref<64x512xf32, #tpu.memory_space<vmem>>, vector<8x512xf32>
    %333 = arith.truncf %308 : vector<8x128xf32> to vector<8x128xbf16>
    %c0_154 = arith.constant 0 : index
    %c0_155 = arith.constant 0 : index
    %334 = vector.load %arg16[%c0_154, %c0_155] : memref<128x512xbf16, #tpu.memory_space<vmem>>, vector<128x512xbf16>
    %cst_156 = arith.constant dense<0.000000e+00> : vector<8x512xf32>
    %335 = tpu.matmul %333, %334, %cst_156 {dimension_numbers = #tpu.dot_dimension_numbers<[1], [0], [0], [1], [0, 0, 1, 1], [], []>} : vector<8x128xbf16>, vector<128x512xbf16>, vector<8x512xf32> -> vector<8x512xf32>
    %336 = arith.addf %332, %335 : vector<8x512xf32>
    %337 = vector.extract_strided_slice %336 {offsets = [0, 0], sizes = [8, 128], strides = [1, 1]} : vector<8x512xf32> to vector<8x128xf32>
    %338 = arith.negf %337 : vector<8x128xf32>
    %339 = math.exp %338 : vector<8x128xf32>
    %cst_157 = arith.constant 1.000000e+00 : f32
    %340 = vector.broadcast %cst_157 : f32 to vector<8x128xf32>
    %341 = arith.addf %340, %339 : vector<8x128xf32>
    %342 = arith.divf %340, %341 : vector<8x128xf32>
    %343 = vector.extract_strided_slice %336 {offsets = [0, 128], sizes = [8, 128], strides = [1, 1]} : vector<8x512xf32> to vector<8x128xf32>
    %344 = arith.negf %343 : vector<8x128xf32>
    %345 = math.exp %344 : vector<8x128xf32>
    %cst_158 = arith.constant 1.000000e+00 : f32
    %346 = vector.broadcast %cst_158 : f32 to vector<8x128xf32>
    %347 = arith.addf %346, %345 : vector<8x128xf32>
    %348 = arith.divf %346, %347 : vector<8x128xf32>
    %349 = vector.extract_strided_slice %336 {offsets = [0, 256], sizes = [8, 128], strides = [1, 1]} : vector<8x512xf32> to vector<8x128xf32>
    %350 = math.tanh %349 : vector<8x128xf32>
    %351 = vector.extract_strided_slice %336 {offsets = [0, 384], sizes = [8, 128], strides = [1, 1]} : vector<8x512xf32> to vector<8x128xf32>
    %352 = arith.negf %351 : vector<8x128xf32>
    %353 = math.exp %352 : vector<8x128xf32>
    %cst_159 = arith.constant 1.000000e+00 : f32
    %354 = vector.broadcast %cst_159 : f32 to vector<8x128xf32>
    %355 = arith.addf %354, %353 : vector<8x128xf32>
    %356 = arith.divf %354, %355 : vector<8x128xf32>
    %357 = arith.mulf %348, %306 : vector<8x128xf32>
    %358 = arith.mulf %342, %350 : vector<8x128xf32>
    %359 = arith.addf %357, %358 : vector<8x128xf32>
    %360 = math.tanh %359 : vector<8x128xf32>
    %361 = arith.mulf %356, %360 : vector<8x128xf32>
    %362 = arith.truncf %361 : vector<8x128xf32> to vector<8x128xbf16>
    %c0_160 = arith.constant 0 : index
    %c0_161 = arith.constant 0 : index
    %363 = vector.load %arg17[%c0_160, %c0_161] : memref<128x64xbf16, #tpu.memory_space<vmem>>, vector<128x64xbf16>
    %cst_162 = arith.constant dense<0.000000e+00> : vector<8x64xf32>
    %364 = tpu.matmul %362, %363, %cst_162 {dimension_numbers = #tpu.dot_dimension_numbers<[1], [0], [0], [1], [0, 0, 1, 1], [], []>} : vector<8x128xbf16>, vector<128x64xbf16>, vector<8x64xf32> -> vector<8x64xf32>
    %c0_163 = arith.constant 0 : index
    %c0_164 = arith.constant 0 : index
    %365 = vector.load %arg18[%c0_163, %c0_164] : memref<1x64xf32, #tpu.memory_space<vmem>>, vector<1x64xf32>
    %366 = vector.broadcast %365 : vector<1x64xf32> to vector<8x64xf32>
    %367 = arith.addf %364, %366 : vector<8x64xf32>
    %cst_165 = arith.constant 0.000000e+00 : f32
    %368 = vector.broadcast %cst_165 : f32 to vector<8x64xf32>
    %369 = arith.maximumf %367, %368 : vector<8x64xf32>
    %370 = arith.truncf %369 : vector<8x64xf32> to vector<8x64xbf16>
    %c0_166 = arith.constant 0 : index
    %c0_167 = arith.constant 0 : index
    %371 = vector.load %arg19[%c0_166, %c0_167] : memref<64x128xbf16, #tpu.memory_space<vmem>>, vector<64x128xbf16>
    %cst_168 = arith.constant dense<0.000000e+00> : vector<8x128xf32>
    %372 = tpu.matmul %370, %371, %cst_168 {dimension_numbers = #tpu.dot_dimension_numbers<[1], [0], [0], [1], [0, 0, 1, 1], [], []>} : vector<8x64xbf16>, vector<64x128xbf16>, vector<8x128xf32> -> vector<8x128xf32>
    %c0_169 = arith.constant 0 : index
    %c0_170 = arith.constant 0 : index
    %373 = vector.load %arg20[%c0_169, %c0_170] : memref<1x128xf32, #tpu.memory_space<vmem>>, vector<1x128xf32>
    %374 = vector.broadcast %373 : vector<1x128xf32> to vector<8x128xf32>
    %375 = arith.addf %372, %374 : vector<8x128xf32>
    %376 = math.tanh %375 : vector<8x128xf32>
    %cst_171 = arith.constant 3.14159274 : f32
    %377 = vector.broadcast %cst_171 : f32 to vector<8x128xf32>
    %378 = arith.mulf %376, %377 : vector<8x128xf32>
    %379 = arith.select %63, %378, %375 : vector<8x128xi1>, vector<8x128xf32>
    %380 = arith.index_cast %330 : i32 to index
    %c0_172 = arith.constant 0 : index
    %381 = vector.load %arg21[%380, %c0_172] : memref<64x128xf32, #tpu.memory_space<vmem>>, vector<8x128xf32>
    tpu.vector_store %arg21[%380, %c0_172], %379 {strides = array<i32>} : memref<64x128xf32, #tpu.memory_space<vmem>>, vector<8x128xf32>,
    %c6_i32 = arith.constant 6 : i32
    %c8_i32_173 = arith.constant 8 : i32
    %382 = arith.muli %c6_i32, %c8_i32_173 : i32
    %383 = tpu.assume_multiple %382, 8 : i32
    %384 = arith.index_cast %383 : i32 to index
    %c0_174 = arith.constant 0 : index
    %385 = vector.load %arg22[%384, %c0_174] : memref<64x512xf32, #tpu.memory_space<vmem>>, vector<8x512xf32>
    %386 = arith.truncf %361 : vector<8x128xf32> to vector<8x128xbf16>
    %c0_175 = arith.constant 0 : index
    %c0_176 = arith.constant 0 : index
    %387 = vector.load %arg16[%c0_175, %c0_176] : memref<128x512xbf16, #tpu.memory_space<vmem>>, vector<128x512xbf16>
    %cst_177 = arith.constant dense<0.000000e+00> : vector<8x512xf32>
    %388 = tpu.matmul %386, %387, %cst_177 {dimension_numbers = #tpu.dot_dimension_numbers<[1], [0], [0], [1], [0, 0, 1, 1], [], []>} : vector<8x128xbf16>, vector<128x512xbf16>, vector<8x512xf32> -> vector<8x512xf32>
    %389 = arith.addf %385, %388 : vector<8x512xf32>
    %390 = vector.extract_strided_slice %389 {offsets = [0, 0], sizes = [8, 128], strides = [1, 1]} : vector<8x512xf32> to vector<8x128xf32>
    %391 = arith.negf %390 : vector<8x128xf32>
    %392 = math.exp %391 : vector<8x128xf32>
    %cst_178 = arith.constant 1.000000e+00 : f32
    %393 = vector.broadcast %cst_178 : f32 to vector<8x128xf32>
    %394 = arith.addf %393, %392 : vector<8x128xf32>
    %395 = arith.divf %393, %394 : vector<8x128xf32>
    %396 = vector.extract_strided_slice %389 {offsets = [0, 128], sizes = [8, 128], strides = [1, 1]} : vector<8x512xf32> to vector<8x128xf32>
    %397 = arith.negf %396 : vector<8x128xf32>
    %398 = math.exp %397 : vector<8x128xf32>
    %cst_179 = arith.constant 1.000000e+00 : f32
    %399 = vector.broadcast %cst_179 : f32 to vector<8x128xf32>
    %400 = arith.addf %399, %398 : vector<8x128xf32>
    %401 = arith.divf %399, %400 : vector<8x128xf32>
    %402 = vector.extract_strided_slice %389 {offsets = [0, 256], sizes = [8, 128], strides = [1, 1]} : vector<8x512xf32> to vector<8x128xf32>
    %403 = math.tanh %402 : vector<8x128xf32>
    %404 = vector.extract_strided_slice %389 {offsets = [0, 384], sizes = [8, 128], strides = [1, 1]} : vector<8x512xf32> to vector<8x128xf32>
    %405 = arith.negf %404 : vector<8x128xf32>
    %406 = math.exp %405 : vector<8x128xf32>
    %cst_180 = arith.constant 1.000000e+00 : f32
    %407 = vector.broadcast %cst_180 : f32 to vector<8x128xf32>
    %408 = arith.addf %407, %406 : vector<8x128xf32>
    %409 = arith.divf %407, %408 : vector<8x128xf32>
    %410 = arith.mulf %401, %359 : vector<8x128xf32>
    %411 = arith.mulf %395, %403 : vector<8x128xf32>
    %412 = arith.addf %410, %411 : vector<8x128xf32>
    %413 = math.tanh %412 : vector<8x128xf32>
    %414 = arith.mulf %409, %413 : vector<8x128xf32>
    %415 = arith.truncf %414 : vector<8x128xf32> to vector<8x128xbf16>
    %c0_181 = arith.constant 0 : index
    %c0_182 = arith.constant 0 : index
    %416 = vector.load %arg17[%c0_181, %c0_182] : memref<128x64xbf16, #tpu.memory_space<vmem>>, vector<128x64xbf16>
    %cst_183 = arith.constant dense<0.000000e+00> : vector<8x64xf32>
    %417 = tpu.matmul %415, %416, %cst_183 {dimension_numbers = #tpu.dot_dimension_numbers<[1], [0], [0], [1], [0, 0, 1, 1], [], []>} : vector<8x128xbf16>, vector<128x64xbf16>, vector<8x64xf32> -> vector<8x64xf32>
    %c0_184 = arith.constant 0 : index
    %c0_185 = arith.constant 0 : index
    %418 = vector.load %arg18[%c0_184, %c0_185] : memref<1x64xf32, #tpu.memory_space<vmem>>, vector<1x64xf32>
    %419 = vector.broadcast %418 : vector<1x64xf32> to vector<8x64xf32>
    %420 = arith.addf %417, %419 : vector<8x64xf32>
    %cst_186 = arith.constant 0.000000e+00 : f32
    %421 = vector.broadcast %cst_186 : f32 to vector<8x64xf32>
    %422 = arith.maximumf %420, %421 : vector<8x64xf32>
    %423 = arith.truncf %422 : vector<8x64xf32> to vector<8x64xbf16>
    %c0_187 = arith.constant 0 : index
    %c0_188 = arith.constant 0 : index
    %424 = vector.load %arg19[%c0_187, %c0_188] : memref<64x128xbf16, #tpu.memory_space<vmem>>, vector<64x128xbf16>
    %cst_189 = arith.constant dense<0.000000e+00> : vector<8x128xf32>
    %425 = tpu.matmul %423, %424, %cst_189 {dimension_numbers = #tpu.dot_dimension_numbers<[1], [0], [0], [1], [0, 0, 1, 1], [], []>} : vector<8x64xbf16>, vector<64x128xbf16>, vector<8x128xf32> -> vector<8x128xf32>
    %c0_190 = arith.constant 0 : index
    %c0_191 = arith.constant 0 : index
    %426 = vector.load %arg20[%c0_190, %c0_191] : memref<1x128xf32, #tpu.memory_space<vmem>>, vector<1x128xf32>
    %427 = vector.broadcast %426 : vector<1x128xf32> to vector<8x128xf32>
    %428 = arith.addf %425, %427 : vector<8x128xf32>
    %429 = math.tanh %428 : vector<8x128xf32>
    %cst_192 = arith.constant 3.14159274 : f32
    %430 = vector.broadcast %cst_192 : f32 to vector<8x128xf32>
    %431 = arith.mulf %429, %430 : vector<8x128xf32>
    %432 = arith.select %63, %431, %428 : vector<8x128xi1>, vector<8x128xf32>
    %433 = arith.index_cast %383 : i32 to index
    %c0_193 = arith.constant 0 : index
    %434 = vector.load %arg21[%433, %c0_193] : memref<64x128xf32, #tpu.memory_space<vmem>>, vector<8x128xf32>
    tpu.vector_store %arg21[%433, %c0_193], %432 {strides = array<i32>} : memref<64x128xf32, #tpu.memory_space<vmem>>, vector<8x128xf32>,
    %c7_i32 = arith.constant 7 : i32
    %c8_i32_194 = arith.constant 8 : i32
    %435 = arith.muli %c7_i32, %c8_i32_194 : i32
    %436 = tpu.assume_multiple %435, 8 : i32
    %437 = arith.index_cast %436 : i32 to index
    %c0_195 = arith.constant 0 : index
    %438 = vector.load %arg22[%437, %c0_195] : memref<64x512xf32, #tpu.memory_space<vmem>>, vector<8x512xf32>
    %439 = arith.truncf %414 : vector<8x128xf32> to vector<8x128xbf16>
    %c0_196 = arith.constant 0 : index
    %c0_197 = arith.constant 0 : index
    %440 = vector.load %arg16[%c0_196, %c0_197] : memref<128x512xbf16, #tpu.memory_space<vmem>>, vector<128x512xbf16>
    %cst_198 = arith.constant dense<0.000000e+00> : vector<8x512xf32>
    %441 = tpu.matmul %439, %440, %cst_198 {dimension_numbers = #tpu.dot_dimension_numbers<[1], [0], [0], [1], [0, 0, 1, 1], [], []>} : vector<8x128xbf16>, vector<128x512xbf16>, vector<8x512xf32> -> vector<8x512xf32>
    %442 = arith.addf %438, %441 : vector<8x512xf32>
    %443 = vector.extract_strided_slice %442 {offsets = [0, 0], sizes = [8, 128], strides = [1, 1]} : vector<8x512xf32> to vector<8x128xf32>
    %444 = arith.negf %443 : vector<8x128xf32>
    %445 = math.exp %444 : vector<8x128xf32>
    %cst_199 = arith.constant 1.000000e+00 : f32
    %446 = vector.broadcast %cst_199 : f32 to vector<8x128xf32>
    %447 = arith.addf %446, %445 : vector<8x128xf32>
    %448 = arith.divf %446, %447 : vector<8x128xf32>
    %449 = vector.extract_strided_slice %442 {offsets = [0, 128], sizes = [8, 128], strides = [1, 1]} : vector<8x512xf32> to vector<8x128xf32>
    %450 = arith.negf %449 : vector<8x128xf32>
    %451 = math.exp %450 : vector<8x128xf32>
    %cst_200 = arith.constant 1.000000e+00 : f32
    %452 = vector.broadcast %cst_200 : f32 to vector<8x128xf32>
    %453 = arith.addf %452, %451 : vector<8x128xf32>
    %454 = arith.divf %452, %453 : vector<8x128xf32>
    %455 = vector.extract_strided_slice %442 {offsets = [0, 256], sizes = [8, 128], strides = [1, 1]} : vector<8x512xf32> to vector<8x128xf32>
    %456 = math.tanh %455 : vector<8x128xf32>
    %457 = vector.extract_strided_slice %442 {offsets = [0, 384], sizes = [8, 128], strides = [1, 1]} : vector<8x512xf32> to vector<8x128xf32>
    %458 = arith.negf %457 : vector<8x128xf32>
    %459 = math.exp %458 : vector<8x128xf32>
    %cst_201 = arith.constant 1.000000e+00 : f32
    %460 = vector.broadcast %cst_201 : f32 to vector<8x128xf32>
    %461 = arith.addf %460, %459 : vector<8x128xf32>
    %462 = arith.divf %460, %461 : vector<8x128xf32>
    %463 = arith.mulf %454, %412 : vector<8x128xf32>
    %464 = arith.mulf %448, %456 : vector<8x128xf32>
    %465 = arith.addf %463, %464 : vector<8x128xf32>
    %466 = math.tanh %465 : vector<8x128xf32>
    %467 = arith.mulf %462, %466 : vector<8x128xf32>
    %468 = arith.truncf %467 : vector<8x128xf32> to vector<8x128xbf16>
    %c0_202 = arith.constant 0 : index
    %c0_203 = arith.constant 0 : index
    %469 = vector.load %arg17[%c0_202, %c0_203] : memref<128x64xbf16, #tpu.memory_space<vmem>>, vector<128x64xbf16>
    %cst_204 = arith.constant dense<0.000000e+00> : vector<8x64xf32>
    %470 = tpu.matmul %468, %469, %cst_204 {dimension_numbers = #tpu.dot_dimension_numbers<[1], [0], [0], [1], [0, 0, 1, 1], [], []>} : vector<8x128xbf16>, vector<128x64xbf16>, vector<8x64xf32> -> vector<8x64xf32>
    %c0_205 = arith.constant 0 : index
    %c0_206 = arith.constant 0 : index
    %471 = vector.load %arg18[%c0_205, %c0_206] : memref<1x64xf32, #tpu.memory_space<vmem>>, vector<1x64xf32>
    %472 = vector.broadcast %471 : vector<1x64xf32> to vector<8x64xf32>
    %473 = arith.addf %470, %472 : vector<8x64xf32>
    %cst_207 = arith.constant 0.000000e+00 : f32
    %474 = vector.broadcast %cst_207 : f32 to vector<8x64xf32>
    %475 = arith.maximumf %473, %474 : vector<8x64xf32>
    %476 = arith.truncf %475 : vector<8x64xf32> to vector<8x64xbf16>
    %c0_208 = arith.constant 0 : index
    %c0_209 = arith.constant 0 : index
    %477 = vector.load %arg19[%c0_208, %c0_209] : memref<64x128xbf16, #tpu.memory_space<vmem>>, vector<64x128xbf16>
    %cst_210 = arith.constant dense<0.000000e+00> : vector<8x128xf32>
    %478 = tpu.matmul %476, %477, %cst_210 {dimension_numbers = #tpu.dot_dimension_numbers<[1], [0], [0], [1], [0, 0, 1, 1], [], []>} : vector<8x64xbf16>, vector<64x128xbf16>, vector<8x128xf32> -> vector<8x128xf32>
    %c0_211 = arith.constant 0 : index
    %c0_212 = arith.constant 0 : index
    %479 = vector.load %arg20[%c0_211, %c0_212] : memref<1x128xf32, #tpu.memory_space<vmem>>, vector<1x128xf32>
    %480 = vector.broadcast %479 : vector<1x128xf32> to vector<8x128xf32>
    %481 = arith.addf %478, %480 : vector<8x128xf32>
    %482 = math.tanh %481 : vector<8x128xf32>
    %cst_213 = arith.constant 3.14159274 : f32
    %483 = vector.broadcast %cst_213 : f32 to vector<8x128xf32>
    %484 = arith.mulf %482, %483 : vector<8x128xf32>
    %485 = arith.select %63, %484, %481 : vector<8x128xi1>, vector<8x128xf32>
    %486 = arith.index_cast %436 : i32 to index
    %c0_214 = arith.constant 0 : index
    %487 = vector.load %arg21[%486, %c0_214] : memref<64x128xf32, #tpu.memory_space<vmem>>, vector<8x128xf32>
    tpu.vector_store %arg21[%486, %c0_214], %485 {strides = array<i32>} : memref<64x128xf32, #tpu.memory_space<vmem>>, vector<8x128xf32>,
    %c8_i32_215 = arith.constant 8 : i32
    return
  }
}

</mosaic_0001>

<llo_original>
// kernel: polnet_badgr_forward.2
$region0: #{polnet_badgr_forward.2}
  #allocation0 [shape = 'u32[]', space=smem, size = 0x4, offset = 0x4, fixed_abs, tag = 'smem constant byte address 0x4 - core index']
  #allocation1 [shape = 'u32[144,128]{1,0:T(1,128)}', space=vmem, size = 0x12000, scoped, tag = 'internal scratch']
  %s0 = inlined_call_operand.vmem [shape: bf16[512,128], index: 0, kind: input, shape index: {}]
  %s1 = inlined_call_operand.vmem [shape: bf16[128,128], index: 1, kind: input, shape index: {}]
  %s2 = inlined_call_operand.vmem [shape: f32[1,128], index: 2, kind: input, shape index: {}]
  %s3 = inlined_call_operand.vmem [shape: bf16[512,128], index: 3, kind: output, shape index: {}]
  %s4 = sld [smem:[#allocation0]]
  $region45: #{polnet_badgr_forward.2} parent=0
    _
  %s6 = ssub.s32 1, %s4
  %s7 = scalar_select 0, %s6, %s4
  loop: start=0, step=1, limit=6
  $region2: #{polnet_badgr_forward.2} parent=0 // loop_pre_header
    _
  $region3: #{polnet_badgr_forward.2} parent=0 // loop_header
    %s9 = sphi 0, %s13
    %p10 = scmp.ge.s32.totalorder %s9, 6
    %s19 = sphi 0, %s21
    %s22 = sphi 0, %s19
    %s23 = sphi 0, %s22
    %s39 = sphi 0, %s23
    %s43 = sphi 0, %s43
    %s45 = sphi 0, %s43
    %s46 = sphi 0, %s45
    %s60 = sphi 0, %s46
    %s64 = sphi 0, %s64
    %s66 = sphi 0, %s64
    %s67 = sphi 0, %s66
    %s81 = sphi 0, %s67
    %s87 = sphi 0, %s89
    %s90 = sphi 0, %s87
    %s91 = sphi 0, %s90
    %s107 = sphi 0, %s91
  $region4: #{polnet_badgr_forward.2} parent=0 // loop_header_branch
    %12 = sbr.rel (%p10) target = $region8
  $region5: #{polnet_badgr_forward.2} parent=0 // loop_body
    %s14 = ssub.s32 %s9, 1
    %s15 = ssub.s32 %s9, 2
    %s16 = sadd.s32 %s9, 1
    %s17 = ssub.s32 %s9, %s16
    %p18 = scmp.eq.s32.totalorder %s17, 0
    %s20 = sadd.s32 %s19, 1
    %s21 = scalar_select %p18, %s19, %s20
    %p24 = pneg %p18
    %p25 = scmp.eq.s32.totalorder %s9, 3
    %p26 = por %p24, %p25
    %p27 = scmp.ne.s32.totalorder %s19, %s22
    %p28 = scmp.eq.s32.totalorder %s9, 0
    %p29 = por %p27, %p28
    %p30 = scmp.ne.s32.totalorder %s19, %s22
    %p31 = scmp.eq.s32.totalorder %s14, 3
    %p32 = por %p30, %p31
    %p33 = scmp.ne.s32.totalorder %s22, %s23
    %p34 = scmp.eq.s32.totalorder %s14, 0
    %p35 = por %p33, %p34
    %p36 = scmp.ne.s32.totalorder %s22, %s23
    %p37 = scmp.eq.s32.totalorder %s15, 3
    %p38 = por %p36, %p37
    %p40 = scmp.ne.s32.totalorder %s23, %s39
    %p41 = scmp.eq.s32.totalorder %s15, 0
    %p42 = por %p40, %p41
    %s44 = sadd.s32 %s43, 1
    %p47 = scmp.eq.s32.totalorder %s9, 3
    %p48 = scmp.ne.s32.totalorder %s43, %s45
    %p49 = scmp.eq.s32.totalorder %s9, 0
    %p50 = por %p48, %p49
    %p51 = scmp.ne.s32.totalorder %s43, %s45
    %p52 = scmp.eq.s32.totalorder %s14, 3
    %p53 = por %p51, %p52
    %p54 = scmp.ne.s32.totalorder %s45, %s46
    %p55 = scmp.eq.s32.totalorder %s14, 0
    %p56 = por %p54, %p55
    %p57 = scmp.ne.s32.totalorder %s45, %s46
    %p58 = scmp.eq.s32.totalorder %s15, 3
    %p59 = por %p57, %p58
    %p61 = scmp.ne.s32.totalorder %s46, %s60
    %p62 = scmp.eq.s32.totalorder %s15, 0
    %p63 = por %p61, %p62
    %s65 = sadd.s32 %s64, 1
    %p68 = scmp.eq.s32.totalorder %s9, 3
    %p69 = scmp.ne.s32.totalorder %s64, %s66
    %p70 = scmp.eq.s32.totalorder %s9, 0
    %p71 = por %p69, %p70
    %p72 = scmp.ne.s32.totalorder %s64, %s66
    %p73 = scmp.eq.s32.totalorder %s14, 3
    %p74 = por %p72, %p73
    %p75 = scmp.ne.s32.totalorder %s66, %s67
    %p76 = scmp.eq.s32.totalorder %s14, 0
    %p77 = por %p75, %p76
    %p78 = scmp.ne.s32.totalorder %s66, %s67
    %p79 = scmp.eq.s32.totalorder %s15, 3
    %p80 = por %p78, %p79
    %p82 = scmp.ne.s32.totalorder %s67, %s81
    %p83 = scmp.eq.s32.totalorder %s15, 0
    %p84 = por %p82, %p83
    %s85 = ssub.s32 %s9, %s16
    %p86 = scmp.eq.s32.totalorder %s85, 0
    %s88 = sadd.s32 %s87, 1
    %s89 = scalar_select %p86, %s87, %s88
    %p92 = pneg %p86
    %p93 = scmp.eq.s32.totalorder %s9, 3
    %p94 = por %p92, %p93
    %p95 = scmp.ne.s32.totalorder %s87, %s90
    %p96 = scmp.eq.s32.totalorder %s9, 0
    %p97 = por %p95, %p96
    %p98 = scmp.ne.s32.totalorder %s87, %s90
    %p99 = scmp.eq.s32.totalorder %s14, 3
    %p100 = por %p98, %p99
    %p101 = scmp.ne.s32.totalorder %s90, %s91
    %p102 = scmp.eq.s32.totalorder %s14, 0
    %p103 = por %p101, %p102
    %p104 = scmp.ne.s32.totalorder %s90, %s91
    %p105 = scmp.eq.s32.totalorder %s15, 3
    %p106 = por %p104, %p105
    %p108 = scmp.ne.s32.totalorder %s91, %s107
    %p109 = scmp.eq.s32.totalorder %s15, 0
    %p110 = por %p108, %p109
    %p111 = scmp.le.s32.totalorder 1, %s9
    %p112 = scmp.lt.s32.totalorder %s9, 5
    %p113 = pnand %p111, %p112
    %p114 = pneg %p113
    // Predicated region
    $region9: #{polnet_badgr_forward.2} parent=5 // pred_check
      _
    $region10: #{polnet_badgr_forward.2} parent=5 // pred_check_branch
      %116 = sbr.rel (%p113) target = $region12
    $region11: #{polnet_badgr_forward.2} parent=5 // pred_region
      %s117 = ssub.s32 %s9, 1
      // Predicated region
      $region13: #{polnet_badgr_forward.2} parent=11 // pred_check
        %p118 = pneg %p56
      $region14: #{polnet_badgr_forward.2} parent=11 // pred_check_branch
        %120 = sbr.rel (%p118) target = $region16
      $region15: #{polnet_badgr_forward.2} parent=11 // pred_region
        _
      $region16: #{polnet_badgr_forward.2} parent=11 // pred_fallthru
        _
      // Predicated region
      $region17: #{polnet_badgr_forward.2} parent=11 // pred_check
        %p121 = pneg %p77
      $region18: #{polnet_badgr_forward.2} parent=11 // pred_check_branch
        %123 = sbr.rel (%p121) target = $region20
      $region19: #{polnet_badgr_forward.2} parent=11 // pred_region
        _
      $region20: #{polnet_badgr_forward.2} parent=11 // pred_fallthru
        _
    $region12: #{polnet_badgr_forward.2} parent=5 // pred_fallthru
      _
    %p124 = scmp.lt.s32.totalorder %s9, 4
    // Predicated region
    $region21: #{polnet_badgr_forward.2} parent=5 // pred_check
      %p125 = pneg %p124
    $region22: #{polnet_badgr_forward.2} parent=5 // pred_check_branch
      %127 = sbr.rel (%p125) target = $region24
    $region23: #{polnet_badgr_forward.2} parent=5 // pred_region
      // Predicated region
      $region25: #{polnet_badgr_forward.2} parent=23 // pred_check
        %p128 = pneg %p29
      $region26: #{polnet_badgr_forward.2} parent=23 // pred_check_branch
        %130 = sbr.rel (%p128) target = $region28
      $region27: #{polnet_badgr_forward.2} parent=23 // pred_region
        %s131 = smul.u32 16, %s9
        %p132 = scmp.lt.s32.totalorder %s131, 63
        %s133 = scalar_select %p132, %s131, 63
        %s134 = smul.addr %s133, 4
        %s135 = scalar_lea.vmem %s0, %s134
        %s136 = smul.u32 16, %s9
      $region28: #{polnet_badgr_forward.2} parent=23 // pred_fallthru
        _
    $region24: #{polnet_badgr_forward.2} parent=5 // pred_fallthru
      _
    %p137 = scmp.le.s32.totalorder 1, %s9
    %p138 = scmp.lt.s32.totalorder %s9, 5
    %p139 = pnand %p137, %p138
    %p140 = pneg %p139
    // Predicated region
    $region29: #{polnet_badgr_forward.2} parent=5 // pred_check
      _
    $region30: #{polnet_badgr_forward.2} parent=5 // pred_check_branch
      %142 = sbr.rel (%p139) target = $region32
    $region31: #{polnet_badgr_forward.2} parent=5 // pred_region
      %s143 = ssub.s32 %s9, 1
      %s144 = smul.u32 16, %s14
      %p145 = scmp.lt.s32.totalorder %s144, 63
      %s146 = scalar_select %p145, %s144, 63
      %s147 = smul.addr %s146, 4
      %s148 = scalar_lea.vmem %s0, %s147
      %p149 = pneg %p35
      %p150 = pneg %p32
      %p151 = pneg %p56
      %p152 = pneg %p53
      %p153 = pneg %p77
      %p154 = pneg %p74
      %p155 = pneg %p103
      %p156 = pneg %p100
      %s157 = smul.u32 16, %s14
      %p158 = scmp.lt.s32.totalorder %s157, 63
      %s159 = scalar_select %p158, %s157, 63
      %s160 = smul.addr %s159, 4
      %s161 = scalar_lea.vmem %s3, %s160
      %s162 = smul.u32 16, %s14
      %p163 = scmp.lt.s32.totalorder %s162, 63
      %s164 = scalar_select %p163, %s162, 63
      %s165 = smul.addr %s164, 4
      %s166 = scalar_lea.vmem %s0, %s165
      %s167 = smul.u32 16, %s14
      %s168 = smul.u32 16, %s14
      %p169 = scmp.lt.s32.totalorder %s168, 63
      %s170 = scalar_select %p169, %s168, 63
      %s171 = smul.addr %s170, 4
      %s172 = scalar_lea.vmem %s3, %s171
      %s173 = smul.u32 16, %s14
      %v175 = vld [vmem:[%s166] sm:$0xf]
      %v176 = vld [vmem:[%s166 + $0x4] sm:$0xf]
      %v177 = vld [vmem:[%s166 + $0x8] sm:$0xf]
      %v178 = vld [vmem:[%s166 + $0xc] sm:$0xf]
      %v179 = vld [vmem:[%s166 + $0x10] sm:$0xf]
      %v180 = vld [vmem:[%s166 + $0x14] sm:$0xf]
      %v181 = vld [vmem:[%s166 + $0x18] sm:$0xf]
      %v182 = vld [vmem:[%s166 + $0x1c] sm:$0xf]
      %v183 = vld [vmem:[%s166 + $0x20] sm:$0xf]
      %v184 = vld [vmem:[%s166 + $0x24] sm:$0xf]
      %v185 = vld [vmem:[%s166 + $0x28] sm:$0xf]
      %v186 = vld [vmem:[%s166 + $0x2c] sm:$0xf]
      %v187 = vld [vmem:[%s166 + $0x30] sm:$0xf]
      %v188 = vld [vmem:[%s166 + $0x34] sm:$0xf]
      %v189 = vld [vmem:[%s166 + $0x38] sm:$0xf]
      %v190 = vld [vmem:[%s166 + $0x3c] sm:$0xf]
      %v191 = vld [vmem:[%s1] sm:$0xf]
      %v192 = vld [vmem:[%s1 + $0x4] sm:$0xf]
      %v193 = vld [vmem:[%s1 + $0x8] sm:$0xf]
      %v194 = vld [vmem:[%s1 + $0xc] sm:$0xf]
      %v195 = vld [vmem:[%s1 + $0x10] sm:$0xf]
      %v196 = vld [vmem:[%s1 + $0x14] sm:$0xf]
      %v197 = vld [vmem:[%s1 + $0x18] sm:$0xf]
      %v198 = vld [vmem:[%s1 + $0x1c] sm:$0xf]
      %v199 = vld [vmem:[%s1 + $0x20] sm:$0xf]
      %v200 = vld [vmem:[%s1 + $0x24] sm:$0xf]
      %v201 = vld [vmem:[%s1 + $0x28] sm:$0xf]
      %v202 = vld [vmem:[%s1 + $0x2c] sm:$0xf]
      %v203 = vld [vmem:[%s1 + $0x30] sm:$0xf]
      %v204 = vld [vmem:[%s1 + $0x34] sm:$0xf]
      %v205 = vld [vmem:[%s1 + $0x38] sm:$0xf]
      %v206 = vld [vmem:[%s1 + $0x3c] sm:$0xf]
      %v207 = vld [vmem:[%s2] sm:$0x1]
      %v209 = vlaneseq
      %v210 = vshrl.u32 %v209, 7
      %v211 = vsub.s32 0, %v210
      %v212 = vrot.slane %v207, %v211
      %v230 = vunpack.c.l.b16 %v175
      %v231 = vunpack.c.l.b16 %v176
      %v232 = vunpack.c.l.b16 %v177
      %v233 = vunpack.c.l.b16 %v178
      %v234 = vunpack.c.l.b16 %v179
      %v235 = vunpack.c.l.b16 %v180
      %v236 = vunpack.c.l.b16 %v181
      %v237 = vunpack.c.l.b16 %v182
      %v238 = vunpack.c.l.b16 %v183
      %v239 = vunpack.c.l.b16 %v184
      %v240 = vunpack.c.l.b16 %v185
      %v241 = vunpack.c.l.b16 %v186
      %v242 = vunpack.c.l.b16 %v187
      %v243 = vunpack.c.l.b16 %v188
      %v244 = vunpack.c.l.b16 %v189
      %v245 = vunpack.c.l.b16 %v190
      %v246 = vpack.c.b16 %v231, %v230
      %v247 = vpack.c.b16 %v233, %v232
      %v248 = vpack.c.b16 %v235, %v234
      %v249 = vpack.c.b16 %v237, %v236
      %v250 = vpack.c.b16 %v239, %v238
      %v251 = vpack.c.b16 %v241, %v240
      %v252 = vpack.c.b16 %v243, %v242
      %v253 = vpack.c.b16 %v245, %v244
      %v278 = vunpack.c.l.b16 %v191
      %v279 = vunpack.c.l.b16 %v192
      %v280 = vunpack.c.l.b16 %v193
      %v281 = vunpack.c.l.b16 %v194
      %v282 = vunpack.c.l.b16 %v195
      %v283 = vunpack.c.l.b16 %v196
      %v284 = vunpack.c.l.b16 %v197
      %v285 = vunpack.c.l.b16 %v198
      %v286 = vunpack.c.l.b16 %v199
      %v287 = vunpack.c.l.b16 %v200
      %v288 = vunpack.c.l.b16 %v201
      %v289 = vunpack.c.l.b16 %v202
      %v290 = vunpack.c.l.b16 %v203
      %v291 = vunpack.c.l.b16 %v204
      %v292 = vunpack.c.l.b16 %v205
      %v293 = vunpack.c.l.b16 %v206
      %v294 = vpack.c.b16 %v279, %v278
      %v295 = vpack.c.b16 %v281, %v280
      %v296 = vpack.c.b16 %v283, %v282
      %v297 = vpack.c.b16 %v285, %v284
      %v298 = vpack.c.b16 %v287, %v286
      %v299 = vpack.c.b16 %v289, %v288
      %v300 = vpack.c.b16 %v291, %v290
      %v301 = vpack.c.b16 %v293, %v292
      %310 = vmatprep.subr.bf16.mxu0 0
      %311 = vmatpush1.bf16.msra.mxu0 %v301
      %312 = vmatprep.subr.bf16.mxu0 0
      %313 = vmatpush1.bf16.msra.mxu0 %v300
      %314 = vmatprep.subr.bf16.mxu0 0
      %315 = vmatpush1.bf16.msra.mxu0 %v299
      %316 = vmatprep.subr.bf16.mxu0 0
      %317 = vmatpush1.bf16.msra.mxu0 %v298
      %318 = vmatprep.subr.bf16.mxu0 0
      %319 = vmatpush1.bf16.msra.mxu0 %v297
      %320 = vmatprep.subr.bf16.mxu0 0
      %321 = vmatpush1.bf16.msra.mxu0 %v296
      %322 = vmatprep.subr.bf16.mxu0 0
      %323 = vmatpush1.bf16.msra.mxu0 %v295
      %324 = vmatprep.subr.bf16.mxu0 0
      %325 = vmatpush1.bf16.msra.mxu0 %v294
      %326 = vmatprep.subr.bf16.mxu0 0
      %327 = vmatpush2.bf16.msra.mxu0 0
      %328 = vmatprep.subr.bf16.mxu0 0
      %329 = vmatpush2.bf16.msra.mxu0 0
      %330 = vmatprep.subr.bf16.mxu0 0
      %331 = vmatpush2.bf16.msra.mxu0 0
      %332 = vmatprep.subr.bf16.mxu0 0
      %333 = vmatpush2.bf16.msra.mxu0 0
      %334 = vmatprep.subr.bf16.mxu0 0
      %335 = vmatpush2.bf16.msra.mxu0 0
      %336 = vmatprep.subr.bf16.mxu0 0
      %337 = vmatpush2.bf16.msra.mxu0 0
      %338 = vmatprep.subr.bf16.mxu0 0
      %339 = vmatpush2.bf16.msra.mxu0 0
      %340 = vmatprep.subr.bf16.mxu0 0
      %341 = vmatpush2.bf16.msra.mxu0 0
      %342 = vmatprep.mubr.bf16.mxu0 0
      %343 = vmatmul.mubr.bf16.gmra.mxu0 %v246
      %v344 = vpop.f32.mrf.mxu0
      %v345 = vadd.f32 %v212, %v344
      %v346 = vpop.f32.mrf.mxu0
      %v347 = vpop.f32.mrf.mxu0
      %v348 = vadd.f32 %v212, %v347
      %v349 = vpop.f32.mrf.mxu0
      %350 = vmatprep.mubr.bf16.mxu0 0
      %351 = vmatmul.mubr.bf16.gmra.mxu0 %v247
      %v352 = vpop.f32.mrf.mxu0
      %v353 = vadd.f32 %v212, %v352
      %v354 = vpop.f32.mrf.mxu0
      %v355 = vpop.f32.mrf.mxu0
      %v356 = vadd.f32 %v212, %v355
      %v357 = vpop.f32.mrf.mxu0
      %358 = vmatprep.mubr.bf16.mxu0 0
      %359 = vmatmul.mubr.bf16.gmra.mxu0 %v248
      %v360 = vpop.f32.mrf.mxu0
      %v361 = vadd.f32 %v212, %v360
      %v362 = vpop.f32.mrf.mxu0
      %v363 = vpop.f32.mrf.mxu0
      %v364 = vadd.f32 %v212, %v363
      %v365 = vpop.f32.mrf.mxu0
      %366 = vmatprep.mubr.bf16.mxu0 0
      %367 = vmatmul.mubr.bf16.gmra.mxu0 %v249
      %v368 = vpop.f32.mrf.mxu0
      %v369 = vadd.f32 %v212, %v368
      %v370 = vpop.f32.mrf.mxu0
      %v371 = vpop.f32.mrf.mxu0
      %v372 = vadd.f32 %v212, %v371
      %v373 = vpop.f32.mrf.mxu0
      %374 = vmatprep.mubr.bf16.mxu0 0
      %375 = vmatmul.mubr.bf16.gmra.mxu0 %v250
      %v376 = vpop.f32.mrf.mxu0
      %v377 = vadd.f32 %v212, %v376
      %v378 = vpop.f32.mrf.mxu0
      %v379 = vpop.f32.mrf.mxu0
      %v380 = vadd.f32 %v212, %v379
      %v381 = vpop.f32.mrf.mxu0
      %382 = vmatprep.mubr.bf16.mxu0 0
      %383 = vmatmul.mubr.bf16.gmra.mxu0 %v251
      %v384 = vpop.f32.mrf.mxu0
      %v385 = vadd.f32 %v212, %v384
      %v386 = vpop.f32.mrf.mxu0
      %v387 = vpop.f32.mrf.mxu0
      %v388 = vadd.f32 %v212, %v387
      %v389 = vpop.f32.mrf.mxu0
      %390 = vmatprep.mubr.bf16.mxu0 0
      %391 = vmatmul.mubr.bf16.gmra.mxu0 %v252
      %v392 = vpop.f32.mrf.mxu0
      %v393 = vadd.f32 %v212, %v392
      %v394 = vpop.f32.mrf.mxu0
      %v395 = vpop.f32.mrf.mxu0
      %v396 = vadd.f32 %v212, %v395
      %v397 = vpop.f32.mrf.mxu0
      %398 = vmatprep.mubr.bf16.mxu0 0
      %399 = vmatmul.mubr.bf16.gmra.mxu0 %v253
      %v400 = vpop.f32.mrf.mxu0
      %v401 = vadd.f32 %v212, %v400
      %v402 = vpop.f32.mrf.mxu0
      %v403 = vpop.f32.mrf.mxu0
      %v404 = vadd.f32 %v212, %v403
      %v405 = vpop.f32.mrf.mxu0
      %406 = vdwg.mxu0
      %v407 = vmax.f32 %v345, 0.0
      %v408 = vmax.f32 %v348, 0.0
      %v409 = vmax.f32 %v353, 0.0
      %v410 = vmax.f32 %v356, 0.0
      %v411 = vmax.f32 %v361, 0.0
      %v412 = vmax.f32 %v364, 0.0
      %v413 = vmax.f32 %v369, 0.0
      %v414 = vmax.f32 %v372, 0.0
      %v415 = vmax.f32 %v377, 0.0
      %v416 = vmax.f32 %v380, 0.0
      %v417 = vmax.f32 %v385, 0.0
      %v418 = vmax.f32 %v388, 0.0
      %v419 = vmax.f32 %v393, 0.0
      %v420 = vmax.f32 %v396, 0.0
      %v421 = vmax.f32 %v401, 0.0
      %v422 = vmax.f32 %v404, 0.0
      %v423 = vpack.c.bf16 %v408, %v407
      %v424 = vpack.c.bf16 %v410, %v409
      %v425 = vpack.c.bf16 %v412, %v411
      %v426 = vpack.c.bf16 %v414, %v413
      %v427 = vpack.c.bf16 %v416, %v415
      %v428 = vpack.c.bf16 %v418, %v417
      %v429 = vpack.c.bf16 %v420, %v419
      %v430 = vpack.c.bf16 %v422, %v421
      %v439 = vunpack.c.l.b16 %v423
      %v440 = vunpack.c.h.b16 %v423
      %v441 = vunpack.c.l.b16 %v424
      %v442 = vunpack.c.h.b16 %v424
      %v443 = vunpack.c.l.b16 %v425
      %v444 = vunpack.c.h.b16 %v425
      %v445 = vunpack.c.l.b16 %v426
      %v446 = vunpack.c.h.b16 %v426
      %v447 = vunpack.c.l.b16 %v427
      %v448 = vunpack.c.h.b16 %v427
      %v449 = vunpack.c.l.b16 %v428
      %v450 = vunpack.c.h.b16 %v428
      %v451 = vunpack.c.l.b16 %v429
      %v452 = vunpack.c.h.b16 %v429
      %v453 = vunpack.c.l.b16 %v430
      %v454 = vunpack.c.h.b16 %v430
      %v455 = vpack.c.b16 %v439, %v439
      %v456 = vpack.c.b16 %v440, %v440
      %v457 = vpack.c.b16 %v441, %v441
      %v458 = vpack.c.b16 %v442, %v442
      %v459 = vpack.c.b16 %v443, %v443
      %v460 = vpack.c.b16 %v444, %v444
      %v461 = vpack.c.b16 %v445, %v445
      %v462 = vpack.c.b16 %v446, %v446
      %v463 = vpack.c.b16 %v447, %v447
      %v464 = vpack.c.b16 %v448, %v448
      %v465 = vpack.c.b16 %v449, %v449
      %v466 = vpack.c.b16 %v450, %v450
      %v467 = vpack.c.b16 %v451, %v451
      %v468 = vpack.c.b16 %v452, %v452
      %v469 = vpack.c.b16 %v453, %v453
      %v470 = vpack.c.b16 %v454, %v454
      %487 = vst [vmem:[%s172] sm:$0xf] %v455
      %488 = vst [vmem:[%s172 + $0x4] sm:$0xf] %v456
      %489 = vst [vmem:[%s172 + $0x8] sm:$0xf] %v457
      %490 = vst [vmem:[%s172 + $0xc] sm:$0xf] %v458
      %491 = vst [vmem:[%s172 + $0x10] sm:$0xf] %v459
      %492 = vst [vmem:[%s172 + $0x14] sm:$0xf] %v460
      %493 = vst [vmem:[%s172 + $0x18] sm:$0xf] %v461
      %494 = vst [vmem:[%s172 + $0x1c] sm:$0xf] %v462
      %495 = vst [vmem:[%s172 + $0x20] sm:$0xf] %v463
      %496 = vst [vmem:[%s172 + $0x24] sm:$0xf] %v464
      %497 = vst [vmem:[%s172 + $0x28] sm:$0xf] %v465
      %498 = vst [vmem:[%s172 + $0x2c] sm:$0xf] %v466
      %499 = vst [vmem:[%s172 + $0x30] sm:$0xf] %v467
      %500 = vst [vmem:[%s172 + $0x34] sm:$0xf] %v468
      %501 = vst [vmem:[%s172 + $0x38] sm:$0xf] %v469
      %502 = vst [vmem:[%s172 + $0x3c] sm:$0xf] %v470
      %s503 = smul.u32 16, %s14
      %p504 = scmp.lt.s32.totalorder %s503, 63
      %s505 = scalar_select %p504, %s503, 63
      %s506 = smul.addr %s505, 4
      %s507 = scalar_lea.vmem %s3, %s506
      // Predicated region
      $region33: #{polnet_badgr_forward.2} parent=31 // pred_check
        %p508 = pneg %p100
      $region34: #{polnet_badgr_forward.2} parent=31 // pred_check_branch
        %510 = sbr.rel (%p508) target = $region36
      $region35: #{polnet_badgr_forward.2} parent=31 // pred_region
        %s511 = smul.u32 16, %s14
      $region36: #{polnet_badgr_forward.2} parent=31 // pred_fallthru
        _
    $region32: #{polnet_badgr_forward.2} parent=5 // pred_fallthru
      _
    %p512 = scmp.le.s32.totalorder 2, %s9
    // Predicated region
    $region37: #{polnet_badgr_forward.2} parent=5 // pred_check
      %p513 = pneg %p512
    $region38: #{polnet_badgr_forward.2} parent=5 // pred_check_branch
      %515 = sbr.rel (%p513) target = $region40
    $region39: #{polnet_badgr_forward.2} parent=5 // pred_region
      %s516 = ssub.s32 %s9, 2
      // Predicated region
      $region41: #{polnet_badgr_forward.2} parent=39 // pred_check
        %p517 = pneg %p106
      $region42: #{polnet_badgr_forward.2} parent=39 // pred_check_branch
        %519 = sbr.rel (%p517) target = $region44
      $region43: #{polnet_badgr_forward.2} parent=39 // pred_region
        %s520 = smul.u32 16, %s15
        %p521 = scmp.lt.s32.totalorder %s520, 63
        %s522 = scalar_select %p521, %s520, 63
        %s523 = smul.addr %s522, 4
        %s524 = scalar_lea.vmem %s3, %s523
      $region44: #{polnet_badgr_forward.2} parent=39 // pred_fallthru
        _
    $region40: #{polnet_badgr_forward.2} parent=5 // pred_fallthru
      _
  $region6: #{polnet_badgr_forward.2} parent=0 // loop_footer
    %s13 = sadd.s32 1, %s9
  $region7: #{polnet_badgr_forward.2} parent=0 // loop_footer_branch
    %8 = sbr.rel target = $region3
  $region8: #{polnet_badgr_forward.2} parent=0 // loop_exit
    _

// kernel: polnet_badgr_forward.3
$region0: #{polnet_badgr_forward.3}
  #allocation0 [shape = 'u32[]', space=smem, size = 0x4, offset = 0x4, fixed_abs, tag = 'smem constant byte address 0x4 - core index']
  #allocation1 [shape = 'u32[144,128]{1,0:T(1,128)}', space=vmem, size = 0x12000, scoped, tag = 'internal scratch']
  #allocation2 [shape = 'f32[64,512]{1,0:T(8,128)}', space=vmem, size = 0x20000, scoped, tag = 'scratch operand']
  %s0 = inlined_call_operand.vmem [shape: bf16[8,512], index: 0, kind: input, shape index: {}]
  %s1 = inlined_call_operand.vmem [shape: bf16[512,256], index: 1, kind: input, shape index: {}]
  %s2 = inlined_call_operand.vmem [shape: f32[1,256], index: 2, kind: input, shape index: {}]
  %s3 = inlined_call_operand.vmem [shape: bf16[256,256], index: 3, kind: input, shape index: {}]
  %s4 = inlined_call_operand.vmem [shape: f32[1,256], index: 4, kind: input, shape index: {}]
  %s5 = inlined_call_operand.vmem [shape: bf16[256,128], index: 5, kind: input, shape index: {}]
  %s6 = inlined_call_operand.vmem [shape: f32[1,128], index: 6, kind: input, shape index: {}]
  %s7 = inlined_call_operand.vmem [shape: bf16[128,128], index: 7, kind: input, shape index: {}]
  %s8 = inlined_call_operand.vmem [shape: f32[1,128], index: 8, kind: input, shape index: {}]
  %s9 = inlined_call_operand.vmem [shape: bf16[64,128], index: 9, kind: input, shape index: {}]
  %s10 = inlined_call_operand.vmem [shape: bf16[128,16], index: 10, kind: input, shape index: {}]
  %s11 = inlined_call_operand.vmem [shape: f32[1,16], index: 11, kind: input, shape index: {}]
  %s12 = inlined_call_operand.vmem [shape: bf16[16,16], index: 12, kind: input, shape index: {}]
  %s13 = inlined_call_operand.vmem [shape: f32[1,16], index: 13, kind: input, shape index: {}]
  %s14 = inlined_call_operand.vmem [shape: bf16[16,512], index: 14, kind: input, shape index: {}]
  %s15 = inlined_call_operand.vmem [shape: f32[1,512], index: 15, kind: input, shape index: {}]
  %s16 = inlined_call_operand.vmem [shape: bf16[128,512], index: 16, kind: input, shape index: {}]
  %s17 = inlined_call_operand.vmem [shape: bf16[128,64], index: 17, kind: input, shape index: {}]
  %s18 = inlined_call_operand.vmem [shape: f32[1,64], index: 18, kind: input, shape index: {}]
  %s19 = inlined_call_operand.vmem [shape: bf16[64,128], index: 19, kind: input, shape index: {}]
  %s20 = inlined_call_operand.vmem [shape: f32[1,128], index: 20, kind: input, shape index: {}]
  %s21 = inlined_call_operand.vmem [shape: f32[64,128], index: 21, kind: output, shape index: {}]
  %s22 = sld [smem:[#allocation0]]
  $region94: #{polnet_badgr_forward.3} parent=0
    _
  %s24 = ssub.s32 1, %s22
  %s25 = scalar_select 0, %s24, %s22
  // Predicated region
  $region2: #{polnet_badgr_forward.3} parent=0 // pred_check
    _
  $region3: #{polnet_badgr_forward.3} parent=0 // pred_check_branch
    %27 = sbr.rel (0) target = $region5
  $region4: #{polnet_badgr_forward.3} parent=0 // pred_region
    _
  $region5: #{polnet_badgr_forward.3} parent=0 // pred_fallthru
    _
  // Predicated region
  $region6: #{polnet_badgr_forward.3} parent=0 // pred_check
    _
  $region7: #{polnet_badgr_forward.3} parent=0 // pred_check_branch
    %29 = sbr.rel (0) target = $region9
  $region8: #{polnet_badgr_forward.3} parent=0 // pred_region
    _
  $region9: #{polnet_badgr_forward.3} parent=0 // pred_fallthru
    _
  // Predicated region
  $region10: #{polnet_badgr_forward.3} parent=0 // pred_check
    _
  $region11: #{polnet_badgr_forward.3} parent=0 // pred_check_branch
    %31 = sbr.rel (0) target = $region13
  $region12: #{polnet_badgr_forward.3} parent=0 // pred_region
    _
  $region13: #{polnet_badgr_forward.3} parent=0 // pred_fallthru
    _
  // Predicated region
  $region14: #{polnet_badgr_forward.3} parent=0 // pred_check
    _
  $region15: #{polnet_badgr_forward.3} parent=0 // pred_check_branch
    %33 = sbr.rel (0) target = $region17
  $region16: #{polnet_badgr_forward.3} parent=0 // pred_region
    _
  $region17: #{polnet_badgr_forward.3} parent=0 // pred_fallthru
    _
  // Predicated region
  $region18: #{polnet_badgr_forward.3} parent=0 // pred_check
    _
  $region19: #{polnet_badgr_forward.3} parent=0 // pred_check_branch
    %35 = sbr.rel (0) target = $region21
  $region20: #{polnet_badgr_forward.3} parent=0 // pred_region
    _
  $region21: #{polnet_badgr_forward.3} parent=0 // pred_fallthru
    _
  // Predicated region
  $region22: #{polnet_badgr_forward.3} parent=0 // pred_check
    _
  $region23: #{polnet_badgr_forward.3} parent=0 // pred_check_branch
    %37 = sbr.rel (0) target = $region25
  $region24: #{polnet_badgr_forward.3} parent=0 // pred_region
    _
  $region25: #{polnet_badgr_forward.3} parent=0 // pred_fallthru
    _
  // Predicated region
  $region26: #{polnet_badgr_forward.3} parent=0 // pred_check
    _
  $region27: #{polnet_badgr_forward.3} parent=0 // pred_check_branch
    %39 = sbr.rel (0) target = $region29
  $region28: #{polnet_badgr_forward.3} parent=0 // pred_region
    _
  $region29: #{polnet_badgr_forward.3} parent=0 // pred_fallthru
    _
  // Predicated region
  $region30: #{polnet_badgr_forward.3} parent=0 // pred_check
    _
  $region31: #{polnet_badgr_forward.3} parent=0 // pred_check_branch
    %41 = sbr.rel (0) target = $region33
  $region32: #{polnet_badgr_forward.3} parent=0 // pred_region
    _
  $region33: #{polnet_badgr_forward.3} parent=0 // pred_fallthru
    _
  // Predicated region
  $region34: #{polnet_badgr_forward.3} parent=0 // pred_check
    _
  $region35: #{polnet_badgr_forward.3} parent=0 // pred_check_branch
    %43 = sbr.rel (0) target = $region37
  $region36: #{polnet_badgr_forward.3} parent=0 // pred_region
    _
  $region37: #{polnet_badgr_forward.3} parent=0 // pred_fallthru
    _
  // Predicated region
  $region38: #{polnet_badgr_forward.3} parent=0 // pred_check
    _
  $region39: #{polnet_badgr_forward.3} parent=0 // pred_check_branch
    %45 = sbr.rel (0) target = $region41
  $region40: #{polnet_badgr_forward.3} parent=0 // pred_region
    _
  $region41: #{polnet_badgr_forward.3} parent=0 // pred_fallthru
    _
  // Predicated region
  $region42: #{polnet_badgr_forward.3} parent=0 // pred_check
    _
  $region43: #{polnet_badgr_forward.3} parent=0 // pred_check_branch
    %47 = sbr.rel (0) target = $region45
  $region44: #{polnet_badgr_forward.3} parent=0 // pred_region
    _
  $region45: #{polnet_badgr_forward.3} parent=0 // pred_fallthru
    _
  // Predicated region
  $region46: #{polnet_badgr_forward.3} parent=0 // pred_check
    _
  $region47: #{polnet_badgr_forward.3} parent=0 // pred_check_branch
    %49 = sbr.rel (0) target = $region49
  $region48: #{polnet_badgr_forward.3} parent=0 // pred_region
    _
  $region49: #{polnet_badgr_forward.3} parent=0 // pred_fallthru
    _
  // Predicated region
  $region50: #{polnet_badgr_forward.3} parent=0 // pred_check
    _
  $region51: #{polnet_badgr_forward.3} parent=0 // pred_check_branch
    %51 = sbr.rel (0) target = $region53
  $region52: #{polnet_badgr_forward.3} parent=0 // pred_region
    _
  $region53: #{polnet_badgr_forward.3} parent=0 // pred_fallthru
    _
  // Predicated region
  $region54: #{polnet_badgr_forward.3} parent=0 // pred_check
    _
  $region55: #{polnet_badgr_forward.3} parent=0 // pred_check_branch
    %53 = sbr.rel (0) target = $region57
  $region56: #{polnet_badgr_forward.3} parent=0 // pred_region
    _
  $region57: #{polnet_badgr_forward.3} parent=0 // pred_fallthru
    _
  // Predicated region
  $region58: #{polnet_badgr_forward.3} parent=0 // pred_check
    _
  $region59: #{polnet_badgr_forward.3} parent=0 // pred_check_branch
    %55 = sbr.rel (0) target = $region61
  $region60: #{polnet_badgr_forward.3} parent=0 // pred_region
    _
  $region61: #{polnet_badgr_forward.3} parent=0 // pred_fallthru
    _
  // Predicated region
  $region62: #{polnet_badgr_forward.3} parent=0 // pred_check
    _
  $region63: #{polnet_badgr_forward.3} parent=0 // pred_check_branch
    %57 = sbr.rel (0) target = $region65
  $region64: #{polnet_badgr_forward.3} parent=0 // pred_region
    _
  $region65: #{polnet_badgr_forward.3} parent=0 // pred_fallthru
    _
  // Predicated region
  $region66: #{polnet_badgr_forward.3} parent=0 // pred_check
    _
  $region67: #{polnet_badgr_forward.3} parent=0 // pred_check_branch
    %59 = sbr.rel (0) target = $region69
  $region68: #{polnet_badgr_forward.3} parent=0 // pred_region
    _
  $region69: #{polnet_badgr_forward.3} parent=0 // pred_fallthru
    _
  // Predicated region
  $region70: #{polnet_badgr_forward.3} parent=0 // pred_check
    _
  $region71: #{polnet_badgr_forward.3} parent=0 // pred_check_branch
    %61 = sbr.rel (0) target = $region73
  $region72: #{polnet_badgr_forward.3} parent=0 // pred_region
    _
  $region73: #{polnet_badgr_forward.3} parent=0 // pred_fallthru
    _
  // Predicated region
  $region74: #{polnet_badgr_forward.3} parent=0 // pred_check
    _
  $region75: #{polnet_badgr_forward.3} parent=0 // pred_check_branch
    %63 = sbr.rel (0) target = $region77
  $region76: #{polnet_badgr_forward.3} parent=0 // pred_region
    _
  $region77: #{polnet_badgr_forward.3} parent=0 // pred_fallthru
    _
  // Predicated region
  $region78: #{polnet_badgr_forward.3} parent=0 // pred_check
    _
  $region79: #{polnet_badgr_forward.3} parent=0 // pred_check_branch
    %65 = sbr.rel (0) target = $region81
  $region80: #{polnet_badgr_forward.3} parent=0 // pred_region
    _
  $region81: #{polnet_badgr_forward.3} parent=0 // pred_fallthru
    _
  // Predicated region
  $region82: #{polnet_badgr_forward.3} parent=0 // pred_check
    _
  $region83: #{polnet_badgr_forward.3} parent=0 // pred_check_branch
    %67 = sbr.rel (0) target = $region85
  $region84: #{polnet_badgr_forward.3} parent=0 // pred_region
    _
  $region85: #{polnet_badgr_forward.3} parent=0 // pred_fallthru
    _
  %v69 = vld [vmem:[%s0] sm:$0xff]
  %v70 = vld [vmem:[%s0 + $0x8] sm:$0xff]
  %v71 = vld [vmem:[%s1] sm:$0xff]
  %v72 = vld [vmem:[%s1 + $0x8] sm:$0xff]
  %v73 = vld [vmem:[%s1 + $0x10] sm:$0xff]
  %v74 = vld [vmem:[%s1 + $0x18] sm:$0xff]
  %v75 = vld [vmem:[%s1 + $0x20] sm:$0xff]
  %v76 = vld [vmem:[%s1 + $0x28] sm:$0xff]
  %v77 = vld [vmem:[%s1 + $0x30] sm:$0xff]
  %v78 = vld [vmem:[%s1 + $0x38] sm:$0xff]
  %v79 = vld [vmem:[%s1 + $0x40] sm:$0xff]
  %v80 = vld [vmem:[%s1 + $0x48] sm:$0xff]
  %v81 = vld [vmem:[%s1 + $0x50] sm:$0xff]
  %v82 = vld [vmem:[%s1 + $0x58] sm:$0xff]
  %v83 = vld [vmem:[%s1 + $0x60] sm:$0xff]
  %v84 = vld [vmem:[%s1 + $0x68] sm:$0xff]
  %v85 = vld [vmem:[%s1 + $0x70] sm:$0xff]
  %v86 = vld [vmem:[%s1 + $0x78] sm:$0xff]
  %v87 = vld [vmem:[%s1 + $0x80] sm:$0xff]
  %v88 = vld [vmem:[%s1 + $0x88] sm:$0xff]
  %v89 = vld [vmem:[%s1 + $0x90] sm:$0xff]
  %v90 = vld [vmem:[%s1 + $0x98] sm:$0xff]
  %v91 = vld [vmem:[%s1 + $0xa0] sm:$0xff]
  %v92 = vld [vmem:[%s1 + $0xa8] sm:$0xff]
  %v93 = vld [vmem:[%s1 + $0xb0] sm:$0xff]
  %v94 = vld [vmem:[%s1 + $0xb8] sm:$0xff]
  %v95 = vld [vmem:[%s1 + $0xc0] sm:$0xff]
  %v96 = vld [vmem:[%s1 + $0xc8] sm:$0xff]
  %v97 = vld [vmem:[%s1 + $0xd0] sm:$0xff]
  %v98 = vld [vmem:[%s1 + $0xd8] sm:$0xff]
  %v99 = vld [vmem:[%s1 + $0xe0] sm:$0xff]
  %v100 = vld [vmem:[%s1 + $0xe8] sm:$0xff]
  %v101 = vld [vmem:[%s1 + $0xf0] sm:$0xff]
  %v102 = vld [vmem:[%s1 + $0xf8] sm:$0xff]
  %v103 = vld [vmem:[%s1 + $0x100] sm:$0xff]
  %v104 = vld [vmem:[%s1 + $0x108] sm:$0xff]
  %v105 = vld [vmem:[%s1 + $0x110] sm:$0xff]
  %v106 = vld [vmem:[%s1 + $0x118] sm:$0xff]
  %v107 = vld [vmem:[%s1 + $0x120] sm:$0xff]
  %v108 = vld [vmem:[%s1 + $0x128] sm:$0xff]
  %v109 = vld [vmem:[%s1 + $0x130] sm:$0xff]
  %v110 = vld [vmem:[%s1 + $0x138] sm:$0xff]
  %v111 = vld [vmem:[%s1 + $0x140] sm:$0xff]
  %v112 = vld [vmem:[%s1 + $0x148] sm:$0xff]
  %v113 = vld [vmem:[%s1 + $0x150] sm:$0xff]
  %v114 = vld [vmem:[%s1 + $0x158] sm:$0xff]
  %v115 = vld [vmem:[%s1 + $0x160] sm:$0xff]
  %v116 = vld [vmem:[%s1 + $0x168] sm:$0xff]
  %v117 = vld [vmem:[%s1 + $0x170] sm:$0xff]
  %v118 = vld [vmem:[%s1 + $0x178] sm:$0xff]
  %v119 = vld [vmem:[%s1 + $0x180] sm:$0xff]
  %v120 = vld [vmem:[%s1 + $0x188] sm:$0xff]
  %v121 = vld [vmem:[%s1 + $0x190] sm:$0xff]
  %v122 = vld [vmem:[%s1 + $0x198] sm:$0xff]
  %v123 = vld [vmem:[%s1 + $0x1a0] sm:$0xff]
  %v124 = vld [vmem:[%s1 + $0x1a8] sm:$0xff]
  %v125 = vld [vmem:[%s1 + $0x1b0] sm:$0xff]
  %v126 = vld [vmem:[%s1 + $0x1b8] sm:$0xff]
  %v127 = vld [vmem:[%s1 + $0x1c0] sm:$0xff]
  %v128 = vld [vmem:[%s1 + $0x1c8] sm:$0xff]
  %v129 = vld [vmem:[%s1 + $0x1d0] sm:$0xff]
  %v130 = vld [vmem:[%s1 + $0x1d8] sm:$0xff]
  %v131 = vld [vmem:[%s1 + $0x1e0] sm:$0xff]
  %v132 = vld [vmem:[%s1 + $0x1e8] sm:$0xff]
  %v133 = vld [vmem:[%s1 + $0x1f0] sm:$0xff]
  %v134 = vld [vmem:[%s1 + $0x1f8] sm:$0xff]
  %v135 = vld [vmem:[%s2] sm:$0x3]
  %v137 = vlaneseq
  %v138 = vshrl.u32 %v137, 7
  %v139 = vsub.s32 0, %v138
  %v140 = vrot.slane %v135, %v139
  %v141 = vlaneseq
  %v142 = vshrl.u32 %v141, 7
  %v143 = vsub.s32 1, %v142
  %v144 = vrot.slane %v135, %v143
  %v149 = vunpack.c.l.b16 %v69
  %v150 = vunpack.c.h.b16 %v69
  %v151 = vunpack.c.l.b16 %v70
  %v152 = vunpack.c.h.b16 %v70
  %v153 = vpack.c.b16 %v149, %v149
  %v154 = vpack.c.b16 %v150, %v150
  %v155 = vpack.c.b16 %v151, %v151
  %v156 = vpack.c.b16 %v152, %v152
  %v225 = vunpack.c.l.b16 %v71
  %v226 = vunpack.c.h.b16 %v71
  %v227 = vunpack.c.l.b16 %v72
  %v228 = vunpack.c.h.b16 %v72
  %v229 = vunpack.c.l.b16 %v73
  %v230 = vunpack.c.h.b16 %v73
  %v231 = vunpack.c.l.b16 %v74
  %v232 = vunpack.c.h.b16 %v74
  %v233 = vunpack.c.l.b16 %v75
  %v234 = vunpack.c.h.b16 %v75
  %v235 = vunpack.c.l.b16 %v76
  %v236 = vunpack.c.h.b16 %v76
  %v237 = vunpack.c.l.b16 %v77
  %v238 = vunpack.c.h.b16 %v77
  %v239 = vunpack.c.l.b16 %v78
  %v240 = vunpack.c.h.b16 %v78
  %v241 = vunpack.c.l.b16 %v79
  %v242 = vunpack.c.h.b16 %v79
  %v243 = vunpack.c.l.b16 %v80
  %v244 = vunpack.c.h.b16 %v80
  %v245 = vunpack.c.l.b16 %v81
  %v246 = vunpack.c.h.b16 %v81
  %v247 = vunpack.c.l.b16 %v82
  %v248 = vunpack.c.h.b16 %v82
  %v249 = vunpack.c.l.b16 %v83
  %v250 = vunpack.c.h.b16 %v83
  %v251 = vunpack.c.l.b16 %v84
  %v252 = vunpack.c.h.b16 %v84
  %v253 = vunpack.c.l.b16 %v85
  %v254 = vunpack.c.h.b16 %v85
  %v255 = vunpack.c.l.b16 %v86
  %v256 = vunpack.c.h.b16 %v86
  %v257 = vunpack.c.l.b16 %v87
  %v258 = vunpack.c.h.b16 %v87
  %v259 = vunpack.c.l.b16 %v88
  %v260 = vunpack.c.h.b16 %v88
  %v261 = vunpack.c.l.b16 %v89
  %v262 = vunpack.c.h.b16 %v89
  %v263 = vunpack.c.l.b16 %v90
  %v264 = vunpack.c.h.b16 %v90
  %v265 = vunpack.c.l.b16 %v91
  %v266 = vunpack.c.h.b16 %v91
  %v267 = vunpack.c.l.b16 %v92
  %v268 = vunpack.c.h.b16 %v92
  %v269 = vunpack.c.l.b16 %v93
  %v270 = vunpack.c.h.b16 %v93
  %v271 = vunpack.c.l.b16 %v94
  %v272 = vunpack.c.h.b16 %v94
  %v273 = vunpack.c.l.b16 %v95
  %v274 = vunpack.c.h.b16 %v95
  %v275 = vunpack.c.l.b16 %v96
  %v276 = vunpack.c.h.b16 %v96
  %v277 = vunpack.c.l.b16 %v97
  %v278 = vunpack.c.h.b16 %v97
  %v279 = vunpack.c.l.b16 %v98
  %v280 = vunpack.c.h.b16 %v98
  %v281 = vunpack.c.l.b16 %v99
  %v282 = vunpack.c.h.b16 %v99
  %v283 = vunpack.c.l.b16 %v100
  %v284 = vunpack.c.h.b16 %v100
  %v285 = vunpack.c.l.b16 %v101
  %v286 = vunpack.c.h.b16 %v101
  %v287 = vunpack.c.l.b16 %v102
  %v288 = vunpack.c.h.b16 %v102
  %v289 = vunpack.c.l.b16 %v103
  %v290 = vunpack.c.h.b16 %v103
  %v291 = vunpack.c.l.b16 %v104
  %v292 = vunpack.c.h.b16 %v104
  %v293 = vunpack.c.l.b16 %v105
  %v294 = vunpack.c.h.b16 %v105
  %v295 = vunpack.c.l.b16 %v106
  %v296 = vunpack.c.h.b16 %v106
  %v297 = vunpack.c.l.b16 %v107
  %v298 = vunpack.c.h.b16 %v107
  %v299 = vunpack.c.l.b16 %v108
  %v300 = vunpack.c.h.b16 %v108
  %v301 = vunpack.c.l.b16 %v109
  %v302 = vunpack.c.h.b16 %v109
  %v303 = vunpack.c.l.b16 %v110
  %v304 = vunpack.c.h.b16 %v110
  %v305 = vunpack.c.l.b16 %v111
  %v306 = vunpack.c.h.b16 %v111
  %v307 = vunpack.c.l.b16 %v112
  %v308 = vunpack.c.h.b16 %v112
  %v309 = vunpack.c.l.b16 %v113
  %v310 = vunpack.c.h.b16 %v113
  %v311 = vunpack.c.l.b16 %v114
  %v312 = vunpack.c.h.b16 %v114
  %v313 = vunpack.c.l.b16 %v115
  %v314 = vunpack.c.h.b16 %v115
  %v315 = vunpack.c.l.b16 %v116
  %v316 = vunpack.c.h.b16 %v116
  %v317 = vunpack.c.l.b16 %v117
  %v318 = vunpack.c.h.b16 %v117
  %v319 = vunpack.c.l.b16 %v118
  %v320 = vunpack.c.h.b16 %v118
  %v321 = vunpack.c.l.b16 %v119
  %v322 = vunpack.c.h.b16 %v119
  %v323 = vunpack.c.l.b16 %v120
  %v324 = vunpack.c.h.b16 %v120
  %v325 = vunpack.c.l.b16 %v121
  %v326 = vunpack.c.h.b16 %v121
  %v327 = vunpack.c.l.b16 %v122
  %v328 = vunpack.c.h.b16 %v122
  %v329 = vunpack.c.l.b16 %v123
  %v330 = vunpack.c.h.b16 %v123
  %v331 = vunpack.c.l.b16 %v124
  %v332 = vunpack.c.h.b16 %v124
  %v333 = vunpack.c.l.b16 %v125
  %v334 = vunpack.c.h.b16 %v125
  %v335 = vunpack.c.l.b16 %v126
  %v336 = vunpack.c.h.b16 %v126
  %v337 = vunpack.c.l.b16 %v127
  %v338 = vunpack.c.h.b16 %v127
  %v339 = vunpack.c.l.b16 %v128
  %v340 = vunpack.c.h.b16 %v128
  %v341 = vunpack.c.l.b16 %v129
  %v342 = vunpack.c.h.b16 %v129
  %v343 = vunpack.c.l.b16 %v130
  %v344 = vunpack.c.h.b16 %v130
  %v345 = vunpack.c.l.b16 %v131
  %v346 = vunpack.c.h.b16 %v131
  %v347 = vunpack.c.l.b16 %v132
  %v348 = vunpack.c.h.b16 %v132
  %v349 = vunpack.c.l.b16 %v133
  %v350 = vunpack.c.h.b16 %v133
  %v351 = vunpack.c.l.b16 %v134
  %v352 = vunpack.c.h.b16 %v134
  %v353 = vpack.c.b16 %v227, %v225
  %v354 = vpack.c.b16 %v228, %v226
  %v355 = vpack.c.b16 %v231, %v229
  %v356 = vpack.c.b16 %v232, %v230
  %v357 = vpack.c.b16 %v235, %v233
  %v358 = vpack.c.b16 %v236, %v234
  %v359 = vpack.c.b16 %v239, %v237
  %v360 = vpack.c.b16 %v240, %v238
  %v361 = vpack.c.b16 %v243, %v241
  %v362 = vpack.c.b16 %v244, %v242
  %v363 = vpack.c.b16 %v247, %v245
  %v364 = vpack.c.b16 %v248, %v246
  %v365 = vpack.c.b16 %v251, %v249
  %v366 = vpack.c.b16 %v252, %v250
  %v367 = vpack.c.b16 %v255, %v253
  %v368 = vpack.c.b16 %v256, %v254
  %v369 = vpack.c.b16 %v259, %v257
  %v370 = vpack.c.b16 %v260, %v258
  %v371 = vpack.c.b16 %v263, %v261
  %v372 = vpack.c.b16 %v264, %v262
  %v373 = vpack.c.b16 %v267, %v265
  %v374 = vpack.c.b16 %v268, %v266
  %v375 = vpack.c.b16 %v271, %v269
  %v376 = vpack.c.b16 %v272, %v270
  %v377 = vpack.c.b16 %v275, %v273
  %v378 = vpack.c.b16 %v276, %v274
  %v379 = vpack.c.b16 %v279, %v277
  %v380 = vpack.c.b16 %v280, %v278
  %v381 = vpack.c.b16 %v283, %v281
  %v382 = vpack.c.b16 %v284, %v282
  %v383 = vpack.c.b16 %v287, %v285
  %v384 = vpack.c.b16 %v288, %v286
  %v385 = vpack.c.b16 %v291, %v289
  %v386 = vpack.c.b16 %v292, %v290
  %v387 = vpack.c.b16 %v295, %v293
  %v388 = vpack.c.b16 %v296, %v294
  %v389 = vpack.c.b16 %v299, %v297
  %v390 = vpack.c.b16 %v300, %v298
  %v391 = vpack.c.b16 %v303, %v301
  %v392 = vpack.c.b16 %v304, %v302
  %v393 = vpack.c.b16 %v307, %v305
  %v394 = vpack.c.b16 %v308, %v306
  %v395 = vpack.c.b16 %v311, %v309
  %v396 = vpack.c.b16 %v312, %v310
  %v397 = vpack.c.b16 %v315, %v313
  %v398 = vpack.c.b16 %v316, %v314
  %v399 = vpack.c.b16 %v319, %v317
  %v400 = vpack.c.b16 %v320, %v318
  %v401 = vpack.c.b16 %v323, %v321
  %v402 = vpack.c.b16 %v324, %v322
  %v403 = vpack.c.b16 %v327, %v325
  %v404 = vpack.c.b16 %v328, %v326
  %v405 = vpack.c.b16 %v331, %v329
  %v406 = vpack.c.b16 %v332, %v330
  %v407 = vpack.c.b16 %v335, %v333
  %v408 = vpack.c.b16 %v336, %v334
  %v409 = vpack.c.b16 %v339, %v337
  %v410 = vpack.c.b16 %v340, %v338
  %v411 = vpack.c.b16 %v343, %v341
  %v412 = vpack.c.b16 %v344, %v342
  %v413 = vpack.c.b16 %v347, %v345
  %v414 = vpack.c.b16 %v348, %v346
  %v415 = vpack.c.b16 %v351, %v349
  %v416 = vpack.c.b16 %v352, %v350
  %481 = vmatprep.subr.bf16.mxu0 %v368
  %482 = vmatpush1.bf16.msra.mxu0 %v367
  %483 = vmatprep.subr.bf16.mxu0 %v366
  %484 = vmatpush1.bf16.msra.mxu0 %v365
  %485 = vmatprep.subr.bf16.mxu0 %v364
  %486 = vmatpush1.bf16.msra.mxu0 %v363
  %487 = vmatprep.subr.bf16.mxu0 %v362
  %488 = vmatpush1.bf16.msra.mxu0 %v361
  %489 = vmatprep.subr.bf16.mxu0 %v360
  %490 = vmatpush1.bf16.msra.mxu0 %v359
  %491 = vmatprep.subr.bf16.mxu0 %v358
  %492 = vmatpush1.bf16.msra.mxu0 %v357
  %493 = vmatprep.subr.bf16.mxu0 %v356
  %494 = vmatpush1.bf16.msra.mxu0 %v355
  %495 = vmatprep.subr.bf16.mxu0 %v354
  %496 = vmatpush1.bf16.msra.mxu0 %v353
  %497 = vmatprep.subr.bf16.mxu0 %v384
  %498 = vmatpush2.bf16.msra.mxu0 %v383
  %499 = vmatprep.subr.bf16.mxu0 %v382
  %500 = vmatpush2.bf16.msra.mxu0 %v381
  %501 = vmatprep.subr.bf16.mxu0 %v380
  %502 = vmatpush2.bf16.msra.mxu0 %v379
  %503 = vmatprep.subr.bf16.mxu0 %v378
  %504 = vmatpush2.bf16.msra.mxu0 %v377
  %505 = vmatprep.subr.bf16.mxu0 %v376
  %506 = vmatpush2.bf16.msra.mxu0 %v375
  %507 = vmatprep.subr.bf16.mxu0 %v374
  %508 = vmatpush2.bf16.msra.mxu0 %v373
  %509 = vmatprep.subr.bf16.mxu0 %v372
  %510 = vmatpush2.bf16.msra.mxu0 %v371
  %511 = vmatprep.subr.bf16.mxu0 %v370
  %512 = vmatpush2.bf16.msra.mxu0 %v369
  %513 = vmatprep.mubr.bf16.mxu0 %v154
  %514 = vmatmul.mubr.bf16.gmra.mxu0 %v153
  %v515 = vpop.f32.mrf.mxu0
  %v516 = vadd.f32 %v140, %v515
  %v517 = vpop.f32.mrf.mxu0
  %v518 = vadd.f32 %v144, %v517
  %v519 = vpop.f32.mrf.mxu0
  %v520 = vpop.f32.mrf.mxu0
  %521 = vdwg.mxu0
  %522 = vmatprep.subr.bf16.mxu0 %v400
  %523 = vmatpush1.bf16.msra.mxu0 %v399
  %524 = vmatprep.subr.bf16.mxu0 %v398
  %525 = vmatpush1.bf16.msra.mxu0 %v397
  %526 = vmatprep.subr.bf16.mxu0 %v396
  %527 = vmatpush1.bf16.msra.mxu0 %v395
  %528 = vmatprep.subr.bf16.mxu0 %v394
  %529 = vmatpush1.bf16.msra.mxu0 %v393
  %530 = vmatprep.subr.bf16.mxu0 %v392
  %531 = vmatpush1.bf16.msra.mxu0 %v391
  %532 = vmatprep.subr.bf16.mxu0 %v390
  %533 = vmatpush1.bf16.msra.mxu0 %v389
  %534 = vmatprep.subr.bf16.mxu0 %v388
  %535 = vmatpush1.bf16.msra.mxu0 %v387
  %536 = vmatprep.subr.bf16.mxu0 %v386
  %537 = vmatpush1.bf16.msra.mxu0 %v385
  %538 = vmatprep.subr.bf16.mxu0 %v416
  %539 = vmatpush2.bf16.msra.mxu0 %v415
  %540 = vmatprep.subr.bf16.mxu0 %v414
  %541 = vmatpush2.bf16.msra.mxu0 %v413
  %542 = vmatprep.subr.bf16.mxu0 %v412
  %543 = vmatpush2.bf16.msra.mxu0 %v411
  %544 = vmatprep.subr.bf16.mxu0 %v410
  %545 = vmatpush2.bf16.msra.mxu0 %v409
  %546 = vmatprep.subr.bf16.mxu0 %v408
  %547 = vmatpush2.bf16.msra.mxu0 %v407
  %548 = vmatprep.subr.bf16.mxu0 %v406
  %549 = vmatpush2.bf16.msra.mxu0 %v405
  %550 = vmatprep.subr.bf16.mxu0 %v404
  %551 = vmatpush2.bf16.msra.mxu0 %v403
  %552 = vmatprep.subr.bf16.mxu0 %v402
  %553 = vmatpush2.bf16.msra.mxu0 %v401
  %554 = vmatprep.mubr.bf16.mxu0 %v156
  %555 = vmatmul.mubr.bf16.gmra.mxu0 %v155
  %v556 = vpop.f32.mrf.mxu0
  %v557 = vadd.f32 %v516, %v556
  %v558 = vpop.f32.mrf.mxu0
  %v559 = vadd.f32 %v518, %v558
  %v560 = vpop.f32.mrf.mxu0
  %v561 = vpop.f32.mrf.mxu0
  %562 = vdwg.mxu0
  %v563 = vmax.f32 %v557, 0.0
  %v564 = vmax.f32 %v559, 0.0
  %v565 = vpack.c.bf16 %v563, %v563
  %v566 = vpack.c.bf16 %v564, %v564
  %v567 = vld [vmem:[%s3] sm:$0xff]
  %v568 = vld [vmem:[%s3 + $0x8] sm:$0xff]
  %v569 = vld [vmem:[%s3 + $0x10] sm:$0xff]
  %v570 = vld [vmem:[%s3 + $0x18] sm:$0xff]
  %v571 = vld [vmem:[%s3 + $0x20] sm:$0xff]
  %v572 = vld [vmem:[%s3 + $0x28] sm:$0xff]
  %v573 = vld [vmem:[%s3 + $0x30] sm:$0xff]
  %v574 = vld [vmem:[%s3 + $0x38] sm:$0xff]
  %v575 = vld [vmem:[%s3 + $0x40] sm:$0xff]
  %v576 = vld [vmem:[%s3 + $0x48] sm:$0xff]
  %v577 = vld [vmem:[%s3 + $0x50] sm:$0xff]
  %v578 = vld [vmem:[%s3 + $0x58] sm:$0xff]
  %v579 = vld [vmem:[%s3 + $0x60] sm:$0xff]
  %v580 = vld [vmem:[%s3 + $0x68] sm:$0xff]
  %v581 = vld [vmem:[%s3 + $0x70] sm:$0xff]
  %v582 = vld [vmem:[%s3 + $0x78] sm:$0xff]
  %v583 = vld [vmem:[%s3 + $0x80] sm:$0xff]
  %v584 = vld [vmem:[%s3 + $0x88] sm:$0xff]
  %v585 = vld [vmem:[%s3 + $0x90] sm:$0xff]
  %v586 = vld [vmem:[%s3 + $0x98] sm:$0xff]
  %v587 = vld [vmem:[%s3 + $0xa0] sm:$0xff]
  %v588 = vld [vmem:[%s3 + $0xa8] sm:$0xff]
  %v589 = vld [vmem:[%s3 + $0xb0] sm:$0xff]
  %v590 = vld [vmem:[%s3 + $0xb8] sm:$0xff]
  %v591 = vld [vmem:[%s3 + $0xc0] sm:$0xff]
  %v592 = vld [vmem:[%s3 + $0xc8] sm:$0xff]
  %v593 = vld [vmem:[%s3 + $0xd0] sm:$0xff]
  %v594 = vld [vmem:[%s3 + $0xd8] sm:$0xff]
  %v595 = vld [vmem:[%s3 + $0xe0] sm:$0xff]
  %v596 = vld [vmem:[%s3 + $0xe8] sm:$0xff]
  %v597 = vld [vmem:[%s3 + $0xf0] sm:$0xff]
  %v598 = vld [vmem:[%s3 + $0xf8] sm:$0xff]
  %v599 = vld [vmem:[%s4] sm:$0x3]
  %v601 = vlaneseq
  %v602 = vshrl.u32 %v601, 7
  %v603 = vsub.s32 0, %v602
  %v604 = vrot.slane %v599, %v603
  %v605 = vlaneseq
  %v606 = vshrl.u32 %v605, 7
  %v607 = vsub.s32 1, %v606
  %v608 = vrot.slane %v599, %v607
  %v643 = vunpack.c.l.b16 %v567
  %v644 = vunpack.c.h.b16 %v567
  %v645 = vunpack.c.l.b16 %v568
  %v646 = vunpack.c.h.b16 %v568
  %v647 = vunpack.c.l.b16 %v569
  %v648 = vunpack.c.h.b16 %v569
  %v649 = vunpack.c.l.b16 %v570
  %v650 = vunpack.c.h.b16 %v570
  %v651 = vunpack.c.l.b16 %v571
  %v652 = vunpack.c.h.b16 %v571
  %v653 = vunpack.c.l.b16 %v572
  %v654 = vunpack.c.h.b16 %v572
  %v655 = vunpack.c.l.b16 %v573
  %v656 = vunpack.c.h.b16 %v573
  %v657 = vunpack.c.l.b16 %v574
  %v658 = vunpack.c.h.b16 %v574
  %v659 = vunpack.c.l.b16 %v575
  %v660 = vunpack.c.h.b16 %v575
  %v661 = vunpack.c.l.b16 %v576
  %v662 = vunpack.c.h.b16 %v576
  %v663 = vunpack.c.l.b16 %v577
  %v664 = vunpack.c.h.b16 %v577
  %v665 = vunpack.c.l.b16 %v578
  %v666 = vunpack.c.h.b16 %v578
  %v667 = vunpack.c.l.b16 %v579
  %v668 = vunpack.c.h.b16 %v579
  %v669 = vunpack.c.l.b16 %v580
  %v670 = vunpack.c.h.b16 %v580
  %v671 = vunpack.c.l.b16 %v581
  %v672 = vunpack.c.h.b16 %v581
  %v673 = vunpack.c.l.b16 %v582
  %v674 = vunpack.c.h.b16 %v582
  %v675 = vunpack.c.l.b16 %v583
  %v676 = vunpack.c.h.b16 %v583
  %v677 = vunpack.c.l.b16 %v584
  %v678 = vunpack.c.h.b16 %v584
  %v679 = vunpack.c.l.b16 %v585
  %v680 = vunpack.c.h.b16 %v585
  %v681 = vunpack.c.l.b16 %v586
  %v682 = vunpack.c.h.b16 %v586
  %v683 = vunpack.c.l.b16 %v587
  %v684 = vunpack.c.h.b16 %v587
  %v685 = vunpack.c.l.b16 %v588
  %v686 = vunpack.c.h.b16 %v588
  %v687 = vunpack.c.l.b16 %v589
  %v688 = vunpack.c.h.b16 %v589
  %v689 = vunpack.c.l.b16 %v590
  %v690 = vunpack.c.h.b16 %v590
  %v691 = vunpack.c.l.b16 %v591
  %v692 = vunpack.c.h.b16 %v591
  %v693 = vunpack.c.l.b16 %v592
  %v694 = vunpack.c.h.b16 %v592
  %v695 = vunpack.c.l.b16 %v593
  %v696 = vunpack.c.h.b16 %v593
  %v697 = vunpack.c.l.b16 %v594
  %v698 = vunpack.c.h.b16 %v594
  %v699 = vunpack.c.l.b16 %v595
  %v700 = vunpack.c.h.b16 %v595
  %v701 = vunpack.c.l.b16 %v596
  %v702 = vunpack.c.h.b16 %v596
  %v703 = vunpack.c.l.b16 %v597
  %v704 = vunpack.c.h.b16 %v597
  %v705 = vunpack.c.l.b16 %v598
  %v706 = vunpack.c.h.b16 %v598
  %v707 = vpack.c.b16 %v645, %v643
  %v708 = vpack.c.b16 %v646, %v644
  %v709 = vpack.c.b16 %v649, %v647
  %v710 = vpack.c.b16 %v650, %v648
  %v711 = vpack.c.b16 %v653, %v651
  %v712 = vpack.c.b16 %v654, %v652
  %v713 = vpack.c.b16 %v657, %v655
  %v714 = vpack.c.b16 %v658, %v656
  %v715 = vpack.c.b16 %v661, %v659
  %v716 = vpack.c.b16 %v662, %v660
  %v717 = vpack.c.b16 %v665, %v663
  %v718 = vpack.c.b16 %v666, %v664
  %v719 = vpack.c.b16 %v669, %v667
  %v720 = vpack.c.b16 %v670, %v668
  %v721 = vpack.c.b16 %v673, %v671
  %v722 = vpack.c.b16 %v674, %v672
  %v723 = vpack.c.b16 %v677, %v675
  %v724 = vpack.c.b16 %v678, %v676
  %v725 = vpack.c.b16 %v681, %v679
  %v726 = vpack.c.b16 %v682, %v680
  %v727 = vpack.c.b16 %v685, %v683
  %v728 = vpack.c.b16 %v686, %v684
  %v729 = vpack.c.b16 %v689, %v687
  %v730 = vpack.c.b16 %v690, %v688
  %v731 = vpack.c.b16 %v693, %v691
  %v732 = vpack.c.b16 %v694, %v692
  %v733 = vpack.c.b16 %v697, %v695
  %v734 = vpack.c.b16 %v698, %v696
  %v735 = vpack.c.b16 %v701, %v699
  %v736 = vpack.c.b16 %v702, %v700
  %v737 = vpack.c.b16 %v705, %v703
  %v738 = vpack.c.b16 %v706, %v704
  %771 = vmatprep.subr.bf16.mxu0 %v722
  %772 = vmatpush1.bf16.msra.mxu0 %v721
  %773 = vmatprep.subr.bf16.mxu0 %v720
  %774 = vmatpush1.bf16.msra.mxu0 %v719
  %775 = vmatprep.subr.bf16.mxu0 %v718
  %776 = vmatpush1.bf16.msra.mxu0 %v717
  %777 = vmatprep.subr.bf16.mxu0 %v716
  %778 = vmatpush1.bf16.msra.mxu0 %v715
  %779 = vmatprep.subr.bf16.mxu0 %v714
  %780 = vmatpush1.bf16.msra.mxu0 %v713
  %781 = vmatprep.subr.bf16.mxu0 %v712
  %782 = vmatpush1.bf16.msra.mxu0 %v711
  %783 = vmatprep.subr.bf16.mxu0 %v710
  %784 = vmatpush1.bf16.msra.mxu0 %v709
  %785 = vmatprep.subr.bf16.mxu0 %v708
  %786 = vmatpush1.bf16.msra.mxu0 %v707
  %787 = vmatprep.subr.bf16.mxu0 %v738
  %788 = vmatpush2.bf16.msra.mxu0 %v737
  %789 = vmatprep.subr.bf16.mxu0 %v736
  %790 = vmatpush2.bf16.msra.mxu0 %v735
  %791 = vmatprep.subr.bf16.mxu0 %v734
  %792 = vmatpush2.bf16.msra.mxu0 %v733
  %793 = vmatprep.subr.bf16.mxu0 %v732
  %794 = vmatpush2.bf16.msra.mxu0 %v731
  %795 = vmatprep.subr.bf16.mxu0 %v730
  %796 = vmatpush2.bf16.msra.mxu0 %v729
  %797 = vmatprep.subr.bf16.mxu0 %v728
  %798 = vmatpush2.bf16.msra.mxu0 %v727
  %799 = vmatprep.subr.bf16.mxu0 %v726
  %800 = vmatpush2.bf16.msra.mxu0 %v725
  %801 = vmatprep.subr.bf16.mxu0 %v724
  %802 = vmatpush2.bf16.msra.mxu0 %v723
  %803 = vmatprep.mubr.bf16.mxu0 %v566
  %804 = vmatmul.mubr.bf16.gmra.mxu0 %v565
  %v805 = vpop.f32.mrf.mxu0
  %v806 = vadd.f32 %v604, %v805
  %v807 = vpop.f32.mrf.mxu0
  %v808 = vadd.f32 %v608, %v807
  %v809 = vpop.f32.mrf.mxu0
  %v810 = vpop.f32.mrf.mxu0
  %811 = vdwg.mxu0
  %v812 = vmax.f32 %v806, 0.0
  %v813 = vmax.f32 %v808, 0.0
  %v814 = vpack.c.bf16 %v812, %v812
  %v815 = vpack.c.bf16 %v813, %v813
  %v816 = vld [vmem:[%s5] sm:$0xf]
  %v817 = vld [vmem:[%s5 + $0x4] sm:$0xf]
  %v818 = vld [vmem:[%s5 + $0x8] sm:$0xf]
  %v819 = vld [vmem:[%s5 + $0xc] sm:$0xf]
  %v820 = vld [vmem:[%s5 + $0x10] sm:$0xf]
  %v821 = vld [vmem:[%s5 + $0x14] sm:$0xf]
  %v822 = vld [vmem:[%s5 + $0x18] sm:$0xf]
  %v823 = vld [vmem:[%s5 + $0x1c] sm:$0xf]
  %v824 = vld [vmem:[%s5 + $0x20] sm:$0xf]
  %v825 = vld [vmem:[%s5 + $0x24] sm:$0xf]
  %v826 = vld [vmem:[%s5 + $0x28] sm:$0xf]
  %v827 = vld [vmem:[%s5 + $0x2c] sm:$0xf]
  %v828 = vld [vmem:[%s5 + $0x30] sm:$0xf]
  %v829 = vld [vmem:[%s5 + $0x34] sm:$0xf]
  %v830 = vld [vmem:[%s5 + $0x38] sm:$0xf]
  %v831 = vld [vmem:[%s5 + $0x3c] sm:$0xf]
  %v832 = vld [vmem:[%s5 + $0x40] sm:$0xf]
  %v833 = vld [vmem:[%s5 + $0x44] sm:$0xf]
  %v834 = vld [vmem:[%s5 + $0x48] sm:$0xf]
  %v835 = vld [vmem:[%s5 + $0x4c] sm:$0xf]
  %v836 = vld [vmem:[%s5 + $0x50] sm:$0xf]
  %v837 = vld [vmem:[%s5 + $0x54] sm:$0xf]
  %v838 = vld [vmem:[%s5 + $0x58] sm:$0xf]
  %v839 = vld [vmem:[%s5 + $0x5c] sm:$0xf]
  %v840 = vld [vmem:[%s5 + $0x60] sm:$0xf]
  %v841 = vld [vmem:[%s5 + $0x64] sm:$0xf]
  %v842 = vld [vmem:[%s5 + $0x68] sm:$0xf]
  %v843 = vld [vmem:[%s5 + $0x6c] sm:$0xf]
  %v844 = vld [vmem:[%s5 + $0x70] sm:$0xf]
  %v845 = vld [vmem:[%s5 + $0x74] sm:$0xf]
  %v846 = vld [vmem:[%s5 + $0x78] sm:$0xf]
  %v847 = vld [vmem:[%s5 + $0x7c] sm:$0xf]
  %v848 = vld [vmem:[%s6] sm:$0x1]
  %v850 = vlaneseq
  %v851 = vshrl.u32 %v850, 7
  %v852 = vsub.s32 0, %v851
  %v853 = vrot.slane %v848, %v852
  %v887 = vunpack.c.l.b16 %v816
  %v888 = vunpack.c.l.b16 %v817
  %v889 = vunpack.c.l.b16 %v818
  %v890 = vunpack.c.l.b16 %v819
  %v891 = vunpack.c.l.b16 %v820
  %v892 = vunpack.c.l.b16 %v821
  %v893 = vunpack.c.l.b16 %v822
  %v894 = vunpack.c.l.b16 %v823
  %v895 = vunpack.c.l.b16 %v824
  %v896 = vunpack.c.l.b16 %v825
  %v897 = vunpack.c.l.b16 %v826
  %v898 = vunpack.c.l.b16 %v827
  %v899 = vunpack.c.l.b16 %v828
  %v900 = vunpack.c.l.b16 %v829
  %v901 = vunpack.c.l.b16 %v830
  %v902 = vunpack.c.l.b16 %v831
  %v903 = vunpack.c.l.b16 %v832
  %v904 = vunpack.c.l.b16 %v833
  %v905 = vunpack.c.l.b16 %v834
  %v906 = vunpack.c.l.b16 %v835
  %v907 = vunpack.c.l.b16 %v836
  %v908 = vunpack.c.l.b16 %v837
  %v909 = vunpack.c.l.b16 %v838
  %v910 = vunpack.c.l.b16 %v839
  %v911 = vunpack.c.l.b16 %v840
  %v912 = vunpack.c.l.b16 %v841
  %v913 = vunpack.c.l.b16 %v842
  %v914 = vunpack.c.l.b16 %v843
  %v915 = vunpack.c.l.b16 %v844
  %v916 = vunpack.c.l.b16 %v845
  %v917 = vunpack.c.l.b16 %v846
  %v918 = vunpack.c.l.b16 %v847
  %v919 = vpack.c.b16 %v888, %v887
  %v920 = vpack.c.b16 %v890, %v889
  %v921 = vpack.c.b16 %v892, %v891
  %v922 = vpack.c.b16 %v894, %v893
  %v923 = vpack.c.b16 %v896, %v895
  %v924 = vpack.c.b16 %v898, %v897
  %v925 = vpack.c.b16 %v900, %v899
  %v926 = vpack.c.b16 %v902, %v901
  %v927 = vpack.c.b16 %v904, %v903
  %v928 = vpack.c.b16 %v906, %v905
  %v929 = vpack.c.b16 %v908, %v907
  %v930 = vpack.c.b16 %v910, %v909
  %v931 = vpack.c.b16 %v912, %v911
  %v932 = vpack.c.b16 %v914, %v913
  %v933 = vpack.c.b16 %v916, %v915
  %v934 = vpack.c.b16 %v918, %v917
  %951 = vmatprep.subr.bf16.mxu0 0
  %952 = vmatpush1.bf16.msra.mxu0 %v926
  %953 = vmatprep.subr.bf16.mxu0 0
  %954 = vmatpush1.bf16.msra.mxu0 %v925
  %955 = vmatprep.subr.bf16.mxu0 0
  %956 = vmatpush1.bf16.msra.mxu0 %v924
  %957 = vmatprep.subr.bf16.mxu0 0
  %958 = vmatpush1.bf16.msra.mxu0 %v923
  %959 = vmatprep.subr.bf16.mxu0 0
  %960 = vmatpush1.bf16.msra.mxu0 %v922
  %961 = vmatprep.subr.bf16.mxu0 0
  %962 = vmatpush1.bf16.msra.mxu0 %v921
  %963 = vmatprep.subr.bf16.mxu0 0
  %964 = vmatpush1.bf16.msra.mxu0 %v920
  %965 = vmatprep.subr.bf16.mxu0 0
  %966 = vmatpush1.bf16.msra.mxu0 %v919
  %967 = vmatprep.subr.bf16.mxu0 0
  %968 = vmatpush2.bf16.msra.mxu0 %v934
  %969 = vmatprep.subr.bf16.mxu0 0
  %970 = vmatpush2.bf16.msra.mxu0 %v933
  %971 = vmatprep.subr.bf16.mxu0 0
  %972 = vmatpush2.bf16.msra.mxu0 %v932
  %973 = vmatprep.subr.bf16.mxu0 0
  %974 = vmatpush2.bf16.msra.mxu0 %v931
  %975 = vmatprep.subr.bf16.mxu0 0
  %976 = vmatpush2.bf16.msra.mxu0 %v930
  %977 = vmatprep.subr.bf16.mxu0 0
  %978 = vmatpush2.bf16.msra.mxu0 %v929
  %979 = vmatprep.subr.bf16.mxu0 0
  %980 = vmatpush2.bf16.msra.mxu0 %v928
  %981 = vmatprep.subr.bf16.mxu0 0
  %982 = vmatpush2.bf16.msra.mxu0 %v927
  %983 = vmatprep.mubr.bf16.mxu0 %v815
  %984 = vmatmul.mubr.bf16.gmra.mxu0 %v814
  %v985 = vpop.f32.mrf.mxu0
  %v986 = vadd.f32 %v853, %v985
  %v987 = vpop.f32.mrf.mxu0
  %v988 = vpop.f32.mrf.mxu0
  %v989 = vpop.f32.mrf.mxu0
  %990 = vdwg.mxu0
  %v991 = vmax.f32 %v986, 0.0
  %v992 = vpack.c.bf16 %v991, %v991
  %v993 = vld [vmem:[%s7] sm:$0xf]
  %v994 = vld [vmem:[%s7 + $0x4] sm:$0xf]
  %v995 = vld [vmem:[%s7 + $0x8] sm:$0xf]
  %v996 = vld [vmem:[%s7 + $0xc] sm:$0xf]
  %v997 = vld [vmem:[%s7 + $0x10] sm:$0xf]
  %v998 = vld [vmem:[%s7 + $0x14] sm:$0xf]
  %v999 = vld [vmem:[%s7 + $0x18] sm:$0xf]
  %v1000 = vld [vmem:[%s7 + $0x1c] sm:$0xf]
  %v1001 = vld [vmem:[%s7 + $0x20] sm:$0xf]
  %v1002 = vld [vmem:[%s7 + $0x24] sm:$0xf]
  %v1003 = vld [vmem:[%s7 + $0x28] sm:$0xf]
  %v1004 = vld [vmem:[%s7 + $0x2c] sm:$0xf]
  %v1005 = vld [vmem:[%s7 + $0x30] sm:$0xf]
  %v1006 = vld [vmem:[%s7 + $0x34] sm:$0xf]
  %v1007 = vld [vmem:[%s7 + $0x38] sm:$0xf]
  %v1008 = vld [vmem:[%s7 + $0x3c] sm:$0xf]
  %v1009 = vld [vmem:[%s8] sm:$0x1]
  %v1011 = vlaneseq
  %v1012 = vshrl.u32 %v1011, 7
  %v1013 = vsub.s32 0, %v1012
  %v1014 = vrot.slane %v1009, %v1013
  %v1032 = vunpack.c.l.b16 %v993
  %v1033 = vunpack.c.l.b16 %v994
  %v1034 = vunpack.c.l.b16 %v995
  %v1035 = vunpack.c.l.b16 %v996
  %v1036 = vunpack.c.l.b16 %v997
  %v1037 = vunpack.c.l.b16 %v998
  %v1038 = vunpack.c.l.b16 %v999
  %v1039 = vunpack.c.l.b16 %v1000
  %v1040 = vunpack.c.l.b16 %v1001
  %v1041 = vunpack.c.l.b16 %v1002
  %v1042 = vunpack.c.l.b16 %v1003
  %v1043 = vunpack.c.l.b16 %v1004
  %v1044 = vunpack.c.l.b16 %v1005
  %v1045 = vunpack.c.l.b16 %v1006
  %v1046 = vunpack.c.l.b16 %v1007
  %v1047 = vunpack.c.l.b16 %v1008
  %v1048 = vpack.c.b16 %v1033, %v1032
  %v1049 = vpack.c.b16 %v1035, %v1034
  %v1050 = vpack.c.b16 %v1037, %v1036
  %v1051 = vpack.c.b16 %v1039, %v1038
  %v1052 = vpack.c.b16 %v1041, %v1040
  %v1053 = vpack.c.b16 %v1043, %v1042
  %v1054 = vpack.c.b16 %v1045, %v1044
  %v1055 = vpack.c.b16 %v1047, %v1046
  %1064 = vmatprep.subr.bf16.mxu0 0
  %1065 = vmatpush1.bf16.msra.mxu0 %v1055
  %1066 = vmatprep.subr.bf16.mxu0 0
  %1067 = vmatpush1.bf16.msra.mxu0 %v1054
  %1068 = vmatprep.subr.bf16.mxu0 0
  %1069 = vmatpush1.bf16.msra.mxu0 %v1053
  %1070 = vmatprep.subr.bf16.mxu0 0
  %1071 = vmatpush1.bf16.msra.mxu0 %v1052
  %1072 = vmatprep.subr.bf16.mxu0 0
  %1073 = vmatpush1.bf16.msra.mxu0 %v1051
  %1074 = vmatprep.subr.bf16.mxu0 0
  %1075 = vmatpush1.bf16.msra.mxu0 %v1050
  %1076 = vmatprep.subr.bf16.mxu0 0
  %1077 = vmatpush1.bf16.msra.mxu0 %v1049
  %1078 = vmatprep.subr.bf16.mxu0 0
  %1079 = vmatpush1.bf16.msra.mxu0 %v1048
  %1080 = vmatprep.subr.bf16.mxu0 0
  %1081 = vmatpush2.bf16.msra.mxu0 0
  %1082 = vmatprep.subr.bf16.mxu0 0
  %1083 = vmatpush2.bf16.msra.mxu0 0
  %1084 = vmatprep.subr.bf16.mxu0 0
  %1085 = vmatpush2.bf16.msra.mxu0 0
  %1086 = vmatprep.subr.bf16.mxu0 0
  %1087 = vmatpush2.bf16.msra.mxu0 0
  %1088 = vmatprep.subr.bf16.mxu0 0
  %1089 = vmatpush2.bf16.msra.mxu0 0
  %1090 = vmatprep.subr.bf16.mxu0 0
  %1091 = vmatpush2.bf16.msra.mxu0 0
  %1092 = vmatprep.subr.bf16.mxu0 0
  %1093 = vmatpush2.bf16.msra.mxu0 0
  %1094 = vmatprep.subr.bf16.mxu0 0
  %1095 = vmatpush2.bf16.msra.mxu0 0
  %1096 = vmatprep.mubr.bf16.mxu0 0
  %1097 = vmatmul.mubr.bf16.gmra.mxu0 %v992
  %v1098 = vpop.f32.mrf.mxu0
  %v1099 = vadd.f32 %v1014, %v1098
  %v1100 = vpop.f32.mrf.mxu0
  %v1101 = vpop.f32.mrf.mxu0
  %v1102 = vpop.f32.mrf.mxu0
  %1103 = vdwg.mxu0
  %v1104 = vlaneseq
  %v1105 = vand.u32 %v1104, 127
  %vm1106 = vcmp.lt.s32.totalorder %v1105, 64
  %v1107 = vsel %vm1106, %v1099, 0.0
  %1108 = vrot.lane.b32.xlu0 %v1099, 64
  %v1109 = vpop.permute.xlu0 %1108
  %v1110 = vsel %vm1106, %v1109, 0.0
  %v1111 = vld [vmem:[%s9] sm:$0xf]
  %v1112 = vld [vmem:[%s9 + $0x4] sm:$0xf]
  %v1113 = vld [vmem:[%s9 + $0x8] sm:$0xf]
  %v1114 = vld [vmem:[%s9 + $0xc] sm:$0xf]
  %v1115 = vld [vmem:[%s9 + $0x10] sm:$0xf]
  %v1116 = vld [vmem:[%s9 + $0x14] sm:$0xf]
  %v1117 = vld [vmem:[%s9 + $0x18] sm:$0xf]
  %v1118 = vld [vmem:[%s9 + $0x1c] sm:$0xf]
  %v1119 = vld [vmem:[%s10] sm:$0xf]
  %v1120 = vld [vmem:[%s10 + $0x4] sm:$0xf]
  %v1121 = vld [vmem:[%s10 + $0x8] sm:$0xf]
  %v1122 = vld [vmem:[%s10 + $0xc] sm:$0xf]
  %v1123 = vld [vmem:[%s10 + $0x10] sm:$0xf]
  %v1124 = vld [vmem:[%s10 + $0x14] sm:$0xf]
  %v1125 = vld [vmem:[%s10 + $0x18] sm:$0xf]
  %v1126 = vld [vmem:[%s10 + $0x1c] sm:$0xf]
  %v1127 = vld [vmem:[%s10 + $0x20] sm:$0xf]
  %v1128 = vld [vmem:[%s10 + $0x24] sm:$0xf]
  %v1129 = vld [vmem:[%s10 + $0x28] sm:$0xf]
  %v1130 = vld [vmem:[%s10 + $0x2c] sm:$0xf]
  %v1131 = vld [vmem:[%s10 + $0x30] sm:$0xf]
  %v1132 = vld [vmem:[%s10 + $0x34] sm:$0xf]
  %v1133 = vld [vmem:[%s10 + $0x38] sm:$0xf]
  %v1134 = vld [vmem:[%s10 + $0x3c] sm:$0xf]
  %v1135 = vld [vmem:[%s11] sm:$0x1]
  %v1137 = vlaneseq
  %v1138 = vshrl.u32 %v1137, 7
  %v1139 = vsub.s32 0, %v1138
  %v1140 = vrot.slane %v1135, %v1139
  %v1150 = vunpack.c.l.b16 %v1111
  %v1151 = vunpack.c.l.b16 %v1112
  %v1152 = vunpack.c.l.b16 %v1113
  %v1153 = vunpack.c.l.b16 %v1114
  %v1154 = vunpack.c.l.b16 %v1115
  %v1155 = vunpack.c.l.b16 %v1116
  %v1156 = vunpack.c.l.b16 %v1117
  %v1157 = vunpack.c.l.b16 %v1118
  %v1158 = vpack.c.b16 %v1151, %v1150
  %v1159 = vpack.c.b16 %v1153, %v1152
  %v1160 = vpack.c.b16 %v1155, %v1154
  %v1161 = vpack.c.b16 %v1157, %v1156
  %v1182 = vunpack.c.l.b16 %v1119
  %v1183 = vunpack.c.l.b16 %v1120
  %v1184 = vunpack.c.l.b16 %v1121
  %v1185 = vunpack.c.l.b16 %v1122
  %v1186 = vunpack.c.l.b16 %v1123
  %v1187 = vunpack.c.l.b16 %v1124
  %v1188 = vunpack.c.l.b16 %v1125
  %v1189 = vunpack.c.l.b16 %v1126
  %v1190 = vunpack.c.l.b16 %v1127
  %v1191 = vunpack.c.l.b16 %v1128
  %v1192 = vunpack.c.l.b16 %v1129
  %v1193 = vunpack.c.l.b16 %v1130
  %v1194 = vunpack.c.l.b16 %v1131
  %v1195 = vunpack.c.l.b16 %v1132
  %v1196 = vunpack.c.l.b16 %v1133
  %v1197 = vunpack.c.l.b16 %v1134
  %v1198 = vpack.c.b16 %v1183, %v1182
  %v1199 = vpack.c.b16 %v1185, %v1184
  %v1200 = vpack.c.b16 %v1187, %v1186
  %v1201 = vpack.c.b16 %v1189, %v1188
  %v1202 = vpack.c.b16 %v1191, %v1190
  %v1203 = vpack.c.b16 %v1193, %v1192
  %v1204 = vpack.c.b16 %v1195, %v1194
  %v1205 = vpack.c.b16 %v1197, %v1196
  %1214 = vmatprep.subr.bf16.mxu0 0
  %1215 = vmatpush1.bf16.msra.mxu0 %v1205
  %1216 = vmatprep.subr.bf16.mxu0 0
  %1217 = vmatpush1.bf16.msra.mxu0 %v1204
  %1218 = vmatprep.subr.bf16.mxu0 0
  %1219 = vmatpush1.bf16.msra.mxu0 %v1203
  %1220 = vmatprep.subr.bf16.mxu0 0
  %1221 = vmatpush1.bf16.msra.mxu0 %v1202
  %1222 = vmatprep.subr.bf16.mxu0 0
  %1223 = vmatpush1.bf16.msra.mxu0 %v1201
  %1224 = vmatprep.subr.bf16.mxu0 0
  %1225 = vmatpush1.bf16.msra.mxu0 %v1200
  %1226 = vmatprep.subr.bf16.mxu0 0
  %1227 = vmatpush1.bf16.msra.mxu0 %v1199
  %1228 = vmatprep.subr.bf16.mxu0 0
  %1229 = vmatpush1.bf16.msra.mxu0 %v1198
  %1230 = vmatprep.subr.bf16.mxu0 0
  %1231 = vmatpush2.bf16.msra.mxu0 0
  %1232 = vmatprep.subr.bf16.mxu0 0
  %1233 = vmatpush2.bf16.msra.mxu0 0
  %1234 = vmatprep.subr.bf16.mxu0 0
  %1235 = vmatpush2.bf16.msra.mxu0 0
  %1236 = vmatprep.subr.bf16.mxu0 0
  %1237 = vmatpush2.bf16.msra.mxu0 0
  %1238 = vmatprep.subr.bf16.mxu0 0
  %1239 = vmatpush2.bf16.msra.mxu0 0
  %1240 = vmatprep.subr.bf16.mxu0 0
  %1241 = vmatpush2.bf16.msra.mxu0 0
  %1242 = vmatprep.subr.bf16.mxu0 0
  %1243 = vmatpush2.bf16.msra.mxu0 0
  %1244 = vmatprep.subr.bf16.mxu0 0
  %1245 = vmatpush2.bf16.msra.mxu0 0
  %1246 = vmatprep.mubr.bf16.mxu0 0
  %1247 = vmatmul.mubr.bf16.gmra.mxu0 %v1158
  %v1248 = vpop.f32.mrf.mxu0
  %v1249 = vadd.f32 %v1140, %v1248
  %v1250 = vpop.f32.mrf.mxu0
  %v1251 = vpop.f32.mrf.mxu0
  %v1252 = vadd.f32 %v1140, %v1251
  %v1253 = vpop.f32.mrf.mxu0
  %1254 = vmatprep.mubr.bf16.mxu0 0
  %1255 = vmatmul.mubr.bf16.gmra.mxu0 %v1159
  %v1256 = vpop.f32.mrf.mxu0
  %v1257 = vadd.f32 %v1140, %v1256
  %v1258 = vpop.f32.mrf.mxu0
  %v1259 = vpop.f32.mrf.mxu0
  %v1260 = vadd.f32 %v1140, %v1259
  %v1261 = vpop.f32.mrf.mxu0
  %1262 = vmatprep.mubr.bf16.mxu0 0
  %1263 = vmatmul.mubr.bf16.gmra.mxu0 %v1160
  %v1264 = vpop.f32.mrf.mxu0
  %v1265 = vadd.f32 %v1140, %v1264
  %v1266 = vpop.f32.mrf.mxu0
  %v1267 = vpop.f32.mrf.mxu0
  %v1268 = vadd.f32 %v1140, %v1267
  %v1269 = vpop.f32.mrf.mxu0
  %1270 = vmatprep.mubr.bf16.mxu0 0
  %1271 = vmatmul.mubr.bf16.gmra.mxu0 %v1161
  %v1272 = vpop.f32.mrf.mxu0
  %v1273 = vadd.f32 %v1140, %v1272
  %v1274 = vpop.f32.mrf.mxu0
  %v1275 = vpop.f32.mrf.mxu0
  %v1276 = vadd.f32 %v1140, %v1275
  %v1277 = vpop.f32.mrf.mxu0
  %1278 = vdwg.mxu0
  %v1279 = vmax.f32 %v1249, 0.0
  %v1280 = vmax.f32 %v1252, 0.0
  %v1281 = vmax.f32 %v1257, 0.0
  %v1282 = vmax.f32 %v1260, 0.0
  %v1283 = vmax.f32 %v1265, 0.0
  %v1284 = vmax.f32 %v1268, 0.0
  %v1285 = vmax.f32 %v1273, 0.0
  %v1286 = vmax.f32 %v1276, 0.0
  %v1287 = vpack.c.bf16 %v1280, %v1279
  %v1288 = vpack.c.bf16 %v1282, %v1281
  %v1289 = vpack.c.bf16 %v1284, %v1283
  %v1290 = vpack.c.bf16 %v1286, %v1285
  %v1291 = vld [vmem:[%s12] sm:$0xf]
  %v1292 = vld [vmem:[%s12 + $0x4] sm:$0xf]
  %v1293 = vld [vmem:[%s13] sm:$0x1]
  %v1295 = vlaneseq
  %v1296 = vshrl.u32 %v1295, 7
  %v1297 = vsub.s32 0, %v1296
  %v1298 = vrot.slane %v1293, %v1297
  %v1302 = vunpack.c.l.b16 %v1291
  %v1303 = vunpack.c.l.b16 %v1292
  %v1304 = vpack.c.b16 %v1303, %v1302
  %vm1306 = vcmask 130048
  %v1308 = vsel %vm1306, %v1287, 0
  %v1311 = vsel %vm1306, %v1288, 0
  %v1314 = vsel %vm1306, %v1289, 0
  %v1317 = vsel %vm1306, %v1290, 0
  %1319 = vmatprep.subr.bf16.mxu0 0
  %1320 = vmatpush1.bf16.msra.mxu0 0
  %1321 = vmatprep.subr.bf16.mxu0 0
  %1322 = vmatpush1.bf16.msra.mxu0 0
  %1323 = vmatprep.subr.bf16.mxu0 0
  %1324 = vmatpush1.bf16.msra.mxu0 0
  %1325 = vmatprep.subr.bf16.mxu0 0
  %1326 = vmatpush1.bf16.msra.mxu0 0
  %1327 = vmatprep.subr.bf16.mxu0 0
  %1328 = vmatpush1.bf16.msra.mxu0 0
  %1329 = vmatprep.subr.bf16.mxu0 0
  %1330 = vmatpush1.bf16.msra.mxu0 0
  %1331 = vmatprep.subr.bf16.mxu0 0
  %1332 = vmatpush1.bf16.msra.mxu0 0
  %1333 = vmatprep.subr.bf16.mxu0 0
  %1334 = vmatpush1.bf16.msra.mxu0 %v1304
  %1335 = vmatprep.subr.bf16.mxu0 0
  %1336 = vmatpush2.bf16.msra.mxu0 0
  %1337 = vmatprep.subr.bf16.mxu0 0
  %1338 = vmatpush2.bf16.msra.mxu0 0
  %1339 = vmatprep.subr.bf16.mxu0 0
  %1340 = vmatpush2.bf16.msra.mxu0 0
  %1341 = vmatprep.subr.bf16.mxu0 0
  %1342 = vmatpush2.bf16.msra.mxu0 0
  %1343 = vmatprep.subr.bf16.mxu0 0
  %1344 = vmatpush2.bf16.msra.mxu0 0
  %1345 = vmatprep.subr.bf16.mxu0 0
  %1346 = vmatpush2.bf16.msra.mxu0 0
  %1347 = vmatprep.subr.bf16.mxu0 0
  %1348 = vmatpush2.bf16.msra.mxu0 0
  %1349 = vmatprep.subr.bf16.mxu0 0
  %1350 = vmatpush2.bf16.msra.mxu0 0
  %1351 = vmatprep.mubr.bf16.mxu0 0
  %1352 = vmatmul.mubr.bf16.gmra.mxu0 %v1308
  %v1353 = vpop.f32.mrf.mxu0
  %v1354 = vadd.f32 %v1298, %v1353
  %v1355 = vpop.f32.mrf.mxu0
  %v1356 = vpop.f32.mrf.mxu0
  %v1357 = vadd.f32 %v1298, %v1356
  %v1358 = vpop.f32.mrf.mxu0
  %1359 = vmatprep.mubr.bf16.mxu0 0
  %1360 = vmatmul.mubr.bf16.gmra.mxu0 %v1311
  %v1361 = vpop.f32.mrf.mxu0
  %v1362 = vadd.f32 %v1298, %v1361
  %v1363 = vpop.f32.mrf.mxu0
  %v1364 = vpop.f32.mrf.mxu0
  %v1365 = vadd.f32 %v1298, %v1364
  %v1366 = vpop.f32.mrf.mxu0
  %1367 = vmatprep.mubr.bf16.mxu0 0
  %1368 = vmatmul.mubr.bf16.gmra.mxu0 %v1314
  %v1369 = vpop.f32.mrf.mxu0
  %v1370 = vadd.f32 %v1298, %v1369
  %v1371 = vpop.f32.mrf.mxu0
  %v1372 = vpop.f32.mrf.mxu0
  %v1373 = vadd.f32 %v1298, %v1372
  %v1374 = vpop.f32.mrf.mxu0
  %1375 = vmatprep.mubr.bf16.mxu0 0
  %1376 = vmatmul.mubr.bf16.gmra.mxu0 %v1317
  %v1377 = vpop.f32.mrf.mxu0
  %v1378 = vadd.f32 %v1298, %v1377
  %v1379 = vpop.f32.mrf.mxu0
  %v1380 = vpop.f32.mrf.mxu0
  %v1381 = vadd.f32 %v1298, %v1380
  %v1382 = vpop.f32.mrf.mxu0
  %1383 = vdwg.mxu0
  %v1384 = vmax.f32 %v1354, 0.0
  %v1385 = vmax.f32 %v1357, 0.0
  %v1386 = vmax.f32 %v1362, 0.0
  %v1387 = vmax.f32 %v1365, 0.0
  %v1388 = vmax.f32 %v1370, 0.0
  %v1389 = vmax.f32 %v1373, 0.0
  %v1390 = vmax.f32 %v1378, 0.0
  %v1391 = vmax.f32 %v1381, 0.0
  %v1392 = vpack.c.bf16 %v1385, %v1384
  %v1393 = vpack.c.bf16 %v1387, %v1386
  %v1394 = vpack.c.bf16 %v1389, %v1388
  %v1395 = vpack.c.bf16 %v1391, %v1390
  %v1396 = vld [vmem:[%s14] sm:$0xff]
  %v1397 = vld [vmem:[%s14 + $0x8] sm:$0xff]
  %v1398 = vld [vmem:[%s14 + $0x10] sm:$0xff]
  %v1399 = vld [vmem:[%s14 + $0x18] sm:$0xff]
  %v1400 = vld [vmem:[%s15] sm:$0xf]
  %v1402 = vlaneseq
  %v1403 = vshrl.u32 %v1402, 7
  %v1404 = vsub.s32 0, %v1403
  %v1405 = vrot.slane %v1400, %v1404
  %v1406 = vlaneseq
  %v1407 = vshrl.u32 %v1406, 7
  %v1408 = vsub.s32 1, %v1407
  %v1409 = vrot.slane %v1400, %v1408
  %v1410 = vlaneseq
  %v1411 = vshrl.u32 %v1410, 7
  %v1412 = vsub.s32 2, %v1411
  %v1413 = vrot.slane %v1400, %v1412
  %v1414 = vlaneseq
  %v1415 = vshrl.u32 %v1414, 7
  %v1416 = vsub.s32 3, %v1415
  %v1417 = vrot.slane %v1400, %v1416
  %v1426 = vunpack.c.l.b16 %v1396
  %v1427 = vunpack.c.h.b16 %v1396
  %v1428 = vunpack.c.l.b16 %v1397
  %v1429 = vunpack.c.h.b16 %v1397
  %v1430 = vunpack.c.l.b16 %v1398
  %v1431 = vunpack.c.h.b16 %v1398
  %v1432 = vunpack.c.l.b16 %v1399
  %v1433 = vunpack.c.h.b16 %v1399
  %v1434 = vpack.c.b16 %v1430, %v1426
  %v1435 = vpack.c.b16 %v1431, %v1427
  %v1436 = vpack.c.b16 %v1432, %v1428
  %v1437 = vpack.c.b16 %v1433, %v1429
  %v1443 = vsel %vm1306, %v1392, 0
  %v1446 = vsel %vm1306, %v1393, 0
  %v1449 = vsel %vm1306, %v1394, 0
  %v1452 = vsel %vm1306, %v1395, 0
  %1454 = vmatprep.subr.bf16.mxu0 0
  %1455 = vmatpush1.bf16.msra.mxu0 0
  %1456 = vmatprep.subr.bf16.mxu0 0
  %1457 = vmatpush1.bf16.msra.mxu0 0
  %1458 = vmatprep.subr.bf16.mxu0 0
  %1459 = vmatpush1.bf16.msra.mxu0 0
  %1460 = vmatprep.subr.bf16.mxu0 0
  %1461 = vmatpush1.bf16.msra.mxu0 0
  %1462 = vmatprep.subr.bf16.mxu0 0
  %1463 = vmatpush1.bf16.msra.mxu0 0
  %1464 = vmatprep.subr.bf16.mxu0 0
  %1465 = vmatpush1.bf16.msra.mxu0 0
  %1466 = vmatprep.subr.bf16.mxu0 0
  %1467 = vmatpush1.bf16.msra.mxu0 0
  %1468 = vmatprep.subr.bf16.mxu0 %v1435
  %1469 = vmatpush1.bf16.msra.mxu0 %v1434
  %1470 = vmatprep.subr.bf16.mxu0 0
  %1471 = vmatpush2.bf16.msra.mxu0 0
  %1472 = vmatprep.subr.bf16.mxu0 0
  %1473 = vmatpush2.bf16.msra.mxu0 0
  %1474 = vmatprep.subr.bf16.mxu0 0
  %1475 = vmatpush2.bf16.msra.mxu0 0
  %1476 = vmatprep.subr.bf16.mxu0 0
  %1477 = vmatpush2.bf16.msra.mxu0 0
  %1478 = vmatprep.subr.bf16.mxu0 0
  %1479 = vmatpush2.bf16.msra.mxu0 0
  %1480 = vmatprep.subr.bf16.mxu0 0
  %1481 = vmatpush2.bf16.msra.mxu0 0
  %1482 = vmatprep.subr.bf16.mxu0 0
  %1483 = vmatpush2.bf16.msra.mxu0 0
  %1484 = vmatprep.subr.bf16.mxu0 0
  %1485 = vmatpush2.bf16.msra.mxu0 0
  %1486 = vmatprep.mubr.bf16.mxu0 0
  %1487 = vmatmul.mubr.bf16.gmra.mxu0 %v1443
  %v1488 = vpop.f32.mrf.mxu0
  %v1489 = vadd.f32 %v1405, %v1488
  %v1490 = vpop.f32.mrf.mxu0
  %v1491 = vadd.f32 %v1409, %v1490
  %v1492 = vpop.f32.mrf.mxu0
  %v1493 = vadd.f32 %v1405, %v1492
  %v1494 = vpop.f32.mrf.mxu0
  %v1495 = vadd.f32 %v1409, %v1494
  %1496 = vmatprep.mubr.bf16.mxu0 0
  %1497 = vmatmul.mubr.bf16.gmra.mxu0 %v1446
  %v1498 = vpop.f32.mrf.mxu0
  %v1499 = vadd.f32 %v1405, %v1498
  %v1500 = vpop.f32.mrf.mxu0
  %v1501 = vadd.f32 %v1409, %v1500
  %v1502 = vpop.f32.mrf.mxu0
  %v1503 = vadd.f32 %v1405, %v1502
  %v1504 = vpop.f32.mrf.mxu0
  %v1505 = vadd.f32 %v1409, %v1504
  %1506 = vmatprep.mubr.bf16.mxu0 0
  %1507 = vmatmul.mubr.bf16.gmra.mxu0 %v1449
  %v1508 = vpop.f32.mrf.mxu0
  %v1509 = vadd.f32 %v1405, %v1508
  %v1510 = vpop.f32.mrf.mxu0
  %v1511 = vadd.f32 %v1409, %v1510
  %v1512 = vpop.f32.mrf.mxu0
  %v1513 = vadd.f32 %v1405, %v1512
  %v1514 = vpop.f32.mrf.mxu0
  %v1515 = vadd.f32 %v1409, %v1514
  %1516 = vmatprep.mubr.bf16.mxu0 0
  %1517 = vmatmul.mubr.bf16.gmra.mxu0 %v1452
  %v1518 = vpop.f32.mrf.mxu0
  %v1519 = vadd.f32 %v1405, %v1518
  %v1520 = vpop.f32.mrf.mxu0
  %v1521 = vadd.f32 %v1409, %v1520
  %v1522 = vpop.f32.mrf.mxu0
  %v1523 = vadd.f32 %v1405, %v1522
  %v1524 = vpop.f32.mrf.mxu0
  %v1525 = vadd.f32 %v1409, %v1524
  %1526 = vdwg.mxu0
  %1527 = vmatprep.subr.bf16.mxu0 0
  %1528 = vmatpush1.bf16.msra.mxu0 0
  %1529 = vmatprep.subr.bf16.mxu0 0
  %1530 = vmatpush1.bf16.msra.mxu0 0
  %1531 = vmatprep.subr.bf16.mxu0 0
  %1532 = vmatpush1.bf16.msra.mxu0 0
  %1533 = vmatprep.subr.bf16.mxu0 0
  %1534 = vmatpush1.bf16.msra.mxu0 0
  %1535 = vmatprep.subr.bf16.mxu0 0
  %1536 = vmatpush1.bf16.msra.mxu0 0
  %1537 = vmatprep.subr.bf16.mxu0 0
  %1538 = vmatpush1.bf16.msra.mxu0 0
  %1539 = vmatprep.subr.bf16.mxu0 0
  %1540 = vmatpush1.bf16.msra.mxu0 0
  %1541 = vmatprep.subr.bf16.mxu0 %v1437
  %1542 = vmatpush1.bf16.msra.mxu0 %v1436
  %1543 = vmatprep.subr.bf16.mxu0 0
  %1544 = vmatpush2.bf16.msra.mxu0 0
  %1545 = vmatprep.subr.bf16.mxu0 0
  %1546 = vmatpush2.bf16.msra.mxu0 0
  %1547 = vmatprep.subr.bf16.mxu0 0
  %1548 = vmatpush2.bf16.msra.mxu0 0
  %1549 = vmatprep.subr.bf16.mxu0 0
  %1550 = vmatpush2.bf16.msra.mxu0 0
  %1551 = vmatprep.subr.bf16.mxu0 0
  %1552 = vmatpush2.bf16.msra.mxu0 0
  %1553 = vmatprep.subr.bf16.mxu0 0
  %1554 = vmatpush2.bf16.msra.mxu0 0
  %1555 = vmatprep.subr.bf16.mxu0 0
  %1556 = vmatpush2.bf16.msra.mxu0 0
  %1557 = vmatprep.subr.bf16.mxu0 0
  %1558 = vmatpush2.bf16.msra.mxu0 0
  %1559 = vmatprep.mubr.bf16.mxu0 0
  %1560 = vmatmul.mubr.bf16.gmra.mxu0 %v1443
  %v1561 = vpop.f32.mrf.mxu0
  %v1562 = vadd.f32 %v1413, %v1561
  %v1563 = vpop.f32.mrf.mxu0
  %v1564 = vadd.f32 %v1417, %v1563
  %v1565 = vpop.f32.mrf.mxu0
  %v1566 = vadd.f32 %v1413, %v1565
  %v1567 = vpop.f32.mrf.mxu0
  %v1568 = vadd.f32 %v1417, %v1567
  %1569 = vmatprep.mubr.bf16.mxu0 0
  %1570 = vmatmul.mubr.bf16.gmra.mxu0 %v1446
  %v1571 = vpop.f32.mrf.mxu0
  %v1572 = vadd.f32 %v1413, %v1571
  %v1573 = vpop.f32.mrf.mxu0
  %v1574 = vadd.f32 %v1417, %v1573
  %v1575 = vpop.f32.mrf.mxu0
  %v1576 = vadd.f32 %v1413, %v1575
  %v1577 = vpop.f32.mrf.mxu0
  %v1578 = vadd.f32 %v1417, %v1577
  %1579 = vmatprep.mubr.bf16.mxu0 0
  %1580 = vmatmul.mubr.bf16.gmra.mxu0 %v1449
  %v1581 = vpop.f32.mrf.mxu0
  %v1582 = vadd.f32 %v1413, %v1581
  %v1583 = vpop.f32.mrf.mxu0
  %v1584 = vadd.f32 %v1417, %v1583
  %v1585 = vpop.f32.mrf.mxu0
  %v1586 = vadd.f32 %v1413, %v1585
  %v1587 = vpop.f32.mrf.mxu0
  %v1588 = vadd.f32 %v1417, %v1587
  %1589 = vmatprep.mubr.bf16.mxu0 0
  %1590 = vmatmul.mubr.bf16.gmra.mxu0 %v1452
  %v1591 = vpop.f32.mrf.mxu0
  %v1592 = vadd.f32 %v1413, %v1591
  %v1593 = vpop.f32.mrf.mxu0
  %v1594 = vadd.f32 %v1417, %v1593
  %v1595 = vpop.f32.mrf.mxu0
  %v1596 = vadd.f32 %v1413, %v1595
  %v1597 = vpop.f32.mrf.mxu0
  %v1598 = vadd.f32 %v1417, %v1597
  %1599 = vdwg.mxu0
  %1600 = vst [vmem:[#allocation2] sm:$0xff] %v1489
  %1601 = vst [vmem:[#allocation2 + $0x8] sm:$0xff] %v1491
  %1602 = vst [vmem:[#allocation2 + $0x10] sm:$0xff] %v1562
  %1603 = vst [vmem:[#allocation2 + $0x18] sm:$0xff] %v1564
  %1604 = vst [vmem:[#allocation2 + $0x20] sm:$0xff] %v1493
  %1605 = vst [vmem:[#allocation2 + $0x28] sm:$0xff] %v1495
  %1606 = vst [vmem:[#allocation2 + $0x30] sm:$0xff] %v1566
  %1607 = vst [vmem:[#allocation2 + $0x38] sm:$0xff] %v1568
  %1608 = vst [vmem:[#allocation2 + $0x40] sm:$0xff] %v1499
  %1609 = vst [vmem:[#allocation2 + $0x48] sm:$0xff] %v1501
  %1610 = vst [vmem:[#allocation2 + $0x50] sm:$0xff] %v1572
  %1611 = vst [vmem:[#allocation2 + $0x58] sm:$0xff] %v1574
  %1612 = vst [vmem:[#allocation2 + $0x60] sm:$0xff] %v1503
  %1613 = vst [vmem:[#allocation2 + $0x68] sm:$0xff] %v1505
  %1614 = vst [vmem:[#allocation2 + $0x70] sm:$0xff] %v1576
  %1615 = vst [vmem:[#allocation2 + $0x78] sm:$0xff] %v1578
  %1616 = vst [vmem:[#allocation2 + $0x80] sm:$0xff] %v1509
  %1617 = vst [vmem:[#allocation2 + $0x88] sm:$0xff] %v1511
  %1618 = vst [vmem:[#allocation2 + $0x90] sm:$0xff] %v1582
  %1619 = vst [vmem:[#allocation2 + $0x98] sm:$0xff] %v1584
  %1620 = vst [vmem:[#allocation2 + $0xa0] sm:$0xff] %v1513
  %1621 = vst [vmem:[#allocation2 + $0xa8] sm:$0xff] %v1515
  %1622 = vst [vmem:[#allocation2 + $0xb0] sm:$0xff] %v1586
  %1623 = vst [vmem:[#allocation2 + $0xb8] sm:$0xff] %v1588
  %1624 = vst [vmem:[#allocation2 + $0xc0] sm:$0xff] %v1519
  %1625 = vst [vmem:[#allocation2 + $0xc8] sm:$0xff] %v1521
  %1626 = vst [vmem:[#allocation2 + $0xd0] sm:$0xff] %v1592
  %1627 = vst [vmem:[#allocation2 + $0xd8] sm:$0xff] %v1594
  %1628 = vst [vmem:[#allocation2 + $0xe0] sm:$0xff] %v1523
  %1629 = vst [vmem:[#allocation2 + $0xe8] sm:$0xff] %v1525
  %1630 = vst [vmem:[#allocation2 + $0xf0] sm:$0xff] %v1596
  %1631 = vst [vmem:[#allocation2 + $0xf8] sm:$0xff] %v1598
  %vm1632 = vcmp.eq.s32.totalorder %v1105, 3
  %s1633 = smul.u32 0, 4
  %s1634 = smul.addr %s1633, 8
  %s1635 = scalar_lea.vmem [#allocation2], %s1634
  %v1636 = vld [vmem:[%s1635] sm:$0xff]
  %v1637 = vld [vmem:[%s1635 + $0x8] sm:$0xff]
  %v1638 = vld [vmem:[%s1635 + $0x10] sm:$0xff]
  %v1639 = vld [vmem:[%s1635 + $0x18] sm:$0xff]
  %v1640 = vpack.c.bf16 %v1107, %v1107
  %v1641 = vld [vmem:[%s16] sm:$0xff]
  %v1642 = vld [vmem:[%s16 + $0x8] sm:$0xff]
  %v1643 = vld [vmem:[%s16 + $0x10] sm:$0xff]
  %v1644 = vld [vmem:[%s16 + $0x18] sm:$0xff]
  %v1645 = vld [vmem:[%s16 + $0x20] sm:$0xff]
  %v1646 = vld [vmem:[%s16 + $0x28] sm:$0xff]
  %v1647 = vld [vmem:[%s16 + $0x30] sm:$0xff]
  %v1648 = vld [vmem:[%s16 + $0x38] sm:$0xff]
  %v1649 = vld [vmem:[%s16 + $0x40] sm:$0xff]
  %v1650 = vld [vmem:[%s16 + $0x48] sm:$0xff]
  %v1651 = vld [vmem:[%s16 + $0x50] sm:$0xff]
  %v1652 = vld [vmem:[%s16 + $0x58] sm:$0xff]
  %v1653 = vld [vmem:[%s16 + $0x60] sm:$0xff]
  %v1654 = vld [vmem:[%s16 + $0x68] sm:$0xff]
  %v1655 = vld [vmem:[%s16 + $0x70] sm:$0xff]
  %v1656 = vld [vmem:[%s16 + $0x78] sm:$0xff]
  %v1657 = vld [vmem:[%s16 + $0x80] sm:$0xff]
  %v1658 = vld [vmem:[%s16 + $0x88] sm:$0xff]
  %v1659 = vld [vmem:[%s16 + $0x90] sm:$0xff]
  %v1660 = vld [vmem:[%s16 + $0x98] sm:$0xff]
  %v1661 = vld [vmem:[%s16 + $0xa0] sm:$0xff]
  %v1662 = vld [vmem:[%s16 + $0xa8] sm:$0xff]
  %v1663 = vld [vmem:[%s16 + $0xb0] sm:$0xff]
  %v1664 = vld [vmem:[%s16 + $0xb8] sm:$0xff]
  %v1665 = vld [vmem:[%s16 + $0xc0] sm:$0xff]
  %v1666 = vld [vmem:[%s16 + $0xc8] sm:$0xff]
  %v1667 = vld [vmem:[%s16 + $0xd0] sm:$0xff]
  %v1668 = vld [vmem:[%s16 + $0xd8] sm:$0xff]
  %v1669 = vld [vmem:[%s16 + $0xe0] sm:$0xff]
  %v1670 = vld [vmem:[%s16 + $0xe8] sm:$0xff]
  %v1671 = vld [vmem:[%s16 + $0xf0] sm:$0xff]
  %v1672 = vld [vmem:[%s16 + $0xf8] sm:$0xff]
  %v1705 = vunpack.c.l.b16 %v1641
  %v1706 = vunpack.c.h.b16 %v1641
  %v1707 = vunpack.c.l.b16 %v1642
  %v1708 = vunpack.c.h.b16 %v1642
  %v1709 = vunpack.c.l.b16 %v1643
  %v1710 = vunpack.c.h.b16 %v1643
  %v1711 = vunpack.c.l.b16 %v1644
  %v1712 = vunpack.c.h.b16 %v1644
  %v1713 = vunpack.c.l.b16 %v1645
  %v1714 = vunpack.c.h.b16 %v1645
  %v1715 = vunpack.c.l.b16 %v1646
  %v1716 = vunpack.c.h.b16 %v1646
  %v1717 = vunpack.c.l.b16 %v1647
  %v1718 = vunpack.c.h.b16 %v1647
  %v1719 = vunpack.c.l.b16 %v1648
  %v1720 = vunpack.c.h.b16 %v1648
  %v1721 = vunpack.c.l.b16 %v1649
  %v1722 = vunpack.c.h.b16 %v1649
  %v1723 = vunpack.c.l.b16 %v1650
  %v1724 = vunpack.c.h.b16 %v1650
  %v1725 = vunpack.c.l.b16 %v1651
  %v1726 = vunpack.c.h.b16 %v1651
  %v1727 = vunpack.c.l.b16 %v1652
  %v1728 = vunpack.c.h.b16 %v1652
  %v1729 = vunpack.c.l.b16 %v1653
  %v1730 = vunpack.c.h.b16 %v1653
  %v1731 = vunpack.c.l.b16 %v1654
  %v1732 = vunpack.c.h.b16 %v1654
  %v1733 = vunpack.c.l.b16 %v1655
  %v1734 = vunpack.c.h.b16 %v1655
  %v1735 = vunpack.c.l.b16 %v1656
  %v1736 = vunpack.c.h.b16 %v1656
  %v1737 = vunpack.c.l.b16 %v1657
  %v1738 = vunpack.c.h.b16 %v1657
  %v1739 = vunpack.c.l.b16 %v1658
  %v1740 = vunpack.c.h.b16 %v1658
  %v1741 = vunpack.c.l.b16 %v1659
  %v1742 = vunpack.c.h.b16 %v1659
  %v1743 = vunpack.c.l.b16 %v1660
  %v1744 = vunpack.c.h.b16 %v1660
  %v1745 = vunpack.c.l.b16 %v1661
  %v1746 = vunpack.c.h.b16 %v1661
  %v1747 = vunpack.c.l.b16 %v1662
  %v1748 = vunpack.c.h.b16 %v1662
  %v1749 = vunpack.c.l.b16 %v1663
  %v1750 = vunpack.c.h.b16 %v1663
  %v1751 = vunpack.c.l.b16 %v1664
  %v1752 = vunpack.c.h.b16 %v1664
  %v1753 = vunpack.c.l.b16 %v1665
  %v1754 = vunpack.c.h.b16 %v1665
  %v1755 = vunpack.c.l.b16 %v1666
  %v1756 = vunpack.c.h.b16 %v1666
  %v1757 = vunpack.c.l.b16 %v1667
  %v1758 = vunpack.c.h.b16 %v1667
  %v1759 = vunpack.c.l.b16 %v1668
  %v1760 = vunpack.c.h.b16 %v1668
  %v1761 = vunpack.c.l.b16 %v1669
  %v1762 = vunpack.c.h.b16 %v1669
  %v1763 = vunpack.c.l.b16 %v1670
  %v1764 = vunpack.c.h.b16 %v1670
  %v1765 = vunpack.c.l.b16 %v1671
  %v1766 = vunpack.c.h.b16 %v1671
  %v1767 = vunpack.c.l.b16 %v1672
  %v1768 = vunpack.c.h.b16 %v1672
  %v1769 = vpack.c.b16 %v1709, %v1705
  %v1770 = vpack.c.b16 %v1710, %v1706
  %v1771 = vpack.c.b16 %v1711, %v1707
  %v1772 = vpack.c.b16 %v1712, %v1708
  %v1773 = vpack.c.b16 %v1717, %v1713
  %v1774 = vpack.c.b16 %v1718, %v1714
  %v1775 = vpack.c.b16 %v1719, %v1715
  %v1776 = vpack.c.b16 %v1720, %v1716
  %v1777 = vpack.c.b16 %v1725, %v1721
  %v1778 = vpack.c.b16 %v1726, %v1722
  %v1779 = vpack.c.b16 %v1727, %v1723
  %v1780 = vpack.c.b16 %v1728, %v1724
  %v1781 = vpack.c.b16 %v1733, %v1729
  %v1782 = vpack.c.b16 %v1734, %v1730
  %v1783 = vpack.c.b16 %v1735, %v1731
  %v1784 = vpack.c.b16 %v1736, %v1732
  %v1785 = vpack.c.b16 %v1741, %v1737
  %v1786 = vpack.c.b16 %v1742, %v1738
  %v1787 = vpack.c.b16 %v1743, %v1739
  %v1788 = vpack.c.b16 %v1744, %v1740
  %v1789 = vpack.c.b16 %v1749, %v1745
  %v1790 = vpack.c.b16 %v1750, %v1746
  %v1791 = vpack.c.b16 %v1751, %v1747
  %v1792 = vpack.c.b16 %v1752, %v1748
  %v1793 = vpack.c.b16 %v1757, %v1753
  %v1794 = vpack.c.b16 %v1758, %v1754
  %v1795 = vpack.c.b16 %v1759, %v1755
  %v1796 = vpack.c.b16 %v1760, %v1756
  %v1797 = vpack.c.b16 %v1765, %v1761
  %v1798 = vpack.c.b16 %v1766, %v1762
  %v1799 = vpack.c.b16 %v1767, %v1763
  %v1800 = vpack.c.b16 %v1768, %v1764
  %1833 = vmatprep.subr.bf16.mxu0 %v1798
  %1834 = vmatpush1.bf16.msra.mxu0 %v1797
  %1835 = vmatprep.subr.bf16.mxu0 %v1794
  %1836 = vmatpush1.bf16.msra.mxu0 %v1793
  %1837 = vmatprep.subr.bf16.mxu0 %v1790
  %1838 = vmatpush1.bf16.msra.mxu0 %v1789
  %1839 = vmatprep.subr.bf16.mxu0 %v1786
  %1840 = vmatpush1.bf16.msra.mxu0 %v1785
  %1841 = vmatprep.subr.bf16.mxu0 %v1782
  %1842 = vmatpush1.bf16.msra.mxu0 %v1781
  %1843 = vmatprep.subr.bf16.mxu0 %v1778
  %1844 = vmatpush1.bf16.msra.mxu0 %v1777
  %1845 = vmatprep.subr.bf16.mxu0 %v1774
  %1846 = vmatpush1.bf16.msra.mxu0 %v1773
  %1847 = vmatprep.subr.bf16.mxu0 %v1770
  %1848 = vmatpush1.bf16.msra.mxu0 %v1769
  %1849 = vmatprep.subr.bf16.mxu0 0
  %1850 = vmatpush2.bf16.msra.mxu0 0
  %1851 = vmatprep.subr.bf16.mxu0 0
  %1852 = vmatpush2.bf16.msra.mxu0 0
  %1853 = vmatprep.subr.bf16.mxu0 0
  %1854 = vmatpush2.bf16.msra.mxu0 0
  %1855 = vmatprep.subr.bf16.mxu0 0
  %1856 = vmatpush2.bf16.msra.mxu0 0
  %1857 = vmatprep.subr.bf16.mxu0 0
  %1858 = vmatpush2.bf16.msra.mxu0 0
  %1859 = vmatprep.subr.bf16.mxu0 0
  %1860 = vmatpush2.bf16.msra.mxu0 0
  %1861 = vmatprep.subr.bf16.mxu0 0
  %1862 = vmatpush2.bf16.msra.mxu0 0
  %1863 = vmatprep.subr.bf16.mxu0 0
  %1864 = vmatpush2.bf16.msra.mxu0 0
  %1865 = vmatprep.mubr.bf16.mxu0 0
  %1866 = vmatmul.mubr.bf16.gmra.mxu0 %v1640
  %v1867 = vpop.f32.mrf.mxu0
  %v1868 = vadd.f32 0.0, %v1867
  %v1869 = vpop.f32.mrf.mxu0
  %v1870 = vadd.f32 0.0, %v1869
  %v1871 = vpop.f32.mrf.mxu0
  %v1872 = vpop.f32.mrf.mxu0
  %1873 = vdwg.mxu0
  %1874 = vmatprep.subr.bf16.mxu0 %v1800
  %1875 = vmatpush1.bf16.msra.mxu0 %v1799
  %1876 = vmatprep.subr.bf16.mxu0 %v1796
  %1877 = vmatpush1.bf16.msra.mxu0 %v1795
  %1878 = vmatprep.subr.bf16.mxu0 %v1792
  %1879 = vmatpush1.bf16.msra.mxu0 %v1791
  %1880 = vmatprep.subr.bf16.mxu0 %v1788
  %1881 = vmatpush1.bf16.msra.mxu0 %v1787
  %1882 = vmatprep.subr.bf16.mxu0 %v1784
  %1883 = vmatpush1.bf16.msra.mxu0 %v1783
  %1884 = vmatprep.subr.bf16.mxu0 %v1780
  %1885 = vmatpush1.bf16.msra.mxu0 %v1779
  %1886 = vmatprep.subr.bf16.mxu0 %v1776
  %1887 = vmatpush1.bf16.msra.mxu0 %v1775
  %1888 = vmatprep.subr.bf16.mxu0 %v1772
  %1889 = vmatpush1.bf16.msra.mxu0 %v1771
  %1890 = vmatprep.subr.bf16.mxu0 0
  %1891 = vmatpush2.bf16.msra.mxu0 0
  %1892 = vmatprep.subr.bf16.mxu0 0
  %1893 = vmatpush2.bf16.msra.mxu0 0
  %1894 = vmatprep.subr.bf16.mxu0 0
  %1895 = vmatpush2.bf16.msra.mxu0 0
  %1896 = vmatprep.subr.bf16.mxu0 0
  %1897 = vmatpush2.bf16.msra.mxu0 0
  %1898 = vmatprep.subr.bf16.mxu0 0
  %1899 = vmatpush2.bf16.msra.mxu0 0
  %1900 = vmatprep.subr.bf16.mxu0 0
  %1901 = vmatpush2.bf16.msra.mxu0 0
  %1902 = vmatprep.subr.bf16.mxu0 0
  %1903 = vmatpush2.bf16.msra.mxu0 0
  %1904 = vmatprep.subr.bf16.mxu0 0
  %1905 = vmatpush2.bf16.msra.mxu0 0
  %1906 = vmatprep.mubr.bf16.mxu0 0
  %1907 = vmatmul.mubr.bf16.gmra.mxu0 %v1640
  %v1908 = vpop.f32.mrf.mxu0
  %v1909 = vadd.f32 0.0, %v1908
  %v1910 = vpop.f32.mrf.mxu0
  %v1911 = vadd.f32 0.0, %v1910
  %v1912 = vpop.f32.mrf.mxu0
  %v1913 = vpop.f32.mrf.mxu0
  %1914 = vdwg.mxu0
  %v1915 = vadd.f32 %v1636, %v1868
  %v1916 = vadd.f32 %v1637, %v1870
  %v1917 = vadd.f32 %v1638, %v1909
  %v1918 = vadd.f32 %v1639, %v1911
  %v1919 = vxor.u32 %v1915, 2147483648
  %v1920 = vmul.f32 %v1919, 1.442695
  %v1921 = vpow.pop %v1920
  %v1922 = vadd.f32 %v1921, 1.0
  %v1923 = vrcp.pop %v1922
  %v1924 = vmul.f32 1.0, %v1923
  %v1925 = vxor.u32 %v1916, 2147483648
  %v1926 = vmul.f32 %v1925, 1.442695
  %v1927 = vpow.pop %v1926
  %v1928 = vadd.f32 %v1927, 1.0
  %v1929 = vrcp.pop %v1928
  %v1930 = vmul.f32 1.0, %v1929
  %v1931 = vtanh.pop %v1917
  %v1932 = vxor.u32 %v1918, 2147483648
  %v1933 = vmul.f32 %v1932, 1.442695
  %v1934 = vpow.pop %v1933
  %v1935 = vadd.f32 %v1934, 1.0
  %v1936 = vrcp.pop %v1935
  %v1937 = vmul.f32 1.0, %v1936
  %v1938 = vmul.f32 %v1930, %v1110
  %v1939 = vmul.f32 %v1924, %v1931
  %v1940 = vadd.f32 %v1938, %v1939
  %v1941 = vtanh.pop %v1940
  %v1942 = vmul.f32 %v1937, %v1941
  %v1943 = vpack.c.bf16 %v1942, %v1942
  %v1944 = vld [vmem:[%s17] sm:$0xf]
  %v1945 = vld [vmem:[%s17 + $0x4] sm:$0xf]
  %v1946 = vld [vmem:[%s17 + $0x8] sm:$0xf]
  %v1947 = vld [vmem:[%s17 + $0xc] sm:$0xf]
  %v1948 = vld [vmem:[%s17 + $0x10] sm:$0xf]
  %v1949 = vld [vmem:[%s17 + $0x14] sm:$0xf]
  %v1950 = vld [vmem:[%s17 + $0x18] sm:$0xf]
  %v1951 = vld [vmem:[%s17 + $0x1c] sm:$0xf]
  %v1952 = vld [vmem:[%s17 + $0x20] sm:$0xf]
  %v1953 = vld [vmem:[%s17 + $0x24] sm:$0xf]
  %v1954 = vld [vmem:[%s17 + $0x28] sm:$0xf]
  %v1955 = vld [vmem:[%s17 + $0x2c] sm:$0xf]
  %v1956 = vld [vmem:[%s17 + $0x30] sm:$0xf]
  %v1957 = vld [vmem:[%s17 + $0x34] sm:$0xf]
  %v1958 = vld [vmem:[%s17 + $0x38] sm:$0xf]
  %v1959 = vld [vmem:[%s17 + $0x3c] sm:$0xf]
  %v1960 = vld [vmem:[%s18] sm:$0x1]
  %v1962 = vlaneseq
  %v1963 = vshrl.u32 %v1962, 7
  %v1964 = vsub.s32 0, %v1963
  %v1965 = vrot.slane %v1960, %v1964
  %v1983 = vunpack.c.l.b16 %v1944
  %v1984 = vunpack.c.l.b16 %v1945
  %v1985 = vunpack.c.l.b16 %v1946
  %v1986 = vunpack.c.l.b16 %v1947
  %v1987 = vunpack.c.l.b16 %v1948
  %v1988 = vunpack.c.l.b16 %v1949
  %v1989 = vunpack.c.l.b16 %v1950
  %v1990 = vunpack.c.l.b16 %v1951
  %v1991 = vunpack.c.l.b16 %v1952
  %v1992 = vunpack.c.l.b16 %v1953
  %v1993 = vunpack.c.l.b16 %v1954
  %v1994 = vunpack.c.l.b16 %v1955
  %v1995 = vunpack.c.l.b16 %v1956
  %v1996 = vunpack.c.l.b16 %v1957
  %v1997 = vunpack.c.l.b16 %v1958
  %v1998 = vunpack.c.l.b16 %v1959
  %v1999 = vpack.c.b16 %v1984, %v1983
  %v2000 = vpack.c.b16 %v1986, %v1985
  %v2001 = vpack.c.b16 %v1988, %v1987
  %v2002 = vpack.c.b16 %v1990, %v1989
  %v2003 = vpack.c.b16 %v1992, %v1991
  %v2004 = vpack.c.b16 %v1994, %v1993
  %v2005 = vpack.c.b16 %v1996, %v1995
  %v2006 = vpack.c.b16 %v1998, %v1997
  %2015 = vmatprep.subr.bf16.mxu0 0
  %2016 = vmatpush1.bf16.msra.mxu0 %v2006
  %2017 = vmatprep.subr.bf16.mxu0 0
  %2018 = vmatpush1.bf16.msra.mxu0 %v2005
  %2019 = vmatprep.subr.bf16.mxu0 0
  %2020 = vmatpush1.bf16.msra.mxu0 %v2004
  %2021 = vmatprep.subr.bf16.mxu0 0
  %2022 = vmatpush1.bf16.msra.mxu0 %v2003
  %2023 = vmatprep.subr.bf16.mxu0 0
  %2024 = vmatpush1.bf16.msra.mxu0 %v2002
  %2025 = vmatprep.subr.bf16.mxu0 0
  %2026 = vmatpush1.bf16.msra.mxu0 %v2001
  %2027 = vmatprep.subr.bf16.mxu0 0
  %2028 = vmatpush1.bf16.msra.mxu0 %v2000
  %2029 = vmatprep.subr.bf16.mxu0 0
  %2030 = vmatpush1.bf16.msra.mxu0 %v1999
  %2031 = vmatprep.subr.bf16.mxu0 0
  %2032 = vmatpush2.bf16.msra.mxu0 0
  %2033 = vmatprep.subr.bf16.mxu0 0
  %2034 = vmatpush2.bf16.msra.mxu0 0
  %2035 = vmatprep.subr.bf16.mxu0 0
  %2036 = vmatpush2.bf16.msra.mxu0 0
  %2037 = vmatprep.subr.bf16.mxu0 0
  %2038 = vmatpush2.bf16.msra.mxu0 0
  %2039 = vmatprep.subr.bf16.mxu0 0
  %2040 = vmatpush2.bf16.msra.mxu0 0
  %2041 = vmatprep.subr.bf16.mxu0 0
  %2042 = vmatpush2.bf16.msra.mxu0 0
  %2043 = vmatprep.subr.bf16.mxu0 0
  %2044 = vmatpush2.bf16.msra.mxu0 0
  %2045 = vmatprep.subr.bf16.mxu0 0
  %2046 = vmatpush2.bf16.msra.mxu0 0
  %2047 = vmatprep.mubr.bf16.mxu0 0
  %2048 = vmatmul.mubr.bf16.gmra.mxu0 %v1943
  %v2049 = vpop.f32.mrf.mxu0
  %v2050 = vadd.f32 %v1965, %v2049
  %v2051 = vpop.f32.mrf.mxu0
  %v2052 = vpop.f32.mrf.mxu0
  %v2053 = vpop.f32.mrf.mxu0
  %2054 = vdwg.mxu0
  %v2055 = vmax.f32 %v2050, 0.0
  %v2056 = vpack.c.bf16 %v2055, %v2055
  %v2057 = vld [vmem:[%s19] sm:$0xf]
  %v2058 = vld [vmem:[%s19 + $0x4] sm:$0xf]
  %v2059 = vld [vmem:[%s19 + $0x8] sm:$0xf]
  %v2060 = vld [vmem:[%s19 + $0xc] sm:$0xf]
  %v2061 = vld [vmem:[%s19 + $0x10] sm:$0xf]
  %v2062 = vld [vmem:[%s19 + $0x14] sm:$0xf]
  %v2063 = vld [vmem:[%s19 + $0x18] sm:$0xf]
  %v2064 = vld [vmem:[%s19 + $0x1c] sm:$0xf]
  %v2065 = vld [vmem:[%s20] sm:$0x1]
  %v2067 = vlaneseq
  %v2068 = vshrl.u32 %v2067, 7
  %v2069 = vsub.s32 0, %v2068
  %v2070 = vrot.slane %v2065, %v2069
  %v2080 = vunpack.c.l.b16 %v2057
  %v2081 = vunpack.c.l.b16 %v2058
  %v2082 = vunpack.c.l.b16 %v2059
  %v2083 = vunpack.c.l.b16 %v2060
  %v2084 = vunpack.c.l.b16 %v2061
  %v2085 = vunpack.c.l.b16 %v2062
  %v2086 = vunpack.c.l.b16 %v2063
  %v2087 = vunpack.c.l.b16 %v2064
  %v2088 = vpack.c.b16 %v2081, %v2080
  %v2089 = vpack.c.b16 %v2083, %v2082
  %v2090 = vpack.c.b16 %v2085, %v2084
  %v2091 = vpack.c.b16 %v2087, %v2086
  %vm2096 = vcmask 523264
  %v2098 = vsel %vm2096, %v2056, 0
  %2100 = vmatprep.subr.bf16.mxu0 0
  %2101 = vmatpush1.bf16.msra.mxu0 0
  %2102 = vmatprep.subr.bf16.mxu0 0
  %2103 = vmatpush1.bf16.msra.mxu0 0
  %2104 = vmatprep.subr.bf16.mxu0 0
  %2105 = vmatpush1.bf16.msra.mxu0 0
  %2106 = vmatprep.subr.bf16.mxu0 0
  %2107 = vmatpush1.bf16.msra.mxu0 0
  %2108 = vmatprep.subr.bf16.mxu0 0
  %2109 = vmatpush1.bf16.msra.mxu0 %v2091
  %2110 = vmatprep.subr.bf16.mxu0 0
  %2111 = vmatpush1.bf16.msra.mxu0 %v2090
  %2112 = vmatprep.subr.bf16.mxu0 0
  %2113 = vmatpush1.bf16.msra.mxu0 %v2089
  %2114 = vmatprep.subr.bf16.mxu0 0
  %2115 = vmatpush1.bf16.msra.mxu0 %v2088
  %2116 = vmatprep.subr.bf16.mxu0 0
  %2117 = vmatpush2.bf16.msra.mxu0 0
  %2118 = vmatprep.subr.bf16.mxu0 0
  %2119 = vmatpush2.bf16.msra.mxu0 0
  %2120 = vmatprep.subr.bf16.mxu0 0
  %2121 = vmatpush2.bf16.msra.mxu0 0
  %2122 = vmatprep.subr.bf16.mxu0 0
  %2123 = vmatpush2.bf16.msra.mxu0 0
  %2124 = vmatprep.subr.bf16.mxu0 0
  %2125 = vmatpush2.bf16.msra.mxu0 0
  %2126 = vmatprep.subr.bf16.mxu0 0
  %2127 = vmatpush2.bf16.msra.mxu0 0
  %2128 = vmatprep.subr.bf16.mxu0 0
  %2129 = vmatpush2.bf16.msra.mxu0 0
  %2130 = vmatprep.subr.bf16.mxu0 0
  %2131 = vmatpush2.bf16.msra.mxu0 0
  %2132 = vmatprep.mubr.bf16.mxu0 0
  %2133 = vmatmul.mubr.bf16.gmra.mxu0 %v2098
  %v2134 = vpop.f32.mrf.mxu0
  %v2135 = vadd.f32 %v2070, %v2134
  %v2136 = vpop.f32.mrf.mxu0
  %v2137 = vpop.f32.mrf.mxu0
  %v2138 = vpop.f32.mrf.mxu0
  %2139 = vdwg.mxu0
  %v2140 = vtanh.pop %v2135
  %v2141 = vmul.f32 %v2140, 3.1415927
  %v2142 = vsel %vm1632, %v2141, %v2135
  %2143 = vst [vmem:[%s21] sm:$0xff] %v2142
  %s2144 = smul.u32 1, 4
  %s2145 = smul.addr %s2144, 8
  %s2146 = scalar_lea.vmem [#allocation2], %s2145
  %v2147 = vld [vmem:[%s2146] sm:$0xff]
  %v2148 = vld [vmem:[%s2146 + $0x8] sm:$0xff]
  %v2149 = vld [vmem:[%s2146 + $0x10] sm:$0xff]
  %v2150 = vld [vmem:[%s2146 + $0x18] sm:$0xff]
  %v2151 = vld [vmem:[%s16] sm:$0xff]
  %v2152 = vld [vmem:[%s16 + $0x8] sm:$0xff]
  %v2153 = vld [vmem:[%s16 + $0x10] sm:$0xff]
  %v2154 = vld [vmem:[%s16 + $0x18] sm:$0xff]
  %v2155 = vld [vmem:[%s16 + $0x20] sm:$0xff]
  %v2156 = vld [vmem:[%s16 + $0x28] sm:$0xff]
  %v2157 = vld [vmem:[%s16 + $0x30] sm:$0xff]
  %v2158 = vld [vmem:[%s16 + $0x38] sm:$0xff]
  %v2159 = vld [vmem:[%s16 + $0x40] sm:$0xff]
  %v2160 = vld [vmem:[%s16 + $0x48] sm:$0xff]
  %v2161 = vld [vmem:[%s16 + $0x50] sm:$0xff]
  %v2162 = vld [vmem:[%s16 + $0x58] sm:$0xff]
  %v2163 = vld [vmem:[%s16 + $0x60] sm:$0xff]
  %v2164 = vld [vmem:[%s16 + $0x68] sm:$0xff]
  %v2165 = vld [vmem:[%s16 + $0x70] sm:$0xff]
  %v2166 = vld [vmem:[%s16 + $0x78] sm:$0xff]
  %v2167 = vld [vmem:[%s16 + $0x80] sm:$0xff]
  %v2168 = vld [vmem:[%s16 + $0x88] sm:$0xff]
  %v2169 = vld [vmem:[%s16 + $0x90] sm:$0xff]
  %v2170 = vld [vmem:[%s16 + $0x98] sm:$0xff]
  %v2171 = vld [vmem:[%s16 + $0xa0] sm:$0xff]
  %v2172 = vld [vmem:[%s16 + $0xa8] sm:$0xff]
  %v2173 = vld [vmem:[%s16 + $0xb0] sm:$0xff]
  %v2174 = vld [vmem:[%s16 + $0xb8] sm:$0xff]
  %v2175 = vld [vmem:[%s16 + $0xc0] sm:$0xff]
  %v2176 = vld [vmem:[%s16 + $0xc8] sm:$0xff]
  %v2177 = vld [vmem:[%s16 + $0xd0] sm:$0xff]
  %v2178 = vld [vmem:[%s16 + $0xd8] sm:$0xff]
  %v2179 = vld [vmem:[%s16 + $0xe0] sm:$0xff]
  %v2180 = vld [vmem:[%s16 + $0xe8] sm:$0xff]
  %v2181 = vld [vmem:[%s16 + $0xf0] sm:$0xff]
  %v2182 = vld [vmem:[%s16 + $0xf8] sm:$0xff]
  %v2215 = vunpack.c.l.b16 %v2151
  %v2216 = vunpack.c.h.b16 %v2151
  %v2217 = vunpack.c.l.b16 %v2152
  %v2218 = vunpack.c.h.b16 %v2152
  %v2219 = vunpack.c.l.b16 %v2153
  %v2220 = vunpack.c.h.b16 %v2153
  %v2221 = vunpack.c.l.b16 %v2154
  %v2222 = vunpack.c.h.b16 %v2154
  %v2223 = vunpack.c.l.b16 %v2155
  %v2224 = vunpack.c.h.b16 %v2155
  %v2225 = vunpack.c.l.b16 %v2156
  %v2226 = vunpack.c.h.b16 %v2156
  %v2227 = vunpack.c.l.b16 %v2157
  %v2228 = vunpack.c.h.b16 %v2157
  %v2229 = vunpack.c.l.b16 %v2158
  %v2230 = vunpack.c.h.b16 %v2158
  %v2231 = vunpack.c.l.b16 %v2159
  %v2232 = vunpack.c.h.b16 %v2159
  %v2233 = vunpack.c.l.b16 %v2160
  %v2234 = vunpack.c.h.b16 %v2160
  %v2235 = vunpack.c.l.b16 %v2161
  %v2236 = vunpack.c.h.b16 %v2161
  %v2237 = vunpack.c.l.b16 %v2162
  %v2238 = vunpack.c.h.b16 %v2162
  %v2239 = vunpack.c.l.b16 %v2163
  %v2240 = vunpack.c.h.b16 %v2163
  %v2241 = vunpack.c.l.b16 %v2164
  %v2242 = vunpack.c.h.b16 %v2164
  %v2243 = vunpack.c.l.b16 %v2165
  %v2244 = vunpack.c.h.b16 %v2165
  %v2245 = vunpack.c.l.b16 %v2166
  %v2246 = vunpack.c.h.b16 %v2166
  %v2247 = vunpack.c.l.b16 %v2167
  %v2248 = vunpack.c.h.b16 %v2167
  %v2249 = vunpack.c.l.b16 %v2168
  %v2250 = vunpack.c.h.b16 %v2168
  %v2251 = vunpack.c.l.b16 %v2169
  %v2252 = vunpack.c.h.b16 %v2169
  %v2253 = vunpack.c.l.b16 %v2170
  %v2254 = vunpack.c.h.b16 %v2170
  %v2255 = vunpack.c.l.b16 %v2171
  %v2256 = vunpack.c.h.b16 %v2171
  %v2257 = vunpack.c.l.b16 %v2172
  %v2258 = vunpack.c.h.b16 %v2172
  %v2259 = vunpack.c.l.b16 %v2173
  %v2260 = vunpack.c.h.b16 %v2173
  %v2261 = vunpack.c.l.b16 %v2174
  %v2262 = vunpack.c.h.b16 %v2174
  %v2263 = vunpack.c.l.b16 %v2175
  %v2264 = vunpack.c.h.b16 %v2175
  %v2265 = vunpack.c.l.b16 %v2176
  %v2266 = vunpack.c.h.b16 %v2176
  %v2267 = vunpack.c.l.b16 %v2177
  %v2268 = vunpack.c.h.b16 %v2177
  %v2269 = vunpack.c.l.b16 %v2178
  %v2270 = vunpack.c.h.b16 %v2178
  %v2271 = vunpack.c.l.b16 %v2179
  %v2272 = vunpack.c.h.b16 %v2179
  %v2273 = vunpack.c.l.b16 %v2180
  %v2274 = vunpack.c.h.b16 %v2180
  %v2275 = vunpack.c.l.b16 %v2181
  %v2276 = vunpack.c.h.b16 %v2181
  %v2277 = vunpack.c.l.b16 %v2182
  %v2278 = vunpack.c.h.b16 %v2182
  %v2279 = vpack.c.b16 %v2219, %v2215
  %v2280 = vpack.c.b16 %v2220, %v2216
  %v2281 = vpack.c.b16 %v2221, %v2217
  %v2282 = vpack.c.b16 %v2222, %v2218
  %v2283 = vpack.c.b16 %v2227, %v2223
  %v2284 = vpack.c.b16 %v2228, %v2224
  %v2285 = vpack.c.b16 %v2229, %v2225
  %v2286 = vpack.c.b16 %v2230, %v2226
  %v2287 = vpack.c.b16 %v2235, %v2231
  %v2288 = vpack.c.b16 %v2236, %v2232
  %v2289 = vpack.c.b16 %v2237, %v2233
  %v2290 = vpack.c.b16 %v2238, %v2234
  %v2291 = vpack.c.b16 %v2243, %v2239
  %v2292 = vpack.c.b16 %v2244, %v2240
  %v2293 = vpack.c.b16 %v2245, %v2241
  %v2294 = vpack.c.b16 %v2246, %v2242
  %v2295 = vpack.c.b16 %v2251, %v2247
  %v2296 = vpack.c.b16 %v2252, %v2248
  %v2297 = vpack.c.b16 %v2253, %v2249
  %v2298 = vpack.c.b16 %v2254, %v2250
  %v2299 = vpack.c.b16 %v2259, %v2255
  %v2300 = vpack.c.b16 %v2260, %v2256
  %v2301 = vpack.c.b16 %v2261, %v2257
  %v2302 = vpack.c.b16 %v2262, %v2258
  %v2303 = vpack.c.b16 %v2267, %v2263
  %v2304 = vpack.c.b16 %v2268, %v2264
  %v2305 = vpack.c.b16 %v2269, %v2265
  %v2306 = vpack.c.b16 %v2270, %v2266
  %v2307 = vpack.c.b16 %v2275, %v2271
  %v2308 = vpack.c.b16 %v2276, %v2272
  %v2309 = vpack.c.b16 %v2277, %v2273
  %v2310 = vpack.c.b16 %v2278, %v2274
  %2343 = vmatprep.subr.bf16.mxu0 %v2308
  %2344 = vmatpush1.bf16.msra.mxu0 %v2307
  %2345 = vmatprep.subr.bf16.mxu0 %v2304
  %2346 = vmatpush1.bf16.msra.mxu0 %v2303
  %2347 = vmatprep.subr.bf16.mxu0 %v2300
  %2348 = vmatpush1.bf16.msra.mxu0 %v2299
  %2349 = vmatprep.subr.bf16.mxu0 %v2296
  %2350 = vmatpush1.bf16.msra.mxu0 %v2295
  %2351 = vmatprep.subr.bf16.mxu0 %v2292
  %2352 = vmatpush1.bf16.msra.mxu0 %v2291
  %2353 = vmatprep.subr.bf16.mxu0 %v2288
  %2354 = vmatpush1.bf16.msra.mxu0 %v2287
  %2355 = vmatprep.subr.bf16.mxu0 %v2284
  %2356 = vmatpush1.bf16.msra.mxu0 %v2283
  %2357 = vmatprep.subr.bf16.mxu0 %v2280
  %2358 = vmatpush1.bf16.msra.mxu0 %v2279
  %2359 = vmatprep.subr.bf16.mxu0 0
  %2360 = vmatpush2.bf16.msra.mxu0 0
  %2361 = vmatprep.subr.bf16.mxu0 0
  %2362 = vmatpush2.bf16.msra.mxu0 0
  %2363 = vmatprep.subr.bf16.mxu0 0
  %2364 = vmatpush2.bf16.msra.mxu0 0
  %2365 = vmatprep.subr.bf16.mxu0 0
  %2366 = vmatpush2.bf16.msra.mxu0 0
  %2367 = vmatprep.subr.bf16.mxu0 0
  %2368 = vmatpush2.bf16.msra.mxu0 0
  %2369 = vmatprep.subr.bf16.mxu0 0
  %2370 = vmatpush2.bf16.msra.mxu0 0
  %2371 = vmatprep.subr.bf16.mxu0 0
  %2372 = vmatpush2.bf16.msra.mxu0 0
  %2373 = vmatprep.subr.bf16.mxu0 0
  %2374 = vmatpush2.bf16.msra.mxu0 0
  %2375 = vmatprep.mubr.bf16.mxu0 0
  %2376 = vmatmul.mubr.bf16.gmra.mxu0 %v1943
  %v2377 = vpop.f32.mrf.mxu0
  %v2378 = vadd.f32 0.0, %v2377
  %v2379 = vpop.f32.mrf.mxu0
  %v2380 = vadd.f32 0.0, %v2379
  %v2381 = vpop.f32.mrf.mxu0
  %v2382 = vpop.f32.mrf.mxu0
  %2383 = vdwg.mxu0
  %2384 = vmatprep.subr.bf16.mxu0 %v2310
  %2385 = vmatpush1.bf16.msra.mxu0 %v2309
  %2386 = vmatprep.subr.bf16.mxu0 %v2306
  %2387 = vmatpush1.bf16.msra.mxu0 %v2305
  %2388 = vmatprep.subr.bf16.mxu0 %v2302
  %2389 = vmatpush1.bf16.msra.mxu0 %v2301
  %2390 = vmatprep.subr.bf16.mxu0 %v2298
  %2391 = vmatpush1.bf16.msra.mxu0 %v2297
  %2392 = vmatprep.subr.bf16.mxu0 %v2294
  %2393 = vmatpush1.bf16.msra.mxu0 %v2293
  %2394 = vmatprep.subr.bf16.mxu0 %v2290
  %2395 = vmatpush1.bf16.msra.mxu0 %v2289
  %2396 = vmatprep.subr.bf16.mxu0 %v2286
  %2397 = vmatpush1.bf16.msra.mxu0 %v2285
  %2398 = vmatprep.subr.bf16.mxu0 %v2282
  %2399 = vmatpush1.bf16.msra.mxu0 %v2281
  %2400 = vmatprep.subr.bf16.mxu0 0
  %2401 = vmatpush2.bf16.msra.mxu0 0
  %2402 = vmatprep.subr.bf16.mxu0 0
  %2403 = vmatpush2.bf16.msra.mxu0 0
  %2404 = vmatprep.subr.bf16.mxu0 0
  %2405 = vmatpush2.bf16.msra.mxu0 0
  %2406 = vmatprep.subr.bf16.mxu0 0
  %2407 = vmatpush2.bf16.msra.mxu0 0
  %2408 = vmatprep.subr.bf16.mxu0 0
  %2409 = vmatpush2.bf16.msra.mxu0 0
  %2410 = vmatprep.subr.bf16.mxu0 0
  %2411 = vmatpush2.bf16.msra.mxu0 0
  %2412 = vmatprep.subr.bf16.mxu0 0
  %2413 = vmatpush2.bf16.msra.mxu0 0
  %2414 = vmatprep.subr.bf16.mxu0 0
  %2415 = vmatpush2.bf16.msra.mxu0 0
  %2416 = vmatprep.mubr.bf16.mxu0 0
  %2417 = vmatmul.mubr.bf16.gmra.mxu0 %v1943
  %v2418 = vpop.f32.mrf.mxu0
  %v2419 = vadd.f32 0.0, %v2418
  %v2420 = vpop.f32.mrf.mxu0
  %v2421 = vadd.f32 0.0, %v2420
  %v2422 = vpop.f32.mrf.mxu0
  %v2423 = vpop.f32.mrf.mxu0
  %2424 = vdwg.mxu0
  %v2425 = vadd.f32 %v2147, %v2378
  %v2426 = vadd.f32 %v2148, %v2380
  %v2427 = vadd.f32 %v2149, %v2419
  %v2428 = vadd.f32 %v2150, %v2421
  %v2429 = vxor.u32 %v2425, 2147483648
  %v2430 = vmul.f32 %v2429, 1.442695
  %v2431 = vpow.pop %v2430
  %v2432 = vadd.f32 %v2431, 1.0
  %v2433 = vrcp.pop %v2432
  %v2434 = vmul.f32 1.0, %v2433
  %v2435 = vxor.u32 %v2426, 2147483648
  %v2436 = vmul.f32 %v2435, 1.442695
  %v2437 = vpow.pop %v2436
  %v2438 = vadd.f32 %v2437, 1.0
  %v2439 = vrcp.pop %v2438
  %v2440 = vmul.f32 1.0, %v2439
  %v2441 = vtanh.pop %v2427
  %v2442 = vxor.u32 %v2428, 2147483648
  %v2443 = vmul.f32 %v2442, 1.442695
  %v2444 = vpow.pop %v2443
  %v2445 = vadd.f32 %v2444, 1.0
  %v2446 = vrcp.pop %v2445
  %v2447 = vmul.f32 1.0, %v2446
  %v2448 = vmul.f32 %v2440, %v1940
  %v2449 = vmul.f32 %v2434, %v2441
  %v2450 = vadd.f32 %v2448, %v2449
  %v2451 = vtanh.pop %v2450
  %v2452 = vmul.f32 %v2447, %v2451
  %v2453 = vpack.c.bf16 %v2452, %v2452
  %v2454 = vld [vmem:[%s17] sm:$0xf]
  %v2455 = vld [vmem:[%s17 + $0x4] sm:$0xf]
  %v2456 = vld [vmem:[%s17 + $0x8] sm:$0xf]
  %v2457 = vld [vmem:[%s17 + $0xc] sm:$0xf]
  %v2458 = vld [vmem:[%s17 + $0x10] sm:$0xf]
  %v2459 = vld [vmem:[%s17 + $0x14] sm:$0xf]
  %v2460 = vld [vmem:[%s17 + $0x18] sm:$0xf]
  %v2461 = vld [vmem:[%s17 + $0x1c] sm:$0xf]
  %v2462 = vld [vmem:[%s17 + $0x20] sm:$0xf]
  %v2463 = vld [vmem:[%s17 + $0x24] sm:$0xf]
  %v2464 = vld [vmem:[%s17 + $0x28] sm:$0xf]
  %v2465 = vld [vmem:[%s17 + $0x2c] sm:$0xf]
  %v2466 = vld [vmem:[%s17 + $0x30] sm:$0xf]
  %v2467 = vld [vmem:[%s17 + $0x34] sm:$0xf]
  %v2468 = vld [vmem:[%s17 + $0x38] sm:$0xf]
  %v2469 = vld [vmem:[%s17 + $0x3c] sm:$0xf]
  %v2470 = vld [vmem:[%s18] sm:$0x1]
  %v2472 = vlaneseq
  %v2473 = vshrl.u32 %v2472, 7
  %v2474 = vsub.s32 0, %v2473
  %v2475 = vrot.slane %v2470, %v2474
  %v2493 = vunpack.c.l.b16 %v2454
  %v2494 = vunpack.c.l.b16 %v2455
  %v2495 = vunpack.c.l.b16 %v2456
  %v2496 = vunpack.c.l.b16 %v2457
  %v2497 = vunpack.c.l.b16 %v2458
  %v2498 = vunpack.c.l.b16 %v2459
  %v2499 = vunpack.c.l.b16 %v2460
  %v2500 = vunpack.c.l.b16 %v2461
  %v2501 = vunpack.c.l.b16 %v2462
  %v2502 = vunpack.c.l.b16 %v2463
  %v2503 = vunpack.c.l.b16 %v2464
  %v2504 = vunpack.c.l.b16 %v2465
  %v2505 = vunpack.c.l.b16 %v2466
  %v2506 = vunpack.c.l.b16 %v2467
  %v2507 = vunpack.c.l.b16 %v2468
  %v2508 = vunpack.c.l.b16 %v2469
  %v2509 = vpack.c.b16 %v2494, %v2493
  %v2510 = vpack.c.b16 %v2496, %v2495
  %v2511 = vpack.c.b16 %v2498, %v2497
  %v2512 = vpack.c.b16 %v2500, %v2499
  %v2513 = vpack.c.b16 %v2502, %v2501
  %v2514 = vpack.c.b16 %v2504, %v2503
  %v2515 = vpack.c.b16 %v2506, %v2505
  %v2516 = vpack.c.b16 %v2508, %v2507
  %2525 = vmatprep.subr.bf16.mxu0 0
  %2526 = vmatpush1.bf16.msra.mxu0 %v2516
  %2527 = vmatprep.subr.bf16.mxu0 0
  %2528 = vmatpush1.bf16.msra.mxu0 %v2515
  %2529 = vmatprep.subr.bf16.mxu0 0
  %2530 = vmatpush1.bf16.msra.mxu0 %v2514
  %2531 = vmatprep.subr.bf16.mxu0 0
  %2532 = vmatpush1.bf16.msra.mxu0 %v2513
  %2533 = vmatprep.subr.bf16.mxu0 0
  %2534 = vmatpush1.bf16.msra.mxu0 %v2512
  %2535 = vmatprep.subr.bf16.mxu0 0
  %2536 = vmatpush1.bf16.msra.mxu0 %v2511
  %2537 = vmatprep.subr.bf16.mxu0 0
  %2538 = vmatpush1.bf16.msra.mxu0 %v2510
  %2539 = vmatprep.subr.bf16.mxu0 0
  %2540 = vmatpush1.bf16.msra.mxu0 %v2509
  %2541 = vmatprep.subr.bf16.mxu0 0
  %2542 = vmatpush2.bf16.msra.mxu0 0
  %2543 = vmatprep.subr.bf16.mxu0 0
  %2544 = vmatpush2.bf16.msra.mxu0 0
  %2545 = vmatprep.subr.bf16.mxu0 0
  %2546 = vmatpush2.bf16.msra.mxu0 0
  %2547 = vmatprep.subr.bf16.mxu0 0
  %2548 = vmatpush2.bf16.msra.mxu0 0
  %2549 = vmatprep.subr.bf16.mxu0 0
  %2550 = vmatpush2.bf16.msra.mxu0 0
  %2551 = vmatprep.subr.bf16.mxu0 0
  %2552 = vmatpush2.bf16.msra.mxu0 0
  %2553 = vmatprep.subr.bf16.mxu0 0
  %2554 = vmatpush2.bf16.msra.mxu0 0
  %2555 = vmatprep.subr.bf16.mxu0 0
  %2556 = vmatpush2.bf16.msra.mxu0 0
  %2557 = vmatprep.mubr.bf16.mxu0 0
  %2558 = vmatmul.mubr.bf16.gmra.mxu0 %v2453
  %v2559 = vpop.f32.mrf.mxu0
  %v2560 = vadd.f32 %v2475, %v2559
  %v2561 = vpop.f32.mrf.mxu0
  %v2562 = vpop.f32.mrf.mxu0
  %v2563 = vpop.f32.mrf.mxu0
  %2564 = vdwg.mxu0
  %v2565 = vmax.f32 %v2560, 0.0
  %v2566 = vpack.c.bf16 %v2565, %v2565
  %v2567 = vld [vmem:[%s19] sm:$0xf]
  %v2568 = vld [vmem:[%s19 + $0x4] sm:$0xf]
  %v2569 = vld [vmem:[%s19 + $0x8] sm:$0xf]
  %v2570 = vld [vmem:[%s19 + $0xc] sm:$0xf]
  %v2571 = vld [vmem:[%s19 + $0x10] sm:$0xf]
  %v2572 = vld [vmem:[%s19 + $0x14] sm:$0xf]
  %v2573 = vld [vmem:[%s19 + $0x18] sm:$0xf]
  %v2574 = vld [vmem:[%s19 + $0x1c] sm:$0xf]
  %v2575 = vld [vmem:[%s20] sm:$0x1]
  %v2577 = vlaneseq
  %v2578 = vshrl.u32 %v2577, 7
  %v2579 = vsub.s32 0, %v2578
  %v2580 = vrot.slane %v2575, %v2579
  %v2590 = vunpack.c.l.b16 %v2567
  %v2591 = vunpack.c.l.b16 %v2568
  %v2592 = vunpack.c.l.b16 %v2569
  %v2593 = vunpack.c.l.b16 %v2570
  %v2594 = vunpack.c.l.b16 %v2571
  %v2595 = vunpack.c.l.b16 %v2572
  %v2596 = vunpack.c.l.b16 %v2573
  %v2597 = vunpack.c.l.b16 %v2574
  %v2598 = vpack.c.b16 %v2591, %v2590
  %v2599 = vpack.c.b16 %v2593, %v2592
  %v2600 = vpack.c.b16 %v2595, %v2594
  %v2601 = vpack.c.b16 %v2597, %v2596
  %v2607 = vsel %vm2096, %v2566, 0
  %2609 = vmatprep.subr.bf16.mxu0 0
  %2610 = vmatpush1.bf16.msra.mxu0 0
  %2611 = vmatprep.subr.bf16.mxu0 0
  %2612 = vmatpush1.bf16.msra.mxu0 0
  %2613 = vmatprep.subr.bf16.mxu0 0
  %2614 = vmatpush1.bf16.msra.mxu0 0
  %2615 = vmatprep.subr.bf16.mxu0 0
  %2616 = vmatpush1.bf16.msra.mxu0 0
  %2617 = vmatprep.subr.bf16.mxu0 0
  %2618 = vmatpush1.bf16.msra.mxu0 %v2601
  %2619 = vmatprep.subr.bf16.mxu0 0
  %2620 = vmatpush1.bf16.msra.mxu0 %v2600
  %2621 = vmatprep.subr.bf16.mxu0 0
  %2622 = vmatpush1.bf16.msra.mxu0 %v2599
  %2623 = vmatprep.subr.bf16.mxu0 0
  %2624 = vmatpush1.bf16.msra.mxu0 %v2598
  %2625 = vmatprep.subr.bf16.mxu0 0
  %2626 = vmatpush2.bf16.msra.mxu0 0
  %2627 = vmatprep.subr.bf16.mxu0 0
  %2628 = vmatpush2.bf16.msra.mxu0 0
  %2629 = vmatprep.subr.bf16.mxu0 0
  %2630 = vmatpush2.bf16.msra.mxu0 0
  %2631 = vmatprep.subr.bf16.mxu0 0
  %2632 = vmatpush2.bf16.msra.mxu0 0
  %2633 = vmatprep.subr.bf16.mxu0 0
  %2634 = vmatpush2.bf16.msra.mxu0 0
  %2635 = vmatprep.subr.bf16.mxu0 0
  %2636 = vmatpush2.bf16.msra.mxu0 0
  %2637 = vmatprep.subr.bf16.mxu0 0
  %2638 = vmatpush2.bf16.msra.mxu0 0
  %2639 = vmatprep.subr.bf16.mxu0 0
  %2640 = vmatpush2.bf16.msra.mxu0 0
  %2641 = vmatprep.mubr.bf16.mxu0 0
  %2642 = vmatmul.mubr.bf16.gmra.mxu0 %v2607
  %v2643 = vpop.f32.mrf.mxu0
  %v2644 = vadd.f32 %v2580, %v2643
  %v2645 = vpop.f32.mrf.mxu0
  %v2646 = vpop.f32.mrf.mxu0
  %v2647 = vpop.f32.mrf.mxu0
  %2648 = vdwg.mxu0
  %v2649 = vtanh.pop %v2644
  %v2650 = vmul.f32 %v2649, 3.1415927
  %v2651 = vsel %vm1632, %v2650, %v2644
  %s2652 = scalar_lea.vmem %s21, 8
  %2653 = vst [vmem:[%s2652] sm:$0xff] %v2651
  %s2654 = smul.u32 2, 4
  %s2655 = smul.addr %s2654, 8
  %s2656 = scalar_lea.vmem [#allocation2], %s2655
  %v2657 = vld [vmem:[%s2656] sm:$0xff]
  %v2658 = vld [vmem:[%s2656 + $0x8] sm:$0xff]
  %v2659 = vld [vmem:[%s2656 + $0x10] sm:$0xff]
  %v2660 = vld [vmem:[%s2656 + $0x18] sm:$0xff]
  %v2661 = vld [vmem:[%s16] sm:$0xff]
  %v2662 = vld [vmem:[%s16 + $0x8] sm:$0xff]
  %v2663 = vld [vmem:[%s16 + $0x10] sm:$0xff]
  %v2664 = vld [vmem:[%s16 + $0x18] sm:$0xff]
  %v2665 = vld [vmem:[%s16 + $0x20] sm:$0xff]
  %v2666 = vld [vmem:[%s16 + $0x28] sm:$0xff]
  %v2667 = vld [vmem:[%s16 + $0x30] sm:$0xff]
  %v2668 = vld [vmem:[%s16 + $0x38] sm:$0xff]
  %v2669 = vld [vmem:[%s16 + $0x40] sm:$0xff]
  %v2670 = vld [vmem:[%s16 + $0x48] sm:$0xff]
  %v2671 = vld [vmem:[%s16 + $0x50] sm:$0xff]
  %v2672 = vld [vmem:[%s16 + $0x58] sm:$0xff]
  %v2673 = vld [vmem:[%s16 + $0x60] sm:$0xff]
  %v2674 = vld [vmem:[%s16 + $0x68] sm:$0xff]
  %v2675 = vld [vmem:[%s16 + $0x70] sm:$0xff]
  %v2676 = vld [vmem:[%s16 + $0x78] sm:$0xff]
  %v2677 = vld [vmem:[%s16 + $0x80] sm:$0xff]
  %v2678 = vld [vmem:[%s16 + $0x88] sm:$0xff]
  %v2679 = vld [vmem:[%s16 + $0x90] sm:$0xff]
  %v2680 = vld [vmem:[%s16 + $0x98] sm:$0xff]
  %v2681 = vld [vmem:[%s16 + $0xa0] sm:$0xff]
  %v2682 = vld [vmem:[%s16 + $0xa8] sm:$0xff]
  %v2683 = vld [vmem:[%s16 + $0xb0] sm:$0xff]
  %v2684 = vld [vmem:[%s16 + $0xb8] sm:$0xff]
  %v2685 = vld [vmem:[%s16 + $0xc0] sm:$0xff]
  %v2686 = vld [vmem:[%s16 + $0xc8] sm:$0xff]
  %v2687 = vld [vmem:[%s16 + $0xd0] sm:$0xff]
  %v2688 = vld [vmem:[%s16 + $0xd8] sm:$0xff]
  %v2689 = vld [vmem:[%s16 + $0xe0] sm:$0xff]
  %v2690 = vld [vmem:[%s16 + $0xe8] sm:$0xff]
  %v2691 = vld [vmem:[%s16 + $0xf0] sm:$0xff]
  %v2692 = vld [vmem:[%s16 + $0xf8] sm:$0xff]
  %v2725 = vunpack.c.l.b16 %v2661
  %v2726 = vunpack.c.h.b16 %v2661
  %v2727 = vunpack.c.l.b16 %v2662
  %v2728 = vunpack.c.h.b16 %v2662
  %v2729 = vunpack.c.l.b16 %v2663
  %v2730 = vunpack.c.h.b16 %v2663
  %v2731 = vunpack.c.l.b16 %v2664
  %v2732 = vunpack.c.h.b16 %v2664
  %v2733 = vunpack.c.l.b16 %v2665
  %v2734 = vunpack.c.h.b16 %v2665
  %v2735 = vunpack.c.l.b16 %v2666
  %v2736 = vunpack.c.h.b16 %v2666
  %v2737 = vunpack.c.l.b16 %v2667
  %v2738 = vunpack.c.h.b16 %v2667
  %v2739 = vunpack.c.l.b16 %v2668
  %v2740 = vunpack.c.h.b16 %v2668
  %v2741 = vunpack.c.l.b16 %v2669
  %v2742 = vunpack.c.h.b16 %v2669
  %v2743 = vunpack.c.l.b16 %v2670
  %v2744 = vunpack.c.h.b16 %v2670
  %v2745 = vunpack.c.l.b16 %v2671
  %v2746 = vunpack.c.h.b16 %v2671
  %v2747 = vunpack.c.l.b16 %v2672
  %v2748 = vunpack.c.h.b16 %v2672
  %v2749 = vunpack.c.l.b16 %v2673
  %v2750 = vunpack.c.h.b16 %v2673
  %v2751 = vunpack.c.l.b16 %v2674
  %v2752 = vunpack.c.h.b16 %v2674
  %v2753 = vunpack.c.l.b16 %v2675
  %v2754 = vunpack.c.h.b16 %v2675
  %v2755 = vunpack.c.l.b16 %v2676
  %v2756 = vunpack.c.h.b16 %v2676
  %v2757 = vunpack.c.l.b16 %v2677
  %v2758 = vunpack.c.h.b16 %v2677
  %v2759 = vunpack.c.l.b16 %v2678
  %v2760 = vunpack.c.h.b16 %v2678
  %v2761 = vunpack.c.l.b16 %v2679
  %v2762 = vunpack.c.h.b16 %v2679
  %v2763 = vunpack.c.l.b16 %v2680
  %v2764 = vunpack.c.h.b16 %v2680
  %v2765 = vunpack.c.l.b16 %v2681
  %v2766 = vunpack.c.h.b16 %v2681
  %v2767 = vunpack.c.l.b16 %v2682
  %v2768 = vunpack.c.h.b16 %v2682
  %v2769 = vunpack.c.l.b16 %v2683
  %v2770 = vunpack.c.h.b16 %v2683
  %v2771 = vunpack.c.l.b16 %v2684
  %v2772 = vunpack.c.h.b16 %v2684
  %v2773 = vunpack.c.l.b16 %v2685
  %v2774 = vunpack.c.h.b16 %v2685
  %v2775 = vunpack.c.l.b16 %v2686
  %v2776 = vunpack.c.h.b16 %v2686
  %v2777 = vunpack.c.l.b16 %v2687
  %v2778 = vunpack.c.h.b16 %v2687
  %v2779 = vunpack.c.l.b16 %v2688
  %v2780 = vunpack.c.h.b16 %v2688
  %v2781 = vunpack.c.l.b16 %v2689
  %v2782 = vunpack.c.h.b16 %v2689
  %v2783 = vunpack.c.l.b16 %v2690
  %v2784 = vunpack.c.h.b16 %v2690
  %v2785 = vunpack.c.l.b16 %v2691
  %v2786 = vunpack.c.h.b16 %v2691
  %v2787 = vunpack.c.l.b16 %v2692
  %v2788 = vunpack.c.h.b16 %v2692
  %v2789 = vpack.c.b16 %v2729, %v2725
  %v2790 = vpack.c.b16 %v2730, %v2726
  %v2791 = vpack.c.b16 %v2731, %v2727
  %v2792 = vpack.c.b16 %v2732, %v2728
  %v2793 = vpack.c.b16 %v2737, %v2733
  %v2794 = vpack.c.b16 %v2738, %v2734
  %v2795 = vpack.c.b16 %v2739, %v2735
  %v2796 = vpack.c.b16 %v2740, %v2736
  %v2797 = vpack.c.b16 %v2745, %v2741
  %v2798 = vpack.c.b16 %v2746, %v2742
  %v2799 = vpack.c.b16 %v2747, %v2743
  %v2800 = vpack.c.b16 %v2748, %v2744
  %v2801 = vpack.c.b16 %v2753, %v2749
  %v2802 = vpack.c.b16 %v2754, %v2750
  %v2803 = vpack.c.b16 %v2755, %v2751
  %v2804 = vpack.c.b16 %v2756, %v2752
  %v2805 = vpack.c.b16 %v2761, %v2757
  %v2806 = vpack.c.b16 %v2762, %v2758
  %v2807 = vpack.c.b16 %v2763, %v2759
  %v2808 = vpack.c.b16 %v2764, %v2760
  %v2809 = vpack.c.b16 %v2769, %v2765
  %v2810 = vpack.c.b16 %v2770, %v2766
  %v2811 = vpack.c.b16 %v2771, %v2767
  %v2812 = vpack.c.b16 %v2772, %v2768
  %v2813 = vpack.c.b16 %v2777, %v2773
  %v2814 = vpack.c.b16 %v2778, %v2774
  %v2815 = vpack.c.b16 %v2779, %v2775
  %v2816 = vpack.c.b16 %v2780, %v2776
  %v2817 = vpack.c.b16 %v2785, %v2781
  %v2818 = vpack.c.b16 %v2786, %v2782
  %v2819 = vpack.c.b16 %v2787, %v2783
  %v2820 = vpack.c.b16 %v2788, %v2784
  %2853 = vmatprep.subr.bf16.mxu0 %v2818
  %2854 = vmatpush1.bf16.msra.mxu0 %v2817
  %2855 = vmatprep.subr.bf16.mxu0 %v2814
  %2856 = vmatpush1.bf16.msra.mxu0 %v2813
  %2857 = vmatprep.subr.bf16.mxu0 %v2810
  %2858 = vmatpush1.bf16.msra.mxu0 %v2809
  %2859 = vmatprep.subr.bf16.mxu0 %v2806
  %2860 = vmatpush1.bf16.msra.mxu0 %v2805
  %2861 = vmatprep.subr.bf16.mxu0 %v2802
  %2862 = vmatpush1.bf16.msra.mxu0 %v2801
  %2863 = vmatprep.subr.bf16.mxu0 %v2798
  %2864 = vmatpush1.bf16.msra.mxu0 %v2797
  %2865 = vmatprep.subr.bf16.mxu0 %v2794
  %2866 = vmatpush1.bf16.msra.mxu0 %v2793
  %2867 = vmatprep.subr.bf16.mxu0 %v2790
  %2868 = vmatpush1.bf16.msra.mxu0 %v2789
  %2869 = vmatprep.subr.bf16.mxu0 0
  %2870 = vmatpush2.bf16.msra.mxu0 0
  %2871 = vmatprep.subr.bf16.mxu0 0
  %2872 = vmatpush2.bf16.msra.mxu0 0
  %2873 = vmatprep.subr.bf16.mxu0 0
  %2874 = vmatpush2.bf16.msra.mxu0 0
  %2875 = vmatprep.subr.bf16.mxu0 0
  %2876 = vmatpush2.bf16.msra.mxu0 0
  %2877 = vmatprep.subr.bf16.mxu0 0
  %2878 = vmatpush2.bf16.msra.mxu0 0
  %2879 = vmatprep.subr.bf16.mxu0 0
  %2880 = vmatpush2.bf16.msra.mxu0 0
  %2881 = vmatprep.subr.bf16.mxu0 0
  %2882 = vmatpush2.bf16.msra.mxu0 0
  %2883 = vmatprep.subr.bf16.mxu0 0
  %2884 = vmatpush2.bf16.msra.mxu0 0
  %2885 = vmatprep.mubr.bf16.mxu0 0
  %2886 = vmatmul.mubr.bf16.gmra.mxu0 %v2453
  %v2887 = vpop.f32.mrf.mxu0
  %v2888 = vadd.f32 0.0, %v2887
  %v2889 = vpop.f32.mrf.mxu0
  %v2890 = vadd.f32 0.0, %v2889
  %v2891 = vpop.f32.mrf.mxu0
  %v2892 = vpop.f32.mrf.mxu0
  %2893 = vdwg.mxu0
  %2894 = vmatprep.subr.bf16.mxu0 %v2820
  %2895 = vmatpush1.bf16.msra.mxu0 %v2819
  %2896 = vmatprep.subr.bf16.mxu0 %v2816
  %2897 = vmatpush1.bf16.msra.mxu0 %v2815
  %2898 = vmatprep.subr.bf16.mxu0 %v2812
  %2899 = vmatpush1.bf16.msra.mxu0 %v2811
  %2900 = vmatprep.subr.bf16.mxu0 %v2808
  %2901 = vmatpush1.bf16.msra.mxu0 %v2807
  %2902 = vmatprep.subr.bf16.mxu0 %v2804
  %2903 = vmatpush1.bf16.msra.mxu0 %v2803
  %2904 = vmatprep.subr.bf16.mxu0 %v2800
  %2905 = vmatpush1.bf16.msra.mxu0 %v2799
  %2906 = vmatprep.subr.bf16.mxu0 %v2796
  %2907 = vmatpush1.bf16.msra.mxu0 %v2795
  %2908 = vmatprep.subr.bf16.mxu0 %v2792
  %2909 = vmatpush1.bf16.msra.mxu0 %v2791
  %2910 = vmatprep.subr.bf16.mxu0 0
  %2911 = vmatpush2.bf16.msra.mxu0 0
  %2912 = vmatprep.subr.bf16.mxu0 0
  %2913 = vmatpush2.bf16.msra.mxu0 0
  %2914 = vmatprep.subr.bf16.mxu0 0
  %2915 = vmatpush2.bf16.msra.mxu0 0
  %2916 = vmatprep.subr.bf16.mxu0 0
  %2917 = vmatpush2.bf16.msra.mxu0 0
  %2918 = vmatprep.subr.bf16.mxu0 0
  %2919 = vmatpush2.bf16.msra.mxu0 0
  %2920 = vmatprep.subr.bf16.mxu0 0
  %2921 = vmatpush2.bf16.msra.mxu0 0
  %2922 = vmatprep.subr.bf16.mxu0 0
  %2923 = vmatpush2.bf16.msra.mxu0 0
  %2924 = vmatprep.subr.bf16.mxu0 0
  %2925 = vmatpush2.bf16.msra.mxu0 0
  %2926 = vmatprep.mubr.bf16.mxu0 0
  %2927 = vmatmul.mubr.bf16.gmra.mxu0 %v2453
  %v2928 = vpop.f32.mrf.mxu0
  %v2929 = vadd.f32 0.0, %v2928
  %v2930 = vpop.f32.mrf.mxu0
  %v2931 = vadd.f32 0.0, %v2930
  %v2932 = vpop.f32.mrf.mxu0
  %v2933 = vpop.f32.mrf.mxu0
  %2934 = vdwg.mxu0
  %v2935 = vadd.f32 %v2657, %v2888
  %v2936 = vadd.f32 %v2658, %v2890
  %v2937 = vadd.f32 %v2659, %v2929
  %v2938 = vadd.f32 %v2660, %v2931
  %v2939 = vxor.u32 %v2935, 2147483648
  %v2940 = vmul.f32 %v2939, 1.442695
  %v2941 = vpow.pop %v2940
  %v2942 = vadd.f32 %v2941, 1.0
  %v2943 = vrcp.pop %v2942
  %v2944 = vmul.f32 1.0, %v2943
  %v2945 = vxor.u32 %v2936, 2147483648
  %v2946 = vmul.f32 %v2945, 1.442695
  %v2947 = vpow.pop %v2946
  %v2948 = vadd.f32 %v2947, 1.0
  %v2949 = vrcp.pop %v2948
  %v2950 = vmul.f32 1.0, %v2949
  %v2951 = vtanh.pop %v2937
  %v2952 = vxor.u32 %v2938, 2147483648
  %v2953 = vmul.f32 %v2952, 1.442695
  %v2954 = vpow.pop %v2953
  %v2955 = vadd.f32 %v2954, 1.0
  %v2956 = vrcp.pop %v2955
  %v2957 = vmul.f32 1.0, %v2956
  %v2958 = vmul.f32 %v2950, %v2450
  %v2959 = vmul.f32 %v2944, %v2951
  %v2960 = vadd.f32 %v2958, %v2959
  %v2961 = vtanh.pop %v2960
  %v2962 = vmul.f32 %v2957, %v2961
  %v2963 = vpack.c.bf16 %v2962, %v2962
  %v2964 = vld [vmem:[%s17] sm:$0xf]
  %v2965 = vld [vmem:[%s17 + $0x4] sm:$0xf]
  %v2966 = vld [vmem:[%s17 + $0x8] sm:$0xf]
  %v2967 = vld [vmem:[%s17 + $0xc] sm:$0xf]
  %v2968 = vld [vmem:[%s17 + $0x10] sm:$0xf]
  %v2969 = vld [vmem:[%s17 + $0x14] sm:$0xf]
  %v2970 = vld [vmem:[%s17 + $0x18] sm:$0xf]
  %v2971 = vld [vmem:[%s17 + $0x1c] sm:$0xf]
  %v2972 = vld [vmem:[%s17 + $0x20] sm:$0xf]
  %v2973 = vld [vmem:[%s17 + $0x24] sm:$0xf]
  %v2974 = vld [vmem:[%s17 + $0x28] sm:$0xf]
  %v2975 = vld [vmem:[%s17 + $0x2c] sm:$0xf]
  %v2976 = vld [vmem:[%s17 + $0x30] sm:$0xf]
  %v2977 = vld [vmem:[%s17 + $0x34] sm:$0xf]
  %v2978 = vld [vmem:[%s17 + $0x38] sm:$0xf]
  %v2979 = vld [vmem:[%s17 + $0x3c] sm:$0xf]
  %v2980 = vld [vmem:[%s18] sm:$0x1]
  %v2982 = vlaneseq
  %v2983 = vshrl.u32 %v2982, 7
  %v2984 = vsub.s32 0, %v2983
  %v2985 = vrot.slane %v2980, %v2984
  %v3003 = vunpack.c.l.b16 %v2964
  %v3004 = vunpack.c.l.b16 %v2965
  %v3005 = vunpack.c.l.b16 %v2966
  %v3006 = vunpack.c.l.b16 %v2967
  %v3007 = vunpack.c.l.b16 %v2968
  %v3008 = vunpack.c.l.b16 %v2969
  %v3009 = vunpack.c.l.b16 %v2970
  %v3010 = vunpack.c.l.b16 %v2971
  %v3011 = vunpack.c.l.b16 %v2972
  %v3012 = vunpack.c.l.b16 %v2973
  %v3013 = vunpack.c.l.b16 %v2974
  %v3014 = vunpack.c.l.b16 %v2975
  %v3015 = vunpack.c.l.b16 %v2976
  %v3016 = vunpack.c.l.b16 %v2977
  %v3017 = vunpack.c.l.b16 %v2978
  %v3018 = vunpack.c.l.b16 %v2979
  %v3019 = vpack.c.b16 %v3004, %v3003
  %v3020 = vpack.c.b16 %v3006, %v3005
  %v3021 = vpack.c.b16 %v3008, %v3007
  %v3022 = vpack.c.b16 %v3010, %v3009
  %v3023 = vpack.c.b16 %v3012, %v3011
  %v3024 = vpack.c.b16 %v3014, %v3013
  %v3025 = vpack.c.b16 %v3016, %v3015
  %v3026 = vpack.c.b16 %v3018, %v3017
  %3035 = vmatprep.subr.bf16.mxu0 0
  %3036 = vmatpush1.bf16.msra.mxu0 %v3026
  %3037 = vmatprep.subr.bf16.mxu0 0
  %3038 = vmatpush1.bf16.msra.mxu0 %v3025
  %3039 = vmatprep.subr.bf16.mxu0 0
  %3040 = vmatpush1.bf16.msra.mxu0 %v3024
  %3041 = vmatprep.subr.bf16.mxu0 0
  %3042 = vmatpush1.bf16.msra.mxu0 %v3023
  %3043 = vmatprep.subr.bf16.mxu0 0
  %3044 = vmatpush1.bf16.msra.mxu0 %v3022
  %3045 = vmatprep.subr.bf16.mxu0 0
  %3046 = vmatpush1.bf16.msra.mxu0 %v3021
  %3047 = vmatprep.subr.bf16.mxu0 0
  %3048 = vmatpush1.bf16.msra.mxu0 %v3020
  %3049 = vmatprep.subr.bf16.mxu0 0
  %3050 = vmatpush1.bf16.msra.mxu0 %v3019
  %3051 = vmatprep.subr.bf16.mxu0 0
  %3052 = vmatpush2.bf16.msra.mxu0 0
  %3053 = vmatprep.subr.bf16.mxu0 0
  %3054 = vmatpush2.bf16.msra.mxu0 0
  %3055 = vmatprep.subr.bf16.mxu0 0
  %3056 = vmatpush2.bf16.msra.mxu0 0
  %3057 = vmatprep.subr.bf16.mxu0 0
  %3058 = vmatpush2.bf16.msra.mxu0 0
  %3059 = vmatprep.subr.bf16.mxu0 0
  %3060 = vmatpush2.bf16.msra.mxu0 0
  %3061 = vmatprep.subr.bf16.mxu0 0
  %3062 = vmatpush2.bf16.msra.mxu0 0
  %3063 = vmatprep.subr.bf16.mxu0 0
  %3064 = vmatpush2.bf16.msra.mxu0 0
  %3065 = vmatprep.subr.bf16.mxu0 0
  %3066 = vmatpush2.bf16.msra.mxu0 0
  %3067 = vmatprep.mubr.bf16.mxu0 0
  %3068 = vmatmul.mubr.bf16.gmra.mxu0 %v2963
  %v3069 = vpop.f32.mrf.mxu0
  %v3070 = vadd.f32 %v2985, %v3069
  %v3071 = vpop.f32.mrf.mxu0
  %v3072 = vpop.f32.mrf.mxu0
  %v3073 = vpop.f32.mrf.mxu0
  %3074 = vdwg.mxu0
  %v3075 = vmax.f32 %v3070, 0.0
  %v3076 = vpack.c.bf16 %v3075, %v3075
  %v3077 = vld [vmem:[%s19] sm:$0xf]
  %v3078 = vld [vmem:[%s19 + $0x4] sm:$0xf]
  %v3079 = vld [vmem:[%s19 + $0x8] sm:$0xf]
  %v3080 = vld [vmem:[%s19 + $0xc] sm:$0xf]
  %v3081 = vld [vmem:[%s19 + $0x10] sm:$0xf]
  %v3082 = vld [vmem:[%s19 + $0x14] sm:$0xf]
  %v3083 = vld [vmem:[%s19 + $0x18] sm:$0xf]
  %v3084 = vld [vmem:[%s19 + $0x1c] sm:$0xf]
  %v3085 = vld [vmem:[%s20] sm:$0x1]
  %v3087 = vlaneseq
  %v3088 = vshrl.u32 %v3087, 7
  %v3089 = vsub.s32 0, %v3088
  %v3090 = vrot.slane %v3085, %v3089
  %v3100 = vunpack.c.l.b16 %v3077
  %v3101 = vunpack.c.l.b16 %v3078
  %v3102 = vunpack.c.l.b16 %v3079
  %v3103 = vunpack.c.l.b16 %v3080
  %v3104 = vunpack.c.l.b16 %v3081
  %v3105 = vunpack.c.l.b16 %v3082
  %v3106 = vunpack.c.l.b16 %v3083
  %v3107 = vunpack.c.l.b16 %v3084
  %v3108 = vpack.c.b16 %v3101, %v3100
  %v3109 = vpack.c.b16 %v3103, %v3102
  %v3110 = vpack.c.b16 %v3105, %v3104
  %v3111 = vpack.c.b16 %v3107, %v3106
  %v3117 = vsel %vm2096, %v3076, 0
  %3119 = vmatprep.subr.bf16.mxu0 0
  %3120 = vmatpush1.bf16.msra.mxu0 0
  %3121 = vmatprep.subr.bf16.mxu0 0
  %3122 = vmatpush1.bf16.msra.mxu0 0
  %3123 = vmatprep.subr.bf16.mxu0 0
  %3124 = vmatpush1.bf16.msra.mxu0 0
  %3125 = vmatprep.subr.bf16.mxu0 0
  %3126 = vmatpush1.bf16.msra.mxu0 0
  %3127 = vmatprep.subr.bf16.mxu0 0
  %3128 = vmatpush1.bf16.msra.mxu0 %v3111
  %3129 = vmatprep.subr.bf16.mxu0 0
  %3130 = vmatpush1.bf16.msra.mxu0 %v3110
  %3131 = vmatprep.subr.bf16.mxu0 0
  %3132 = vmatpush1.bf16.msra.mxu0 %v3109
  %3133 = vmatprep.subr.bf16.mxu0 0
  %3134 = vmatpush1.bf16.msra.mxu0 %v3108
  %3135 = vmatprep.subr.bf16.mxu0 0
  %3136 = vmatpush2.bf16.msra.mxu0 0
  %3137 = vmatprep.subr.bf16.mxu0 0
  %3138 = vmatpush2.bf16.msra.mxu0 0
  %3139 = vmatprep.subr.bf16.mxu0 0
  %3140 = vmatpush2.bf16.msra.mxu0 0
  %3141 = vmatprep.subr.bf16.mxu0 0
  %3142 = vmatpush2.bf16.msra.mxu0 0
  %3143 = vmatprep.subr.bf16.mxu0 0
  %3144 = vmatpush2.bf16.msra.mxu0 0
  %3145 = vmatprep.subr.bf16.mxu0 0
  %3146 = vmatpush2.bf16.msra.mxu0 0
  %3147 = vmatprep.subr.bf16.mxu0 0
  %3148 = vmatpush2.bf16.msra.mxu0 0
  %3149 = vmatprep.subr.bf16.mxu0 0
  %3150 = vmatpush2.bf16.msra.mxu0 0
  %3151 = vmatprep.mubr.bf16.mxu0 0
  %3152 = vmatmul.mubr.bf16.gmra.mxu0 %v3117
  %v3153 = vpop.f32.mrf.mxu0
  %v3154 = vadd.f32 %v3090, %v3153
  %v3155 = vpop.f32.mrf.mxu0
  %v3156 = vpop.f32.mrf.mxu0
  %v3157 = vpop.f32.mrf.mxu0
  %3158 = vdwg.mxu0
  %v3159 = vtanh.pop %v3154
  %v3160 = vmul.f32 %v3159, 3.1415927
  %v3161 = vsel %vm1632, %v3160, %v3154
  %s3162 = scalar_lea.vmem %s21, 16
  %3163 = vst [vmem:[%s3162] sm:$0xff] %v3161
  %s3164 = smul.u32 3, 4
  %s3165 = smul.addr %s3164, 8
  %s3166 = scalar_lea.vmem [#allocation2], %s3165
  %v3167 = vld [vmem:[%s3166] sm:$0xff]
  %v3168 = vld [vmem:[%s3166 + $0x8] sm:$0xff]
  %v3169 = vld [vmem:[%s3166 + $0x10] sm:$0xff]
  %v3170 = vld [vmem:[%s3166 + $0x18] sm:$0xff]
  %v3171 = vld [vmem:[%s16] sm:$0xff]
  %v3172 = vld [vmem:[%s16 + $0x8] sm:$0xff]
  %v3173 = vld [vmem:[%s16 + $0x10] sm:$0xff]
  %v3174 = vld [vmem:[%s16 + $0x18] sm:$0xff]
  %v3175 = vld [vmem:[%s16 + $0x20] sm:$0xff]
  %v3176 = vld [vmem:[%s16 + $0x28] sm:$0xff]
  %v3177 = vld [vmem:[%s16 + $0x30] sm:$0xff]
  %v3178 = vld [vmem:[%s16 + $0x38] sm:$0xff]
  %v3179 = vld [vmem:[%s16 + $0x40] sm:$0xff]
  %v3180 = vld [vmem:[%s16 + $0x48] sm:$0xff]
  %v3181 = vld [vmem:[%s16 + $0x50] sm:$0xff]
  %v3182 = vld [vmem:[%s16 + $0x58] sm:$0xff]
  %v3183 = vld [vmem:[%s16 + $0x60] sm:$0xff]
  %v3184 = vld [vmem:[%s16 + $0x68] sm:$0xff]
  %v3185 = vld [vmem:[%s16 + $0x70] sm:$0xff]
  %v3186 = vld [vmem:[%s16 + $0x78] sm:$0xff]
  %v3187 = vld [vmem:[%s16 + $0x80] sm:$0xff]
  %v3188 = vld [vmem:[%s16 + $0x88] sm:$0xff]
  %v3189 = vld [vmem:[%s16 + $0x90] sm:$0xff]
  %v3190 = vld [vmem:[%s16 + $0x98] sm:$0xff]
  %v3191 = vld [vmem:[%s16 + $0xa0] sm:$0xff]
  %v3192 = vld [vmem:[%s16 + $0xa8] sm:$0xff]
  %v3193 = vld [vmem:[%s16 + $0xb0] sm:$0xff]
  %v3194 = vld [vmem:[%s16 + $0xb8] sm:$0xff]
  %v3195 = vld [vmem:[%s16 + $0xc0] sm:$0xff]
  %v3196 = vld [vmem:[%s16 + $0xc8] sm:$0xff]
  %v3197 = vld [vmem:[%s16 + $0xd0] sm:$0xff]
  %v3198 = vld [vmem:[%s16 + $0xd8] sm:$0xff]
  %v3199 = vld [vmem:[%s16 + $0xe0] sm:$0xff]
  %v3200 = vld [vmem:[%s16 + $0xe8] sm:$0xff]
  %v3201 = vld [vmem:[%s16 + $0xf0] sm:$0xff]
  %v3202 = vld [vmem:[%s16 + $0xf8] sm:$0xff]
  %v3235 = vunpack.c.l.b16 %v3171
  %v3236 = vunpack.c.h.b16 %v3171
  %v3237 = vunpack.c.l.b16 %v3172
  %v3238 = vunpack.c.h.b16 %v3172
  %v3239 = vunpack.c.l.b16 %v3173
  %v3240 = vunpack.c.h.b16 %v3173
  %v3241 = vunpack.c.l.b16 %v3174
  %v3242 = vunpack.c.h.b16 %v3174
  %v3243 = vunpack.c.l.b16 %v3175
  %v3244 = vunpack.c.h.b16 %v3175
  %v3245 = vunpack.c.l.b16 %v3176
  %v3246 = vunpack.c.h.b16 %v3176
  %v3247 = vunpack.c.l.b16 %v3177
  %v3248 = vunpack.c.h.b16 %v3177
  %v3249 = vunpack.c.l.b16 %v3178
  %v3250 = vunpack.c.h.b16 %v3178
  %v3251 = vunpack.c.l.b16 %v3179
  %v3252 = vunpack.c.h.b16 %v3179
  %v3253 = vunpack.c.l.b16 %v3180
  %v3254 = vunpack.c.h.b16 %v3180
  %v3255 = vunpack.c.l.b16 %v3181
  %v3256 = vunpack.c.h.b16 %v3181
  %v3257 = vunpack.c.l.b16 %v3182
  %v3258 = vunpack.c.h.b16 %v3182
  %v3259 = vunpack.c.l.b16 %v3183
  %v3260 = vunpack.c.h.b16 %v3183
  %v3261 = vunpack.c.l.b16 %v3184
  %v3262 = vunpack.c.h.b16 %v3184
  %v3263 = vunpack.c.l.b16 %v3185
  %v3264 = vunpack.c.h.b16 %v3185
  %v3265 = vunpack.c.l.b16 %v3186
  %v3266 = vunpack.c.h.b16 %v3186
  %v3267 = vunpack.c.l.b16 %v3187
  %v3268 = vunpack.c.h.b16 %v3187
  %v3269 = vunpack.c.l.b16 %v3188
  %v3270 = vunpack.c.h.b16 %v3188
  %v3271 = vunpack.c.l.b16 %v3189
  %v3272 = vunpack.c.h.b16 %v3189
  %v3273 = vunpack.c.l.b16 %v3190
  %v3274 = vunpack.c.h.b16 %v3190
  %v3275 = vunpack.c.l.b16 %v3191
  %v3276 = vunpack.c.h.b16 %v3191
  %v3277 = vunpack.c.l.b16 %v3192
  %v3278 = vunpack.c.h.b16 %v3192
  %v3279 = vunpack.c.l.b16 %v3193
  %v3280 = vunpack.c.h.b16 %v3193
  %v3281 = vunpack.c.l.b16 %v3194
  %v3282 = vunpack.c.h.b16 %v3194
  %v3283 = vunpack.c.l.b16 %v3195
  %v3284 = vunpack.c.h.b16 %v3195
  %v3285 = vunpack.c.l.b16 %v3196
  %v3286 = vunpack.c.h.b16 %v3196
  %v3287 = vunpack.c.l.b16 %v3197
  %v3288 = vunpack.c.h.b16 %v3197
  %v3289 = vunpack.c.l.b16 %v3198
  %v3290 = vunpack.c.h.b16 %v3198
  %v3291 = vunpack.c.l.b16 %v3199
  %v3292 = vunpack.c.h.b16 %v3199
  %v3293 = vunpack.c.l.b16 %v3200
  %v3294 = vunpack.c.h.b16 %v3200
  %v3295 = vunpack.c.l.b16 %v3201
  %v3296 = vunpack.c.h.b16 %v3201
  %v3297 = vunpack.c.l.b16 %v3202
  %v3298 = vunpack.c.h.b16 %v3202
  %v3299 = vpack.c.b16 %v3239, %v3235
  %v3300 = vpack.c.b16 %v3240, %v3236
  %v3301 = vpack.c.b16 %v3241, %v3237
  %v3302 = vpack.c.b16 %v3242, %v3238
  %v3303 = vpack.c.b16 %v3247, %v3243
  %v3304 = vpack.c.b16 %v3248, %v3244
  %v3305 = vpack.c.b16 %v3249, %v3245
  %v3306 = vpack.c.b16 %v3250, %v3246
  %v3307 = vpack.c.b16 %v3255, %v3251
  %v3308 = vpack.c.b16 %v3256, %v3252
  %v3309 = vpack.c.b16 %v3257, %v3253
  %v3310 = vpack.c.b16 %v3258, %v3254
  %v3311 = vpack.c.b16 %v3263, %v3259
  %v3312 = vpack.c.b16 %v3264, %v3260
  %v3313 = vpack.c.b16 %v3265, %v3261
  %v3314 = vpack.c.b16 %v3266, %v3262
  %v3315 = vpack.c.b16 %v3271, %v3267
  %v3316 = vpack.c.b16 %v3272, %v3268
  %v3317 = vpack.c.b16 %v3273, %v3269
  %v3318 = vpack.c.b16 %v3274, %v3270
  %v3319 = vpack.c.b16 %v3279, %v3275
  %v3320 = vpack.c.b16 %v3280, %v3276
  %v3321 = vpack.c.b16 %v3281, %v3277
  %v3322 = vpack.c.b16 %v3282, %v3278
  %v3323 = vpack.c.b16 %v3287, %v3283
  %v3324 = vpack.c.b16 %v3288, %v3284
  %v3325 = vpack.c.b16 %v3289, %v3285
  %v3326 = vpack.c.b16 %v3290, %v3286
  %v3327 = vpack.c.b16 %v3295, %v3291
  %v3328 = vpack.c.b16 %v3296, %v3292
  %v3329 = vpack.c.b16 %v3297, %v3293
  %v3330 = vpack.c.b16 %v3298, %v3294
  %3363 = vmatprep.subr.bf16.mxu0 %v3328
  %3364 = vmatpush1.bf16.msra.mxu0 %v3327
  %3365 = vmatprep.subr.bf16.mxu0 %v3324
  %3366 = vmatpush1.bf16.msra.mxu0 %v3323
  %3367 = vmatprep.subr.bf16.mxu0 %v3320
  %3368 = vmatpush1.bf16.msra.mxu0 %v3319
  %3369 = vmatprep.subr.bf16.mxu0 %v3316
  %3370 = vmatpush1.bf16.msra.mxu0 %v3315
  %3371 = vmatprep.subr.bf16.mxu0 %v3312
  %3372 = vmatpush1.bf16.msra.mxu0 %v3311
  %3373 = vmatprep.subr.bf16.mxu0 %v3308
  %3374 = vmatpush1.bf16.msra.mxu0 %v3307
  %3375 = vmatprep.subr.bf16.mxu0 %v3304
  %3376 = vmatpush1.bf16.msra.mxu0 %v3303
  %3377 = vmatprep.subr.bf16.mxu0 %v3300
  %3378 = vmatpush1.bf16.msra.mxu0 %v3299
  %3379 = vmatprep.subr.bf16.mxu0 0
  %3380 = vmatpush2.bf16.msra.mxu0 0
  %3381 = vmatprep.subr.bf16.mxu0 0
  %3382 = vmatpush2.bf16.msra.mxu0 0
  %3383 = vmatprep.subr.bf16.mxu0 0
  %3384 = vmatpush2.bf16.msra.mxu0 0
  %3385 = vmatprep.subr.bf16.mxu0 0
  %3386 = vmatpush2.bf16.msra.mxu0 0
  %3387 = vmatprep.subr.bf16.mxu0 0
  %3388 = vmatpush2.bf16.msra.mxu0 0
  %3389 = vmatprep.subr.bf16.mxu0 0
  %3390 = vmatpush2.bf16.msra.mxu0 0
  %3391 = vmatprep.subr.bf16.mxu0 0
  %3392 = vmatpush2.bf16.msra.mxu0 0
  %3393 = vmatprep.subr.bf16.mxu0 0
  %3394 = vmatpush2.bf16.msra.mxu0 0
  %3395 = vmatprep.mubr.bf16.mxu0 0
  %3396 = vmatmul.mubr.bf16.gmra.mxu0 %v2963
  %v3397 = vpop.f32.mrf.mxu0
  %v3398 = vadd.f32 0.0, %v3397
  %v3399 = vpop.f32.mrf.mxu0
  %v3400 = vadd.f32 0.0, %v3399
  %v3401 = vpop.f32.mrf.mxu0
  %v3402 = vpop.f32.mrf.mxu0
  %3403 = vdwg.mxu0
  %3404 = vmatprep.subr.bf16.mxu0 %v3330
  %3405 = vmatpush1.bf16.msra.mxu0 %v3329
  %3406 = vmatprep.subr.bf16.mxu0 %v3326
  %3407 = vmatpush1.bf16.msra.mxu0 %v3325
  %3408 = vmatprep.subr.bf16.mxu0 %v3322
  %3409 = vmatpush1.bf16.msra.mxu0 %v3321
  %3410 = vmatprep.subr.bf16.mxu0 %v3318
  %3411 = vmatpush1.bf16.msra.mxu0 %v3317
  %3412 = vmatprep.subr.bf16.mxu0 %v3314
  %3413 = vmatpush1.bf16.msra.mxu0 %v3313
  %3414 = vmatprep.subr.bf16.mxu0 %v3310
  %3415 = vmatpush1.bf16.msra.mxu0 %v3309
  %3416 = vmatprep.subr.bf16.mxu0 %v3306
  %3417 = vmatpush1.bf16.msra.mxu0 %v3305
  %3418 = vmatprep.subr.bf16.mxu0 %v3302
  %3419 = vmatpush1.bf16.msra.mxu0 %v3301
  %3420 = vmatprep.subr.bf16.mxu0 0
  %3421 = vmatpush2.bf16.msra.mxu0 0
  %3422 = vmatprep.subr.bf16.mxu0 0
  %3423 = vmatpush2.bf16.msra.mxu0 0
  %3424 = vmatprep.subr.bf16.mxu0 0
  %3425 = vmatpush2.bf16.msra.mxu0 0
  %3426 = vmatprep.subr.bf16.mxu0 0
  %3427 = vmatpush2.bf16.msra.mxu0 0
  %3428 = vmatprep.subr.bf16.mxu0 0
  %3429 = vmatpush2.bf16.msra.mxu0 0
  %3430 = vmatprep.subr.bf16.mxu0 0
  %3431 = vmatpush2.bf16.msra.mxu0 0
  %3432 = vmatprep.subr.bf16.mxu0 0
  %3433 = vmatpush2.bf16.msra.mxu0 0
  %3434 = vmatprep.subr.bf16.mxu0 0
  %3435 = vmatpush2.bf16.msra.mxu0 0
  %3436 = vmatprep.mubr.bf16.mxu0 0
  %3437 = vmatmul.mubr.bf16.gmra.mxu0 %v2963
  %v3438 = vpop.f32.mrf.mxu0
  %v3439 = vadd.f32 0.0, %v3438
  %v3440 = vpop.f32.mrf.mxu0
  %v3441 = vadd.f32 0.0, %v3440
  %v3442 = vpop.f32.mrf.mxu0
  %v3443 = vpop.f32.mrf.mxu0
  %3444 = vdwg.mxu0
  %v3445 = vadd.f32 %v3167, %v3398
  %v3446 = vadd.f32 %v3168, %v3400
  %v3447 = vadd.f32 %v3169, %v3439
  %v3448 = vadd.f32 %v3170, %v3441
  %v3449 = vxor.u32 %v3445, 2147483648
  %v3450 = vmul.f32 %v3449, 1.442695
  %v3451 = vpow.pop %v3450
  %v3452 = vadd.f32 %v3451, 1.0
  %v3453 = vrcp.pop %v3452
  %v3454 = vmul.f32 1.0, %v3453
  %v3455 = vxor.u32 %v3446, 2147483648
  %v3456 = vmul.f32 %v3455, 1.442695
  %v3457 = vpow.pop %v3456
  %v3458 = vadd.f32 %v3457, 1.0
  %v3459 = vrcp.pop %v3458
  %v3460 = vmul.f32 1.0, %v3459
  %v3461 = vtanh.pop %v3447
  %v3462 = vxor.u32 %v3448, 2147483648
  %v3463 = vmul.f32 %v3462, 1.442695
  %v3464 = vpow.pop %v3463
  %v3465 = vadd.f32 %v3464, 1.0
  %v3466 = vrcp.pop %v3465
  %v3467 = vmul.f32 1.0, %v3466
  %v3468 = vmul.f32 %v3460, %v2960
  %v3469 = vmul.f32 %v3454, %v3461
  %v3470 = vadd.f32 %v3468, %v3469
  %v3471 = vtanh.pop %v3470
  %v3472 = vmul.f32 %v3467, %v3471
  %v3473 = vpack.c.bf16 %v3472, %v3472
  %v3474 = vld [vmem:[%s17] sm:$0xf]
  %v3475 = vld [vmem:[%s17 + $0x4] sm:$0xf]
  %v3476 = vld [vmem:[%s17 + $0x8] sm:$0xf]
  %v3477 = vld [vmem:[%s17 + $0xc] sm:$0xf]
  %v3478 = vld [vmem:[%s17 + $0x10] sm:$0xf]
  %v3479 = vld [vmem:[%s17 + $0x14] sm:$0xf]
  %v3480 = vld [vmem:[%s17 + $0x18] sm:$0xf]
  %v3481 = vld [vmem:[%s17 + $0x1c] sm:$0xf]
  %v3482 = vld [vmem:[%s17 + $0x20] sm:$0xf]
  %v3483 = vld [vmem:[%s17 + $0x24] sm:$0xf]
  %v3484 = vld [vmem:[%s17 + $0x28] sm:$0xf]
  %v3485 = vld [vmem:[%s17 + $0x2c] sm:$0xf]
  %v3486 = vld [vmem:[%s17 + $0x30] sm:$0xf]
  %v3487 = vld [vmem:[%s17 + $0x34] sm:$0xf]
  %v3488 = vld [vmem:[%s17 + $0x38] sm:$0xf]
  %v3489 = vld [vmem:[%s17 + $0x3c] sm:$0xf]
  %v3490 = vld [vmem:[%s18] sm:$0x1]
  %v3492 = vlaneseq
  %v3493 = vshrl.u32 %v3492, 7
  %v3494 = vsub.s32 0, %v3493
  %v3495 = vrot.slane %v3490, %v3494
  %v3513 = vunpack.c.l.b16 %v3474
  %v3514 = vunpack.c.l.b16 %v3475
  %v3515 = vunpack.c.l.b16 %v3476
  %v3516 = vunpack.c.l.b16 %v3477
  %v3517 = vunpack.c.l.b16 %v3478
  %v3518 = vunpack.c.l.b16 %v3479
  %v3519 = vunpack.c.l.b16 %v3480
  %v3520 = vunpack.c.l.b16 %v3481
  %v3521 = vunpack.c.l.b16 %v3482
  %v3522 = vunpack.c.l.b16 %v3483
  %v3523 = vunpack.c.l.b16 %v3484
  %v3524 = vunpack.c.l.b16 %v3485
  %v3525 = vunpack.c.l.b16 %v3486
  %v3526 = vunpack.c.l.b16 %v3487
  %v3527 = vunpack.c.l.b16 %v3488
  %v3528 = vunpack.c.l.b16 %v3489
  %v3529 = vpack.c.b16 %v3514, %v3513
  %v3530 = vpack.c.b16 %v3516, %v3515
  %v3531 = vpack.c.b16 %v3518, %v3517
  %v3532 = vpack.c.b16 %v3520, %v3519
  %v3533 = vpack.c.b16 %v3522, %v3521
  %v3534 = vpack.c.b16 %v3524, %v3523
  %v3535 = vpack.c.b16 %v3526, %v3525
  %v3536 = vpack.c.b16 %v3528, %v3527
  %3545 = vmatprep.subr.bf16.mxu0 0
  %3546 = vmatpush1.bf16.msra.mxu0 %v3536
  %3547 = vmatprep.subr.bf16.mxu0 0
  %3548 = vmatpush1.bf16.msra.mxu0 %v3535
  %3549 = vmatprep.subr.bf16.mxu0 0
  %3550 = vmatpush1.bf16.msra.mxu0 %v3534
  %3551 = vmatprep.subr.bf16.mxu0 0
  %3552 = vmatpush1.bf16.msra.mxu0 %v3533
  %3553 = vmatprep.subr.bf16.mxu0 0
  %3554 = vmatpush1.bf16.msra.mxu0 %v3532
  %3555 = vmatprep.subr.bf16.mxu0 0
  %3556 = vmatpush1.bf16.msra.mxu0 %v3531
  %3557 = vmatprep.subr.bf16.mxu0 0
  %3558 = vmatpush1.bf16.msra.mxu0 %v3530
  %3559 = vmatprep.subr.bf16.mxu0 0
  %3560 = vmatpush1.bf16.msra.mxu0 %v3529
  %3561 = vmatprep.subr.bf16.mxu0 0
  %3562 = vmatpush2.bf16.msra.mxu0 0
  %3563 = vmatprep.subr.bf16.mxu0 0
  %3564 = vmatpush2.bf16.msra.mxu0 0
  %3565 = vmatprep.subr.bf16.mxu0 0
  %3566 = vmatpush2.bf16.msra.mxu0 0
  %3567 = vmatprep.subr.bf16.mxu0 0
  %3568 = vmatpush2.bf16.msra.mxu0 0
  %3569 = vmatprep.subr.bf16.mxu0 0
  %3570 = vmatpush2.bf16.msra.mxu0 0
  %3571 = vmatprep.subr.bf16.mxu0 0
  %3572 = vmatpush2.bf16.msra.mxu0 0
  %3573 = vmatprep.subr.bf16.mxu0 0
  %3574 = vmatpush2.bf16.msra.mxu0 0
  %3575 = vmatprep.subr.bf16.mxu0 0
  %3576 = vmatpush2.bf16.msra.mxu0 0
  %3577 = vmatprep.mubr.bf16.mxu0 0
  %3578 = vmatmul.mubr.bf16.gmra.mxu0 %v3473
  %v3579 = vpop.f32.mrf.mxu0
  %v3580 = vadd.f32 %v3495, %v3579
  %v3581 = vpop.f32.mrf.mxu0
  %v3582 = vpop.f32.mrf.mxu0
  %v3583 = vpop.f32.mrf.mxu0
  %3584 = vdwg.mxu0
  %v3585 = vmax.f32 %v3580, 0.0
  %v3586 = vpack.c.bf16 %v3585, %v3585
  %v3587 = vld [vmem:[%s19] sm:$0xf]
  %v3588 = vld [vmem:[%s19 + $0x4] sm:$0xf]
  %v3589 = vld [vmem:[%s19 + $0x8] sm:$0xf]
  %v3590 = vld [vmem:[%s19 + $0xc] sm:$0xf]
  %v3591 = vld [vmem:[%s19 + $0x10] sm:$0xf]
  %v3592 = vld [vmem:[%s19 + $0x14] sm:$0xf]
  %v3593 = vld [vmem:[%s19 + $0x18] sm:$0xf]
  %v3594 = vld [vmem:[%s19 + $0x1c] sm:$0xf]
  %v3595 = vld [vmem:[%s20] sm:$0x1]
  %v3597 = vlaneseq
  %v3598 = vshrl.u32 %v3597, 7
  %v3599 = vsub.s32 0, %v3598
  %v3600 = vrot.slane %v3595, %v3599
  %v3610 = vunpack.c.l.b16 %v3587
  %v3611 = vunpack.c.l.b16 %v3588
  %v3612 = vunpack.c.l.b16 %v3589
  %v3613 = vunpack.c.l.b16 %v3590
  %v3614 = vunpack.c.l.b16 %v3591
  %v3615 = vunpack.c.l.b16 %v3592
  %v3616 = vunpack.c.l.b16 %v3593
  %v3617 = vunpack.c.l.b16 %v3594
  %v3618 = vpack.c.b16 %v3611, %v3610
  %v3619 = vpack.c.b16 %v3613, %v3612
  %v3620 = vpack.c.b16 %v3615, %v3614
  %v3621 = vpack.c.b16 %v3617, %v3616
  %v3627 = vsel %vm2096, %v3586, 0
  %3629 = vmatprep.subr.bf16.mxu0 0
  %3630 = vmatpush1.bf16.msra.mxu0 0
  %3631 = vmatprep.subr.bf16.mxu0 0
  %3632 = vmatpush1.bf16.msra.mxu0 0
  %3633 = vmatprep.subr.bf16.mxu0 0
  %3634 = vmatpush1.bf16.msra.mxu0 0
  %3635 = vmatprep.subr.bf16.mxu0 0
  %3636 = vmatpush1.bf16.msra.mxu0 0
  %3637 = vmatprep.subr.bf16.mxu0 0
  %3638 = vmatpush1.bf16.msra.mxu0 %v3621
  %3639 = vmatprep.subr.bf16.mxu0 0
  %3640 = vmatpush1.bf16.msra.mxu0 %v3620
  %3641 = vmatprep.subr.bf16.mxu0 0
  %3642 = vmatpush1.bf16.msra.mxu0 %v3619
  %3643 = vmatprep.subr.bf16.mxu0 0
  %3644 = vmatpush1.bf16.msra.mxu0 %v3618
  %3645 = vmatprep.subr.bf16.mxu0 0
  %3646 = vmatpush2.bf16.msra.mxu0 0
  %3647 = vmatprep.subr.bf16.mxu0 0
  %3648 = vmatpush2.bf16.msra.mxu0 0
  %3649 = vmatprep.subr.bf16.mxu0 0
  %3650 = vmatpush2.bf16.msra.mxu0 0
  %3651 = vmatprep.subr.bf16.mxu0 0
  %3652 = vmatpush2.bf16.msra.mxu0 0
  %3653 = vmatprep.subr.bf16.mxu0 0
  %3654 = vmatpush2.bf16.msra.mxu0 0
  %3655 = vmatprep.subr.bf16.mxu0 0
  %3656 = vmatpush2.bf16.msra.mxu0 0
  %3657 = vmatprep.subr.bf16.mxu0 0
  %3658 = vmatpush2.bf16.msra.mxu0 0
  %3659 = vmatprep.subr.bf16.mxu0 0
  %3660 = vmatpush2.bf16.msra.mxu0 0
  %3661 = vmatprep.mubr.bf16.mxu0 0
  %3662 = vmatmul.mubr.bf16.gmra.mxu0 %v3627
  %v3663 = vpop.f32.mrf.mxu0
  %v3664 = vadd.f32 %v3600, %v3663
  %v3665 = vpop.f32.mrf.mxu0
  %v3666 = vpop.f32.mrf.mxu0
  %v3667 = vpop.f32.mrf.mxu0
  %3668 = vdwg.mxu0
  %v3669 = vtanh.pop %v3664
  %v3670 = vmul.f32 %v3669, 3.1415927
  %v3671 = vsel %vm1632, %v3670, %v3664
  %s3672 = scalar_lea.vmem %s21, 24
  %3673 = vst [vmem:[%s3672] sm:$0xff] %v3671
  %s3674 = smul.u32 4, 4
  %s3675 = smul.addr %s3674, 8
  %s3676 = scalar_lea.vmem [#allocation2], %s3675
  %v3677 = vld [vmem:[%s3676] sm:$0xff]
  %v3678 = vld [vmem:[%s3676 + $0x8] sm:$0xff]
  %v3679 = vld [vmem:[%s3676 + $0x10] sm:$0xff]
  %v3680 = vld [vmem:[%s3676 + $0x18] sm:$0xff]
  %v3681 = vld [vmem:[%s16] sm:$0xff]
  %v3682 = vld [vmem:[%s16 + $0x8] sm:$0xff]
  %v3683 = vld [vmem:[%s16 + $0x10] sm:$0xff]
  %v3684 = vld [vmem:[%s16 + $0x18] sm:$0xff]
  %v3685 = vld [vmem:[%s16 + $0x20] sm:$0xff]
  %v3686 = vld [vmem:[%s16 + $0x28] sm:$0xff]
  %v3687 = vld [vmem:[%s16 + $0x30] sm:$0xff]
  %v3688 = vld [vmem:[%s16 + $0x38] sm:$0xff]
  %v3689 = vld [vmem:[%s16 + $0x40] sm:$0xff]
  %v3690 = vld [vmem:[%s16 + $0x48] sm:$0xff]
  %v3691 = vld [vmem:[%s16 + $0x50] sm:$0xff]
  %v3692 = vld [vmem:[%s16 + $0x58] sm:$0xff]
  %v3693 = vld [vmem:[%s16 + $0x60] sm:$0xff]
  %v3694 = vld [vmem:[%s16 + $0x68] sm:$0xff]
  %v3695 = vld [vmem:[%s16 + $0x70] sm:$0xff]
  %v3696 = vld [vmem:[%s16 + $0x78] sm:$0xff]
  %v3697 = vld [vmem:[%s16 + $0x80] sm:$0xff]
  %v3698 = vld [vmem:[%s16 + $0x88] sm:$0xff]
  %v3699 = vld [vmem:[%s16 + $0x90] sm:$0xff]
  %v3700 = vld [vmem:[%s16 + $0x98] sm:$0xff]
  %v3701 = vld [vmem:[%s16 + $0xa0] sm:$0xff]
  %v3702 = vld [vmem:[%s16 + $0xa8] sm:$0xff]
  %v3703 = vld [vmem:[%s16 + $0xb0] sm:$0xff]
  %v3704 = vld [vmem:[%s16 + $0xb8] sm:$0xff]
  %v3705 = vld [vmem:[%s16 + $0xc0] sm:$0xff]
  %v3706 = vld [vmem:[%s16 + $0xc8] sm:$0xff]
  %v3707 = vld [vmem:[%s16 + $0xd0] sm:$0xff]
  %v3708 = vld [vmem:[%s16 + $0xd8] sm:$0xff]
  %v3709 = vld [vmem:[%s16 + $0xe0] sm:$0xff]
  %v3710 = vld [vmem:[%s16 + $0xe8] sm:$0xff]
  %v3711 = vld [vmem:[%s16 + $0xf0] sm:$0xff]
  %v3712 = vld [vmem:[%s16 + $0xf8] sm:$0xff]
  %v3745 = vunpack.c.l.b16 %v3681
  %v3746 = vunpack.c.h.b16 %v3681
  %v3747 = vunpack.c.l.b16 %v3682
  %v3748 = vunpack.c.h.b16 %v3682
  %v3749 = vunpack.c.l.b16 %v3683
  %v3750 = vunpack.c.h.b16 %v3683
  %v3751 = vunpack.c.l.b16 %v3684
  %v3752 = vunpack.c.h.b16 %v3684
  %v3753 = vunpack.c.l.b16 %v3685
  %v3754 = vunpack.c.h.b16 %v3685
  %v3755 = vunpack.c.l.b16 %v3686
  %v3756 = vunpack.c.h.b16 %v3686
  %v3757 = vunpack.c.l.b16 %v3687
  %v3758 = vunpack.c.h.b16 %v3687
  %v3759 = vunpack.c.l.b16 %v3688
  %v3760 = vunpack.c.h.b16 %v3688
  %v3761 = vunpack.c.l.b16 %v3689
  %v3762 = vunpack.c.h.b16 %v3689
  %v3763 = vunpack.c.l.b16 %v3690
  %v3764 = vunpack.c.h.b16 %v3690
  %v3765 = vunpack.c.l.b16 %v3691
  %v3766 = vunpack.c.h.b16 %v3691
  %v3767 = vunpack.c.l.b16 %v3692
  %v3768 = vunpack.c.h.b16 %v3692
  %v3769 = vunpack.c.l.b16 %v3693
  %v3770 = vunpack.c.h.b16 %v3693
  %v3771 = vunpack.c.l.b16 %v3694
  %v3772 = vunpack.c.h.b16 %v3694
  %v3773 = vunpack.c.l.b16 %v3695
  %v3774 = vunpack.c.h.b16 %v3695
  %v3775 = vunpack.c.l.b16 %v3696
  %v3776 = vunpack.c.h.b16 %v3696
  %v3777 = vunpack.c.l.b16 %v3697
  %v3778 = vunpack.c.h.b16 %v3697
  %v3779 = vunpack.c.l.b16 %v3698
  %v3780 = vunpack.c.h.b16 %v3698
  %v3781 = vunpack.c.l.b16 %v3699
  %v3782 = vunpack.c.h.b16 %v3699
  %v3783 = vunpack.c.l.b16 %v3700
  %v3784 = vunpack.c.h.b16 %v3700
  %v3785 = vunpack.c.l.b16 %v3701
  %v3786 = vunpack.c.h.b16 %v3701
  %v3787 = vunpack.c.l.b16 %v3702
  %v3788 = vunpack.c.h.b16 %v3702
  %v3789 = vunpack.c.l.b16 %v3703
  %v3790 = vunpack.c.h.b16 %v3703
  %v3791 = vunpack.c.l.b16 %v3704
  %v3792 = vunpack.c.h.b16 %v3704
  %v3793 = vunpack.c.l.b16 %v3705
  %v3794 = vunpack.c.h.b16 %v3705
  %v3795 = vunpack.c.l.b16 %v3706
  %v3796 = vunpack.c.h.b16 %v3706
  %v3797 = vunpack.c.l.b16 %v3707
  %v3798 = vunpack.c.h.b16 %v3707
  %v3799 = vunpack.c.l.b16 %v3708
  %v3800 = vunpack.c.h.b16 %v3708
  %v3801 = vunpack.c.l.b16 %v3709
  %v3802 = vunpack.c.h.b16 %v3709
  %v3803 = vunpack.c.l.b16 %v3710
  %v3804 = vunpack.c.h.b16 %v3710
  %v3805 = vunpack.c.l.b16 %v3711
  %v3806 = vunpack.c.h.b16 %v3711
  %v3807 = vunpack.c.l.b16 %v3712
  %v3808 = vunpack.c.h.b16 %v3712
  %v3809 = vpack.c.b16 %v3749, %v3745
  %v3810 = vpack.c.b16 %v3750, %v3746
  %v3811 = vpack.c.b16 %v3751, %v3747
  %v3812 = vpack.c.b16 %v3752, %v3748
  %v3813 = vpack.c.b16 %v3757, %v3753
  %v3814 = vpack.c.b16 %v3758, %v3754
  %v3815 = vpack.c.b16 %v3759, %v3755
  %v3816 = vpack.c.b16 %v3760, %v3756
  %v3817 = vpack.c.b16 %v3765, %v3761
  %v3818 = vpack.c.b16 %v3766, %v3762
  %v3819 = vpack.c.b16 %v3767, %v3763
  %v3820 = vpack.c.b16 %v3768, %v3764
  %v3821 = vpack.c.b16 %v3773, %v3769
  %v3822 = vpack.c.b16 %v3774, %v3770
  %v3823 = vpack.c.b16 %v3775, %v3771
  %v3824 = vpack.c.b16 %v3776, %v3772
  %v3825 = vpack.c.b16 %v3781, %v3777
  %v3826 = vpack.c.b16 %v3782, %v3778
  %v3827 = vpack.c.b16 %v3783, %v3779
  %v3828 = vpack.c.b16 %v3784, %v3780
  %v3829 = vpack.c.b16 %v3789, %v3785
  %v3830 = vpack.c.b16 %v3790, %v3786
  %v3831 = vpack.c.b16 %v3791, %v3787
  %v3832 = vpack.c.b16 %v3792, %v3788
  %v3833 = vpack.c.b16 %v3797, %v3793
  %v3834 = vpack.c.b16 %v3798, %v3794
  %v3835 = vpack.c.b16 %v3799, %v3795
  %v3836 = vpack.c.b16 %v3800, %v3796
  %v3837 = vpack.c.b16 %v3805, %v3801
  %v3838 = vpack.c.b16 %v3806, %v3802
  %v3839 = vpack.c.b16 %v3807, %v3803
  %v3840 = vpack.c.b16 %v3808, %v3804
  %3873 = vmatprep.subr.bf16.mxu0 %v3838
  %3874 = vmatpush1.bf16.msra.mxu0 %v3837
  %3875 = vmatprep.subr.bf16.mxu0 %v3834
  %3876 = vmatpush1.bf16.msra.mxu0 %v3833
  %3877 = vmatprep.subr.bf16.mxu0 %v3830
  %3878 = vmatpush1.bf16.msra.mxu0 %v3829
  %3879 = vmatprep.subr.bf16.mxu0 %v3826
  %3880 = vmatpush1.bf16.msra.mxu0 %v3825
  %3881 = vmatprep.subr.bf16.mxu0 %v3822
  %3882 = vmatpush1.bf16.msra.mxu0 %v3821
  %3883 = vmatprep.subr.bf16.mxu0 %v3818
  %3884 = vmatpush1.bf16.msra.mxu0 %v3817
  %3885 = vmatprep.subr.bf16.mxu0 %v3814
  %3886 = vmatpush1.bf16.msra.mxu0 %v3813
  %3887 = vmatprep.subr.bf16.mxu0 %v3810
  %3888 = vmatpush1.bf16.msra.mxu0 %v3809
  %3889 = vmatprep.subr.bf16.mxu0 0
  %3890 = vmatpush2.bf16.msra.mxu0 0
  %3891 = vmatprep.subr.bf16.mxu0 0
  %3892 = vmatpush2.bf16.msra.mxu0 0
  %3893 = vmatprep.subr.bf16.mxu0 0
  %3894 = vmatpush2.bf16.msra.mxu0 0
  %3895 = vmatprep.subr.bf16.mxu0 0
  %3896 = vmatpush2.bf16.msra.mxu0 0
  %3897 = vmatprep.subr.bf16.mxu0 0
  %3898 = vmatpush2.bf16.msra.mxu0 0
  %3899 = vmatprep.subr.bf16.mxu0 0
  %3900 = vmatpush2.bf16.msra.mxu0 0
  %3901 = vmatprep.subr.bf16.mxu0 0
  %3902 = vmatpush2.bf16.msra.mxu0 0
  %3903 = vmatprep.subr.bf16.mxu0 0
  %3904 = vmatpush2.bf16.msra.mxu0 0
  %3905 = vmatprep.mubr.bf16.mxu0 0
  %3906 = vmatmul.mubr.bf16.gmra.mxu0 %v3473
  %v3907 = vpop.f32.mrf.mxu0
  %v3908 = vadd.f32 0.0, %v3907
  %v3909 = vpop.f32.mrf.mxu0
  %v3910 = vadd.f32 0.0, %v3909
  %v3911 = vpop.f32.mrf.mxu0
  %v3912 = vpop.f32.mrf.mxu0
  %3913 = vdwg.mxu0
  %3914 = vmatprep.subr.bf16.mxu0 %v3840
  %3915 = vmatpush1.bf16.msra.mxu0 %v3839
  %3916 = vmatprep.subr.bf16.mxu0 %v3836
  %3917 = vmatpush1.bf16.msra.mxu0 %v3835
  %3918 = vmatprep.subr.bf16.mxu0 %v3832
  %3919 = vmatpush1.bf16.msra.mxu0 %v3831
  %3920 = vmatprep.subr.bf16.mxu0 %v3828
  %3921 = vmatpush1.bf16.msra.mxu0 %v3827
  %3922 = vmatprep.subr.bf16.mxu0 %v3824
  %3923 = vmatpush1.bf16.msra.mxu0 %v3823
  %3924 = vmatprep.subr.bf16.mxu0 %v3820
  %3925 = vmatpush1.bf16.msra.mxu0 %v3819
  %3926 = vmatprep.subr.bf16.mxu0 %v3816
  %3927 = vmatpush1.bf16.msra.mxu0 %v3815
  %3928 = vmatprep.subr.bf16.mxu0 %v3812
  %3929 = vmatpush1.bf16.msra.mxu0 %v3811
  %3930 = vmatprep.subr.bf16.mxu0 0
  %3931 = vmatpush2.bf16.msra.mxu0 0
  %3932 = vmatprep.subr.bf16.mxu0 0
  %3933 = vmatpush2.bf16.msra.mxu0 0
  %3934 = vmatprep.subr.bf16.mxu0 0
  %3935 = vmatpush2.bf16.msra.mxu0 0
  %3936 = vmatprep.subr.bf16.mxu0 0
  %3937 = vmatpush2.bf16.msra.mxu0 0
  %3938 = vmatprep.subr.bf16.mxu0 0
  %3939 = vmatpush2.bf16.msra.mxu0 0
  %3940 = vmatprep.subr.bf16.mxu0 0
  %3941 = vmatpush2.bf16.msra.mxu0 0
  %3942 = vmatprep.subr.bf16.mxu0 0
  %3943 = vmatpush2.bf16.msra.mxu0 0
  %3944 = vmatprep.subr.bf16.mxu0 0
  %3945 = vmatpush2.bf16.msra.mxu0 0
  %3946 = vmatprep.mubr.bf16.mxu0 0
  %3947 = vmatmul.mubr.bf16.gmra.mxu0 %v3473
  %v3948 = vpop.f32.mrf.mxu0
  %v3949 = vadd.f32 0.0, %v3948
  %v3950 = vpop.f32.mrf.mxu0
  %v3951 = vadd.f32 0.0, %v3950
  %v3952 = vpop.f32.mrf.mxu0
  %v3953 = vpop.f32.mrf.mxu0
  %3954 = vdwg.mxu0
  %v3955 = vadd.f32 %v3677, %v3908
  %v3956 = vadd.f32 %v3678, %v3910
  %v3957 = vadd.f32 %v3679, %v3949
  %v3958 = vadd.f32 %v3680, %v3951
  %v3959 = vxor.u32 %v3955, 2147483648
  %v3960 = vmul.f32 %v3959, 1.442695
  %v3961 = vpow.pop %v3960
  %v3962 = vadd.f32 %v3961, 1.0
  %v3963 = vrcp.pop %v3962
  %v3964 = vmul.f32 1.0, %v3963
  %v3965 = vxor.u32 %v3956, 2147483648
  %v3966 = vmul.f32 %v3965, 1.442695
  %v3967 = vpow.pop %v3966
  %v3968 = vadd.f32 %v3967, 1.0
  %v3969 = vrcp.pop %v3968
  %v3970 = vmul.f32 1.0, %v3969
  %v3971 = vtanh.pop %v3957
  %v3972 = vxor.u32 %v3958, 2147483648
  %v3973 = vmul.f32 %v3972, 1.442695
  %v3974 = vpow.pop %v3973
  %v3975 = vadd.f32 %v3974, 1.0
  %v3976 = vrcp.pop %v3975
  %v3977 = vmul.f32 1.0, %v3976
  %v3978 = vmul.f32 %v3970, %v3470
  %v3979 = vmul.f32 %v3964, %v3971
  %v3980 = vadd.f32 %v3978, %v3979
  %v3981 = vtanh.pop %v3980
  %v3982 = vmul.f32 %v3977, %v3981
  %v3983 = vpack.c.bf16 %v3982, %v3982
  %v3984 = vld [vmem:[%s17] sm:$0xf]
  %v3985 = vld [vmem:[%s17 + $0x4] sm:$0xf]
  %v3986 = vld [vmem:[%s17 + $0x8] sm:$0xf]
  %v3987 = vld [vmem:[%s17 + $0xc] sm:$0xf]
  %v3988 = vld [vmem:[%s17 + $0x10] sm:$0xf]
  %v3989 = vld [vmem:[%s17 + $0x14] sm:$0xf]
  %v3990 = vld [vmem:[%s17 + $0x18] sm:$0xf]
  %v3991 = vld [vmem:[%s17 + $0x1c] sm:$0xf]
  %v3992 = vld [vmem:[%s17 + $0x20] sm:$0xf]
  %v3993 = vld [vmem:[%s17 + $0x24] sm:$0xf]
  %v3994 = vld [vmem:[%s17 + $0x28] sm:$0xf]
  %v3995 = vld [vmem:[%s17 + $0x2c] sm:$0xf]
  %v3996 = vld [vmem:[%s17 + $0x30] sm:$0xf]
  %v3997 = vld [vmem:[%s17 + $0x34] sm:$0xf]
  %v3998 = vld [vmem:[%s17 + $0x38] sm:$0xf]
  %v3999 = vld [vmem:[%s17 + $0x3c] sm:$0xf]
  %v4000 = vld [vmem:[%s18] sm:$0x1]
  %v4002 = vlaneseq
  %v4003 = vshrl.u32 %v4002, 7
  %v4004 = vsub.s32 0, %v4003
  %v4005 = vrot.slane %v4000, %v4004
  %v4023 = vunpack.c.l.b16 %v3984
  %v4024 = vunpack.c.l.b16 %v3985
  %v4025 = vunpack.c.l.b16 %v3986
  %v4026 = vunpack.c.l.b16 %v3987
  %v4027 = vunpack.c.l.b16 %v3988
  %v4028 = vunpack.c.l.b16 %v3989
  %v4029 = vunpack.c.l.b16 %v3990
  %v4030 = vunpack.c.l.b16 %v3991
  %v4031 = vunpack.c.l.b16 %v3992
  %v4032 = vunpack.c.l.b16 %v3993
  %v4033 = vunpack.c.l.b16 %v3994
  %v4034 = vunpack.c.l.b16 %v3995
  %v4035 = vunpack.c.l.b16 %v3996
  %v4036 = vunpack.c.l.b16 %v3997
  %v4037 = vunpack.c.l.b16 %v3998
  %v4038 = vunpack.c.l.b16 %v3999
  %v4039 = vpack.c.b16 %v4024, %v4023
  %v4040 = vpack.c.b16 %v4026, %v4025
  %v4041 = vpack.c.b16 %v4028, %v4027
  %v4042 = vpack.c.b16 %v4030, %v4029
  %v4043 = vpack.c.b16 %v4032, %v4031
  %v4044 = vpack.c.b16 %v4034, %v4033
  %v4045 = vpack.c.b16 %v4036, %v4035
  %v4046 = vpack.c.b16 %v4038, %v4037
  %4055 = vmatprep.subr.bf16.mxu0 0
  %4056 = vmatpush1.bf16.msra.mxu0 %v4046
  %4057 = vmatprep.subr.bf16.mxu0 0
  %4058 = vmatpush1.bf16.msra.mxu0 %v4045
  %4059 = vmatprep.subr.bf16.mxu0 0
  %4060 = vmatpush1.bf16.msra.mxu0 %v4044
  %4061 = vmatprep.subr.bf16.mxu0 0
  %4062 = vmatpush1.bf16.msra.mxu0 %v4043
  %4063 = vmatprep.subr.bf16.mxu0 0
  %4064 = vmatpush1.bf16.msra.mxu0 %v4042
  %4065 = vmatprep.subr.bf16.mxu0 0
  %4066 = vmatpush1.bf16.msra.mxu0 %v4041
  %4067 = vmatprep.subr.bf16.mxu0 0
  %4068 = vmatpush1.bf16.msra.mxu0 %v4040
  %4069 = vmatprep.subr.bf16.mxu0 0
  %4070 = vmatpush1.bf16.msra.mxu0 %v4039
  %4071 = vmatprep.subr.bf16.mxu0 0
  %4072 = vmatpush2.bf16.msra.mxu0 0
  %4073 = vmatprep.subr.bf16.mxu0 0
  %4074 = vmatpush2.bf16.msra.mxu0 0
  %4075 = vmatprep.subr.bf16.mxu0 0
  %4076 = vmatpush2.bf16.msra.mxu0 0
  %4077 = vmatprep.subr.bf16.mxu0 0
  %4078 = vmatpush2.bf16.msra.mxu0 0
  %4079 = vmatprep.subr.bf16.mxu0 0
  %4080 = vmatpush2.bf16.msra.mxu0 0
  %4081 = vmatprep.subr.bf16.mxu0 0
  %4082 = vmatpush2.bf16.msra.mxu0 0
  %4083 = vmatprep.subr.bf16.mxu0 0
  %4084 = vmatpush2.bf16.msra.mxu0 0
  %4085 = vmatprep.subr.bf16.mxu0 0
  %4086 = vmatpush2.bf16.msra.mxu0 0
  %4087 = vmatprep.mubr.bf16.mxu0 0
  %4088 = vmatmul.mubr.bf16.gmra.mxu0 %v3983
  %v4089 = vpop.f32.mrf.mxu0
  %v4090 = vadd.f32 %v4005, %v4089
  %v4091 = vpop.f32.mrf.mxu0
  %v4092 = vpop.f32.mrf.mxu0
  %v4093 = vpop.f32.mrf.mxu0
  %4094 = vdwg.mxu0
  %v4095 = vmax.f32 %v4090, 0.0
  %v4096 = vpack.c.bf16 %v4095, %v4095
  %v4097 = vld [vmem:[%s19] sm:$0xf]
  %v4098 = vld [vmem:[%s19 + $0x4] sm:$0xf]
  %v4099 = vld [vmem:[%s19 + $0x8] sm:$0xf]
  %v4100 = vld [vmem:[%s19 + $0xc] sm:$0xf]
  %v4101 = vld [vmem:[%s19 + $0x10] sm:$0xf]
  %v4102 = vld [vmem:[%s19 + $0x14] sm:$0xf]
  %v4103 = vld [vmem:[%s19 + $0x18] sm:$0xf]
  %v4104 = vld [vmem:[%s19 + $0x1c] sm:$0xf]
  %v4105 = vld [vmem:[%s20] sm:$0x1]
  %v4107 = vlaneseq
  %v4108 = vshrl.u32 %v4107, 7
  %v4109 = vsub.s32 0, %v4108
  %v4110 = vrot.slane %v4105, %v4109
  %v4120 = vunpack.c.l.b16 %v4097
  %v4121 = vunpack.c.l.b16 %v4098
  %v4122 = vunpack.c.l.b16 %v4099
  %v4123 = vunpack.c.l.b16 %v4100
  %v4124 = vunpack.c.l.b16 %v4101
  %v4125 = vunpack.c.l.b16 %v4102
  %v4126 = vunpack.c.l.b16 %v4103
  %v4127 = vunpack.c.l.b16 %v4104
  %v4128 = vpack.c.b16 %v4121, %v4120
  %v4129 = vpack.c.b16 %v4123, %v4122
  %v4130 = vpack.c.b16 %v4125, %v4124
  %v4131 = vpack.c.b16 %v4127, %v4126
  %v4137 = vsel %vm2096, %v4096, 0
  %4139 = vmatprep.subr.bf16.mxu0 0
  %4140 = vmatpush1.bf16.msra.mxu0 0
  %4141 = vmatprep.subr.bf16.mxu0 0
  %4142 = vmatpush1.bf16.msra.mxu0 0
  %4143 = vmatprep.subr.bf16.mxu0 0
  %4144 = vmatpush1.bf16.msra.mxu0 0
  %4145 = vmatprep.subr.bf16.mxu0 0
  %4146 = vmatpush1.bf16.msra.mxu0 0
  %4147 = vmatprep.subr.bf16.mxu0 0
  %4148 = vmatpush1.bf16.msra.mxu0 %v4131
  %4149 = vmatprep.subr.bf16.mxu0 0
  %4150 = vmatpush1.bf16.msra.mxu0 %v4130
  %4151 = vmatprep.subr.bf16.mxu0 0
  %4152 = vmatpush1.bf16.msra.mxu0 %v4129
  %4153 = vmatprep.subr.bf16.mxu0 0
  %4154 = vmatpush1.bf16.msra.mxu0 %v4128
  %4155 = vmatprep.subr.bf16.mxu0 0
  %4156 = vmatpush2.bf16.msra.mxu0 0
  %4157 = vmatprep.subr.bf16.mxu0 0
  %4158 = vmatpush2.bf16.msra.mxu0 0
  %4159 = vmatprep.subr.bf16.mxu0 0
  %4160 = vmatpush2.bf16.msra.mxu0 0
  %4161 = vmatprep.subr.bf16.mxu0 0
  %4162 = vmatpush2.bf16.msra.mxu0 0
  %4163 = vmatprep.subr.bf16.mxu0 0
  %4164 = vmatpush2.bf16.msra.mxu0 0
  %4165 = vmatprep.subr.bf16.mxu0 0
  %4166 = vmatpush2.bf16.msra.mxu0 0
  %4167 = vmatprep.subr.bf16.mxu0 0
  %4168 = vmatpush2.bf16.msra.mxu0 0
  %4169 = vmatprep.subr.bf16.mxu0 0
  %4170 = vmatpush2.bf16.msra.mxu0 0
  %4171 = vmatprep.mubr.bf16.mxu0 0
  %4172 = vmatmul.mubr.bf16.gmra.mxu0 %v4137
  %v4173 = vpop.f32.mrf.mxu0
  %v4174 = vadd.f32 %v4110, %v4173
  %v4175 = vpop.f32.mrf.mxu0
  %v4176 = vpop.f32.mrf.mxu0
  %v4177 = vpop.f32.mrf.mxu0
  %4178 = vdwg.mxu0
  %v4179 = vtanh.pop %v4174
  %v4180 = vmul.f32 %v4179, 3.1415927
  %v4181 = vsel %vm1632, %v4180, %v4174
  %s4182 = scalar_lea.vmem %s21, 32
  %4183 = vst [vmem:[%s4182] sm:$0xff] %v4181
  %s4184 = smul.u32 5, 4
  %s4185 = smul.addr %s4184, 8
  %s4186 = scalar_lea.vmem [#allocation2], %s4185
  %v4187 = vld [vmem:[%s4186] sm:$0xff]
  %v4188 = vld [vmem:[%s4186 + $0x8] sm:$0xff]
  %v4189 = vld [vmem:[%s4186 + $0x10] sm:$0xff]
  %v4190 = vld [vmem:[%s4186 + $0x18] sm:$0xff]
  %v4191 = vld [vmem:[%s16] sm:$0xff]
  %v4192 = vld [vmem:[%s16 + $0x8] sm:$0xff]
  %v4193 = vld [vmem:[%s16 + $0x10] sm:$0xff]
  %v4194 = vld [vmem:[%s16 + $0x18] sm:$0xff]
  %v4195 = vld [vmem:[%s16 + $0x20] sm:$0xff]
  %v4196 = vld [vmem:[%s16 + $0x28] sm:$0xff]
  %v4197 = vld [vmem:[%s16 + $0x30] sm:$0xff]
  %v4198 = vld [vmem:[%s16 + $0x38] sm:$0xff]
  %v4199 = vld [vmem:[%s16 + $0x40] sm:$0xff]
  %v4200 = vld [vmem:[%s16 + $0x48] sm:$0xff]
  %v4201 = vld [vmem:[%s16 + $0x50] sm:$0xff]
  %v4202 = vld [vmem:[%s16 + $0x58] sm:$0xff]
  %v4203 = vld [vmem:[%s16 + $0x60] sm:$0xff]
  %v4204 = vld [vmem:[%s16 + $0x68] sm:$0xff]
  %v4205 = vld [vmem:[%s16 + $0x70] sm:$0xff]
  %v4206 = vld [vmem:[%s16 + $0x78] sm:$0xff]
  %v4207 = vld [vmem:[%s16 + $0x80] sm:$0xff]
  %v4208 = vld [vmem:[%s16 + $0x88] sm:$0xff]
  %v4209 = vld [vmem:[%s16 + $0x90] sm:$0xff]
  %v4210 = vld [vmem:[%s16 + $0x98] sm:$0xff]
  %v4211 = vld [vmem:[%s16 + $0xa0] sm:$0xff]
  %v4212 = vld [vmem:[%s16 + $0xa8] sm:$0xff]
  %v4213 = vld [vmem:[%s16 + $0xb0] sm:$0xff]
  %v4214 = vld [vmem:[%s16 + $0xb8] sm:$0xff]
  %v4215 = vld [vmem:[%s16 + $0xc0] sm:$0xff]
  %v4216 = vld [vmem:[%s16 + $0xc8] sm:$0xff]
  %v4217 = vld [vmem:[%s16 + $0xd0] sm:$0xff]
  %v4218 = vld [vmem:[%s16 + $0xd8] sm:$0xff]
  %v4219 = vld [vmem:[%s16 + $0xe0] sm:$0xff]
  %v4220 = vld [vmem:[%s16 + $0xe8] sm:$0xff]
  %v4221 = vld [vmem:[%s16 + $0xf0] sm:$0xff]
  %v4222 = vld [vmem:[%s16 + $0xf8] sm:$0xff]
  %v4255 = vunpack.c.l.b16 %v4191
  %v4256 = vunpack.c.h.b16 %v4191
  %v4257 = vunpack.c.l.b16 %v4192
  %v4258 = vunpack.c.h.b16 %v4192
  %v4259 = vunpack.c.l.b16 %v4193
  %v4260 = vunpack.c.h.b16 %v4193
  %v4261 = vunpack.c.l.b16 %v4194
  %v4262 = vunpack.c.h.b16 %v4194
  %v4263 = vunpack.c.l.b16 %v4195
  %v4264 = vunpack.c.h.b16 %v4195
  %v4265 = vunpack.c.l.b16 %v4196
  %v4266 = vunpack.c.h.b16 %v4196
  %v4267 = vunpack.c.l.b16 %v4197
  %v4268 = vunpack.c.h.b16 %v4197
  %v4269 = vunpack.c.l.b16 %v4198
  %v4270 = vunpack.c.h.b16 %v4198
  %v4271 = vunpack.c.l.b16 %v4199
  %v4272 = vunpack.c.h.b16 %v4199
  %v4273 = vunpack.c.l.b16 %v4200
  %v4274 = vunpack.c.h.b16 %v4200
  %v4275 = vunpack.c.l.b16 %v4201
  %v4276 = vunpack.c.h.b16 %v4201
  %v4277 = vunpack.c.l.b16 %v4202
  %v4278 = vunpack.c.h.b16 %v4202
  %v4279 = vunpack.c.l.b16 %v4203
  %v4280 = vunpack.c.h.b16 %v4203
  %v4281 = vunpack.c.l.b16 %v4204
  %v4282 = vunpack.c.h.b16 %v4204
  %v4283 = vunpack.c.l.b16 %v4205
  %v4284 = vunpack.c.h.b16 %v4205
  %v4285 = vunpack.c.l.b16 %v4206
  %v4286 = vunpack.c.h.b16 %v4206
  %v4287 = vunpack.c.l.b16 %v4207
  %v4288 = vunpack.c.h.b16 %v4207
  %v4289 = vunpack.c.l.b16 %v4208
  %v4290 = vunpack.c.h.b16 %v4208
  %v4291 = vunpack.c.l.b16 %v4209
  %v4292 = vunpack.c.h.b16 %v4209
  %v4293 = vunpack.c.l.b16 %v4210
  %v4294 = vunpack.c.h.b16 %v4210
  %v4295 = vunpack.c.l.b16 %v4211
  %v4296 = vunpack.c.h.b16 %v4211
  %v4297 = vunpack.c.l.b16 %v4212
  %v4298 = vunpack.c.h.b16 %v4212
  %v4299 = vunpack.c.l.b16 %v4213
  %v4300 = vunpack.c.h.b16 %v4213
  %v4301 = vunpack.c.l.b16 %v4214
  %v4302 = vunpack.c.h.b16 %v4214
  %v4303 = vunpack.c.l.b16 %v4215
  %v4304 = vunpack.c.h.b16 %v4215
  %v4305 = vunpack.c.l.b16 %v4216
  %v4306 = vunpack.c.h.b16 %v4216
  %v4307 = vunpack.c.l.b16 %v4217
  %v4308 = vunpack.c.h.b16 %v4217
  %v4309 = vunpack.c.l.b16 %v4218
  %v4310 = vunpack.c.h.b16 %v4218
  %v4311 = vunpack.c.l.b16 %v4219
  %v4312 = vunpack.c.h.b16 %v4219
  %v4313 = vunpack.c.l.b16 %v4220
  %v4314 = vunpack.c.h.b16 %v4220
  %v4315 = vunpack.c.l.b16 %v4221
  %v4316 = vunpack.c.h.b16 %v4221
  %v4317 = vunpack.c.l.b16 %v4222
  %v4318 = vunpack.c.h.b16 %v4222
  %v4319 = vpack.c.b16 %v4259, %v4255
  %v4320 = vpack.c.b16 %v4260, %v4256
  %v4321 = vpack.c.b16 %v4261, %v4257
  %v4322 = vpack.c.b16 %v4262, %v4258
  %v4323 = vpack.c.b16 %v4267, %v4263
  %v4324 = vpack.c.b16 %v4268, %v4264
  %v4325 = vpack.c.b16 %v4269, %v4265
  %v4326 = vpack.c.b16 %v4270, %v4266
  %v4327 = vpack.c.b16 %v4275, %v4271
  %v4328 = vpack.c.b16 %v4276, %v4272
  %v4329 = vpack.c.b16 %v4277, %v4273
  %v4330 = vpack.c.b16 %v4278, %v4274
  %v4331 = vpack.c.b16 %v4283, %v4279
  %v4332 = vpack.c.b16 %v4284, %v4280
  %v4333 = vpack.c.b16 %v4285, %v4281
  %v4334 = vpack.c.b16 %v4286, %v4282
  %v4335 = vpack.c.b16 %v4291, %v4287
  %v4336 = vpack.c.b16 %v4292, %v4288
  %v4337 = vpack.c.b16 %v4293, %v4289
  %v4338 = vpack.c.b16 %v4294, %v4290
  %v4339 = vpack.c.b16 %v4299, %v4295
  %v4340 = vpack.c.b16 %v4300, %v4296
  %v4341 = vpack.c.b16 %v4301, %v4297
  %v4342 = vpack.c.b16 %v4302, %v4298
  %v4343 = vpack.c.b16 %v4307, %v4303
  %v4344 = vpack.c.b16 %v4308, %v4304
  %v4345 = vpack.c.b16 %v4309, %v4305
  %v4346 = vpack.c.b16 %v4310, %v4306
  %v4347 = vpack.c.b16 %v4315, %v4311
  %v4348 = vpack.c.b16 %v4316, %v4312
  %v4349 = vpack.c.b16 %v4317, %v4313
  %v4350 = vpack.c.b16 %v4318, %v4314
  %4383 = vmatprep.subr.bf16.mxu0 %v4348
  %4384 = vmatpush1.bf16.msra.mxu0 %v4347
  %4385 = vmatprep.subr.bf16.mxu0 %v4344
  %4386 = vmatpush1.bf16.msra.mxu0 %v4343
  %4387 = vmatprep.subr.bf16.mxu0 %v4340
  %4388 = vmatpush1.bf16.msra.mxu0 %v4339
  %4389 = vmatprep.subr.bf16.mxu0 %v4336
  %4390 = vmatpush1.bf16.msra.mxu0 %v4335
  %4391 = vmatprep.subr.bf16.mxu0 %v4332
  %4392 = vmatpush1.bf16.msra.mxu0 %v4331
  %4393 = vmatprep.subr.bf16.mxu0 %v4328
  %4394 = vmatpush1.bf16.msra.mxu0 %v4327
  %4395 = vmatprep.subr.bf16.mxu0 %v4324
  %4396 = vmatpush1.bf16.msra.mxu0 %v4323
  %4397 = vmatprep.subr.bf16.mxu0 %v4320
  %4398 = vmatpush1.bf16.msra.mxu0 %v4319
  %4399 = vmatprep.subr.bf16.mxu0 0
  %4400 = vmatpush2.bf16.msra.mxu0 0
  %4401 = vmatprep.subr.bf16.mxu0 0
  %4402 = vmatpush2.bf16.msra.mxu0 0
  %4403 = vmatprep.subr.bf16.mxu0 0
  %4404 = vmatpush2.bf16.msra.mxu0 0
  %4405 = vmatprep.subr.bf16.mxu0 0
  %4406 = vmatpush2.bf16.msra.mxu0 0
  %4407 = vmatprep.subr.bf16.mxu0 0
  %4408 = vmatpush2.bf16.msra.mxu0 0
  %4409 = vmatprep.subr.bf16.mxu0 0
  %4410 = vmatpush2.bf16.msra.mxu0 0
  %4411 = vmatprep.subr.bf16.mxu0 0
  %4412 = vmatpush2.bf16.msra.mxu0 0
  %4413 = vmatprep.subr.bf16.mxu0 0
  %4414 = vmatpush2.bf16.msra.mxu0 0
  %4415 = vmatprep.mubr.bf16.mxu0 0
  %4416 = vmatmul.mubr.bf16.gmra.mxu0 %v3983
  %v4417 = vpop.f32.mrf.mxu0
  %v4418 = vadd.f32 0.0, %v4417
  %v4419 = vpop.f32.mrf.mxu0
  %v4420 = vadd.f32 0.0, %v4419
  %v4421 = vpop.f32.mrf.mxu0
  %v4422 = vpop.f32.mrf.mxu0
  %4423 = vdwg.mxu0
  %4424 = vmatprep.subr.bf16.mxu0 %v4350
  %4425 = vmatpush1.bf16.msra.mxu0 %v4349
  %4426 = vmatprep.subr.bf16.mxu0 %v4346
  %4427 = vmatpush1.bf16.msra.mxu0 %v4345
  %4428 = vmatprep.subr.bf16.mxu0 %v4342
  %4429 = vmatpush1.bf16.msra.mxu0 %v4341
  %4430 = vmatprep.subr.bf16.mxu0 %v4338
  %4431 = vmatpush1.bf16.msra.mxu0 %v4337
  %4432 = vmatprep.subr.bf16.mxu0 %v4334
  %4433 = vmatpush1.bf16.msra.mxu0 %v4333
  %4434 = vmatprep.subr.bf16.mxu0 %v4330
  %4435 = vmatpush1.bf16.msra.mxu0 %v4329
  %4436 = vmatprep.subr.bf16.mxu0 %v4326
  %4437 = vmatpush1.bf16.msra.mxu0 %v4325
  %4438 = vmatprep.subr.bf16.mxu0 %v4322
  %4439 = vmatpush1.bf16.msra.mxu0 %v4321
  %4440 = vmatprep.subr.bf16.mxu0 0
  %4441 = vmatpush2.bf16.msra.mxu0 0
  %4442 = vmatprep.subr.bf16.mxu0 0
  %4443 = vmatpush2.bf16.msra.mxu0 0
  %4444 = vmatprep.subr.bf16.mxu0 0
  %4445 = vmatpush2.bf16.msra.mxu0 0
  %4446 = vmatprep.subr.bf16.mxu0 0
  %4447 = vmatpush2.bf16.msra.mxu0 0
  %4448 = vmatprep.subr.bf16.mxu0 0
  %4449 = vmatpush2.bf16.msra.mxu0 0
  %4450 = vmatprep.subr.bf16.mxu0 0
  %4451 = vmatpush2.bf16.msra.mxu0 0
  %4452 = vmatprep.subr.bf16.mxu0 0
  %4453 = vmatpush2.bf16.msra.mxu0 0
  %4454 = vmatprep.subr.bf16.mxu0 0
  %4455 = vmatpush2.bf16.msra.mxu0 0
  %4456 = vmatprep.mubr.bf16.mxu0 0
  %4457 = vmatmul.mubr.bf16.gmra.mxu0 %v3983
  %v4458 = vpop.f32.mrf.mxu0
  %v4459 = vadd.f32 0.0, %v4458
  %v4460 = vpop.f32.mrf.mxu0
  %v4461 = vadd.f32 0.0, %v4460
  %v4462 = vpop.f32.mrf.mxu0
  %v4463 = vpop.f32.mrf.mxu0
  %4464 = vdwg.mxu0
  %v4465 = vadd.f32 %v4187, %v4418
  %v4466 = vadd.f32 %v4188, %v4420
  %v4467 = vadd.f32 %v4189, %v4459
  %v4468 = vadd.f32 %v4190, %v4461
  %v4469 = vxor.u32 %v4465, 2147483648
  %v4470 = vmul.f32 %v4469, 1.442695
  %v4471 = vpow.pop %v4470
  %v4472 = vadd.f32 %v4471, 1.0
  %v4473 = vrcp.pop %v4472
  %v4474 = vmul.f32 1.0, %v4473
  %v4475 = vxor.u32 %v4466, 2147483648
  %v4476 = vmul.f32 %v4475, 1.442695
  %v4477 = vpow.pop %v4476
  %v4478 = vadd.f32 %v4477, 1.0
  %v4479 = vrcp.pop %v4478
  %v4480 = vmul.f32 1.0, %v4479
  %v4481 = vtanh.pop %v4467
  %v4482 = vxor.u32 %v4468, 2147483648
  %v4483 = vmul.f32 %v4482, 1.442695
  %v4484 = vpow.pop %v4483
  %v4485 = vadd.f32 %v4484, 1.0
  %v4486 = vrcp.pop %v4485
  %v4487 = vmul.f32 1.0, %v4486
  %v4488 = vmul.f32 %v4480, %v3980
  %v4489 = vmul.f32 %v4474, %v4481
  %v4490 = vadd.f32 %v4488, %v4489
  %v4491 = vtanh.pop %v4490
  %v4492 = vmul.f32 %v4487, %v4491
  %v4493 = vpack.c.bf16 %v4492, %v4492
  %v4494 = vld [vmem:[%s17] sm:$0xf]
  %v4495 = vld [vmem:[%s17 + $0x4] sm:$0xf]
  %v4496 = vld [vmem:[%s17 + $0x8] sm:$0xf]
  %v4497 = vld [vmem:[%s17 + $0xc] sm:$0xf]
  %v4498 = vld [vmem:[%s17 + $0x10] sm:$0xf]
  %v4499 = vld [vmem:[%s17 + $0x14] sm:$0xf]
  %v4500 = vld [vmem:[%s17 + $0x18] sm:$0xf]
  %v4501 = vld [vmem:[%s17 + $0x1c] sm:$0xf]
  %v4502 = vld [vmem:[%s17 + $0x20] sm:$0xf]
  %v4503 = vld [vmem:[%s17 + $0x24] sm:$0xf]
  %v4504 = vld [vmem:[%s17 + $0x28] sm:$0xf]
  %v4505 = vld [vmem:[%s17 + $0x2c] sm:$0xf]
  %v4506 = vld [vmem:[%s17 + $0x30] sm:$0xf]
  %v4507 = vld [vmem:[%s17 + $0x34] sm:$0xf]
  %v4508 = vld [vmem:[%s17 + $0x38] sm:$0xf]
  %v4509 = vld [vmem:[%s17 + $0x3c] sm:$0xf]
  %v4510 = vld [vmem:[%s18] sm:$0x1]
  %v4512 = vlaneseq
  %v4513 = vshrl.u32 %v4512, 7
  %v4514 = vsub.s32 0, %v4513
  %v4515 = vrot.slane %v4510, %v4514
  %v4533 = vunpack.c.l.b16 %v4494
  %v4534 = vunpack.c.l.b16 %v4495
  %v4535 = vunpack.c.l.b16 %v4496
  %v4536 = vunpack.c.l.b16 %v4497
  %v4537 = vunpack.c.l.b16 %v4498
  %v4538 = vunpack.c.l.b16 %v4499
  %v4539 = vunpack.c.l.b16 %v4500
  %v4540 = vunpack.c.l.b16 %v4501
  %v4541 = vunpack.c.l.b16 %v4502
  %v4542 = vunpack.c.l.b16 %v4503
  %v4543 = vunpack.c.l.b16 %v4504
  %v4544 = vunpack.c.l.b16 %v4505
  %v4545 = vunpack.c.l.b16 %v4506
  %v4546 = vunpack.c.l.b16 %v4507
  %v4547 = vunpack.c.l.b16 %v4508
  %v4548 = vunpack.c.l.b16 %v4509
  %v4549 = vpack.c.b16 %v4534, %v4533
  %v4550 = vpack.c.b16 %v4536, %v4535
  %v4551 = vpack.c.b16 %v4538, %v4537
  %v4552 = vpack.c.b16 %v4540, %v4539
  %v4553 = vpack.c.b16 %v4542, %v4541
  %v4554 = vpack.c.b16 %v4544, %v4543
  %v4555 = vpack.c.b16 %v4546, %v4545
  %v4556 = vpack.c.b16 %v4548, %v4547
  %4565 = vmatprep.subr.bf16.mxu0 0
  %4566 = vmatpush1.bf16.msra.mxu0 %v4556
  %4567 = vmatprep.subr.bf16.mxu0 0
  %4568 = vmatpush1.bf16.msra.mxu0 %v4555
  %4569 = vmatprep.subr.bf16.mxu0 0
  %4570 = vmatpush1.bf16.msra.mxu0 %v4554
  %4571 = vmatprep.subr.bf16.mxu0 0
  %4572 = vmatpush1.bf16.msra.mxu0 %v4553
  %4573 = vmatprep.subr.bf16.mxu0 0
  %4574 = vmatpush1.bf16.msra.mxu0 %v4552
  %4575 = vmatprep.subr.bf16.mxu0 0
  %4576 = vmatpush1.bf16.msra.mxu0 %v4551
  %4577 = vmatprep.subr.bf16.mxu0 0
  %4578 = vmatpush1.bf16.msra.mxu0 %v4550
  %4579 = vmatprep.subr.bf16.mxu0 0
  %4580 = vmatpush1.bf16.msra.mxu0 %v4549
  %4581 = vmatprep.subr.bf16.mxu0 0
  %4582 = vmatpush2.bf16.msra.mxu0 0
  %4583 = vmatprep.subr.bf16.mxu0 0
  %4584 = vmatpush2.bf16.msra.mxu0 0
  %4585 = vmatprep.subr.bf16.mxu0 0
  %4586 = vmatpush2.bf16.msra.mxu0 0
  %4587 = vmatprep.subr.bf16.mxu0 0
  %4588 = vmatpush2.bf16.msra.mxu0 0
  %4589 = vmatprep.subr.bf16.mxu0 0
  %4590 = vmatpush2.bf16.msra.mxu0 0
  %4591 = vmatprep.subr.bf16.mxu0 0
  %4592 = vmatpush2.bf16.msra.mxu0 0
  %4593 = vmatprep.subr.bf16.mxu0 0
  %4594 = vmatpush2.bf16.msra.mxu0 0
  %4595 = vmatprep.subr.bf16.mxu0 0
  %4596 = vmatpush2.bf16.msra.mxu0 0
  %4597 = vmatprep.mubr.bf16.mxu0 0
  %4598 = vmatmul.mubr.bf16.gmra.mxu0 %v4493
  %v4599 = vpop.f32.mrf.mxu0
  %v4600 = vadd.f32 %v4515, %v4599
  %v4601 = vpop.f32.mrf.mxu0
  %v4602 = vpop.f32.mrf.mxu0
  %v4603 = vpop.f32.mrf.mxu0
  %4604 = vdwg.mxu0
  %v4605 = vmax.f32 %v4600, 0.0
  %v4606 = vpack.c.bf16 %v4605, %v4605
  %v4607 = vld [vmem:[%s19] sm:$0xf]
  %v4608 = vld [vmem:[%s19 + $0x4] sm:$0xf]
  %v4609 = vld [vmem:[%s19 + $0x8] sm:$0xf]
  %v4610 = vld [vmem:[%s19 + $0xc] sm:$0xf]
  %v4611 = vld [vmem:[%s19 + $0x10] sm:$0xf]
  %v4612 = vld [vmem:[%s19 + $0x14] sm:$0xf]
  %v4613 = vld [vmem:[%s19 + $0x18] sm:$0xf]
  %v4614 = vld [vmem:[%s19 + $0x1c] sm:$0xf]
  %v4615 = vld [vmem:[%s20] sm:$0x1]
  %v4617 = vlaneseq
  %v4618 = vshrl.u32 %v4617, 7
  %v4619 = vsub.s32 0, %v4618
  %v4620 = vrot.slane %v4615, %v4619
  %v4630 = vunpack.c.l.b16 %v4607
  %v4631 = vunpack.c.l.b16 %v4608
  %v4632 = vunpack.c.l.b16 %v4609
  %v4633 = vunpack.c.l.b16 %v4610
  %v4634 = vunpack.c.l.b16 %v4611
  %v4635 = vunpack.c.l.b16 %v4612
  %v4636 = vunpack.c.l.b16 %v4613
  %v4637 = vunpack.c.l.b16 %v4614
  %v4638 = vpack.c.b16 %v4631, %v4630
  %v4639 = vpack.c.b16 %v4633, %v4632
  %v4640 = vpack.c.b16 %v4635, %v4634
  %v4641 = vpack.c.b16 %v4637, %v4636
  %v4647 = vsel %vm2096, %v4606, 0
  %4649 = vmatprep.subr.bf16.mxu0 0
  %4650 = vmatpush1.bf16.msra.mxu0 0
  %4651 = vmatprep.subr.bf16.mxu0 0
  %4652 = vmatpush1.bf16.msra.mxu0 0
  %4653 = vmatprep.subr.bf16.mxu0 0
  %4654 = vmatpush1.bf16.msra.mxu0 0
  %4655 = vmatprep.subr.bf16.mxu0 0
  %4656 = vmatpush1.bf16.msra.mxu0 0
  %4657 = vmatprep.subr.bf16.mxu0 0
  %4658 = vmatpush1.bf16.msra.mxu0 %v4641
  %4659 = vmatprep.subr.bf16.mxu0 0
  %4660 = vmatpush1.bf16.msra.mxu0 %v4640
  %4661 = vmatprep.subr.bf16.mxu0 0
  %4662 = vmatpush1.bf16.msra.mxu0 %v4639
  %4663 = vmatprep.subr.bf16.mxu0 0
  %4664 = vmatpush1.bf16.msra.mxu0 %v4638
  %4665 = vmatprep.subr.bf16.mxu0 0
  %4666 = vmatpush2.bf16.msra.mxu0 0
  %4667 = vmatprep.subr.bf16.mxu0 0
  %4668 = vmatpush2.bf16.msra.mxu0 0
  %4669 = vmatprep.subr.bf16.mxu0 0
  %4670 = vmatpush2.bf16.msra.mxu0 0
  %4671 = vmatprep.subr.bf16.mxu0 0
  %4672 = vmatpush2.bf16.msra.mxu0 0
  %4673 = vmatprep.subr.bf16.mxu0 0
  %4674 = vmatpush2.bf16.msra.mxu0 0
  %4675 = vmatprep.subr.bf16.mxu0 0
  %4676 = vmatpush2.bf16.msra.mxu0 0
  %4677 = vmatprep.subr.bf16.mxu0 0
  %4678 = vmatpush2.bf16.msra.mxu0 0
  %4679 = vmatprep.subr.bf16.mxu0 0
  %4680 = vmatpush2.bf16.msra.mxu0 0
  %4681 = vmatprep.mubr.bf16.mxu0 0
  %4682 = vmatmul.mubr.bf16.gmra.mxu0 %v4647
  %v4683 = vpop.f32.mrf.mxu0
  %v4684 = vadd.f32 %v4620, %v4683
  %v4685 = vpop.f32.mrf.mxu0
  %v4686 = vpop.f32.mrf.mxu0
  %v4687 = vpop.f32.mrf.mxu0
  %4688 = vdwg.mxu0
  %v4689 = vtanh.pop %v4684
  %v4690 = vmul.f32 %v4689, 3.1415927
  %v4691 = vsel %vm1632, %v4690, %v4684
  %s4692 = scalar_lea.vmem %s21, 40
  %4693 = vst [vmem:[%s4692] sm:$0xff] %v4691
  %s4694 = smul.u32 6, 4
  %s4695 = smul.addr %s4694, 8
  %s4696 = scalar_lea.vmem [#allocation2], %s4695
  %v4697 = vld [vmem:[%s4696] sm:$0xff]
  %v4698 = vld [vmem:[%s4696 + $0x8] sm:$0xff]
  %v4699 = vld [vmem:[%s4696 + $0x10] sm:$0xff]
  %v4700 = vld [vmem:[%s4696 + $0x18] sm:$0xff]
  %v4701 = vld [vmem:[%s16] sm:$0xff]
  %v4702 = vld [vmem:[%s16 + $0x8] sm:$0xff]
  %v4703 = vld [vmem:[%s16 + $0x10] sm:$0xff]
  %v4704 = vld [vmem:[%s16 + $0x18] sm:$0xff]
  %v4705 = vld [vmem:[%s16 + $0x20] sm:$0xff]
  %v4706 = vld [vmem:[%s16 + $0x28] sm:$0xff]
  %v4707 = vld [vmem:[%s16 + $0x30] sm:$0xff]
  %v4708 = vld [vmem:[%s16 + $0x38] sm:$0xff]
  %v4709 = vld [vmem:[%s16 + $0x40] sm:$0xff]
  %v4710 = vld [vmem:[%s16 + $0x48] sm:$0xff]
  %v4711 = vld [vmem:[%s16 + $0x50] sm:$0xff]
  %v4712 = vld [vmem:[%s16 + $0x58] sm:$0xff]
  %v4713 = vld [vmem:[%s16 + $0x60] sm:$0xff]
  %v4714 = vld [vmem:[%s16 + $0x68] sm:$0xff]
  %v4715 = vld [vmem:[%s16 + $0x70] sm:$0xff]
  %v4716 = vld [vmem:[%s16 + $0x78] sm:$0xff]
  %v4717 = vld [vmem:[%s16 + $0x80] sm:$0xff]
  %v4718 = vld [vmem:[%s16 + $0x88] sm:$0xff]
  %v4719 = vld [vmem:[%s16 + $0x90] sm:$0xff]
  %v4720 = vld [vmem:[%s16 + $0x98] sm:$0xff]
  %v4721 = vld [vmem:[%s16 + $0xa0] sm:$0xff]
  %v4722 = vld [vmem:[%s16 + $0xa8] sm:$0xff]
  %v4723 = vld [vmem:[%s16 + $0xb0] sm:$0xff]
  %v4724 = vld [vmem:[%s16 + $0xb8] sm:$0xff]
  %v4725 = vld [vmem:[%s16 + $0xc0] sm:$0xff]
  %v4726 = vld [vmem:[%s16 + $0xc8] sm:$0xff]
  %v4727 = vld [vmem:[%s16 + $0xd0] sm:$0xff]
  %v4728 = vld [vmem:[%s16 + $0xd8] sm:$0xff]
  %v4729 = vld [vmem:[%s16 + $0xe0] sm:$0xff]
  %v4730 = vld [vmem:[%s16 + $0xe8] sm:$0xff]
  %v4731 = vld [vmem:[%s16 + $0xf0] sm:$0xff]
  %v4732 = vld [vmem:[%s16 + $0xf8] sm:$0xff]
  %v4765 = vunpack.c.l.b16 %v4701
  %v4766 = vunpack.c.h.b16 %v4701
  %v4767 = vunpack.c.l.b16 %v4702
  %v4768 = vunpack.c.h.b16 %v4702
  %v4769 = vunpack.c.l.b16 %v4703
  %v4770 = vunpack.c.h.b16 %v4703
  %v4771 = vunpack.c.l.b16 %v4704
  %v4772 = vunpack.c.h.b16 %v4704
  %v4773 = vunpack.c.l.b16 %v4705
  %v4774 = vunpack.c.h.b16 %v4705
  %v4775 = vunpack.c.l.b16 %v4706
  %v4776 = vunpack.c.h.b16 %v4706
  %v4777 = vunpack.c.l.b16 %v4707
  %v4778 = vunpack.c.h.b16 %v4707
  %v4779 = vunpack.c.l.b16 %v4708
  %v4780 = vunpack.c.h.b16 %v4708
  %v4781 = vunpack.c.l.b16 %v4709
  %v4782 = vunpack.c.h.b16 %v4709
  %v4783 = vunpack.c.l.b16 %v4710
  %v4784 = vunpack.c.h.b16 %v4710
  %v4785 = vunpack.c.l.b16 %v4711
  %v4786 = vunpack.c.h.b16 %v4711
  %v4787 = vunpack.c.l.b16 %v4712
  %v4788 = vunpack.c.h.b16 %v4712
  %v4789 = vunpack.c.l.b16 %v4713
  %v4790 = vunpack.c.h.b16 %v4713
  %v4791 = vunpack.c.l.b16 %v4714
  %v4792 = vunpack.c.h.b16 %v4714
  %v4793 = vunpack.c.l.b16 %v4715
  %v4794 = vunpack.c.h.b16 %v4715
  %v4795 = vunpack.c.l.b16 %v4716
  %v4796 = vunpack.c.h.b16 %v4716
  %v4797 = vunpack.c.l.b16 %v4717
  %v4798 = vunpack.c.h.b16 %v4717
  %v4799 = vunpack.c.l.b16 %v4718
  %v4800 = vunpack.c.h.b16 %v4718
  %v4801 = vunpack.c.l.b16 %v4719
  %v4802 = vunpack.c.h.b16 %v4719
  %v4803 = vunpack.c.l.b16 %v4720
  %v4804 = vunpack.c.h.b16 %v4720
  %v4805 = vunpack.c.l.b16 %v4721
  %v4806 = vunpack.c.h.b16 %v4721
  %v4807 = vunpack.c.l.b16 %v4722
  %v4808 = vunpack.c.h.b16 %v4722
  %v4809 = vunpack.c.l.b16 %v4723
  %v4810 = vunpack.c.h.b16 %v4723
  %v4811 = vunpack.c.l.b16 %v4724
  %v4812 = vunpack.c.h.b16 %v4724
  %v4813 = vunpack.c.l.b16 %v4725
  %v4814 = vunpack.c.h.b16 %v4725
  %v4815 = vunpack.c.l.b16 %v4726
  %v4816 = vunpack.c.h.b16 %v4726
  %v4817 = vunpack.c.l.b16 %v4727
  %v4818 = vunpack.c.h.b16 %v4727
  %v4819 = vunpack.c.l.b16 %v4728
  %v4820 = vunpack.c.h.b16 %v4728
  %v4821 = vunpack.c.l.b16 %v4729
  %v4822 = vunpack.c.h.b16 %v4729
  %v4823 = vunpack.c.l.b16 %v4730
  %v4824 = vunpack.c.h.b16 %v4730
  %v4825 = vunpack.c.l.b16 %v4731
  %v4826 = vunpack.c.h.b16 %v4731
  %v4827 = vunpack.c.l.b16 %v4732
  %v4828 = vunpack.c.h.b16 %v4732
  %v4829 = vpack.c.b16 %v4769, %v4765
  %v4830 = vpack.c.b16 %v4770, %v4766
  %v4831 = vpack.c.b16 %v4771, %v4767
  %v4832 = vpack.c.b16 %v4772, %v4768
  %v4833 = vpack.c.b16 %v4777, %v4773
  %v4834 = vpack.c.b16 %v4778, %v4774
  %v4835 = vpack.c.b16 %v4779, %v4775
  %v4836 = vpack.c.b16 %v4780, %v4776
  %v4837 = vpack.c.b16 %v4785, %v4781
  %v4838 = vpack.c.b16 %v4786, %v4782
  %v4839 = vpack.c.b16 %v4787, %v4783
  %v4840 = vpack.c.b16 %v4788, %v4784
  %v4841 = vpack.c.b16 %v4793, %v4789
  %v4842 = vpack.c.b16 %v4794, %v4790
  %v4843 = vpack.c.b16 %v4795, %v4791
  %v4844 = vpack.c.b16 %v4796, %v4792
  %v4845 = vpack.c.b16 %v4801, %v4797
  %v4846 = vpack.c.b16 %v4802, %v4798
  %v4847 = vpack.c.b16 %v4803, %v4799
  %v4848 = vpack.c.b16 %v4804, %v4800
  %v4849 = vpack.c.b16 %v4809, %v4805
  %v4850 = vpack.c.b16 %v4810, %v4806
  %v4851 = vpack.c.b16 %v4811, %v4807
  %v4852 = vpack.c.b16 %v4812, %v4808
  %v4853 = vpack.c.b16 %v4817, %v4813
  %v4854 = vpack.c.b16 %v4818, %v4814
  %v4855 = vpack.c.b16 %v4819, %v4815
  %v4856 = vpack.c.b16 %v4820, %v4816
  %v4857 = vpack.c.b16 %v4825, %v4821
  %v4858 = vpack.c.b16 %v4826, %v4822
  %v4859 = vpack.c.b16 %v4827, %v4823
  %v4860 = vpack.c.b16 %v4828, %v4824
  %4893 = vmatprep.subr.bf16.mxu0 %v4858
  %4894 = vmatpush1.bf16.msra.mxu0 %v4857
  %4895 = vmatprep.subr.bf16.mxu0 %v4854
  %4896 = vmatpush1.bf16.msra.mxu0 %v4853
  %4897 = vmatprep.subr.bf16.mxu0 %v4850
  %4898 = vmatpush1.bf16.msra.mxu0 %v4849
  %4899 = vmatprep.subr.bf16.mxu0 %v4846
  %4900 = vmatpush1.bf16.msra.mxu0 %v4845
  %4901 = vmatprep.subr.bf16.mxu0 %v4842
  %4902 = vmatpush1.bf16.msra.mxu0 %v4841
  %4903 = vmatprep.subr.bf16.mxu0 %v4838
  %4904 = vmatpush1.bf16.msra.mxu0 %v4837
  %4905 = vmatprep.subr.bf16.mxu0 %v4834
  %4906 = vmatpush1.bf16.msra.mxu0 %v4833
  %4907 = vmatprep.subr.bf16.mxu0 %v4830
  %4908 = vmatpush1.bf16.msra.mxu0 %v4829
  %4909 = vmatprep.subr.bf16.mxu0 0
  %4910 = vmatpush2.bf16.msra.mxu0 0
  %4911 = vmatprep.subr.bf16.mxu0 0
  %4912 = vmatpush2.bf16.msra.mxu0 0
  %4913 = vmatprep.subr.bf16.mxu0 0
  %4914 = vmatpush2.bf16.msra.mxu0 0
  %4915 = vmatprep.subr.bf16.mxu0 0
  %4916 = vmatpush2.bf16.msra.mxu0 0
  %4917 = vmatprep.subr.bf16.mxu0 0
  %4918 = vmatpush2.bf16.msra.mxu0 0
  %4919 = vmatprep.subr.bf16.mxu0 0
  %4920 = vmatpush2.bf16.msra.mxu0 0
  %4921 = vmatprep.subr.bf16.mxu0 0
  %4922 = vmatpush2.bf16.msra.mxu0 0
  %4923 = vmatprep.subr.bf16.mxu0 0
  %4924 = vmatpush2.bf16.msra.mxu0 0
  %4925 = vmatprep.mubr.bf16.mxu0 0
  %4926 = vmatmul.mubr.bf16.gmra.mxu0 %v4493
  %v4927 = vpop.f32.mrf.mxu0
  %v4928 = vadd.f32 0.0, %v4927
  %v4929 = vpop.f32.mrf.mxu0
  %v4930 = vadd.f32 0.0, %v4929
  %v4931 = vpop.f32.mrf.mxu0
  %v4932 = vpop.f32.mrf.mxu0
  %4933 = vdwg.mxu0
  %4934 = vmatprep.subr.bf16.mxu0 %v4860
  %4935 = vmatpush1.bf16.msra.mxu0 %v4859
  %4936 = vmatprep.subr.bf16.mxu0 %v4856
  %4937 = vmatpush1.bf16.msra.mxu0 %v4855
  %4938 = vmatprep.subr.bf16.mxu0 %v4852
  %4939 = vmatpush1.bf16.msra.mxu0 %v4851
  %4940 = vmatprep.subr.bf16.mxu0 %v4848
  %4941 = vmatpush1.bf16.msra.mxu0 %v4847
  %4942 = vmatprep.subr.bf16.mxu0 %v4844
  %4943 = vmatpush1.bf16.msra.mxu0 %v4843
  %4944 = vmatprep.subr.bf16.mxu0 %v4840
  %4945 = vmatpush1.bf16.msra.mxu0 %v4839
  %4946 = vmatprep.subr.bf16.mxu0 %v4836
  %4947 = vmatpush1.bf16.msra.mxu0 %v4835
  %4948 = vmatprep.subr.bf16.mxu0 %v4832
  %4949 = vmatpush1.bf16.msra.mxu0 %v4831
  %4950 = vmatprep.subr.bf16.mxu0 0
  %4951 = vmatpush2.bf16.msra.mxu0 0
  %4952 = vmatprep.subr.bf16.mxu0 0
  %4953 = vmatpush2.bf16.msra.mxu0 0
  %4954 = vmatprep.subr.bf16.mxu0 0
  %4955 = vmatpush2.bf16.msra.mxu0 0
  %4956 = vmatprep.subr.bf16.mxu0 0
  %4957 = vmatpush2.bf16.msra.mxu0 0
  %4958 = vmatprep.subr.bf16.mxu0 0
  %4959 = vmatpush2.bf16.msra.mxu0 0
  %4960 = vmatprep.subr.bf16.mxu0 0
  %4961 = vmatpush2.bf16.msra.mxu0 0
  %4962 = vmatprep.subr.bf16.mxu0 0
  %4963 = vmatpush2.bf16.msra.mxu0 0
  %4964 = vmatprep.subr.bf16.mxu0 0
  %4965 = vmatpush2.bf16.msra.mxu0 0
  %4966 = vmatprep.mubr.bf16.mxu0 0
  %4967 = vmatmul.mubr.bf16.gmra.mxu0 %v4493
  %v4968 = vpop.f32.mrf.mxu0
  %v4969 = vadd.f32 0.0, %v4968
  %v4970 = vpop.f32.mrf.mxu0
  %v4971 = vadd.f32 0.0, %v4970
  %v4972 = vpop.f32.mrf.mxu0
  %v4973 = vpop.f32.mrf.mxu0
  %4974 = vdwg.mxu0
  %v4975 = vadd.f32 %v4697, %v4928
  %v4976 = vadd.f32 %v4698, %v4930
  %v4977 = vadd.f32 %v4699, %v4969
  %v4978 = vadd.f32 %v4700, %v4971
  %v4979 = vxor.u32 %v4975, 2147483648
  %v4980 = vmul.f32 %v4979, 1.442695
  %v4981 = vpow.pop %v4980
  %v4982 = vadd.f32 %v4981, 1.0
  %v4983 = vrcp.pop %v4982
  %v4984 = vmul.f32 1.0, %v4983
  %v4985 = vxor.u32 %v4976, 2147483648
  %v4986 = vmul.f32 %v4985, 1.442695
  %v4987 = vpow.pop %v4986
  %v4988 = vadd.f32 %v4987, 1.0
  %v4989 = vrcp.pop %v4988
  %v4990 = vmul.f32 1.0, %v4989
  %v4991 = vtanh.pop %v4977
  %v4992 = vxor.u32 %v4978, 2147483648
  %v4993 = vmul.f32 %v4992, 1.442695
  %v4994 = vpow.pop %v4993
  %v4995 = vadd.f32 %v4994, 1.0
  %v4996 = vrcp.pop %v4995
  %v4997 = vmul.f32 1.0, %v4996
  %v4998 = vmul.f32 %v4990, %v4490
  %v4999 = vmul.f32 %v4984, %v4991
  %v5000 = vadd.f32 %v4998, %v4999
  %v5001 = vtanh.pop %v5000
  %v5002 = vmul.f32 %v4997, %v5001
  %v5003 = vpack.c.bf16 %v5002, %v5002
  %v5004 = vld [vmem:[%s17] sm:$0xf]
  %v5005 = vld [vmem:[%s17 + $0x4] sm:$0xf]
  %v5006 = vld [vmem:[%s17 + $0x8] sm:$0xf]
  %v5007 = vld [vmem:[%s17 + $0xc] sm:$0xf]
  %v5008 = vld [vmem:[%s17 + $0x10] sm:$0xf]
  %v5009 = vld [vmem:[%s17 + $0x14] sm:$0xf]
  %v5010 = vld [vmem:[%s17 + $0x18] sm:$0xf]
  %v5011 = vld [vmem:[%s17 + $0x1c] sm:$0xf]
  %v5012 = vld [vmem:[%s17 + $0x20] sm:$0xf]
  %v5013 = vld [vmem:[%s17 + $0x24] sm:$0xf]
  %v5014 = vld [vmem:[%s17 + $0x28] sm:$0xf]
  %v5015 = vld [vmem:[%s17 + $0x2c] sm:$0xf]
  %v5016 = vld [vmem:[%s17 + $0x30] sm:$0xf]
  %v5017 = vld [vmem:[%s17 + $0x34] sm:$0xf]
  %v5018 = vld [vmem:[%s17 + $0x38] sm:$0xf]
  %v5019 = vld [vmem:[%s17 + $0x3c] sm:$0xf]
  %v5020 = vld [vmem:[%s18] sm:$0x1]
  %v5022 = vlaneseq
  %v5023 = vshrl.u32 %v5022, 7
  %v5024 = vsub.s32 0, %v5023
  %v5025 = vrot.slane %v5020, %v5024
  %v5043 = vunpack.c.l.b16 %v5004
  %v5044 = vunpack.c.l.b16 %v5005
  %v5045 = vunpack.c.l.b16 %v5006
  %v5046 = vunpack.c.l.b16 %v5007
  %v5047 = vunpack.c.l.b16 %v5008
  %v5048 = vunpack.c.l.b16 %v5009
  %v5049 = vunpack.c.l.b16 %v5010
  %v5050 = vunpack.c.l.b16 %v5011
  %v5051 = vunpack.c.l.b16 %v5012
  %v5052 = vunpack.c.l.b16 %v5013
  %v5053 = vunpack.c.l.b16 %v5014
  %v5054 = vunpack.c.l.b16 %v5015
  %v5055 = vunpack.c.l.b16 %v5016
  %v5056 = vunpack.c.l.b16 %v5017
  %v5057 = vunpack.c.l.b16 %v5018
  %v5058 = vunpack.c.l.b16 %v5019
  %v5059 = vpack.c.b16 %v5044, %v5043
  %v5060 = vpack.c.b16 %v5046, %v5045
  %v5061 = vpack.c.b16 %v5048, %v5047
  %v5062 = vpack.c.b16 %v5050, %v5049
  %v5063 = vpack.c.b16 %v5052, %v5051
  %v5064 = vpack.c.b16 %v5054, %v5053
  %v5065 = vpack.c.b16 %v5056, %v5055
  %v5066 = vpack.c.b16 %v5058, %v5057
  %5075 = vmatprep.subr.bf16.mxu0 0
  %5076 = vmatpush1.bf16.msra.mxu0 %v5066
  %5077 = vmatprep.subr.bf16.mxu0 0
  %5078 = vmatpush1.bf16.msra.mxu0 %v5065
  %5079 = vmatprep.subr.bf16.mxu0 0
  %5080 = vmatpush1.bf16.msra.mxu0 %v5064
  %5081 = vmatprep.subr.bf16.mxu0 0
  %5082 = vmatpush1.bf16.msra.mxu0 %v5063
  %5083 = vmatprep.subr.bf16.mxu0 0
  %5084 = vmatpush1.bf16.msra.mxu0 %v5062
  %5085 = vmatprep.subr.bf16.mxu0 0
  %5086 = vmatpush1.bf16.msra.mxu0 %v5061
  %5087 = vmatprep.subr.bf16.mxu0 0
  %5088 = vmatpush1.bf16.msra.mxu0 %v5060
  %5089 = vmatprep.subr.bf16.mxu0 0
  %5090 = vmatpush1.bf16.msra.mxu0 %v5059
  %5091 = vmatprep.subr.bf16.mxu0 0
  %5092 = vmatpush2.bf16.msra.mxu0 0
  %5093 = vmatprep.subr.bf16.mxu0 0
  %5094 = vmatpush2.bf16.msra.mxu0 0
  %5095 = vmatprep.subr.bf16.mxu0 0
  %5096 = vmatpush2.bf16.msra.mxu0 0
  %5097 = vmatprep.subr.bf16.mxu0 0
  %5098 = vmatpush2.bf16.msra.mxu0 0
  %5099 = vmatprep.subr.bf16.mxu0 0
  %5100 = vmatpush2.bf16.msra.mxu0 0
  %5101 = vmatprep.subr.bf16.mxu0 0
  %5102 = vmatpush2.bf16.msra.mxu0 0
  %5103 = vmatprep.subr.bf16.mxu0 0
  %5104 = vmatpush2.bf16.msra.mxu0 0
  %5105 = vmatprep.subr.bf16.mxu0 0
  %5106 = vmatpush2.bf16.msra.mxu0 0
  %5107 = vmatprep.mubr.bf16.mxu0 0
  %5108 = vmatmul.mubr.bf16.gmra.mxu0 %v5003
  %v5109 = vpop.f32.mrf.mxu0
  %v5110 = vadd.f32 %v5025, %v5109
  %v5111 = vpop.f32.mrf.mxu0
  %v5112 = vpop.f32.mrf.mxu0
  %v5113 = vpop.f32.mrf.mxu0
  %5114 = vdwg.mxu0
  %v5115 = vmax.f32 %v5110, 0.0
  %v5116 = vpack.c.bf16 %v5115, %v5115
  %v5117 = vld [vmem:[%s19] sm:$0xf]
  %v5118 = vld [vmem:[%s19 + $0x4] sm:$0xf]
  %v5119 = vld [vmem:[%s19 + $0x8] sm:$0xf]
  %v5120 = vld [vmem:[%s19 + $0xc] sm:$0xf]
  %v5121 = vld [vmem:[%s19 + $0x10] sm:$0xf]
  %v5122 = vld [vmem:[%s19 + $0x14] sm:$0xf]
  %v5123 = vld [vmem:[%s19 + $0x18] sm:$0xf]
  %v5124 = vld [vmem:[%s19 + $0x1c] sm:$0xf]
  %v5125 = vld [vmem:[%s20] sm:$0x1]
  %v5127 = vlaneseq
  %v5128 = vshrl.u32 %v5127, 7
  %v5129 = vsub.s32 0, %v5128
  %v5130 = vrot.slane %v5125, %v5129
  %v5140 = vunpack.c.l.b16 %v5117
  %v5141 = vunpack.c.l.b16 %v5118
  %v5142 = vunpack.c.l.b16 %v5119
  %v5143 = vunpack.c.l.b16 %v5120
  %v5144 = vunpack.c.l.b16 %v5121
  %v5145 = vunpack.c.l.b16 %v5122
  %v5146 = vunpack.c.l.b16 %v5123
  %v5147 = vunpack.c.l.b16 %v5124
  %v5148 = vpack.c.b16 %v5141, %v5140
  %v5149 = vpack.c.b16 %v5143, %v5142
  %v5150 = vpack.c.b16 %v5145, %v5144
  %v5151 = vpack.c.b16 %v5147, %v5146
  %v5157 = vsel %vm2096, %v5116, 0
  %5159 = vmatprep.subr.bf16.mxu0 0
  %5160 = vmatpush1.bf16.msra.mxu0 0
  %5161 = vmatprep.subr.bf16.mxu0 0
  %5162 = vmatpush1.bf16.msra.mxu0 0
  %5163 = vmatprep.subr.bf16.mxu0 0
  %5164 = vmatpush1.bf16.msra.mxu0 0
  %5165 = vmatprep.subr.bf16.mxu0 0
  %5166 = vmatpush1.bf16.msra.mxu0 0
  %5167 = vmatprep.subr.bf16.mxu0 0
  %5168 = vmatpush1.bf16.msra.mxu0 %v5151
  %5169 = vmatprep.subr.bf16.mxu0 0
  %5170 = vmatpush1.bf16.msra.mxu0 %v5150
  %5171 = vmatprep.subr.bf16.mxu0 0
  %5172 = vmatpush1.bf16.msra.mxu0 %v5149
  %5173 = vmatprep.subr.bf16.mxu0 0
  %5174 = vmatpush1.bf16.msra.mxu0 %v5148
  %5175 = vmatprep.subr.bf16.mxu0 0
  %5176 = vmatpush2.bf16.msra.mxu0 0
  %5177 = vmatprep.subr.bf16.mxu0 0
  %5178 = vmatpush2.bf16.msra.mxu0 0
  %5179 = vmatprep.subr.bf16.mxu0 0
  %5180 = vmatpush2.bf16.msra.mxu0 0
  %5181 = vmatprep.subr.bf16.mxu0 0
  %5182 = vmatpush2.bf16.msra.mxu0 0
  %5183 = vmatprep.subr.bf16.mxu0 0
  %5184 = vmatpush2.bf16.msra.mxu0 0
  %5185 = vmatprep.subr.bf16.mxu0 0
  %5186 = vmatpush2.bf16.msra.mxu0 0
  %5187 = vmatprep.subr.bf16.mxu0 0
  %5188 = vmatpush2.bf16.msra.mxu0 0
  %5189 = vmatprep.subr.bf16.mxu0 0
  %5190 = vmatpush2.bf16.msra.mxu0 0
  %5191 = vmatprep.mubr.bf16.mxu0 0
  %5192 = vmatmul.mubr.bf16.gmra.mxu0 %v5157
  %v5193 = vpop.f32.mrf.mxu0
  %v5194 = vadd.f32 %v5130, %v5193
  %v5195 = vpop.f32.mrf.mxu0
  %v5196 = vpop.f32.mrf.mxu0
  %v5197 = vpop.f32.mrf.mxu0
  %5198 = vdwg.mxu0
  %v5199 = vtanh.pop %v5194
  %v5200 = vmul.f32 %v5199, 3.1415927
  %v5201 = vsel %vm1632, %v5200, %v5194
  %s5202 = scalar_lea.vmem %s21, 48
  %5203 = vst [vmem:[%s5202] sm:$0xff] %v5201
  %s5204 = smul.u32 7, 4
  %s5205 = smul.addr %s5204, 8
  %s5206 = scalar_lea.vmem [#allocation2], %s5205
  %v5207 = vld [vmem:[%s5206] sm:$0xff]
  %v5208 = vld [vmem:[%s5206 + $0x8] sm:$0xff]
  %v5209 = vld [vmem:[%s5206 + $0x10] sm:$0xff]
  %v5210 = vld [vmem:[%s5206 + $0x18] sm:$0xff]
  %v5211 = vld [vmem:[%s16] sm:$0xff]
  %v5212 = vld [vmem:[%s16 + $0x8] sm:$0xff]
  %v5213 = vld [vmem:[%s16 + $0x10] sm:$0xff]
  %v5214 = vld [vmem:[%s16 + $0x18] sm:$0xff]
  %v5215 = vld [vmem:[%s16 + $0x20] sm:$0xff]
  %v5216 = vld [vmem:[%s16 + $0x28] sm:$0xff]
  %v5217 = vld [vmem:[%s16 + $0x30] sm:$0xff]
  %v5218 = vld [vmem:[%s16 + $0x38] sm:$0xff]
  %v5219 = vld [vmem:[%s16 + $0x40] sm:$0xff]
  %v5220 = vld [vmem:[%s16 + $0x48] sm:$0xff]
  %v5221 = vld [vmem:[%s16 + $0x50] sm:$0xff]
  %v5222 = vld [vmem:[%s16 + $0x58] sm:$0xff]
  %v5223 = vld [vmem:[%s16 + $0x60] sm:$0xff]
  %v5224 = vld [vmem:[%s16 + $0x68] sm:$0xff]
  %v5225 = vld [vmem:[%s16 + $0x70] sm:$0xff]
  %v5226 = vld [vmem:[%s16 + $0x78] sm:$0xff]
  %v5227 = vld [vmem:[%s16 + $0x80] sm:$0xff]
  %v5228 = vld [vmem:[%s16 + $0x88] sm:$0xff]
  %v5229 = vld [vmem:[%s16 + $0x90] sm:$0xff]
  %v5230 = vld [vmem:[%s16 + $0x98] sm:$0xff]
  %v5231 = vld [vmem:[%s16 + $0xa0] sm:$0xff]
  %v5232 = vld [vmem:[%s16 + $0xa8] sm:$0xff]
  %v5233 = vld [vmem:[%s16 + $0xb0] sm:$0xff]
  %v5234 = vld [vmem:[%s16 + $0xb8] sm:$0xff]
  %v5235 = vld [vmem:[%s16 + $0xc0] sm:$0xff]
  %v5236 = vld [vmem:[%s16 + $0xc8] sm:$0xff]
  %v5237 = vld [vmem:[%s16 + $0xd0] sm:$0xff]
  %v5238 = vld [vmem:[%s16 + $0xd8] sm:$0xff]
  %v5239 = vld [vmem:[%s16 + $0xe0] sm:$0xff]
  %v5240 = vld [vmem:[%s16 + $0xe8] sm:$0xff]
  %v5241 = vld [vmem:[%s16 + $0xf0] sm:$0xff]
  %v5242 = vld [vmem:[%s16 + $0xf8] sm:$0xff]
  %v5275 = vunpack.c.l.b16 %v5211
  %v5276 = vunpack.c.h.b16 %v5211
  %v5277 = vunpack.c.l.b16 %v5212
  %v5278 = vunpack.c.h.b16 %v5212
  %v5279 = vunpack.c.l.b16 %v5213
  %v5280 = vunpack.c.h.b16 %v5213
  %v5281 = vunpack.c.l.b16 %v5214
  %v5282 = vunpack.c.h.b16 %v5214
  %v5283 = vunpack.c.l.b16 %v5215
  %v5284 = vunpack.c.h.b16 %v5215
  %v5285 = vunpack.c.l.b16 %v5216
  %v5286 = vunpack.c.h.b16 %v5216
  %v5287 = vunpack.c.l.b16 %v5217
  %v5288 = vunpack.c.h.b16 %v5217
  %v5289 = vunpack.c.l.b16 %v5218
  %v5290 = vunpack.c.h.b16 %v5218
  %v5291 = vunpack.c.l.b16 %v5219
  %v5292 = vunpack.c.h.b16 %v5219
  %v5293 = vunpack.c.l.b16 %v5220
  %v5294 = vunpack.c.h.b16 %v5220
  %v5295 = vunpack.c.l.b16 %v5221
  %v5296 = vunpack.c.h.b16 %v5221
  %v5297 = vunpack.c.l.b16 %v5222
  %v5298 = vunpack.c.h.b16 %v5222
  %v5299 = vunpack.c.l.b16 %v5223
  %v5300 = vunpack.c.h.b16 %v5223
  %v5301 = vunpack.c.l.b16 %v5224
  %v5302 = vunpack.c.h.b16 %v5224
  %v5303 = vunpack.c.l.b16 %v5225
  %v5304 = vunpack.c.h.b16 %v5225
  %v5305 = vunpack.c.l.b16 %v5226
  %v5306 = vunpack.c.h.b16 %v5226
  %v5307 = vunpack.c.l.b16 %v5227
  %v5308 = vunpack.c.h.b16 %v5227
  %v5309 = vunpack.c.l.b16 %v5228
  %v5310 = vunpack.c.h.b16 %v5228
  %v5311 = vunpack.c.l.b16 %v5229
  %v5312 = vunpack.c.h.b16 %v5229
  %v5313 = vunpack.c.l.b16 %v5230
  %v5314 = vunpack.c.h.b16 %v5230
  %v5315 = vunpack.c.l.b16 %v5231
  %v5316 = vunpack.c.h.b16 %v5231
  %v5317 = vunpack.c.l.b16 %v5232
  %v5318 = vunpack.c.h.b16 %v5232
  %v5319 = vunpack.c.l.b16 %v5233
  %v5320 = vunpack.c.h.b16 %v5233
  %v5321 = vunpack.c.l.b16 %v5234
  %v5322 = vunpack.c.h.b16 %v5234
  %v5323 = vunpack.c.l.b16 %v5235
  %v5324 = vunpack.c.h.b16 %v5235
  %v5325 = vunpack.c.l.b16 %v5236
  %v5326 = vunpack.c.h.b16 %v5236
  %v5327 = vunpack.c.l.b16 %v5237
  %v5328 = vunpack.c.h.b16 %v5237
  %v5329 = vunpack.c.l.b16 %v5238
  %v5330 = vunpack.c.h.b16 %v5238
  %v5331 = vunpack.c.l.b16 %v5239
  %v5332 = vunpack.c.h.b16 %v5239
  %v5333 = vunpack.c.l.b16 %v5240
  %v5334 = vunpack.c.h.b16 %v5240
  %v5335 = vunpack.c.l.b16 %v5241
  %v5336 = vunpack.c.h.b16 %v5241
  %v5337 = vunpack.c.l.b16 %v5242
  %v5338 = vunpack.c.h.b16 %v5242
  %v5339 = vpack.c.b16 %v5279, %v5275
  %v5340 = vpack.c.b16 %v5280, %v5276
  %v5341 = vpack.c.b16 %v5281, %v5277
  %v5342 = vpack.c.b16 %v5282, %v5278
  %v5343 = vpack.c.b16 %v5287, %v5283
  %v5344 = vpack.c.b16 %v5288, %v5284
  %v5345 = vpack.c.b16 %v5289, %v5285
  %v5346 = vpack.c.b16 %v5290, %v5286
  %v5347 = vpack.c.b16 %v5295, %v5291
  %v5348 = vpack.c.b16 %v5296, %v5292
  %v5349 = vpack.c.b16 %v5297, %v5293
  %v5350 = vpack.c.b16 %v5298, %v5294
  %v5351 = vpack.c.b16 %v5303, %v5299
  %v5352 = vpack.c.b16 %v5304, %v5300
  %v5353 = vpack.c.b16 %v5305, %v5301
  %v5354 = vpack.c.b16 %v5306, %v5302
  %v5355 = vpack.c.b16 %v5311, %v5307
  %v5356 = vpack.c.b16 %v5312, %v5308
  %v5357 = vpack.c.b16 %v5313, %v5309
  %v5358 = vpack.c.b16 %v5314, %v5310
  %v5359 = vpack.c.b16 %v5319, %v5315
  %v5360 = vpack.c.b16 %v5320, %v5316
  %v5361 = vpack.c.b16 %v5321, %v5317
  %v5362 = vpack.c.b16 %v5322, %v5318
  %v5363 = vpack.c.b16 %v5327, %v5323
  %v5364 = vpack.c.b16 %v5328, %v5324
  %v5365 = vpack.c.b16 %v5329, %v5325
  %v5366 = vpack.c.b16 %v5330, %v5326
  %v5367 = vpack.c.b16 %v5335, %v5331
  %v5368 = vpack.c.b16 %v5336, %v5332
  %v5369 = vpack.c.b16 %v5337, %v5333
  %v5370 = vpack.c.b16 %v5338, %v5334
  %5403 = vmatprep.subr.bf16.mxu0 %v5368
  %5404 = vmatpush1.bf16.msra.mxu0 %v5367
  %5405 = vmatprep.subr.bf16.mxu0 %v5364
  %5406 = vmatpush1.bf16.msra.mxu0 %v5363
  %5407 = vmatprep.subr.bf16.mxu0 %v5360
  %5408 = vmatpush1.bf16.msra.mxu0 %v5359
  %5409 = vmatprep.subr.bf16.mxu0 %v5356
  %5410 = vmatpush1.bf16.msra.mxu0 %v5355
  %5411 = vmatprep.subr.bf16.mxu0 %v5352
  %5412 = vmatpush1.bf16.msra.mxu0 %v5351
  %5413 = vmatprep.subr.bf16.mxu0 %v5348
  %5414 = vmatpush1.bf16.msra.mxu0 %v5347
  %5415 = vmatprep.subr.bf16.mxu0 %v5344
  %5416 = vmatpush1.bf16.msra.mxu0 %v5343
  %5417 = vmatprep.subr.bf16.mxu0 %v5340
  %5418 = vmatpush1.bf16.msra.mxu0 %v5339
  %5419 = vmatprep.subr.bf16.mxu0 0
  %5420 = vmatpush2.bf16.msra.mxu0 0
  %5421 = vmatprep.subr.bf16.mxu0 0
  %5422 = vmatpush2.bf16.msra.mxu0 0
  %5423 = vmatprep.subr.bf16.mxu0 0
  %5424 = vmatpush2.bf16.msra.mxu0 0
  %5425 = vmatprep.subr.bf16.mxu0 0
  %5426 = vmatpush2.bf16.msra.mxu0 0
  %5427 = vmatprep.subr.bf16.mxu0 0
  %5428 = vmatpush2.bf16.msra.mxu0 0
  %5429 = vmatprep.subr.bf16.mxu0 0
  %5430 = vmatpush2.bf16.msra.mxu0 0
  %5431 = vmatprep.subr.bf16.mxu0 0
  %5432 = vmatpush2.bf16.msra.mxu0 0
  %5433 = vmatprep.subr.bf16.mxu0 0
  %5434 = vmatpush2.bf16.msra.mxu0 0
  %5435 = vmatprep.mubr.bf16.mxu0 0
  %5436 = vmatmul.mubr.bf16.gmra.mxu0 %v5003
  %v5437 = vpop.f32.mrf.mxu0
  %v5438 = vadd.f32 0.0, %v5437
  %v5439 = vpop.f32.mrf.mxu0
  %v5440 = vadd.f32 0.0, %v5439
  %v5441 = vpop.f32.mrf.mxu0
  %v5442 = vpop.f32.mrf.mxu0
  %5443 = vdwg.mxu0
  %5444 = vmatprep.subr.bf16.mxu0 %v5370
  %5445 = vmatpush1.bf16.msra.mxu0 %v5369
  %5446 = vmatprep.subr.bf16.mxu0 %v5366
  %5447 = vmatpush1.bf16.msra.mxu0 %v5365
  %5448 = vmatprep.subr.bf16.mxu0 %v5362
  %5449 = vmatpush1.bf16.msra.mxu0 %v5361
  %5450 = vmatprep.subr.bf16.mxu0 %v5358
  %5451 = vmatpush1.bf16.msra.mxu0 %v5357
  %5452 = vmatprep.subr.bf16.mxu0 %v5354
  %5453 = vmatpush1.bf16.msra.mxu0 %v5353
  %5454 = vmatprep.subr.bf16.mxu0 %v5350
  %5455 = vmatpush1.bf16.msra.mxu0 %v5349
  %5456 = vmatprep.subr.bf16.mxu0 %v5346
  %5457 = vmatpush1.bf16.msra.mxu0 %v5345
  %5458 = vmatprep.subr.bf16.mxu0 %v5342
  %5459 = vmatpush1.bf16.msra.mxu0 %v5341
  %5460 = vmatprep.subr.bf16.mxu0 0
  %5461 = vmatpush2.bf16.msra.mxu0 0
  %5462 = vmatprep.subr.bf16.mxu0 0
  %5463 = vmatpush2.bf16.msra.mxu0 0
  %5464 = vmatprep.subr.bf16.mxu0 0
  %5465 = vmatpush2.bf16.msra.mxu0 0
  %5466 = vmatprep.subr.bf16.mxu0 0
  %5467 = vmatpush2.bf16.msra.mxu0 0
  %5468 = vmatprep.subr.bf16.mxu0 0
  %5469 = vmatpush2.bf16.msra.mxu0 0
  %5470 = vmatprep.subr.bf16.mxu0 0
  %5471 = vmatpush2.bf16.msra.mxu0 0
  %5472 = vmatprep.subr.bf16.mxu0 0
  %5473 = vmatpush2.bf16.msra.mxu0 0
  %5474 = vmatprep.subr.bf16.mxu0 0
  %5475 = vmatpush2.bf16.msra.mxu0 0
  %5476 = vmatprep.mubr.bf16.mxu0 0
  %5477 = vmatmul.mubr.bf16.gmra.mxu0 %v5003
  %v5478 = vpop.f32.mrf.mxu0
  %v5479 = vadd.f32 0.0, %v5478
  %v5480 = vpop.f32.mrf.mxu0
  %v5481 = vadd.f32 0.0, %v5480
  %v5482 = vpop.f32.mrf.mxu0
  %v5483 = vpop.f32.mrf.mxu0
  %5484 = vdwg.mxu0
  %v5485 = vadd.f32 %v5207, %v5438
  %v5486 = vadd.f32 %v5208, %v5440
  %v5487 = vadd.f32 %v5209, %v5479
  %v5488 = vadd.f32 %v5210, %v5481
  %v5489 = vxor.u32 %v5485, 2147483648
  %v5490 = vmul.f32 %v5489, 1.442695
  %v5491 = vpow.pop %v5490
  %v5492 = vadd.f32 %v5491, 1.0
  %v5493 = vrcp.pop %v5492
  %v5494 = vmul.f32 1.0, %v5493
  %v5495 = vxor.u32 %v5486, 2147483648
  %v5496 = vmul.f32 %v5495, 1.442695
  %v5497 = vpow.pop %v5496
  %v5498 = vadd.f32 %v5497, 1.0
  %v5499 = vrcp.pop %v5498
  %v5500 = vmul.f32 1.0, %v5499
  %v5501 = vtanh.pop %v5487
  %v5502 = vxor.u32 %v5488, 2147483648
  %v5503 = vmul.f32 %v5502, 1.442695
  %v5504 = vpow.pop %v5503
  %v5505 = vadd.f32 %v5504, 1.0
  %v5506 = vrcp.pop %v5505
  %v5507 = vmul.f32 1.0, %v5506
  %v5508 = vmul.f32 %v5500, %v5000
  %v5509 = vmul.f32 %v5494, %v5501
  %v5510 = vadd.f32 %v5508, %v5509
  %v5511 = vtanh.pop %v5510
  %v5512 = vmul.f32 %v5507, %v5511
  %v5513 = vpack.c.bf16 %v5512, %v5512
  %v5514 = vld [vmem:[%s17] sm:$0xf]
  %v5515 = vld [vmem:[%s17 + $0x4] sm:$0xf]
  %v5516 = vld [vmem:[%s17 + $0x8] sm:$0xf]
  %v5517 = vld [vmem:[%s17 + $0xc] sm:$0xf]
  %v5518 = vld [vmem:[%s17 + $0x10] sm:$0xf]
  %v5519 = vld [vmem:[%s17 + $0x14] sm:$0xf]
  %v5520 = vld [vmem:[%s17 + $0x18] sm:$0xf]
  %v5521 = vld [vmem:[%s17 + $0x1c] sm:$0xf]
  %v5522 = vld [vmem:[%s17 + $0x20] sm:$0xf]
  %v5523 = vld [vmem:[%s17 + $0x24] sm:$0xf]
  %v5524 = vld [vmem:[%s17 + $0x28] sm:$0xf]
  %v5525 = vld [vmem:[%s17 + $0x2c] sm:$0xf]
  %v5526 = vld [vmem:[%s17 + $0x30] sm:$0xf]
  %v5527 = vld [vmem:[%s17 + $0x34] sm:$0xf]
  %v5528 = vld [vmem:[%s17 + $0x38] sm:$0xf]
  %v5529 = vld [vmem:[%s17 + $0x3c] sm:$0xf]
  %v5530 = vld [vmem:[%s18] sm:$0x1]
  %v5532 = vlaneseq
  %v5533 = vshrl.u32 %v5532, 7
  %v5534 = vsub.s32 0, %v5533
  %v5535 = vrot.slane %v5530, %v5534
  %v5553 = vunpack.c.l.b16 %v5514
  %v5554 = vunpack.c.l.b16 %v5515
  %v5555 = vunpack.c.l.b16 %v5516
  %v5556 = vunpack.c.l.b16 %v5517
  %v5557 = vunpack.c.l.b16 %v5518
  %v5558 = vunpack.c.l.b16 %v5519
  %v5559 = vunpack.c.l.b16 %v5520
  %v5560 = vunpack.c.l.b16 %v5521
  %v5561 = vunpack.c.l.b16 %v5522
  %v5562 = vunpack.c.l.b16 %v5523
  %v5563 = vunpack.c.l.b16 %v5524
  %v5564 = vunpack.c.l.b16 %v5525
  %v5565 = vunpack.c.l.b16 %v5526
  %v5566 = vunpack.c.l.b16 %v5527
  %v5567 = vunpack.c.l.b16 %v5528
  %v5568 = vunpack.c.l.b16 %v5529
  %v5569 = vpack.c.b16 %v5554, %v5553
  %v5570 = vpack.c.b16 %v5556, %v5555
  %v5571 = vpack.c.b16 %v5558, %v5557
  %v5572 = vpack.c.b16 %v5560, %v5559
  %v5573 = vpack.c.b16 %v5562, %v5561
  %v5574 = vpack.c.b16 %v5564, %v5563
  %v5575 = vpack.c.b16 %v5566, %v5565
  %v5576 = vpack.c.b16 %v5568, %v5567
  %5585 = vmatprep.subr.bf16.mxu0 0
  %5586 = vmatpush1.bf16.msra.mxu0 %v5576
  %5587 = vmatprep.subr.bf16.mxu0 0
  %5588 = vmatpush1.bf16.msra.mxu0 %v5575
  %5589 = vmatprep.subr.bf16.mxu0 0
  %5590 = vmatpush1.bf16.msra.mxu0 %v5574
  %5591 = vmatprep.subr.bf16.mxu0 0
  %5592 = vmatpush1.bf16.msra.mxu0 %v5573
  %5593 = vmatprep.subr.bf16.mxu0 0
  %5594 = vmatpush1.bf16.msra.mxu0 %v5572
  %5595 = vmatprep.subr.bf16.mxu0 0
  %5596 = vmatpush1.bf16.msra.mxu0 %v5571
  %5597 = vmatprep.subr.bf16.mxu0 0
  %5598 = vmatpush1.bf16.msra.mxu0 %v5570
  %5599 = vmatprep.subr.bf16.mxu0 0
  %5600 = vmatpush1.bf16.msra.mxu0 %v5569
  %5601 = vmatprep.subr.bf16.mxu0 0
  %5602 = vmatpush2.bf16.msra.mxu0 0
  %5603 = vmatprep.subr.bf16.mxu0 0
  %5604 = vmatpush2.bf16.msra.mxu0 0
  %5605 = vmatprep.subr.bf16.mxu0 0
  %5606 = vmatpush2.bf16.msra.mxu0 0
  %5607 = vmatprep.subr.bf16.mxu0 0
  %5608 = vmatpush2.bf16.msra.mxu0 0
  %5609 = vmatprep.subr.bf16.mxu0 0
  %5610 = vmatpush2.bf16.msra.mxu0 0
  %5611 = vmatprep.subr.bf16.mxu0 0
  %5612 = vmatpush2.bf16.msra.mxu0 0
  %5613 = vmatprep.subr.bf16.mxu0 0
  %5614 = vmatpush2.bf16.msra.mxu0 0
  %5615 = vmatprep.subr.bf16.mxu0 0
  %5616 = vmatpush2.bf16.msra.mxu0 0
  %5617 = vmatprep.mubr.bf16.mxu0 0
  %5618 = vmatmul.mubr.bf16.gmra.mxu0 %v5513
  %v5619 = vpop.f32.mrf.mxu0
  %v5620 = vadd.f32 %v5535, %v5619
  %v5621 = vpop.f32.mrf.mxu0
  %v5622 = vpop.f32.mrf.mxu0
  %v5623 = vpop.f32.mrf.mxu0
  %5624 = vdwg.mxu0
  %v5625 = vmax.f32 %v5620, 0.0
  %v5626 = vpack.c.bf16 %v5625, %v5625
  %v5627 = vld [vmem:[%s19] sm:$0xf]
  %v5628 = vld [vmem:[%s19 + $0x4] sm:$0xf]
  %v5629 = vld [vmem:[%s19 + $0x8] sm:$0xf]
  %v5630 = vld [vmem:[%s19 + $0xc] sm:$0xf]
  %v5631 = vld [vmem:[%s19 + $0x10] sm:$0xf]
  %v5632 = vld [vmem:[%s19 + $0x14] sm:$0xf]
  %v5633 = vld [vmem:[%s19 + $0x18] sm:$0xf]
  %v5634 = vld [vmem:[%s19 + $0x1c] sm:$0xf]
  %v5635 = vld [vmem:[%s20] sm:$0x1]
  %v5637 = vlaneseq
  %v5638 = vshrl.u32 %v5637, 7
  %v5639 = vsub.s32 0, %v5638
  %v5640 = vrot.slane %v5635, %v5639
  %v5650 = vunpack.c.l.b16 %v5627
  %v5651 = vunpack.c.l.b16 %v5628
  %v5652 = vunpack.c.l.b16 %v5629
  %v5653 = vunpack.c.l.b16 %v5630
  %v5654 = vunpack.c.l.b16 %v5631
  %v5655 = vunpack.c.l.b16 %v5632
  %v5656 = vunpack.c.l.b16 %v5633
  %v5657 = vunpack.c.l.b16 %v5634
  %v5658 = vpack.c.b16 %v5651, %v5650
  %v5659 = vpack.c.b16 %v5653, %v5652
  %v5660 = vpack.c.b16 %v5655, %v5654
  %v5661 = vpack.c.b16 %v5657, %v5656
  %v5667 = vsel %vm2096, %v5626, 0
  %5669 = vmatprep.subr.bf16.mxu0 0
  %5670 = vmatpush1.bf16.msra.mxu0 0
  %5671 = vmatprep.subr.bf16.mxu0 0
  %5672 = vmatpush1.bf16.msra.mxu0 0
  %5673 = vmatprep.subr.bf16.mxu0 0
  %5674 = vmatpush1.bf16.msra.mxu0 0
  %5675 = vmatprep.subr.bf16.mxu0 0
  %5676 = vmatpush1.bf16.msra.mxu0 0
  %5677 = vmatprep.subr.bf16.mxu0 0
  %5678 = vmatpush1.bf16.msra.mxu0 %v5661
  %5679 = vmatprep.subr.bf16.mxu0 0
  %5680 = vmatpush1.bf16.msra.mxu0 %v5660
  %5681 = vmatprep.subr.bf16.mxu0 0
  %5682 = vmatpush1.bf16.msra.mxu0 %v5659
  %5683 = vmatprep.subr.bf16.mxu0 0
  %5684 = vmatpush1.bf16.msra.mxu0 %v5658
  %5685 = vmatprep.subr.bf16.mxu0 0
  %5686 = vmatpush2.bf16.msra.mxu0 0
  %5687 = vmatprep.subr.bf16.mxu0 0
  %5688 = vmatpush2.bf16.msra.mxu0 0
  %5689 = vmatprep.subr.bf16.mxu0 0
  %5690 = vmatpush2.bf16.msra.mxu0 0
  %5691 = vmatprep.subr.bf16.mxu0 0
  %5692 = vmatpush2.bf16.msra.mxu0 0
  %5693 = vmatprep.subr.bf16.mxu0 0
  %5694 = vmatpush2.bf16.msra.mxu0 0
  %5695 = vmatprep.subr.bf16.mxu0 0
  %5696 = vmatpush2.bf16.msra.mxu0 0
  %5697 = vmatprep.subr.bf16.mxu0 0
  %5698 = vmatpush2.bf16.msra.mxu0 0
  %5699 = vmatprep.subr.bf16.mxu0 0
  %5700 = vmatpush2.bf16.msra.mxu0 0
  %5701 = vmatprep.mubr.bf16.mxu0 0
  %5702 = vmatmul.mubr.bf16.gmra.mxu0 %v5667
  %v5703 = vpop.f32.mrf.mxu0
  %v5704 = vadd.f32 %v5640, %v5703
  %v5705 = vpop.f32.mrf.mxu0
  %v5706 = vpop.f32.mrf.mxu0
  %v5707 = vpop.f32.mrf.mxu0
  %5708 = vdwg.mxu0
  %v5709 = vtanh.pop %v5704
  %v5710 = vmul.f32 %v5709, 3.1415927
  %v5711 = vsel %vm1632, %v5710, %v5704
  %s5712 = scalar_lea.vmem %s21, 56
  %5713 = vst [vmem:[%s5712] sm:$0xff] %v5711
  // Predicated region
  $region86: #{polnet_badgr_forward.3} parent=0 // pred_check
    _
  $region87: #{polnet_badgr_forward.3} parent=0 // pred_check_branch
    %5715 = sbr.rel (0) target = $region89
  $region88: #{polnet_badgr_forward.3} parent=0 // pred_region
    _
  $region89: #{polnet_badgr_forward.3} parent=0 // pred_fallthru
    _
  // Predicated region
  $region90: #{polnet_badgr_forward.3} parent=0 // pred_check
    _
  $region91: #{polnet_badgr_forward.3} parent=0 // pred_check_branch
    %5717 = sbr.rel (0) target = $region93
  $region92: #{polnet_badgr_forward.3} parent=0 // pred_region
    _
  $region93: #{polnet_badgr_forward.3} parent=0 // pred_fallthru
    _

</llo_original>
